<compile_context>
chip_gen: v7x
topology: tpu7x:2x2x1
jax: 0.10.0
libtpu: 0.0.40
codegen_flags: <defaults>
</compile_context>

<pallas_src>
import functools

import jax
import jax.numpy as jnp
from jax.experimental import pallas as pl
from jax.experimental.pallas import tpu as pltpu

LANE = 128


def _round_up(v, m):
    return (v + m - 1) // m * m


# ---------------------------------------------------------------------------
# Fully fused ConvBase_NN kernel — one grid step per batch element.
# ---------------------------------------------------------------------------
def _convbase_kernel(x_ref, w1_ref, b1_ref, w2_ref, b2_ref, w3_ref, b3_ref,
                     wl_ref, bl_ref, o_ref, *, K, N):
    HI = jax.lax.Precision.HIGHEST
    big = jnp.float32(1e30)
    Cp = w1_ref.shape[0]

    # Fold NCW -> NWC + lane padding of the single-channel input in-kernel:
    # x_ref[0] is (N, 1); place it into lane 0 of a zero (N, Cp) slab.
    lane = jax.lax.broadcasted_iota(jnp.int32, (N, Cp), 1)
    x0 = jnp.where(lane == 0, x_ref[0], 0.0)                       # (N, Cp) f32

    rows = jax.lax.broadcasted_iota(jnp.int32, (N, N), 0)
    cols = jax.lax.broadcasted_iota(jnp.int32, (N, N), 1)
    colf = cols.astype(jnp.float32)

    def layer(h, w_ref, b_ref):
        Co = b_ref.shape[-1]
        w = w_ref[...]
        # Row-relative sq-distance d[i,j] = ||h_j||^2 - 2 h_i.h_j (order-equivalent).
        g = jax.lax.dot_general(h, h, (((1,), (1,)), ((), ())),
                                precision=HI, preferred_element_type=jnp.float32)
        n2 = jnp.sum(jnp.where(rows == cols, g, 0.0), axis=0, keepdims=True)  # (1,N)
        d = n2 - 2.0 * g
        # Hoisted tap contraction: one wide (N,Cp)x(Cp,K*Co) matmul, sliced per tap.
        prec = HI if w.dtype == jnp.float32 else None
        xw = jnp.dot(h.astype(w.dtype), w, precision=prec,
                     preferred_element_type=jnp.float32)           # (N, K*Co)
        acc = jnp.zeros((N, Co), jnp.float32)
        for k in range(K):                       # K tiny & static -> unrolled
            m = jnp.min(d, axis=-1, keepdims=True)
            sel = jnp.min(jnp.where(d <= m, colf, big), axis=-1, keepdims=True)
            sel_mask = colf == sel               # one-hot per query (ties -> lowest idx)
            acc = acc + jnp.dot(sel_mask.astype(jnp.float32),
                                xw[:, k * Co:(k + 1) * Co],
                                precision=HI, preferred_element_type=jnp.float32)
            d = jnp.where(sel_mask, big, d)      # exclude chosen neighbor
        return jnp.maximum(acc + b_ref[...], 0.0)                  # bias + ReLU (f32)

    h = layer(x0, w1_ref, b1_ref)
    h = layer(h, w2_ref, b2_ref)
    h = layer(h, w3_ref, b3_ref)

    # Fused Linear epilogue.  Torch's channel-major Flatten is folded into wl, which
    # is laid out (N, Cp, Op) so the contraction is N unrolled (1,Cp)x(Cp,Op) matmuls
    # with no in-kernel reshape/relayout of the (N, Cp) activation slab.
    y = bl_ref[...]                                                # (1, Op) f32
    hm = h.astype(wl_ref.dtype)
    for n in range(N):                           # N tiny & static -> unrolled
        y = y + jnp.dot(hm[n:n + 1, :], wl_ref[n],
                        preferred_element_type=jnp.float32)
    o_ref[0] = y.astype(o_ref.dtype)


def convbase_nn_forward(x_ncw, p, *, K, output_size):
    B, Cin, N = x_ncw.shape
    assert Cin == 1, "ConvBase_NN's first conv has a single input channel"
    Cp = p["w1"].shape[0]
    Op = p["bl"].shape[-1]
    x_r = x_ncw.reshape(B, N, 1).astype(jnp.float32)   # NCW with C=1: free reshape

    def wspec2(shape):
        return pl.BlockSpec(shape, lambda b: (0, 0))

    out = pl.pallas_call(
        functools.partial(_convbase_kernel, K=K, N=N),
        out_shape=jax.ShapeDtypeStruct((B, 1, Op), jnp.float32),
        grid=(B,),
        in_specs=[
            pl.BlockSpec((1, N, 1), lambda b: (b, 0, 0)),
            wspec2(p["w1"].shape), wspec2(p["b1"].shape),
            wspec2(p["w2"].shape), wspec2(p["b2"].shape),
            wspec2(p["w3"].shape), wspec2(p["b3"].shape),
            pl.BlockSpec(p["wl"].shape, lambda b: (0, 0, 0)),
            wspec2(p["bl"].shape),
        ],
        out_specs=pl.BlockSpec((1, 1, Op), lambda b: (b, 0, 0)),
        compiler_params=pltpu.CompilerParams(dimension_semantics=("parallel",)),
    )(x_r, p["w1"], p["b1"], p["w2"], p["b2"], p["w3"], p["b3"], p["wl"], p["bl"])
    return out.reshape(B, Op)[:, :output_size]


# ---------------------------------------------------------------------------
# One-time weight re-layout (torch layouts -> kernel layouts, lane padding).
# ---------------------------------------------------------------------------
def prepare_params(params, *, K, N, channels, output_size):
    Cp = _round_up(channels, LANE)
    Op = _round_up(output_size, LANE)

    def prep_conv(W, b, dtype):
        Cout, Cin, Kk = W.shape
        wk = jnp.transpose(W, (2, 1, 0)).astype(jnp.float32)        # (K, Cin, Cout)
        wk = jnp.pad(wk, ((0, 0), (0, Cp - Cin), (0, Cp - Cout)))   # (K, Cp, Cp)
        # pack taps along lanes: w_all[cin, k*Cp + cout] = W[cout, cin, k]
        w_all = jnp.transpose(wk, (1, 0, 2)).reshape(Cp, Kk * Cp)
        bp = jnp.pad(b.astype(jnp.float32), (0, Cp - Cout)).reshape(1, Cp)
        return w_all.astype(dtype), bp

    # Layer-1/2 taps stay f32 (their outputs feed the next layer's neighbor
    # selection; bf16 there risks tie flips vs the reference).  Layer-3 / Linear
    # weights only feed the output -> bf16 (MXU native).
    w1, b1 = prep_conv(params["conv1_w"], params["conv1_b"], jnp.float32)
    w2, b2 = prep_conv(params["conv2_w"], params["conv2_b"], jnp.float32)
    w3, b3 = prep_conv(params["conv3_w"], params["conv3_b"], jnp.bfloat16)

    # torch Flatten on (B, C, N) is channel-major (c*N + n); fold that permutation,
    # the channel padding and the output padding into the Linear weight, laid out as
    # (N, Cp, Op) so the kernel contracts row-by-row without any reshape.
    wl = params["linear_w"].astype(jnp.float32).reshape(output_size, channels, N)
    wl = jnp.transpose(wl, (2, 1, 0))                               # (N, C, O)
    wl = jnp.pad(wl, ((0, 0), (0, Cp - channels), (0, Op - output_size)))
    bl = jnp.pad(params["linear_b"].astype(jnp.float32),
                 (0, Op - output_size)).reshape(1, Op)
    return dict(w1=w1, b1=b1, w2=w2, b2=b2, w3=w3, b3=b3,
                wl=wl.astype(jnp.bfloat16), bl=bl)


# ---------------------------------------------------------------------------
# Pure-JAX reference (same neighbor-selection semantics) for validation.
# ---------------------------------------------------------------------------
def reference_forward(x_ncw, params, K):
    P = jax.lax.Precision.HIGHEST

    def layer(xt, W, b):
        g = jnp.einsum("bic,bjc->bij", xt, xt, precision=P)
        n2 = jnp.einsum("bii->bi", g)                     # ||x_j||^2 from the Gram diag
        d = n2[:, None, :] - 2.0 * g                      # same relative-distance form
        _, idx = jax.lax.top_k(-d, K)                     # (B, N, K), ascending distance
        neigh = jax.vmap(lambda xb, ib: xb[ib])(xt, idx)  # (B, N, K, C)
        y = jnp.einsum("bnkc,ock->bno", neigh, W, precision=P) + b[None, None, :]
        return jax.nn.relu(y)

    xt = jnp.transpose(x_ncw, (0, 2, 1))
    h = layer(xt, params["conv1_w"], params["conv1_b"])
    h = layer(h, params["conv2_w"], params["conv2_b"])
    h = layer(h, params["conv3_w"], params["conv3_b"])
    flat = jnp.transpose(h, (0, 2, 1)).reshape(h.shape[0], -1)   # channel-major Flatten
    return jnp.dot(flat, params["linear_w"].T, precision=P) + params["linear_b"]


if __name__ == "__main__":
    B, N, channels, K, output_size = 2, 8, 4, 3, 10
    linear_in = channels * N                                     # 32

    key = jax.random.PRNGKey(0)
    ks = jax.random.split(key, 9)
    params = {
        "conv1_w": 0.2 * jax.random.normal(ks[0], (channels, 1, K), jnp.float32),
        "conv1_b": 0.1 * jax.random.normal(ks[1], (channels,), jnp.float32),
        "conv2_w": 0.2 * jax.random.normal(ks[2], (channels, channels, K), jnp.float32),
        "conv2_b": 0.1 * jax.random.normal(ks[3], (channels,), jnp.float32),
        "conv3_w": 0.2 * jax.random.normal(ks[4], (channels, channels, K), jnp.float32),
        "conv3_b": 0.1 * jax.random.normal(ks[5], (channels,), jnp.float32),
        "linear_w": 0.2 * jax.random.normal(ks[6], (output_size, linear_in), jnp.float32),
        "linear_b": 0.1 * jax.random.normal(ks[7], (output_size,), jnp.float32),
    }
    x = jax.random.normal(ks[8], (B, 1, N), jnp.float32)          # NCW, 1 input channel

    prep = prepare_params(params, K=K, N=N, channels=channels, output_size=output_size)
    fwd = jax.jit(functools.partial(convbase_nn_forward, K=K, output_size=output_size))

    out = jax.block_until_ready(fwd(x, prep))
    assert out.shape == (B, output_size), out.shape
    assert bool(jnp.all(jnp.isfinite(out)))

    ref = reference_forward(x, params, K)
    assert jnp.allclose(out, ref, atol=2e-2, rtol=2e-2), float(jnp.max(jnp.abs(out - ref)))

    print("KERNEL_OK")
</pallas_src>

<mosaic_0001>
module attributes {stable_mosaic.version = 11 : i64} {
  func.func @_convbase_kernel(%arg0: i32, %arg1: memref<1x8x1xf32, #tpu.memory_space<vmem>>, %arg2: memref<128x384xf32, #tpu.memory_space<vmem>>, %arg3: memref<1x128xf32, #tpu.memory_space<vmem>>, %arg4: memref<128x384xf32, #tpu.memory_space<vmem>>, %arg5: memref<1x128xf32, #tpu.memory_space<vmem>>, %arg6: memref<128x384xbf16, #tpu.memory_space<vmem>>, %arg7: memref<1x128xf32, #tpu.memory_space<vmem>>, %arg8: memref<8x128x128xbf16, #tpu.memory_space<vmem>>, %arg9: memref<1x128xf32, #tpu.memory_space<vmem>>, %arg10: memref<1x1x128xf32, #tpu.memory_space<vmem>>) attributes {dimension_semantics = [#tpu.dimension_semantics<parallel>], iteration_bounds = array<i64: 2>, scalar_prefetch = 0 : i64, scratch_operands = 0 : i64, tpu.core_type = #tpu.core_type<tc>, window_params = [{transform_indices = @transform_0, window_bounds = array<i64: 1, 8, 1>}, {pipeline_mode = #tpu.pipeline_mode<synchronous>, transform_indices = @transform_1, window_bounds = array<i64: 128, 384>}, {pipeline_mode = #tpu.pipeline_mode<synchronous>, transform_indices = @transform_2, window_bounds = array<i64: 1, 128>}, {pipeline_mode = #tpu.pipeline_mode<synchronous>, transform_indices = @transform_3, window_bounds = array<i64: 128, 384>}, {pipeline_mode = #tpu.pipeline_mode<synchronous>, transform_indices = @transform_4, window_bounds = array<i64: 1, 128>}, {pipeline_mode = #tpu.pipeline_mode<synchronous>, transform_indices = @transform_5, window_bounds = array<i64: 128, 384>}, {pipeline_mode = #tpu.pipeline_mode<synchronous>, transform_indices = @transform_6, window_bounds = array<i64: 1, 128>}, {pipeline_mode = #tpu.pipeline_mode<synchronous>, transform_indices = @transform_7, window_bounds = array<i64: 8, 128, 128>}, {pipeline_mode = #tpu.pipeline_mode<synchronous>, transform_indices = @transform_8, window_bounds = array<i64: 1, 128>}, {transform_indices = @transform_9, window_bounds = array<i64: 1, 1, 128>}]} {
    %0 = tpu.iota {dimensions = array<i32: 1>} : vector<8x128xi32>
    %c0_i32 = arith.constant 0 : i32
    %1 = vector.broadcast %c0_i32 : i32 to vector<8x128xi32>
    %2 = arith.cmpi eq, %0, %1 : vector<8x128xi32>
    %c0 = arith.constant 0 : index
    %c0_0 = arith.constant 0 : index
    %c0_1 = arith.constant 0 : index
    %3 = vector.load %arg1[%c0, %c0_0, %c0_1] : memref<1x8x1xf32, #tpu.memory_space<vmem>>, vector<1x8x1xf32>
    %4 = vector.shape_cast %3 : vector<1x8x1xf32> to vector<8x1xf32>
    %cst = arith.constant 0.000000e+00 : f32
    %5 = vector.shape_cast %4 : vector<8x1xf32> to vector<8x1xf32>
    %6 = vector.broadcast %5 : vector<8x1xf32> to vector<8x128xf32>
    %7 = vector.broadcast %cst : f32 to vector<8x128xf32>
    %8 = arith.select %2, %6, %7 : vector<8x128xi1>, vector<8x128xf32>
    %9 = tpu.iota {dimensions = array<i32: 0>} : vector<8x8xi32>
    %10 = tpu.iota {dimensions = array<i32: 1>} : vector<8x8xi32>
    %11 = arith.sitofp %10 : vector<8x8xi32> to vector<8x8xf32>
    %c0_2 = arith.constant 0 : index
    %c0_3 = arith.constant 0 : index
    %12 = vector.load %arg2[%c0_2, %c0_3] : memref<128x384xf32, #tpu.memory_space<vmem>>, vector<128x384xf32>
    %cst_4 = arith.constant dense<0.000000e+00> : vector<8x8xf32>
    %13 = tpu.matmul %8, %8, %cst_4 {dimension_numbers = #tpu.dot_dimension_numbers<[1], [1], [0], [0], [0, 0, 1, 0], [], []>, precision = #tpu.contract_precision<fp32>} : vector<8x128xf32>, vector<8x128xf32>, vector<8x8xf32> -> vector<8x8xf32>
    %14 = arith.cmpi eq, %9, %10 : vector<8x8xi32>
    %cst_5 = arith.constant 0.000000e+00 : f32
    %15 = vector.broadcast %cst_5 : f32 to vector<8x8xf32>
    %16 = arith.select %14, %13, %15 : vector<8x8xi1>, vector<8x8xf32>
    %cst_6 = arith.constant dense<0.000000e+00> : vector<8xf32>
    %17 = vector.multi_reduction <add>, %16, %cst_6 [0] : vector<8x8xf32> to vector<8xf32>
    %18 = vector.shape_cast %17 : vector<8xf32> to vector<1x8xf32>
    %cst_7 = arith.constant 2.000000e+00 : f32
    %19 = vector.broadcast %cst_7 : f32 to vector<8x8xf32>
    %20 = arith.mulf %19, %13 : vector<8x8xf32>
    %21 = vector.broadcast %18 : vector<1x8xf32> to vector<8x8xf32>
    %22 = arith.subf %21, %20 : vector<8x8xf32>
    %cst_8 = arith.constant dense<0.000000e+00> : vector<8x384xf32>
    %23 = tpu.matmul %8, %12, %cst_8 {dimension_numbers = #tpu.dot_dimension_numbers<[1], [0], [0], [1], [0, 0, 1, 1], [], []>, precision = #tpu.contract_precision<fp32>} : vector<8x128xf32>, vector<128x384xf32>, vector<8x384xf32> -> vector<8x384xf32>
    %cst_9 = arith.constant 0.000000e+00 : f32
    %24 = vector.broadcast %cst_9 : f32 to vector<8x128xf32>
    %cst_10 = arith.constant dense<0x7F800000> : vector<8xf32>
    %25 = vector.multi_reduction <minimumf>, %22, %cst_10 [1] : vector<8x8xf32> to vector<8xf32>
    %26 = vector.shape_cast %25 : vector<8xf32> to vector<8x1xf32>
    %27 = vector.broadcast %26 : vector<8x1xf32> to vector<8x8xf32>
    %28 = arith.cmpf ole, %22, %27 : vector<8x8xf32>
    %cst_11 = arith.constant 1.000000e+30 : f32
    %29 = vector.broadcast %cst_11 : f32 to vector<8x8xf32>
    %30 = arith.select %28, %11, %29 : vector<8x8xi1>, vector<8x8xf32>
    %cst_12 = arith.constant dense<0x7F800000> : vector<8xf32>
    %31 = vector.multi_reduction <minimumf>, %30, %cst_12 [1] : vector<8x8xf32> to vector<8xf32>
    %32 = vector.shape_cast %31 : vector<8xf32> to vector<8x1xf32>
    %33 = vector.broadcast %32 : vector<8x1xf32> to vector<8x8xf32>
    %34 = arith.cmpf oeq, %11, %33 : vector<8x8xf32>
    %35 = arith.extui %34 : vector<8x8xi1> to vector<8x8xi32>
    %36 = arith.sitofp %35 : vector<8x8xi32> to vector<8x8xf32>
    %37 = vector.extract_strided_slice %23 {offsets = [0, 0], sizes = [8, 128], strides = [1, 1]} : vector<8x384xf32> to vector<8x128xf32>
    %cst_13 = arith.constant dense<0.000000e+00> : vector<8x128xf32>
    %38 = tpu.matmul %36, %37, %cst_13 {dimension_numbers = #tpu.dot_dimension_numbers<[1], [0], [0], [1], [0, 0, 1, 1], [], []>, precision = #tpu.contract_precision<fp32>} : vector<8x8xf32>, vector<8x128xf32>, vector<8x128xf32> -> vector<8x128xf32>
    %39 = arith.addf %24, %38 : vector<8x128xf32>
    %cst_14 = arith.constant 1.000000e+30 : f32
    %40 = vector.broadcast %cst_14 : f32 to vector<8x8xf32>
    %41 = arith.select %34, %40, %22 : vector<8x8xi1>, vector<8x8xf32>
    %cst_15 = arith.constant dense<0x7F800000> : vector<8xf32>
    %42 = vector.multi_reduction <minimumf>, %41, %cst_15 [1] : vector<8x8xf32> to vector<8xf32>
    %43 = vector.shape_cast %42 : vector<8xf32> to vector<8x1xf32>
    %44 = vector.broadcast %43 : vector<8x1xf32> to vector<8x8xf32>
    %45 = arith.cmpf ole, %41, %44 : vector<8x8xf32>
    %cst_16 = arith.constant 1.000000e+30 : f32
    %46 = vector.broadcast %cst_16 : f32 to vector<8x8xf32>
    %47 = arith.select %45, %11, %46 : vector<8x8xi1>, vector<8x8xf32>
    %cst_17 = arith.constant dense<0x7F800000> : vector<8xf32>
    %48 = vector.multi_reduction <minimumf>, %47, %cst_17 [1] : vector<8x8xf32> to vector<8xf32>
    %49 = vector.shape_cast %48 : vector<8xf32> to vector<8x1xf32>
    %50 = vector.broadcast %49 : vector<8x1xf32> to vector<8x8xf32>
    %51 = arith.cmpf oeq, %11, %50 : vector<8x8xf32>
    %52 = arith.extui %51 : vector<8x8xi1> to vector<8x8xi32>
    %53 = arith.sitofp %52 : vector<8x8xi32> to vector<8x8xf32>
    %54 = vector.extract_strided_slice %23 {offsets = [0, 128], sizes = [8, 128], strides = [1, 1]} : vector<8x384xf32> to vector<8x128xf32>
    %cst_18 = arith.constant dense<0.000000e+00> : vector<8x128xf32>
    %55 = tpu.matmul %53, %54, %cst_18 {dimension_numbers = #tpu.dot_dimension_numbers<[1], [0], [0], [1], [0, 0, 1, 1], [], []>, precision = #tpu.contract_precision<fp32>} : vector<8x8xf32>, vector<8x128xf32>, vector<8x128xf32> -> vector<8x128xf32>
    %56 = arith.addf %39, %55 : vector<8x128xf32>
    %cst_19 = arith.constant 1.000000e+30 : f32
    %57 = vector.broadcast %cst_19 : f32 to vector<8x8xf32>
    %58 = arith.select %51, %57, %41 : vector<8x8xi1>, vector<8x8xf32>
    %cst_20 = arith.constant dense<0x7F800000> : vector<8xf32>
    %59 = vector.multi_reduction <minimumf>, %58, %cst_20 [1] : vector<8x8xf32> to vector<8xf32>
    %60 = vector.shape_cast %59 : vector<8xf32> to vector<8x1xf32>
    %61 = vector.broadcast %60 : vector<8x1xf32> to vector<8x8xf32>
    %62 = arith.cmpf ole, %58, %61 : vector<8x8xf32>
    %cst_21 = arith.constant 1.000000e+30 : f32
    %63 = vector.broadcast %cst_21 : f32 to vector<8x8xf32>
    %64 = arith.select %62, %11, %63 : vector<8x8xi1>, vector<8x8xf32>
    %cst_22 = arith.constant dense<0x7F800000> : vector<8xf32>
    %65 = vector.multi_reduction <minimumf>, %64, %cst_22 [1] : vector<8x8xf32> to vector<8xf32>
    %66 = vector.shape_cast %65 : vector<8xf32> to vector<8x1xf32>
    %67 = vector.broadcast %66 : vector<8x1xf32> to vector<8x8xf32>
    %68 = arith.cmpf oeq, %11, %67 : vector<8x8xf32>
    %69 = arith.extui %68 : vector<8x8xi1> to vector<8x8xi32>
    %70 = arith.sitofp %69 : vector<8x8xi32> to vector<8x8xf32>
    %71 = vector.extract_strided_slice %23 {offsets = [0, 256], sizes = [8, 128], strides = [1, 1]} : vector<8x384xf32> to vector<8x128xf32>
    %cst_23 = arith.constant dense<0.000000e+00> : vector<8x128xf32>
    %72 = tpu.matmul %70, %71, %cst_23 {dimension_numbers = #tpu.dot_dimension_numbers<[1], [0], [0], [1], [0, 0, 1, 1], [], []>, precision = #tpu.contract_precision<fp32>} : vector<8x8xf32>, vector<8x128xf32>, vector<8x128xf32> -> vector<8x128xf32>
    %73 = arith.addf %56, %72 : vector<8x128xf32>
    %c0_24 = arith.constant 0 : index
    %c0_25 = arith.constant 0 : index
    %74 = vector.load %arg3[%c0_24, %c0_25] : memref<1x128xf32, #tpu.memory_space<vmem>>, vector<1x128xf32>
    %75 = vector.broadcast %74 : vector<1x128xf32> to vector<8x128xf32>
    %76 = arith.addf %73, %75 : vector<8x128xf32>
    %cst_26 = arith.constant 0.000000e+00 : f32
    %77 = vector.broadcast %cst_26 : f32 to vector<8x128xf32>
    %78 = arith.maximumf %76, %77 : vector<8x128xf32>
    %c0_27 = arith.constant 0 : index
    %c0_28 = arith.constant 0 : index
    %79 = vector.load %arg4[%c0_27, %c0_28] : memref<128x384xf32, #tpu.memory_space<vmem>>, vector<128x384xf32>
    %cst_29 = arith.constant dense<0.000000e+00> : vector<8x8xf32>
    %80 = tpu.matmul %78, %78, %cst_29 {dimension_numbers = #tpu.dot_dimension_numbers<[1], [1], [0], [0], [0, 0, 1, 0], [], []>, precision = #tpu.contract_precision<fp32>} : vector<8x128xf32>, vector<8x128xf32>, vector<8x8xf32> -> vector<8x8xf32>
    %81 = arith.cmpi eq, %9, %10 : vector<8x8xi32>
    %cst_30 = arith.constant 0.000000e+00 : f32
    %82 = vector.broadcast %cst_30 : f32 to vector<8x8xf32>
    %83 = arith.select %81, %80, %82 : vector<8x8xi1>, vector<8x8xf32>
    %cst_31 = arith.constant dense<0.000000e+00> : vector<8xf32>
    %84 = vector.multi_reduction <add>, %83, %cst_31 [0] : vector<8x8xf32> to vector<8xf32>
    %85 = vector.shape_cast %84 : vector<8xf32> to vector<1x8xf32>
    %cst_32 = arith.constant 2.000000e+00 : f32
    %86 = vector.broadcast %cst_32 : f32 to vector<8x8xf32>
    %87 = arith.mulf %86, %80 : vector<8x8xf32>
    %88 = vector.broadcast %85 : vector<1x8xf32> to vector<8x8xf32>
    %89 = arith.subf %88, %87 : vector<8x8xf32>
    %cst_33 = arith.constant dense<0.000000e+00> : vector<8x384xf32>
    %90 = tpu.matmul %78, %79, %cst_33 {dimension_numbers = #tpu.dot_dimension_numbers<[1], [0], [0], [1], [0, 0, 1, 1], [], []>, precision = #tpu.contract_precision<fp32>} : vector<8x128xf32>, vector<128x384xf32>, vector<8x384xf32> -> vector<8x384xf32>
    %cst_34 = arith.constant 0.000000e+00 : f32
    %91 = vector.broadcast %cst_34 : f32 to vector<8x128xf32>
    %cst_35 = arith.constant dense<0x7F800000> : vector<8xf32>
    %92 = vector.multi_reduction <minimumf>, %89, %cst_35 [1] : vector<8x8xf32> to vector<8xf32>
    %93 = vector.shape_cast %92 : vector<8xf32> to vector<8x1xf32>
    %94 = vector.broadcast %93 : vector<8x1xf32> to vector<8x8xf32>
    %95 = arith.cmpf ole, %89, %94 : vector<8x8xf32>
    %cst_36 = arith.constant 1.000000e+30 : f32
    %96 = vector.broadcast %cst_36 : f32 to vector<8x8xf32>
    %97 = arith.select %95, %11, %96 : vector<8x8xi1>, vector<8x8xf32>
    %cst_37 = arith.constant dense<0x7F800000> : vector<8xf32>
    %98 = vector.multi_reduction <minimumf>, %97, %cst_37 [1] : vector<8x8xf32> to vector<8xf32>
    %99 = vector.shape_cast %98 : vector<8xf32> to vector<8x1xf32>
    %100 = vector.broadcast %99 : vector<8x1xf32> to vector<8x8xf32>
    %101 = arith.cmpf oeq, %11, %100 : vector<8x8xf32>
    %102 = arith.extui %101 : vector<8x8xi1> to vector<8x8xi32>
    %103 = arith.sitofp %102 : vector<8x8xi32> to vector<8x8xf32>
    %104 = vector.extract_strided_slice %90 {offsets = [0, 0], sizes = [8, 128], strides = [1, 1]} : vector<8x384xf32> to vector<8x128xf32>
    %cst_38 = arith.constant dense<0.000000e+00> : vector<8x128xf32>
    %105 = tpu.matmul %103, %104, %cst_38 {dimension_numbers = #tpu.dot_dimension_numbers<[1], [0], [0], [1], [0, 0, 1, 1], [], []>, precision = #tpu.contract_precision<fp32>} : vector<8x8xf32>, vector<8x128xf32>, vector<8x128xf32> -> vector<8x128xf32>
    %106 = arith.addf %91, %105 : vector<8x128xf32>
    %cst_39 = arith.constant 1.000000e+30 : f32
    %107 = vector.broadcast %cst_39 : f32 to vector<8x8xf32>
    %108 = arith.select %101, %107, %89 : vector<8x8xi1>, vector<8x8xf32>
    %cst_40 = arith.constant dense<0x7F800000> : vector<8xf32>
    %109 = vector.multi_reduction <minimumf>, %108, %cst_40 [1] : vector<8x8xf32> to vector<8xf32>
    %110 = vector.shape_cast %109 : vector<8xf32> to vector<8x1xf32>
    %111 = vector.broadcast %110 : vector<8x1xf32> to vector<8x8xf32>
    %112 = arith.cmpf ole, %108, %111 : vector<8x8xf32>
    %cst_41 = arith.constant 1.000000e+30 : f32
    %113 = vector.broadcast %cst_41 : f32 to vector<8x8xf32>
    %114 = arith.select %112, %11, %113 : vector<8x8xi1>, vector<8x8xf32>
    %cst_42 = arith.constant dense<0x7F800000> : vector<8xf32>
    %115 = vector.multi_reduction <minimumf>, %114, %cst_42 [1] : vector<8x8xf32> to vector<8xf32>
    %116 = vector.shape_cast %115 : vector<8xf32> to vector<8x1xf32>
    %117 = vector.broadcast %116 : vector<8x1xf32> to vector<8x8xf32>
    %118 = arith.cmpf oeq, %11, %117 : vector<8x8xf32>
    %119 = arith.extui %118 : vector<8x8xi1> to vector<8x8xi32>
    %120 = arith.sitofp %119 : vector<8x8xi32> to vector<8x8xf32>
    %121 = vector.extract_strided_slice %90 {offsets = [0, 128], sizes = [8, 128], strides = [1, 1]} : vector<8x384xf32> to vector<8x128xf32>
    %cst_43 = arith.constant dense<0.000000e+00> : vector<8x128xf32>
    %122 = tpu.matmul %120, %121, %cst_43 {dimension_numbers = #tpu.dot_dimension_numbers<[1], [0], [0], [1], [0, 0, 1, 1], [], []>, precision = #tpu.contract_precision<fp32>} : vector<8x8xf32>, vector<8x128xf32>, vector<8x128xf32> -> vector<8x128xf32>
    %123 = arith.addf %106, %122 : vector<8x128xf32>
    %cst_44 = arith.constant 1.000000e+30 : f32
    %124 = vector.broadcast %cst_44 : f32 to vector<8x8xf32>
    %125 = arith.select %118, %124, %108 : vector<8x8xi1>, vector<8x8xf32>
    %cst_45 = arith.constant dense<0x7F800000> : vector<8xf32>
    %126 = vector.multi_reduction <minimumf>, %125, %cst_45 [1] : vector<8x8xf32> to vector<8xf32>
    %127 = vector.shape_cast %126 : vector<8xf32> to vector<8x1xf32>
    %128 = vector.broadcast %127 : vector<8x1xf32> to vector<8x8xf32>
    %129 = arith.cmpf ole, %125, %128 : vector<8x8xf32>
    %cst_46 = arith.constant 1.000000e+30 : f32
    %130 = vector.broadcast %cst_46 : f32 to vector<8x8xf32>
    %131 = arith.select %129, %11, %130 : vector<8x8xi1>, vector<8x8xf32>
    %cst_47 = arith.constant dense<0x7F800000> : vector<8xf32>
    %132 = vector.multi_reduction <minimumf>, %131, %cst_47 [1] : vector<8x8xf32> to vector<8xf32>
    %133 = vector.shape_cast %132 : vector<8xf32> to vector<8x1xf32>
    %134 = vector.broadcast %133 : vector<8x1xf32> to vector<8x8xf32>
    %135 = arith.cmpf oeq, %11, %134 : vector<8x8xf32>
    %136 = arith.extui %135 : vector<8x8xi1> to vector<8x8xi32>
    %137 = arith.sitofp %136 : vector<8x8xi32> to vector<8x8xf32>
    %138 = vector.extract_strided_slice %90 {offsets = [0, 256], sizes = [8, 128], strides = [1, 1]} : vector<8x384xf32> to vector<8x128xf32>
    %cst_48 = arith.constant dense<0.000000e+00> : vector<8x128xf32>
    %139 = tpu.matmul %137, %138, %cst_48 {dimension_numbers = #tpu.dot_dimension_numbers<[1], [0], [0], [1], [0, 0, 1, 1], [], []>, precision = #tpu.contract_precision<fp32>} : vector<8x8xf32>, vector<8x128xf32>, vector<8x128xf32> -> vector<8x128xf32>
    %140 = arith.addf %123, %139 : vector<8x128xf32>
    %c0_49 = arith.constant 0 : index
    %c0_50 = arith.constant 0 : index
    %141 = vector.load %arg5[%c0_49, %c0_50] : memref<1x128xf32, #tpu.memory_space<vmem>>, vector<1x128xf32>
    %142 = vector.broadcast %141 : vector<1x128xf32> to vector<8x128xf32>
    %143 = arith.addf %140, %142 : vector<8x128xf32>
    %cst_51 = arith.constant 0.000000e+00 : f32
    %144 = vector.broadcast %cst_51 : f32 to vector<8x128xf32>
    %145 = arith.maximumf %143, %144 : vector<8x128xf32>
    %c0_52 = arith.constant 0 : index
    %c0_53 = arith.constant 0 : index
    %146 = vector.load %arg6[%c0_52, %c0_53] : memref<128x384xbf16, #tpu.memory_space<vmem>>, vector<128x384xbf16>
    %cst_54 = arith.constant dense<0.000000e+00> : vector<8x8xf32>
    %147 = tpu.matmul %145, %145, %cst_54 {dimension_numbers = #tpu.dot_dimension_numbers<[1], [1], [0], [0], [0, 0, 1, 0], [], []>, precision = #tpu.contract_precision<fp32>} : vector<8x128xf32>, vector<8x128xf32>, vector<8x8xf32> -> vector<8x8xf32>
    %148 = arith.cmpi eq, %9, %10 : vector<8x8xi32>
    %cst_55 = arith.constant 0.000000e+00 : f32
    %149 = vector.broadcast %cst_55 : f32 to vector<8x8xf32>
    %150 = arith.select %148, %147, %149 : vector<8x8xi1>, vector<8x8xf32>
    %cst_56 = arith.constant dense<0.000000e+00> : vector<8xf32>
    %151 = vector.multi_reduction <add>, %150, %cst_56 [0] : vector<8x8xf32> to vector<8xf32>
    %152 = vector.shape_cast %151 : vector<8xf32> to vector<1x8xf32>
    %cst_57 = arith.constant 2.000000e+00 : f32
    %153 = vector.broadcast %cst_57 : f32 to vector<8x8xf32>
    %154 = arith.mulf %153, %147 : vector<8x8xf32>
    %155 = vector.broadcast %152 : vector<1x8xf32> to vector<8x8xf32>
    %156 = arith.subf %155, %154 : vector<8x8xf32>
    %157 = arith.truncf %145 : vector<8x128xf32> to vector<8x128xbf16>
    %cst_58 = arith.constant dense<0.000000e+00> : vector<8x384xf32>
    %158 = tpu.matmul %157, %146, %cst_58 {dimension_numbers = #tpu.dot_dimension_numbers<[1], [0], [0], [1], [0, 0, 1, 1], [], []>} : vector<8x128xbf16>, vector<128x384xbf16>, vector<8x384xf32> -> vector<8x384xf32>
    %cst_59 = arith.constant 0.000000e+00 : f32
    %159 = vector.broadcast %cst_59 : f32 to vector<8x128xf32>
    %cst_60 = arith.constant dense<0x7F800000> : vector<8xf32>
    %160 = vector.multi_reduction <minimumf>, %156, %cst_60 [1] : vector<8x8xf32> to vector<8xf32>
    %161 = vector.shape_cast %160 : vector<8xf32> to vector<8x1xf32>
    %162 = vector.broadcast %161 : vector<8x1xf32> to vector<8x8xf32>
    %163 = arith.cmpf ole, %156, %162 : vector<8x8xf32>
    %cst_61 = arith.constant 1.000000e+30 : f32
    %164 = vector.broadcast %cst_61 : f32 to vector<8x8xf32>
    %165 = arith.select %163, %11, %164 : vector<8x8xi1>, vector<8x8xf32>
    %cst_62 = arith.constant dense<0x7F800000> : vector<8xf32>
    %166 = vector.multi_reduction <minimumf>, %165, %cst_62 [1] : vector<8x8xf32> to vector<8xf32>
    %167 = vector.shape_cast %166 : vector<8xf32> to vector<8x1xf32>
    %168 = vector.broadcast %167 : vector<8x1xf32> to vector<8x8xf32>
    %169 = arith.cmpf oeq, %11, %168 : vector<8x8xf32>
    %170 = arith.extui %169 : vector<8x8xi1> to vector<8x8xi32>
    %171 = arith.sitofp %170 : vector<8x8xi32> to vector<8x8xf32>
    %172 = vector.extract_strided_slice %158 {offsets = [0, 0], sizes = [8, 128], strides = [1, 1]} : vector<8x384xf32> to vector<8x128xf32>
    %cst_63 = arith.constant dense<0.000000e+00> : vector<8x128xf32>
    %173 = tpu.matmul %171, %172, %cst_63 {dimension_numbers = #tpu.dot_dimension_numbers<[1], [0], [0], [1], [0, 0, 1, 1], [], []>, precision = #tpu.contract_precision<fp32>} : vector<8x8xf32>, vector<8x128xf32>, vector<8x128xf32> -> vector<8x128xf32>
    %174 = arith.addf %159, %173 : vector<8x128xf32>
    %cst_64 = arith.constant 1.000000e+30 : f32
    %175 = vector.broadcast %cst_64 : f32 to vector<8x8xf32>
    %176 = arith.select %169, %175, %156 : vector<8x8xi1>, vector<8x8xf32>
    %cst_65 = arith.constant dense<0x7F800000> : vector<8xf32>
    %177 = vector.multi_reduction <minimumf>, %176, %cst_65 [1] : vector<8x8xf32> to vector<8xf32>
    %178 = vector.shape_cast %177 : vector<8xf32> to vector<8x1xf32>
    %179 = vector.broadcast %178 : vector<8x1xf32> to vector<8x8xf32>
    %180 = arith.cmpf ole, %176, %179 : vector<8x8xf32>
    %cst_66 = arith.constant 1.000000e+30 : f32
    %181 = vector.broadcast %cst_66 : f32 to vector<8x8xf32>
    %182 = arith.select %180, %11, %181 : vector<8x8xi1>, vector<8x8xf32>
    %cst_67 = arith.constant dense<0x7F800000> : vector<8xf32>
    %183 = vector.multi_reduction <minimumf>, %182, %cst_67 [1] : vector<8x8xf32> to vector<8xf32>
    %184 = vector.shape_cast %183 : vector<8xf32> to vector<8x1xf32>
    %185 = vector.broadcast %184 : vector<8x1xf32> to vector<8x8xf32>
    %186 = arith.cmpf oeq, %11, %185 : vector<8x8xf32>
    %187 = arith.extui %186 : vector<8x8xi1> to vector<8x8xi32>
    %188 = arith.sitofp %187 : vector<8x8xi32> to vector<8x8xf32>
    %189 = vector.extract_strided_slice %158 {offsets = [0, 128], sizes = [8, 128], strides = [1, 1]} : vector<8x384xf32> to vector<8x128xf32>
    %cst_68 = arith.constant dense<0.000000e+00> : vector<8x128xf32>
    %190 = tpu.matmul %188, %189, %cst_68 {dimension_numbers = #tpu.dot_dimension_numbers<[1], [0], [0], [1], [0, 0, 1, 1], [], []>, precision = #tpu.contract_precision<fp32>} : vector<8x8xf32>, vector<8x128xf32>, vector<8x128xf32> -> vector<8x128xf32>
    %191 = arith.addf %174, %190 : vector<8x128xf32>
    %cst_69 = arith.constant 1.000000e+30 : f32
    %192 = vector.broadcast %cst_69 : f32 to vector<8x8xf32>
    %193 = arith.select %186, %192, %176 : vector<8x8xi1>, vector<8x8xf32>
    %cst_70 = arith.constant dense<0x7F800000> : vector<8xf32>
    %194 = vector.multi_reduction <minimumf>, %193, %cst_70 [1] : vector<8x8xf32> to vector<8xf32>
    %195 = vector.shape_cast %194 : vector<8xf32> to vector<8x1xf32>
    %196 = vector.broadcast %195 : vector<8x1xf32> to vector<8x8xf32>
    %197 = arith.cmpf ole, %193, %196 : vector<8x8xf32>
    %cst_71 = arith.constant 1.000000e+30 : f32
    %198 = vector.broadcast %cst_71 : f32 to vector<8x8xf32>
    %199 = arith.select %197, %11, %198 : vector<8x8xi1>, vector<8x8xf32>
    %cst_72 = arith.constant dense<0x7F800000> : vector<8xf32>
    %200 = vector.multi_reduction <minimumf>, %199, %cst_72 [1] : vector<8x8xf32> to vector<8xf32>
    %201 = vector.shape_cast %200 : vector<8xf32> to vector<8x1xf32>
    %202 = vector.broadcast %201 : vector<8x1xf32> to vector<8x8xf32>
    %203 = arith.cmpf oeq, %11, %202 : vector<8x8xf32>
    %204 = arith.extui %203 : vector<8x8xi1> to vector<8x8xi32>
    %205 = arith.sitofp %204 : vector<8x8xi32> to vector<8x8xf32>
    %206 = vector.extract_strided_slice %158 {offsets = [0, 256], sizes = [8, 128], strides = [1, 1]} : vector<8x384xf32> to vector<8x128xf32>
    %cst_73 = arith.constant dense<0.000000e+00> : vector<8x128xf32>
    %207 = tpu.matmul %205, %206, %cst_73 {dimension_numbers = #tpu.dot_dimension_numbers<[1], [0], [0], [1], [0, 0, 1, 1], [], []>, precision = #tpu.contract_precision<fp32>} : vector<8x8xf32>, vector<8x128xf32>, vector<8x128xf32> -> vector<8x128xf32>
    %208 = arith.addf %191, %207 : vector<8x128xf32>
    %c0_74 = arith.constant 0 : index
    %c0_75 = arith.constant 0 : index
    %209 = vector.load %arg7[%c0_74, %c0_75] : memref<1x128xf32, #tpu.memory_space<vmem>>, vector<1x128xf32>
    %210 = vector.broadcast %209 : vector<1x128xf32> to vector<8x128xf32>
    %211 = arith.addf %208, %210 : vector<8x128xf32>
    %cst_76 = arith.constant 0.000000e+00 : f32
    %212 = vector.broadcast %cst_76 : f32 to vector<8x128xf32>
    %213 = arith.maximumf %211, %212 : vector<8x128xf32>
    %c0_77 = arith.constant 0 : index
    %c0_78 = arith.constant 0 : index
    %214 = vector.load %arg9[%c0_77, %c0_78] : memref<1x128xf32, #tpu.memory_space<vmem>>, vector<1x128xf32>
    %215 = arith.truncf %213 : vector<8x128xf32> to vector<8x128xbf16>
    %216 = vector.extract_strided_slice %215 {offsets = [0, 0], sizes = [1, 128], strides = [1, 1]} : vector<8x128xbf16> to vector<1x128xbf16>
    %c0_79 = arith.constant 0 : index
    %c0_80 = arith.constant 0 : index
    %c0_81 = arith.constant 0 : index
    %217 = vector.load %arg8[%c0_79, %c0_80, %c0_81] : memref<8x128x128xbf16, #tpu.memory_space<vmem>>, vector<1x128x128xbf16>
    %218 = vector.shape_cast %217 : vector<1x128x128xbf16> to vector<128x128xbf16>
    %cst_82 = arith.constant dense<0.000000e+00> : vector<1x128xf32>
    %219 = tpu.matmul %216, %218, %cst_82 {dimension_numbers = #tpu.dot_dimension_numbers<[1], [0], [0], [1], [0, 0, 1, 1], [], []>} : vector<1x128xbf16>, vector<128x128xbf16>, vector<1x128xf32> -> vector<1x128xf32>
    %220 = arith.addf %214, %219 : vector<1x128xf32>
    %221 = vector.extract_strided_slice %215 {offsets = [1, 0], sizes = [1, 128], strides = [1, 1]} : vector<8x128xbf16> to vector<1x128xbf16>
    %c1 = arith.constant 1 : index
    %c0_83 = arith.constant 0 : index
    %c0_84 = arith.constant 0 : index
    %222 = vector.load %arg8[%c1, %c0_83, %c0_84] : memref<8x128x128xbf16, #tpu.memory_space<vmem>>, vector<1x128x128xbf16>
    %223 = vector.shape_cast %222 : vector<1x128x128xbf16> to vector<128x128xbf16>
    %cst_85 = arith.constant dense<0.000000e+00> : vector<1x128xf32>
    %224 = tpu.matmul %221, %223, %cst_85 {dimension_numbers = #tpu.dot_dimension_numbers<[1], [0], [0], [1], [0, 0, 1, 1], [], []>} : vector<1x128xbf16>, vector<128x128xbf16>, vector<1x128xf32> -> vector<1x128xf32>
    %225 = arith.addf %220, %224 : vector<1x128xf32>
    %226 = vector.extract_strided_slice %215 {offsets = [2, 0], sizes = [1, 128], strides = [1, 1]} : vector<8x128xbf16> to vector<1x128xbf16>
    %c2 = arith.constant 2 : index
    %c0_86 = arith.constant 0 : index
    %c0_87 = arith.constant 0 : index
    %227 = vector.load %arg8[%c2, %c0_86, %c0_87] : memref<8x128x128xbf16, #tpu.memory_space<vmem>>, vector<1x128x128xbf16>
    %228 = vector.shape_cast %227 : vector<1x128x128xbf16> to vector<128x128xbf16>
    %cst_88 = arith.constant dense<0.000000e+00> : vector<1x128xf32>
    %229 = tpu.matmul %226, %228, %cst_88 {dimension_numbers = #tpu.dot_dimension_numbers<[1], [0], [0], [1], [0, 0, 1, 1], [], []>} : vector<1x128xbf16>, vector<128x128xbf16>, vector<1x128xf32> -> vector<1x128xf32>
    %230 = arith.addf %225, %229 : vector<1x128xf32>
    %231 = vector.extract_strided_slice %215 {offsets = [3, 0], sizes = [1, 128], strides = [1, 1]} : vector<8x128xbf16> to vector<1x128xbf16>
    %c3 = arith.constant 3 : index
    %c0_89 = arith.constant 0 : index
    %c0_90 = arith.constant 0 : index
    %232 = vector.load %arg8[%c3, %c0_89, %c0_90] : memref<8x128x128xbf16, #tpu.memory_space<vmem>>, vector<1x128x128xbf16>
    %233 = vector.shape_cast %232 : vector<1x128x128xbf16> to vector<128x128xbf16>
    %cst_91 = arith.constant dense<0.000000e+00> : vector<1x128xf32>
    %234 = tpu.matmul %231, %233, %cst_91 {dimension_numbers = #tpu.dot_dimension_numbers<[1], [0], [0], [1], [0, 0, 1, 1], [], []>} : vector<1x128xbf16>, vector<128x128xbf16>, vector<1x128xf32> -> vector<1x128xf32>
    %235 = arith.addf %230, %234 : vector<1x128xf32>
    %236 = vector.extract_strided_slice %215 {offsets = [4, 0], sizes = [1, 128], strides = [1, 1]} : vector<8x128xbf16> to vector<1x128xbf16>
    %c4 = arith.constant 4 : index
    %c0_92 = arith.constant 0 : index
    %c0_93 = arith.constant 0 : index
    %237 = vector.load %arg8[%c4, %c0_92, %c0_93] : memref<8x128x128xbf16, #tpu.memory_space<vmem>>, vector<1x128x128xbf16>
    %238 = vector.shape_cast %237 : vector<1x128x128xbf16> to vector<128x128xbf16>
    %cst_94 = arith.constant dense<0.000000e+00> : vector<1x128xf32>
    %239 = tpu.matmul %236, %238, %cst_94 {dimension_numbers = #tpu.dot_dimension_numbers<[1], [0], [0], [1], [0, 0, 1, 1], [], []>} : vector<1x128xbf16>, vector<128x128xbf16>, vector<1x128xf32> -> vector<1x128xf32>
    %240 = arith.addf %235, %239 : vector<1x128xf32>
    %241 = vector.extract_strided_slice %215 {offsets = [5, 0], sizes = [1, 128], strides = [1, 1]} : vector<8x128xbf16> to vector<1x128xbf16>
    %c5 = arith.constant 5 : index
    %c0_95 = arith.constant 0 : index
    %c0_96 = arith.constant 0 : index
    %242 = vector.load %arg8[%c5, %c0_95, %c0_96] : memref<8x128x128xbf16, #tpu.memory_space<vmem>>, vector<1x128x128xbf16>
    %243 = vector.shape_cast %242 : vector<1x128x128xbf16> to vector<128x128xbf16>
    %cst_97 = arith.constant dense<0.000000e+00> : vector<1x128xf32>
    %244 = tpu.matmul %241, %243, %cst_97 {dimension_numbers = #tpu.dot_dimension_numbers<[1], [0], [0], [1], [0, 0, 1, 1], [], []>} : vector<1x128xbf16>, vector<128x128xbf16>, vector<1x128xf32> -> vector<1x128xf32>
    %245 = arith.addf %240, %244 : vector<1x128xf32>
    %246 = vector.extract_strided_slice %215 {offsets = [6, 0], sizes = [1, 128], strides = [1, 1]} : vector<8x128xbf16> to vector<1x128xbf16>
    %c6 = arith.constant 6 : index
    %c0_98 = arith.constant 0 : index
    %c0_99 = arith.constant 0 : index
    %247 = vector.load %arg8[%c6, %c0_98, %c0_99] : memref<8x128x128xbf16, #tpu.memory_space<vmem>>, vector<1x128x128xbf16>
    %248 = vector.shape_cast %247 : vector<1x128x128xbf16> to vector<128x128xbf16>
    %cst_100 = arith.constant dense<0.000000e+00> : vector<1x128xf32>
    %249 = tpu.matmul %246, %248, %cst_100 {dimension_numbers = #tpu.dot_dimension_numbers<[1], [0], [0], [1], [0, 0, 1, 1], [], []>} : vector<1x128xbf16>, vector<128x128xbf16>, vector<1x128xf32> -> vector<1x128xf32>
    %250 = arith.addf %245, %249 : vector<1x128xf32>
    %251 = vector.extract_strided_slice %215 {offsets = [7, 0], sizes = [1, 128], strides = [1, 1]} : vector<8x128xbf16> to vector<1x128xbf16>
    %c7 = arith.constant 7 : index
    %c0_101 = arith.constant 0 : index
    %c0_102 = arith.constant 0 : index
    %252 = vector.load %arg8[%c7, %c0_101, %c0_102] : memref<8x128x128xbf16, #tpu.memory_space<vmem>>, vector<1x128x128xbf16>
    %253 = vector.shape_cast %252 : vector<1x128x128xbf16> to vector<128x128xbf16>
    %cst_103 = arith.constant dense<0.000000e+00> : vector<1x128xf32>
    %254 = tpu.matmul %251, %253, %cst_103 {dimension_numbers = #tpu.dot_dimension_numbers<[1], [0], [0], [1], [0, 0, 1, 1], [], []>} : vector<1x128xbf16>, vector<128x128xbf16>, vector<1x128xf32> -> vector<1x128xf32>
    %255 = arith.addf %250, %254 : vector<1x128xf32>
    %c0_104 = arith.constant 0 : index
    %c0_105 = arith.constant 0 : index
    %c0_106 = arith.constant 0 : index
    %256 = vector.load %arg10[%c0_104, %c0_105, %c0_106] : memref<1x1x128xf32, #tpu.memory_space<vmem>>, vector<1x1x128xf32>
    %257 = vector.shape_cast %256 : vector<1x1x128xf32> to vector<1x128xf32>
    %258 = vector.shape_cast %255 : vector<1x128xf32> to vector<1x1x128xf32>
    tpu.vector_store %arg10[%c0_104, %c0_105, %c0_106], %258 {strides = array<i32>} : memref<1x1x128xf32, #tpu.memory_space<vmem>>, vector<1x1x128xf32>,
    return
  }
  func.func @transform_0(%arg0: i32) -> (i32, i32, i32) {
    %c0_i32 = arith.constant 0 : i32
    %c0_i32_0 = arith.constant 0 : i32
    %c0_i32_1 = arith.constant 0 : i32
    return %arg0, %c0_i32, %c0_i32_0 : i32, i32, i32
  }
  func.func @transform_1(%arg0: i32) -> (i32, i32) {
    %c0_i32 = arith.constant 0 : i32
    %c0_i32_0 = arith.constant 0 : i32
    %c0_i32_1 = arith.constant 0 : i32
    return %c0_i32, %c0_i32_0 : i32, i32
  }
  func.func @transform_2(%arg0: i32) -> (i32, i32) {
    %c0_i32 = arith.constant 0 : i32
    %c0_i32_0 = arith.constant 0 : i32
    %c0_i32_1 = arith.constant 0 : i32
    return %c0_i32, %c0_i32_0 : i32, i32
  }
  func.func @transform_3(%arg0: i32) -> (i32, i32) {
    %c0_i32 = arith.constant 0 : i32
    %c0_i32_0 = arith.constant 0 : i32
    %c0_i32_1 = arith.constant 0 : i32
    return %c0_i32, %c0_i32_0 : i32, i32
  }
  func.func @transform_4(%arg0: i32) -> (i32, i32) {
    %c0_i32 = arith.constant 0 : i32
    %c0_i32_0 = arith.constant 0 : i32
    %c0_i32_1 = arith.constant 0 : i32
    return %c0_i32, %c0_i32_0 : i32, i32
  }
  func.func @transform_5(%arg0: i32) -> (i32, i32) {
    %c0_i32 = arith.constant 0 : i32
    %c0_i32_0 = arith.constant 0 : i32
    %c0_i32_1 = arith.constant 0 : i32
    return %c0_i32, %c0_i32_0 : i32, i32
  }
  func.func @transform_6(%arg0: i32) -> (i32, i32) {
    %c0_i32 = arith.constant 0 : i32
    %c0_i32_0 = arith.constant 0 : i32
    %c0_i32_1 = arith.constant 0 : i32
    return %c0_i32, %c0_i32_0 : i32, i32
  }
  func.func @transform_7(%arg0: i32) -> (i32, i32, i32) {
    %c0_i32 = arith.constant 0 : i32
    %c0_i32_0 = arith.constant 0 : i32
    %c0_i32_1 = arith.constant 0 : i32
    %c0_i32_2 = arith.constant 0 : i32
    return %c0_i32, %c0_i32_0, %c0_i32_1 : i32, i32, i32
  }
  func.func @transform_8(%arg0: i32) -> (i32, i32) {
    %c0_i32 = arith.constant 0 : i32
    %c0_i32_0 = arith.constant 0 : i32
    %c0_i32_1 = arith.constant 0 : i32
    return %c0_i32, %c0_i32_0 : i32, i32
  }
  func.func @transform_9(%arg0: i32) -> (i32, i32, i32) {
    %c0_i32 = arith.constant 0 : i32
    %c0_i32_0 = arith.constant 0 : i32
    %c0_i32_1 = arith.constant 0 : i32
    return %arg0, %c0_i32, %c0_i32_0 : i32, i32, i32
  }
}

</mosaic_0001>

<llo_original>
// kernel: convbase_nn_forward.1
$region0: #{convbase_nn_forward.1}
  #allocation0 [shape = 'u32[]', space=smem, size = 0x4, offset = 0x4, fixed_abs, tag = 'smem constant byte address 0x4 - core index']
  #allocation1 [shape = 'u32[144,128]{1,0:T(1,128)}', space=vmem, size = 0x12000, scoped, tag = 'internal scratch']
  %s0 = inlined_call_operand.vmem [shape: f32[2,8,1], index: 0, kind: input, shape index: {}]
  %s1 = inlined_call_operand.hbm [shape: f32[128,384], index: 1, kind: input, shape index: {}]
  %s2 = inlined_call_operand.vmem [shape: f32[1,128], index: 2, kind: input, shape index: {}]
  %s3 = inlined_call_operand.hbm [shape: f32[128,384], index: 3, kind: input, shape index: {}]
  %s4 = inlined_call_operand.vmem [shape: f32[1,128], index: 4, kind: input, shape index: {}]
  %s5 = inlined_call_operand.hbm [shape: bf16[128,384], index: 5, kind: input, shape index: {}]
  %s6 = inlined_call_operand.vmem [shape: f32[1,128], index: 6, kind: input, shape index: {}]
  %s7 = inlined_call_operand.hbm [shape: bf16[8,128,128], index: 7, kind: input, shape index: {}]
  %s8 = inlined_call_operand.vmem [shape: f32[1,128], index: 8, kind: input, shape index: {}]
  %s9 = inlined_call_operand.hbm [shape: f32[2,1,128], index: 9, kind: output, shape index: {}]
  %s10 = sld [smem:[#allocation0]]
  $region85: #{convbase_nn_forward.1} parent=0
    _
  %s12 = ssub.s32 1, %s10
  %s13 = scalar_select 0, %s12, %s10
  $region1: #{convbase_nn_forward.1} parent=0
    #allocation2 [shape = 'u8[196608]{0}', space=vmem, size = 0x30000, scoped, tag = 'input window, operand 1, single buffered']
    #allocation3 [shape = 's32[2]{0}', space=sflag, size = 0x8, scoped, tag = 'scoped memory for convbase_nn_forward.1']
    #allocation4 [shape = 's32[2]{0}', space=sflag, size = 0x8, scoped, tag = 'scoped memory for convbase_nn_forward.1']
    #allocation5 [shape = 'u8[196608]{0}', space=vmem, size = 0x30000, scoped, tag = 'input window, operand 3, single buffered']
    #allocation6 [shape = 's32[1]{0}', space=sflag, size = 0x4, scoped, tag = 'scoped memory for convbase_nn_forward.1']
    #allocation7 [shape = 'u8[98304]{0}', space=vmem, size = 0x18000, scoped, tag = 'input window, operand 5, single buffered']
    #allocation8 [shape = 'u8[262144]{0}', space=vmem, size = 0x40000, scoped, tag = 'input window, operand 7, single buffered']
    #allocation9 [shape = 's32[1]{0}', space=sflag, size = 0x4, scoped, tag = 'scoped memory for convbase_nn_forward.1']
    #allocation10 [shape = 'u8[1024]{0}', space=vmem, size = 0x400, scoped, tag = 'output window, operand 0']
    %14 = vsyncpa [#allocation3], 0
    %15 = vsyncpa [#allocation6], 0
    %16 = vsyncpa [#allocation9], 0
    %17 = vsyncpa [#allocation4], 0
    %s18 = scalar_lea.sflag [#allocation4], 1
    %19 = vsyncpa %s18, 0
    loop: start=0, step=1, limit=4
    $region2: #{convbase_nn_forward.1} parent=1 // loop_pre_header
      _
    $region3: #{convbase_nn_forward.1} parent=1 // loop_header
      %s21 = sphi 0, %s25
      %p22 = scmp.ge.s32.totalorder %s21, 4
      %s31 = sphi 0, %s33
      %s34 = sphi 0, %s31
      %s35 = sphi 0, %s34
      %s51 = sphi 0, %s35
      %s55 = sphi 0, %s55
      %s57 = sphi 0, %s55
      %s58 = sphi 0, %s57
      %s72 = sphi 0, %s58
      %s76 = sphi 0, %s76
      %s78 = sphi 0, %s76
      %s79 = sphi 0, %s78
      %s93 = sphi 0, %s79
      %s97 = sphi 0, %s97
      %s99 = sphi 0, %s97
      %s100 = sphi 0, %s99
      %s114 = sphi 0, %s100
      %s118 = sphi 0, %s118
      %s120 = sphi 0, %s118
      %s121 = sphi 0, %s120
      %s135 = sphi 0, %s121
      %s139 = sphi 0, %s139
      %s141 = sphi 0, %s139
      %s142 = sphi 0, %s141
      %s156 = sphi 0, %s142
      %s160 = sphi 0, %s160
      %s162 = sphi 0, %s160
      %s163 = sphi 0, %s162
      %s177 = sphi 0, %s163
      %s181 = sphi 0, %s181
      %s183 = sphi 0, %s181
      %s184 = sphi 0, %s183
      %s198 = sphi 0, %s184
      %s202 = sphi 0, %s202
      %s204 = sphi 0, %s202
      %s205 = sphi 0, %s204
      %s219 = sphi 0, %s205
      %s225 = sphi 0, %s227
      %s228 = sphi 0, %s225
      %s229 = sphi 0, %s228
      %s245 = sphi 0, %s229
    $region4: #{convbase_nn_forward.1} parent=1 // loop_header_branch
      %24 = sbr.rel (%p22) target = $region8
    $region5: #{convbase_nn_forward.1} parent=1 // loop_body
      %s26 = ssub.s32 %s21, 1
      %s27 = ssub.s32 %s21, 2
      %s28 = sadd.s32 %s21, 1
      %s29 = ssub.s32 %s21, %s28
      %p30 = scmp.eq.s32.totalorder %s29, 0
      %s32 = sadd.s32 %s31, 1
      %s33 = scalar_select %p30, %s31, %s32
      %p36 = pneg %p30
      %p37 = scmp.eq.s32.totalorder %s21, 1
      %p38 = por %p36, %p37
      %p39 = scmp.ne.s32.totalorder %s31, %s34
      %p40 = scmp.eq.s32.totalorder %s21, 0
      %p41 = por %p39, %p40
      %p42 = scmp.ne.s32.totalorder %s31, %s34
      %p43 = scmp.eq.s32.totalorder %s26, 1
      %p44 = por %p42, %p43
      %p45 = scmp.ne.s32.totalorder %s34, %s35
      %p46 = scmp.eq.s32.totalorder %s26, 0
      %p47 = por %p45, %p46
      %p48 = scmp.ne.s32.totalorder %s34, %s35
      %p49 = scmp.eq.s32.totalorder %s27, 1
      %p50 = por %p48, %p49
      %p52 = scmp.ne.s32.totalorder %s35, %s51
      %p53 = scmp.eq.s32.totalorder %s27, 0
      %p54 = por %p52, %p53
      %s56 = sadd.s32 %s55, 1
      %p59 = scmp.eq.s32.totalorder %s21, 1
      %p60 = scmp.ne.s32.totalorder %s55, %s57
      %p61 = scmp.eq.s32.totalorder %s21, 0
      %p62 = por %p60, %p61
      %p63 = scmp.ne.s32.totalorder %s55, %s57
      %p64 = scmp.eq.s32.totalorder %s26, 1
      %p65 = por %p63, %p64
      %p66 = scmp.ne.s32.totalorder %s57, %s58
      %p67 = scmp.eq.s32.totalorder %s26, 0
      %p68 = por %p66, %p67
      %p69 = scmp.ne.s32.totalorder %s57, %s58
      %p70 = scmp.eq.s32.totalorder %s27, 1
      %p71 = por %p69, %p70
      %p73 = scmp.ne.s32.totalorder %s58, %s72
      %p74 = scmp.eq.s32.totalorder %s27, 0
      %p75 = por %p73, %p74
      %s77 = sadd.s32 %s76, 1
      %p80 = scmp.eq.s32.totalorder %s21, 1
      %p81 = scmp.ne.s32.totalorder %s76, %s78
      %p82 = scmp.eq.s32.totalorder %s21, 0
      %p83 = por %p81, %p82
      %p84 = scmp.ne.s32.totalorder %s76, %s78
      %p85 = scmp.eq.s32.totalorder %s26, 1
      %p86 = por %p84, %p85
      %p87 = scmp.ne.s32.totalorder %s78, %s79
      %p88 = scmp.eq.s32.totalorder %s26, 0
      %p89 = por %p87, %p88
      %p90 = scmp.ne.s32.totalorder %s78, %s79
      %p91 = scmp.eq.s32.totalorder %s27, 1
      %p92 = por %p90, %p91
      %p94 = scmp.ne.s32.totalorder %s79, %s93
      %p95 = scmp.eq.s32.totalorder %s27, 0
      %p96 = por %p94, %p95
      %s98 = sadd.s32 %s97, 1
      %p101 = scmp.eq.s32.totalorder %s21, 1
      %p102 = scmp.ne.s32.totalorder %s97, %s99
      %p103 = scmp.eq.s32.totalorder %s21, 0
      %p104 = por %p102, %p103
      %p105 = scmp.ne.s32.totalorder %s97, %s99
      %p106 = scmp.eq.s32.totalorder %s26, 1
      %p107 = por %p105, %p106
      %p108 = scmp.ne.s32.totalorder %s99, %s100
      %p109 = scmp.eq.s32.totalorder %s26, 0
      %p110 = por %p108, %p109
      %p111 = scmp.ne.s32.totalorder %s99, %s100
      %p112 = scmp.eq.s32.totalorder %s27, 1
      %p113 = por %p111, %p112
      %p115 = scmp.ne.s32.totalorder %s100, %s114
      %p116 = scmp.eq.s32.totalorder %s27, 0
      %p117 = por %p115, %p116
      %s119 = sadd.s32 %s118, 1
      %p122 = scmp.eq.s32.totalorder %s21, 1
      %p123 = scmp.ne.s32.totalorder %s118, %s120
      %p124 = scmp.eq.s32.totalorder %s21, 0
      %p125 = por %p123, %p124
      %p126 = scmp.ne.s32.totalorder %s118, %s120
      %p127 = scmp.eq.s32.totalorder %s26, 1
      %p128 = por %p126, %p127
      %p129 = scmp.ne.s32.totalorder %s120, %s121
      %p130 = scmp.eq.s32.totalorder %s26, 0
      %p131 = por %p129, %p130
      %p132 = scmp.ne.s32.totalorder %s120, %s121
      %p133 = scmp.eq.s32.totalorder %s27, 1
      %p134 = por %p132, %p133
      %p136 = scmp.ne.s32.totalorder %s121, %s135
      %p137 = scmp.eq.s32.totalorder %s27, 0
      %p138 = por %p136, %p137
      %s140 = sadd.s32 %s139, 1
      %p143 = scmp.eq.s32.totalorder %s21, 1
      %p144 = scmp.ne.s32.totalorder %s139, %s141
      %p145 = scmp.eq.s32.totalorder %s21, 0
      %p146 = por %p144, %p145
      %p147 = scmp.ne.s32.totalorder %s139, %s141
      %p148 = scmp.eq.s32.totalorder %s26, 1
      %p149 = por %p147, %p148
      %p150 = scmp.ne.s32.totalorder %s141, %s142
      %p151 = scmp.eq.s32.totalorder %s26, 0
      %p152 = por %p150, %p151
      %p153 = scmp.ne.s32.totalorder %s141, %s142
      %p154 = scmp.eq.s32.totalorder %s27, 1
      %p155 = por %p153, %p154
      %p157 = scmp.ne.s32.totalorder %s142, %s156
      %p158 = scmp.eq.s32.totalorder %s27, 0
      %p159 = por %p157, %p158
      %s161 = sadd.s32 %s160, 1
      %p164 = scmp.eq.s32.totalorder %s21, 1
      %p165 = scmp.ne.s32.totalorder %s160, %s162
      %p166 = scmp.eq.s32.totalorder %s21, 0
      %p167 = por %p165, %p166
      %p168 = scmp.ne.s32.totalorder %s160, %s162
      %p169 = scmp.eq.s32.totalorder %s26, 1
      %p170 = por %p168, %p169
      %p171 = scmp.ne.s32.totalorder %s162, %s163
      %p172 = scmp.eq.s32.totalorder %s26, 0
      %p173 = por %p171, %p172
      %p174 = scmp.ne.s32.totalorder %s162, %s163
      %p175 = scmp.eq.s32.totalorder %s27, 1
      %p176 = por %p174, %p175
      %p178 = scmp.ne.s32.totalorder %s163, %s177
      %p179 = scmp.eq.s32.totalorder %s27, 0
      %p180 = por %p178, %p179
      %s182 = sadd.s32 %s181, 1
      %p185 = scmp.eq.s32.totalorder %s21, 1
      %p186 = scmp.ne.s32.totalorder %s181, %s183
      %p187 = scmp.eq.s32.totalorder %s21, 0
      %p188 = por %p186, %p187
      %p189 = scmp.ne.s32.totalorder %s181, %s183
      %p190 = scmp.eq.s32.totalorder %s26, 1
      %p191 = por %p189, %p190
      %p192 = scmp.ne.s32.totalorder %s183, %s184
      %p193 = scmp.eq.s32.totalorder %s26, 0
      %p194 = por %p192, %p193
      %p195 = scmp.ne.s32.totalorder %s183, %s184
      %p196 = scmp.eq.s32.totalorder %s27, 1
      %p197 = por %p195, %p196
      %p199 = scmp.ne.s32.totalorder %s184, %s198
      %p200 = scmp.eq.s32.totalorder %s27, 0
      %p201 = por %p199, %p200
      %s203 = sadd.s32 %s202, 1
      %p206 = scmp.eq.s32.totalorder %s21, 1
      %p207 = scmp.ne.s32.totalorder %s202, %s204
      %p208 = scmp.eq.s32.totalorder %s21, 0
      %p209 = por %p207, %p208
      %p210 = scmp.ne.s32.totalorder %s202, %s204
      %p211 = scmp.eq.s32.totalorder %s26, 1
      %p212 = por %p210, %p211
      %p213 = scmp.ne.s32.totalorder %s204, %s205
      %p214 = scmp.eq.s32.totalorder %s26, 0
      %p215 = por %p213, %p214
      %p216 = scmp.ne.s32.totalorder %s204, %s205
      %p217 = scmp.eq.s32.totalorder %s27, 1
      %p218 = por %p216, %p217
      %p220 = scmp.ne.s32.totalorder %s205, %s219
      %p221 = scmp.eq.s32.totalorder %s27, 0
      %p222 = por %p220, %p221
      %s223 = ssub.s32 %s21, %s28
      %p224 = scmp.eq.s32.totalorder %s223, 0
      %s226 = sadd.s32 %s225, 1
      %s227 = scalar_select %p224, %s225, %s226
      %p230 = pneg %p224
      %p231 = scmp.eq.s32.totalorder %s21, 1
      %p232 = por %p230, %p231
      %p233 = scmp.ne.s32.totalorder %s225, %s228
      %p234 = scmp.eq.s32.totalorder %s21, 0
      %p235 = por %p233, %p234
      %p236 = scmp.ne.s32.totalorder %s225, %s228
      %p237 = scmp.eq.s32.totalorder %s26, 1
      %p238 = por %p236, %p237
      %p239 = scmp.ne.s32.totalorder %s228, %s229
      %p240 = scmp.eq.s32.totalorder %s26, 0
      %p241 = por %p239, %p240
      %p242 = scmp.ne.s32.totalorder %s228, %s229
      %p243 = scmp.eq.s32.totalorder %s27, 1
      %p244 = por %p242, %p243
      %p246 = scmp.ne.s32.totalorder %s229, %s245
      %p247 = scmp.eq.s32.totalorder %s27, 0
      %p248 = por %p246, %p247
      %p249 = scmp.le.s32.totalorder 1, %s21
      %p250 = scmp.lt.s32.totalorder %s21, 3
      %p251 = pnand %p249, %p250
      %p252 = pneg %p251
      // Predicated region
      $region9: #{convbase_nn_forward.1} parent=5 // pred_check
        _
      $region10: #{convbase_nn_forward.1} parent=5 // pred_check_branch
        %254 = sbr.rel (%p251) target = $region12
      $region11: #{convbase_nn_forward.1} parent=5 // pred_region
        %s255 = ssub.s32 %s21, 1
        // Predicated region
        $region13: #{convbase_nn_forward.1} parent=11 // pred_check
          %p256 = pneg %p68
        $region14: #{convbase_nn_forward.1} parent=11 // pred_check_branch
          %258 = sbr.rel (%p256) target = $region16
        $region15: #{convbase_nn_forward.1} parent=11 // pred_region
          %s260 = ssub.s32 6144, 6144
          %261 = vsyncadd [#allocation3], %s260
          %s262 = sshll.u32 [#allocation2], 4
          %s263 = int_to_ptr.vmem [resolvable:$true] %s262
          %268 = dma.hbm_to_vmem [thread:$0]  %s1, 6144, %s263, [#allocation3], 384, 384, 24
        $region16: #{convbase_nn_forward.1} parent=11 // pred_fallthru
          _
        // Predicated region
        $region17: #{convbase_nn_forward.1} parent=11 // pred_check
          %p269 = pneg %p89
        $region18: #{convbase_nn_forward.1} parent=11 // pred_check_branch
          %271 = sbr.rel (%p269) target = $region20
        $region19: #{convbase_nn_forward.1} parent=11 // pred_region
          _
        $region20: #{convbase_nn_forward.1} parent=11 // pred_fallthru
          _
        // Predicated region
        $region21: #{convbase_nn_forward.1} parent=11 // pred_check
          %p272 = pneg %p110
        $region22: #{convbase_nn_forward.1} parent=11 // pred_check_branch
          %274 = sbr.rel (%p272) target = $region24
        $region23: #{convbase_nn_forward.1} parent=11 // pred_region
          %s276 = ssub.s32 6144, 6144
          %277 = vsyncadd [#allocation6], %s276
          %s278 = sshll.u32 [#allocation5], 4
          %s279 = int_to_ptr.vmem [resolvable:$true] %s278
          %284 = dma.hbm_to_vmem [thread:$0]  %s3, 6144, %s279, [#allocation6], 384, 384, 24
        $region24: #{convbase_nn_forward.1} parent=11 // pred_fallthru
          _
        // Predicated region
        $region25: #{convbase_nn_forward.1} parent=11 // pred_check
          %p285 = pneg %p131
        $region26: #{convbase_nn_forward.1} parent=11 // pred_check_branch
          %287 = sbr.rel (%p285) target = $region28
        $region27: #{convbase_nn_forward.1} parent=11 // pred_region
          _
        $region28: #{convbase_nn_forward.1} parent=11 // pred_fallthru
          _
        // Predicated region
        $region29: #{convbase_nn_forward.1} parent=11 // pred_check
          %p288 = pneg %p152
        $region30: #{convbase_nn_forward.1} parent=11 // pred_check_branch
          %290 = sbr.rel (%p288) target = $region32
        $region31: #{convbase_nn_forward.1} parent=11 // pred_region
          %s292 = ssub.s32 3072, 3072
          %293 = vsyncadd [#allocation6], %s292
          %s294 = sshll.u32 [#allocation7], 4
          %s295 = int_to_ptr.vmem [resolvable:$true] %s294
          %300 = dma.hbm_to_vmem [thread:$0]  %s5, 3072, %s295, [#allocation6], 192, 192, 12
        $region32: #{convbase_nn_forward.1} parent=11 // pred_fallthru
          _
        // Predicated region
        $region33: #{convbase_nn_forward.1} parent=11 // pred_check
          %p301 = pneg %p173
        $region34: #{convbase_nn_forward.1} parent=11 // pred_check_branch
          %303 = sbr.rel (%p301) target = $region36
        $region35: #{convbase_nn_forward.1} parent=11 // pred_region
          _
        $region36: #{convbase_nn_forward.1} parent=11 // pred_fallthru
          _
        // Predicated region
        $region37: #{convbase_nn_forward.1} parent=11 // pred_check
          %p304 = pneg %p194
        $region38: #{convbase_nn_forward.1} parent=11 // pred_check_branch
          %306 = sbr.rel (%p304) target = $region40
        $region39: #{convbase_nn_forward.1} parent=11 // pred_region
          %s308 = ssub.s32 8192, 8192
          %309 = vsyncadd [#allocation9], %s308
          %s310 = sshll.u32 [#allocation8], 4
          %s311 = int_to_ptr.vmem [resolvable:$true] %s310
          %316 = dma.hbm_to_vmem [thread:$0]  %s7, 8192, %s311, [#allocation9], 64, 64, 4
        $region40: #{convbase_nn_forward.1} parent=11 // pred_fallthru
          _
        // Predicated region
        $region41: #{convbase_nn_forward.1} parent=11 // pred_check
          %p317 = pneg %p215
        $region42: #{convbase_nn_forward.1} parent=11 // pred_check_branch
          %319 = sbr.rel (%p317) target = $region44
        $region43: #{convbase_nn_forward.1} parent=11 // pred_region
          _
        $region44: #{convbase_nn_forward.1} parent=11 // pred_fallthru
          _
      $region12: #{convbase_nn_forward.1} parent=5 // pred_fallthru
        _
      %p320 = scmp.lt.s32.totalorder %s21, 2
      // Predicated region
      $region45: #{convbase_nn_forward.1} parent=5 // pred_check
        %p321 = pneg %p320
      $region46: #{convbase_nn_forward.1} parent=5 // pred_check_branch
        %323 = sbr.rel (%p321) target = $region48
      $region47: #{convbase_nn_forward.1} parent=5 // pred_region
        // Predicated region
        $region49: #{convbase_nn_forward.1} parent=47 // pred_check
          %p324 = pneg %p41
        $region50: #{convbase_nn_forward.1} parent=47 // pred_check_branch
          %326 = sbr.rel (%p324) target = $region52
        $region51: #{convbase_nn_forward.1} parent=47 // pred_region
          %p327 = scmp.lt.s32.totalorder %s21, 1
          %s328 = scalar_select %p327, %s21, 1
          %s329 = smul.addr %s328, 8
          %s330 = scalar_lea.vmem %s0, %s329
        $region52: #{convbase_nn_forward.1} parent=47 // pred_fallthru
          _
      $region48: #{convbase_nn_forward.1} parent=5 // pred_fallthru
        _
      %p331 = scmp.le.s32.totalorder 1, %s21
      %p332 = scmp.lt.s32.totalorder %s21, 3
      %p333 = pnand %p331, %p332
      %p334 = pneg %p333
      // Predicated region
      $region53: #{convbase_nn_forward.1} parent=5 // pred_check
        _
      $region54: #{convbase_nn_forward.1} parent=5 // pred_check_branch
        %336 = sbr.rel (%p333) target = $region56
      $region55: #{convbase_nn_forward.1} parent=5 // pred_region
        %s337 = ssub.s32 %s21, 1
        // Predicated region
        $region57: #{convbase_nn_forward.1} parent=55 // pred_check
          %p338 = pneg %p68
        $region58: #{convbase_nn_forward.1} parent=55 // pred_check_branch
          %340 = sbr.rel (%p338) target = $region60
        $region59: #{convbase_nn_forward.1} parent=55 // pred_region
          %341 = dma.done [#allocation3], 6144
        $region60: #{convbase_nn_forward.1} parent=55 // pred_fallthru
          _
        // Predicated region
        $region61: #{convbase_nn_forward.1} parent=55 // pred_check
          %p342 = pneg %p110
        $region62: #{convbase_nn_forward.1} parent=55 // pred_check_branch
          %344 = sbr.rel (%p342) target = $region64
        $region63: #{convbase_nn_forward.1} parent=55 // pred_region
          %345 = dma.done [#allocation6], 6144
        $region64: #{convbase_nn_forward.1} parent=55 // pred_fallthru
          _
        // Predicated region
        $region65: #{convbase_nn_forward.1} parent=55 // pred_check
          %p346 = pneg %p152
        $region66: #{convbase_nn_forward.1} parent=55 // pred_check_branch
          %348 = sbr.rel (%p346) target = $region68
        $region67: #{convbase_nn_forward.1} parent=55 // pred_region
          %349 = dma.done [#allocation6], 3072
        $region68: #{convbase_nn_forward.1} parent=55 // pred_fallthru
          _
        // Predicated region
        $region69: #{convbase_nn_forward.1} parent=55 // pred_check
          %p350 = pneg %p194
        $region70: #{convbase_nn_forward.1} parent=55 // pred_check_branch
          %352 = sbr.rel (%p350) target = $region72
        $region71: #{convbase_nn_forward.1} parent=55 // pred_region
          %353 = dma.done [#allocation9], 8192
        $region72: #{convbase_nn_forward.1} parent=55 // pred_fallthru
          _
        %p354 = scmp.lt.s32.totalorder %s26, 1
        %s355 = scalar_select %p354, %s26, 1
        %s356 = smul.addr %s355, 8
        %s357 = scalar_lea.vmem %s0, %s356
        %p358 = pneg %p47
        %p359 = pneg %p44
        %p360 = pneg %p68
        %p361 = pneg %p65
        %p362 = pneg %p89
        %p363 = pneg %p86
        %p364 = pneg %p110
        %p365 = pneg %p107
        %p366 = pneg %p131
        %p367 = pneg %p128
        %p368 = pneg %p152
        %p369 = pneg %p149
        %p370 = pneg %p173
        %p371 = pneg %p170
        %p372 = pneg %p194
        %p373 = pneg %p191
        %p374 = pneg %p215
        %p375 = pneg %p212
        %p376 = pneg %p241
        %p377 = pneg %p238
        %s378 = sand.u32 %s228, 1
        %s379 = scalar_lea.sflag [#allocation4], %s378
        %s380 = sand.u32 %s228, 1
        %s381 = scalar_lea.vmem [#allocation10], %s380
        %p382 = scmp.lt.s32.totalorder %s26, 1
        %s383 = scalar_select %p382, %s26, 1
        %s384 = smul.addr %s383, 8
        %s385 = scalar_lea.vmem %s0, %s384
        %v387 = vlaneseq
        %v388 = vand.u32 %v387, 127
        %vm389 = vcmp.eq.s32.totalorder %v388, 0
        %v390 = vld [vmem:[%s385] sm:$0xff]
        %392 = vset.pattern.permute.xlu0 0
        %393 = vperm.xlu0 %392, %v390
        %v394 = vpop.permute.xlu0 %393
        %v396 = vsel %vm389, %v394, 0.0
        %v397 = vlaneseq
        %v398 = vshrl.u32 %v397, 7
        %v399 = vcvt.s32.f32 %v388
        %v400 = vld [vmem:[#allocation2] sm:$0xff]
        %v401 = vld [vmem:[#allocation2 + $0x8] sm:$0xff]
        %v402 = vld [vmem:[#allocation2 + $0x10] sm:$0xff]
        %v403 = vld [vmem:[#allocation2 + $0x18] sm:$0xff]
        %v404 = vld [vmem:[#allocation2 + $0x20] sm:$0xff]
        %v405 = vld [vmem:[#allocation2 + $0x28] sm:$0xff]
        %v406 = vld [vmem:[#allocation2 + $0x30] sm:$0xff]
        %v407 = vld [vmem:[#allocation2 + $0x38] sm:$0xff]
        %v408 = vld [vmem:[#allocation2 + $0x40] sm:$0xff]
        %v409 = vld [vmem:[#allocation2 + $0x48] sm:$0xff]
        %v410 = vld [vmem:[#allocation2 + $0x50] sm:$0xff]
        %v411 = vld [vmem:[#allocation2 + $0x58] sm:$0xff]
        %v412 = vld [vmem:[#allocation2 + $0x60] sm:$0xff]
        %v413 = vld [vmem:[#allocation2 + $0x68] sm:$0xff]
        %v414 = vld [vmem:[#allocation2 + $0x70] sm:$0xff]
        %v415 = vld [vmem:[#allocation2 + $0x78] sm:$0xff]
        %v416 = vld [vmem:[#allocation2 + $0x80] sm:$0xff]
        %v417 = vld [vmem:[#allocation2 + $0x88] sm:$0xff]
        %v418 = vld [vmem:[#allocation2 + $0x90] sm:$0xff]
        %v419 = vld [vmem:[#allocation2 + $0x98] sm:$0xff]
        %v420 = vld [vmem:[#allocation2 + $0xa0] sm:$0xff]
        %v421 = vld [vmem:[#allocation2 + $0xa8] sm:$0xff]
        %v422 = vld [vmem:[#allocation2 + $0xb0] sm:$0xff]
        %v423 = vld [vmem:[#allocation2 + $0xb8] sm:$0xff]
        %v424 = vld [vmem:[#allocation2 + $0xc0] sm:$0xff]
        %v425 = vld [vmem:[#allocation2 + $0xc8] sm:$0xff]
        %v426 = vld [vmem:[#allocation2 + $0xd0] sm:$0xff]
        %v427 = vld [vmem:[#allocation2 + $0xd8] sm:$0xff]
        %v428 = vld [vmem:[#allocation2 + $0xe0] sm:$0xff]
        %v429 = vld [vmem:[#allocation2 + $0xe8] sm:$0xff]
        %v430 = vld [vmem:[#allocation2 + $0xf0] sm:$0xff]
        %v431 = vld [vmem:[#allocation2 + $0xf8] sm:$0xff]
        %v432 = vld [vmem:[#allocation2 + $0x100] sm:$0xff]
        %v433 = vld [vmem:[#allocation2 + $0x108] sm:$0xff]
        %v434 = vld [vmem:[#allocation2 + $0x110] sm:$0xff]
        %v435 = vld [vmem:[#allocation2 + $0x118] sm:$0xff]
        %v436 = vld [vmem:[#allocation2 + $0x120] sm:$0xff]
        %v437 = vld [vmem:[#allocation2 + $0x128] sm:$0xff]
        %v438 = vld [vmem:[#allocation2 + $0x130] sm:$0xff]
        %v439 = vld [vmem:[#allocation2 + $0x138] sm:$0xff]
        %v440 = vld [vmem:[#allocation2 + $0x140] sm:$0xff]
        %v441 = vld [vmem:[#allocation2 + $0x148] sm:$0xff]
        %v442 = vld [vmem:[#allocation2 + $0x150] sm:$0xff]
        %v443 = vld [vmem:[#allocation2 + $0x158] sm:$0xff]
        %v444 = vld [vmem:[#allocation2 + $0x160] sm:$0xff]
        %v445 = vld [vmem:[#allocation2 + $0x168] sm:$0xff]
        %v446 = vld [vmem:[#allocation2 + $0x170] sm:$0xff]
        %v447 = vld [vmem:[#allocation2 + $0x178] sm:$0xff]
        %448 = vmatprep.subr.mxu0 0.0
        %v449 = vand.u32 %v396, 4294901760
        %450 = vmatpush1.xpose.msra.mxu0 %v449
        %451 = vmatprep.subr.mxu0 0.0
        %452 = vmatpush1.xpose.msra.mxu0 0.0
        %453 = vmatprep.subr.mxu0 0.0
        %454 = vmatpush1.xpose.msra.mxu0 0.0
        %455 = vmatprep.subr.mxu0 0.0
        %456 = vmatpush1.xpose.msra.mxu0 0.0
        %457 = vmatprep.subr.mxu0 0.0
        %458 = vmatpush1.xpose.msra.mxu0 0.0
        %459 = vmatprep.subr.mxu0 0.0
        %460 = vmatpush1.xpose.msra.mxu0 0.0
        %461 = vmatprep.subr.mxu0 0.0
        %462 = vmatpush1.xpose.msra.mxu0 0.0
        %463 = vmatprep.subr.mxu0 0.0
        %464 = vmatpush1.xpose.msra.mxu0 0.0
        %465 = vmatprep.subr.mxu0 0.0
        %466 = vmatpush1.xpose.msra.mxu0 0.0
        %467 = vmatprep.subr.mxu0 0.0
        %468 = vmatpush1.xpose.msra.mxu0 0.0
        %469 = vmatprep.subr.mxu0 0.0
        %470 = vmatpush1.xpose.msra.mxu0 0.0
        %471 = vmatprep.subr.mxu0 0.0
        %472 = vmatpush1.xpose.msra.mxu0 0.0
        %473 = vmatprep.subr.mxu0 0.0
        %474 = vmatpush1.xpose.msra.mxu0 0.0
        %475 = vmatprep.subr.mxu0 0.0
        %476 = vmatpush1.xpose.msra.mxu0 0.0
        %477 = vmatprep.subr.mxu0 0.0
        %478 = vmatpush1.xpose.msra.mxu0 0.0
        %479 = vmatprep.subr.mxu0 0.0
        %480 = vmatpush1.xpose.msra.mxu0 0.0
        %481 = vmatprep.subr.mxu0 0.0
        %482 = vmatpush1.xpose.msra.mxu0 0.0
        %483 = vmatprep.subr.mxu0 0.0
        %484 = vmatpush1.xpose.msra.mxu0 0.0
        %485 = vmatprep.subr.mxu0 0.0
        %486 = vmatpush1.xpose.msra.mxu0 0.0
        %487 = vmatprep.subr.mxu0 0.0
        %488 = vmatpush1.xpose.msra.mxu0 0.0
        %489 = vmatprep.subr.mxu0 0.0
        %490 = vmatpush1.xpose.msra.mxu0 0.0
        %491 = vmatprep.subr.mxu0 0.0
        %492 = vmatpush1.xpose.msra.mxu0 0.0
        %493 = vmatprep.subr.mxu0 0.0
        %494 = vmatpush1.xpose.msra.mxu0 0.0
        %495 = vmatprep.subr.mxu0 0.0
        %496 = vmatpush1.xpose.msra.mxu0 0.0
        %497 = vmatprep.subr.mxu0 0.0
        %498 = vmatpush1.xpose.msra.mxu0 0.0
        %499 = vmatprep.subr.mxu0 0.0
        %500 = vmatpush1.xpose.msra.mxu0 0.0
        %501 = vmatprep.subr.mxu0 0.0
        %502 = vmatpush1.xpose.msra.mxu0 0.0
        %503 = vmatprep.subr.mxu0 0.0
        %504 = vmatpush1.xpose.msra.mxu0 0.0
        %505 = vmatprep.subr.mxu0 0.0
        %506 = vmatpush1.xpose.msra.mxu0 0.0
        %507 = vmatprep.subr.mxu0 0.0
        %508 = vmatpush1.xpose.msra.mxu0 0.0
        %509 = vmatprep.subr.mxu0 0.0
        %510 = vmatpush1.xpose.msra.mxu0 0.0
        %511 = vmatprep.subr.mxu0 0.0
        %512 = vmatpush1.xpose.msra.mxu0 0.0
        %513 = vmatprep.mubr.f32.mxu0 0.0
        %v514 = vand.u32 %v396, 4294901760
        %v515 = vsub.f32 %v396, %v514
        %v516 = vand.u32 %v515, 4294901760
        %v517 = vsub.f32 %v515, %v516
        %v518 = vand.u32 %v517, 4294901760
        %519 = vmatmul.mubr.f32.gmra.mrb[0].mxu0 %v518
        %v520 = vpop.f32.mrb[0].mxu0
        %v521 = vadd.f32 0.0, %v520
        %v522 = vpop.f32.mrb[0].mxu0
        %523 = vdwg.mxu0
        %524 = vmatprep.subr.mxu0 0.0
        %v525 = vand.u32 %v396, 4294901760
        %v526 = vsub.f32 %v396, %v525
        %v527 = vand.u32 %v526, 4294901760
        %v528 = vsub.f32 %v526, %v527
        %v529 = vand.u32 %v528, 4294901760
        %530 = vmatpush1.xpose.msra.mxu0 %v529
        %531 = vmatprep.subr.mxu0 0.0
        %532 = vmatpush1.xpose.msra.mxu0 0.0
        %533 = vmatprep.subr.mxu0 0.0
        %534 = vmatpush1.xpose.msra.mxu0 0.0
        %535 = vmatprep.subr.mxu0 0.0
        %536 = vmatpush1.xpose.msra.mxu0 0.0
        %537 = vmatprep.subr.mxu0 0.0
        %538 = vmatpush1.xpose.msra.mxu0 0.0
        %539 = vmatprep.subr.mxu0 0.0
        %540 = vmatpush1.xpose.msra.mxu0 0.0
        %541 = vmatprep.subr.mxu0 0.0
        %542 = vmatpush1.xpose.msra.mxu0 0.0
        %543 = vmatprep.subr.mxu0 0.0
        %544 = vmatpush1.xpose.msra.mxu0 0.0
        %545 = vmatprep.subr.mxu0 0.0
        %546 = vmatpush1.xpose.msra.mxu0 0.0
        %547 = vmatprep.subr.mxu0 0.0
        %548 = vmatpush1.xpose.msra.mxu0 0.0
        %549 = vmatprep.subr.mxu0 0.0
        %550 = vmatpush1.xpose.msra.mxu0 0.0
        %551 = vmatprep.subr.mxu0 0.0
        %552 = vmatpush1.xpose.msra.mxu0 0.0
        %553 = vmatprep.subr.mxu0 0.0
        %554 = vmatpush1.xpose.msra.mxu0 0.0
        %555 = vmatprep.subr.mxu0 0.0
        %556 = vmatpush1.xpose.msra.mxu0 0.0
        %557 = vmatprep.subr.mxu0 0.0
        %558 = vmatpush1.xpose.msra.mxu0 0.0
        %559 = vmatprep.subr.mxu0 0.0
        %560 = vmatpush1.xpose.msra.mxu0 0.0
        %561 = vmatprep.subr.mxu0 0.0
        %562 = vmatpush1.xpose.msra.mxu0 0.0
        %563 = vmatprep.subr.mxu0 0.0
        %564 = vmatpush1.xpose.msra.mxu0 0.0
        %565 = vmatprep.subr.mxu0 0.0
        %566 = vmatpush1.xpose.msra.mxu0 0.0
        %567 = vmatprep.subr.mxu0 0.0
        %568 = vmatpush1.xpose.msra.mxu0 0.0
        %569 = vmatprep.subr.mxu0 0.0
        %570 = vmatpush1.xpose.msra.mxu0 0.0
        %571 = vmatprep.subr.mxu0 0.0
        %572 = vmatpush1.xpose.msra.mxu0 0.0
        %573 = vmatprep.subr.mxu0 0.0
        %574 = vmatpush1.xpose.msra.mxu0 0.0
        %575 = vmatprep.subr.mxu0 0.0
        %576 = vmatpush1.xpose.msra.mxu0 0.0
        %577 = vmatprep.subr.mxu0 0.0
        %578 = vmatpush1.xpose.msra.mxu0 0.0
        %579 = vmatprep.subr.mxu0 0.0
        %580 = vmatpush1.xpose.msra.mxu0 0.0
        %581 = vmatprep.subr.mxu0 0.0
        %582 = vmatpush1.xpose.msra.mxu0 0.0
        %583 = vmatprep.subr.mxu0 0.0
        %584 = vmatpush1.xpose.msra.mxu0 0.0
        %585 = vmatprep.subr.mxu0 0.0
        %586 = vmatpush1.xpose.msra.mxu0 0.0
        %587 = vmatprep.subr.mxu0 0.0
        %588 = vmatpush1.xpose.msra.mxu0 0.0
        %589 = vmatprep.subr.mxu0 0.0
        %590 = vmatpush1.xpose.msra.mxu0 0.0
        %591 = vmatprep.subr.mxu0 0.0
        %592 = vmatpush1.xpose.msra.mxu0 0.0
        %593 = vmatprep.mubr.f32.mxu0 0.0
        %v594 = vand.u32 %v396, 4294901760
        %595 = vmatmul.mubr.f32.gmra.mrb[0].mxu0 %v594
        %v596 = vpop.f32.mrb[0].mxu0
        %v597 = vadd.f32 %v521, %v596
        %v598 = vpop.f32.mrb[0].mxu0
        %599 = vdwg.mxu0
        %600 = vmatprep.subr.mxu0 0.0
        %v601 = vand.u32 %v396, 4294901760
        %v602 = vsub.f32 %v396, %v601
        %603 = vmatpush1.xpose.msra.mxu0 %v602
        %604 = vmatprep.subr.mxu0 0.0
        %605 = vmatpush1.xpose.msra.mxu0 0.0
        %606 = vmatprep.subr.mxu0 0.0
        %607 = vmatpush1.xpose.msra.mxu0 0.0
        %608 = vmatprep.subr.mxu0 0.0
        %609 = vmatpush1.xpose.msra.mxu0 0.0
        %610 = vmatprep.subr.mxu0 0.0
        %611 = vmatpush1.xpose.msra.mxu0 0.0
        %612 = vmatprep.subr.mxu0 0.0
        %613 = vmatpush1.xpose.msra.mxu0 0.0
        %614 = vmatprep.subr.mxu0 0.0
        %615 = vmatpush1.xpose.msra.mxu0 0.0
        %616 = vmatprep.subr.mxu0 0.0
        %617 = vmatpush1.xpose.msra.mxu0 0.0
        %618 = vmatprep.subr.mxu0 0.0
        %619 = vmatpush1.xpose.msra.mxu0 0.0
        %620 = vmatprep.subr.mxu0 0.0
        %621 = vmatpush1.xpose.msra.mxu0 0.0
        %622 = vmatprep.subr.mxu0 0.0
        %623 = vmatpush1.xpose.msra.mxu0 0.0
        %624 = vmatprep.subr.mxu0 0.0
        %625 = vmatpush1.xpose.msra.mxu0 0.0
        %626 = vmatprep.subr.mxu0 0.0
        %627 = vmatpush1.xpose.msra.mxu0 0.0
        %628 = vmatprep.subr.mxu0 0.0
        %629 = vmatpush1.xpose.msra.mxu0 0.0
        %630 = vmatprep.subr.mxu0 0.0
        %631 = vmatpush1.xpose.msra.mxu0 0.0
        %632 = vmatprep.subr.mxu0 0.0
        %633 = vmatpush1.xpose.msra.mxu0 0.0
        %634 = vmatprep.subr.mxu0 0.0
        %635 = vmatpush1.xpose.msra.mxu0 0.0
        %636 = vmatprep.subr.mxu0 0.0
        %637 = vmatpush1.xpose.msra.mxu0 0.0
        %638 = vmatprep.subr.mxu0 0.0
        %639 = vmatpush1.xpose.msra.mxu0 0.0
        %640 = vmatprep.subr.mxu0 0.0
        %641 = vmatpush1.xpose.msra.mxu0 0.0
        %642 = vmatprep.subr.mxu0 0.0
        %643 = vmatpush1.xpose.msra.mxu0 0.0
        %644 = vmatprep.subr.mxu0 0.0
        %645 = vmatpush1.xpose.msra.mxu0 0.0
        %646 = vmatprep.subr.mxu0 0.0
        %647 = vmatpush1.xpose.msra.mxu0 0.0
        %648 = vmatprep.subr.mxu0 0.0
        %649 = vmatpush1.xpose.msra.mxu0 0.0
        %650 = vmatprep.subr.mxu0 0.0
        %651 = vmatpush1.xpose.msra.mxu0 0.0
        %652 = vmatprep.subr.mxu0 0.0
        %653 = vmatpush1.xpose.msra.mxu0 0.0
        %654 = vmatprep.subr.mxu0 0.0
        %655 = vmatpush1.xpose.msra.mxu0 0.0
        %656 = vmatprep.subr.mxu0 0.0
        %657 = vmatpush1.xpose.msra.mxu0 0.0
        %658 = vmatprep.subr.mxu0 0.0
        %659 = vmatpush1.xpose.msra.mxu0 0.0
        %660 = vmatprep.subr.mxu0 0.0
        %661 = vmatpush1.xpose.msra.mxu0 0.0
        %662 = vmatprep.subr.mxu0 0.0
        %663 = vmatpush1.xpose.msra.mxu0 0.0
        %664 = vmatprep.subr.mxu0 0.0
        %665 = vmatpush1.xpose.msra.mxu0 0.0
        %666 = vmatprep.mubr.f32.mxu0 0.0
        %v667 = vand.u32 %v396, 4294901760
        %v668 = vsub.f32 %v396, %v667
        %669 = vmatmul.mubr.f32.gmra.mrb[0].mxu0 %v668
        %v670 = vpop.f32.mrb[0].mxu0
        %v671 = vadd.f32 %v597, %v670
        %v672 = vpop.f32.mrb[0].mxu0
        %673 = vdwg.mxu0
        %674 = vmatprep.subr.mxu0 0.0
        %v675 = vand.u32 %v396, 4294901760
        %676 = vmatpush1.xpose.msra.mxu0 %v675
        %677 = vmatprep.subr.mxu0 0.0
        %678 = vmatpush1.xpose.msra.mxu0 0.0
        %679 = vmatprep.subr.mxu0 0.0
        %680 = vmatpush1.xpose.msra.mxu0 0.0
        %681 = vmatprep.subr.mxu0 0.0
        %682 = vmatpush1.xpose.msra.mxu0 0.0
        %683 = vmatprep.subr.mxu0 0.0
        %684 = vmatpush1.xpose.msra.mxu0 0.0
        %685 = vmatprep.subr.mxu0 0.0
        %686 = vmatpush1.xpose.msra.mxu0 0.0
        %687 = vmatprep.subr.mxu0 0.0
        %688 = vmatpush1.xpose.msra.mxu0 0.0
        %689 = vmatprep.subr.mxu0 0.0
        %690 = vmatpush1.xpose.msra.mxu0 0.0
        %691 = vmatprep.subr.mxu0 0.0
        %692 = vmatpush1.xpose.msra.mxu0 0.0
        %693 = vmatprep.subr.mxu0 0.0
        %694 = vmatpush1.xpose.msra.mxu0 0.0
        %695 = vmatprep.subr.mxu0 0.0
        %696 = vmatpush1.xpose.msra.mxu0 0.0
        %697 = vmatprep.subr.mxu0 0.0
        %698 = vmatpush1.xpose.msra.mxu0 0.0
        %699 = vmatprep.subr.mxu0 0.0
        %700 = vmatpush1.xpose.msra.mxu0 0.0
        %701 = vmatprep.subr.mxu0 0.0
        %702 = vmatpush1.xpose.msra.mxu0 0.0
        %703 = vmatprep.subr.mxu0 0.0
        %704 = vmatpush1.xpose.msra.mxu0 0.0
        %705 = vmatprep.subr.mxu0 0.0
        %706 = vmatpush1.xpose.msra.mxu0 0.0
        %707 = vmatprep.subr.mxu0 0.0
        %708 = vmatpush1.xpose.msra.mxu0 0.0
        %709 = vmatprep.subr.mxu0 0.0
        %710 = vmatpush1.xpose.msra.mxu0 0.0
        %711 = vmatprep.subr.mxu0 0.0
        %712 = vmatpush1.xpose.msra.mxu0 0.0
        %713 = vmatprep.subr.mxu0 0.0
        %714 = vmatpush1.xpose.msra.mxu0 0.0
        %715 = vmatprep.subr.mxu0 0.0
        %716 = vmatpush1.xpose.msra.mxu0 0.0
        %717 = vmatprep.subr.mxu0 0.0
        %718 = vmatpush1.xpose.msra.mxu0 0.0
        %719 = vmatprep.subr.mxu0 0.0
        %720 = vmatpush1.xpose.msra.mxu0 0.0
        %721 = vmatprep.subr.mxu0 0.0
        %722 = vmatpush1.xpose.msra.mxu0 0.0
        %723 = vmatprep.subr.mxu0 0.0
        %724 = vmatpush1.xpose.msra.mxu0 0.0
        %725 = vmatprep.subr.mxu0 0.0
        %726 = vmatpush1.xpose.msra.mxu0 0.0
        %727 = vmatprep.subr.mxu0 0.0
        %728 = vmatpush1.xpose.msra.mxu0 0.0
        %729 = vmatprep.subr.mxu0 0.0
        %730 = vmatpush1.xpose.msra.mxu0 0.0
        %731 = vmatprep.subr.mxu0 0.0
        %732 = vmatpush1.xpose.msra.mxu0 0.0
        %733 = vmatprep.subr.mxu0 0.0
        %734 = vmatpush1.xpose.msra.mxu0 0.0
        %735 = vmatprep.subr.mxu0 0.0
        %736 = vmatpush1.xpose.msra.mxu0 0.0
        %737 = vmatprep.subr.mxu0 0.0
        %738 = vmatpush1.xpose.msra.mxu0 0.0
        %739 = vmatprep.mubr.f32.mxu0 0.0
        %v740 = vand.u32 %v396, 4294901760
        %v741 = vsub.f32 %v396, %v740
        %v742 = vand.u32 %v741, 4294901760
        %743 = vmatmul.mubr.f32.gmra.mrb[0].mxu0 %v742
        %v744 = vpop.f32.mrb[0].mxu0
        %v745 = vadd.f32 %v671, %v744
        %v746 = vpop.f32.mrb[0].mxu0
        %747 = vdwg.mxu0
        %748 = vmatprep.subr.mxu0 0.0
        %v749 = vand.u32 %v396, 4294901760
        %v750 = vsub.f32 %v396, %v749
        %v751 = vand.u32 %v750, 4294901760
        %752 = vmatpush1.xpose.msra.mxu0 %v751
        %753 = vmatprep.subr.mxu0 0.0
        %754 = vmatpush1.xpose.msra.mxu0 0.0
        %755 = vmatprep.subr.mxu0 0.0
        %756 = vmatpush1.xpose.msra.mxu0 0.0
        %757 = vmatprep.subr.mxu0 0.0
        %758 = vmatpush1.xpose.msra.mxu0 0.0
        %759 = vmatprep.subr.mxu0 0.0
        %760 = vmatpush1.xpose.msra.mxu0 0.0
        %761 = vmatprep.subr.mxu0 0.0
        %762 = vmatpush1.xpose.msra.mxu0 0.0
        %763 = vmatprep.subr.mxu0 0.0
        %764 = vmatpush1.xpose.msra.mxu0 0.0
        %765 = vmatprep.subr.mxu0 0.0
        %766 = vmatpush1.xpose.msra.mxu0 0.0
        %767 = vmatprep.subr.mxu0 0.0
        %768 = vmatpush1.xpose.msra.mxu0 0.0
        %769 = vmatprep.subr.mxu0 0.0
        %770 = vmatpush1.xpose.msra.mxu0 0.0
        %771 = vmatprep.subr.mxu0 0.0
        %772 = vmatpush1.xpose.msra.mxu0 0.0
        %773 = vmatprep.subr.mxu0 0.0
        %774 = vmatpush1.xpose.msra.mxu0 0.0
        %775 = vmatprep.subr.mxu0 0.0
        %776 = vmatpush1.xpose.msra.mxu0 0.0
        %777 = vmatprep.subr.mxu0 0.0
        %778 = vmatpush1.xpose.msra.mxu0 0.0
        %779 = vmatprep.subr.mxu0 0.0
        %780 = vmatpush1.xpose.msra.mxu0 0.0
        %781 = vmatprep.subr.mxu0 0.0
        %782 = vmatpush1.xpose.msra.mxu0 0.0
        %783 = vmatprep.subr.mxu0 0.0
        %784 = vmatpush1.xpose.msra.mxu0 0.0
        %785 = vmatprep.subr.mxu0 0.0
        %786 = vmatpush1.xpose.msra.mxu0 0.0
        %787 = vmatprep.subr.mxu0 0.0
        %788 = vmatpush1.xpose.msra.mxu0 0.0
        %789 = vmatprep.subr.mxu0 0.0
        %790 = vmatpush1.xpose.msra.mxu0 0.0
        %791 = vmatprep.subr.mxu0 0.0
        %792 = vmatpush1.xpose.msra.mxu0 0.0
        %793 = vmatprep.subr.mxu0 0.0
        %794 = vmatpush1.xpose.msra.mxu0 0.0
        %795 = vmatprep.subr.mxu0 0.0
        %796 = vmatpush1.xpose.msra.mxu0 0.0
        %797 = vmatprep.subr.mxu0 0.0
        %798 = vmatpush1.xpose.msra.mxu0 0.0
        %799 = vmatprep.subr.mxu0 0.0
        %800 = vmatpush1.xpose.msra.mxu0 0.0
        %801 = vmatprep.subr.mxu0 0.0
        %802 = vmatpush1.xpose.msra.mxu0 0.0
        %803 = vmatprep.subr.mxu0 0.0
        %804 = vmatpush1.xpose.msra.mxu0 0.0
        %805 = vmatprep.subr.mxu0 0.0
        %806 = vmatpush1.xpose.msra.mxu0 0.0
        %807 = vmatprep.subr.mxu0 0.0
        %808 = vmatpush1.xpose.msra.mxu0 0.0
        %809 = vmatprep.subr.mxu0 0.0
        %810 = vmatpush1.xpose.msra.mxu0 0.0
        %811 = vmatprep.subr.mxu0 0.0
        %812 = vmatpush1.xpose.msra.mxu0 0.0
        %813 = vmatprep.subr.mxu0 0.0
        %814 = vmatpush1.xpose.msra.mxu0 0.0
        %815 = vmatprep.mubr.f32.mxu0 0.0
        %v816 = vand.u32 %v396, 4294901760
        %817 = vmatmul.mubr.f32.gmra.mrb[0].mxu0 %v816
        %v818 = vpop.f32.mrb[0].mxu0
        %v819 = vadd.f32 %v745, %v818
        %v820 = vpop.f32.mrb[0].mxu0
        %821 = vdwg.mxu0
        %822 = vmatprep.subr.mxu0 0.0
        %v823 = vand.u32 %v396, 4294901760
        %824 = vmatpush1.xpose.msra.mxu0 %v823
        %825 = vmatprep.subr.mxu0 0.0
        %826 = vmatpush1.xpose.msra.mxu0 0.0
        %827 = vmatprep.subr.mxu0 0.0
        %828 = vmatpush1.xpose.msra.mxu0 0.0
        %829 = vmatprep.subr.mxu0 0.0
        %830 = vmatpush1.xpose.msra.mxu0 0.0
        %831 = vmatprep.subr.mxu0 0.0
        %832 = vmatpush1.xpose.msra.mxu0 0.0
        %833 = vmatprep.subr.mxu0 0.0
        %834 = vmatpush1.xpose.msra.mxu0 0.0
        %835 = vmatprep.subr.mxu0 0.0
        %836 = vmatpush1.xpose.msra.mxu0 0.0
        %837 = vmatprep.subr.mxu0 0.0
        %838 = vmatpush1.xpose.msra.mxu0 0.0
        %839 = vmatprep.subr.mxu0 0.0
        %840 = vmatpush1.xpose.msra.mxu0 0.0
        %841 = vmatprep.subr.mxu0 0.0
        %842 = vmatpush1.xpose.msra.mxu0 0.0
        %843 = vmatprep.subr.mxu0 0.0
        %844 = vmatpush1.xpose.msra.mxu0 0.0
        %845 = vmatprep.subr.mxu0 0.0
        %846 = vmatpush1.xpose.msra.mxu0 0.0
        %847 = vmatprep.subr.mxu0 0.0
        %848 = vmatpush1.xpose.msra.mxu0 0.0
        %849 = vmatprep.subr.mxu0 0.0
        %850 = vmatpush1.xpose.msra.mxu0 0.0
        %851 = vmatprep.subr.mxu0 0.0
        %852 = vmatpush1.xpose.msra.mxu0 0.0
        %853 = vmatprep.subr.mxu0 0.0
        %854 = vmatpush1.xpose.msra.mxu0 0.0
        %855 = vmatprep.subr.mxu0 0.0
        %856 = vmatpush1.xpose.msra.mxu0 0.0
        %857 = vmatprep.subr.mxu0 0.0
        %858 = vmatpush1.xpose.msra.mxu0 0.0
        %859 = vmatprep.subr.mxu0 0.0
        %860 = vmatpush1.xpose.msra.mxu0 0.0
        %861 = vmatprep.subr.mxu0 0.0
        %862 = vmatpush1.xpose.msra.mxu0 0.0
        %863 = vmatprep.subr.mxu0 0.0
        %864 = vmatpush1.xpose.msra.mxu0 0.0
        %865 = vmatprep.subr.mxu0 0.0
        %866 = vmatpush1.xpose.msra.mxu0 0.0
        %867 = vmatprep.subr.mxu0 0.0
        %868 = vmatpush1.xpose.msra.mxu0 0.0
        %869 = vmatprep.subr.mxu0 0.0
        %870 = vmatpush1.xpose.msra.mxu0 0.0
        %871 = vmatprep.subr.mxu0 0.0
        %872 = vmatpush1.xpose.msra.mxu0 0.0
        %873 = vmatprep.subr.mxu0 0.0
        %874 = vmatpush1.xpose.msra.mxu0 0.0
        %875 = vmatprep.subr.mxu0 0.0
        %876 = vmatpush1.xpose.msra.mxu0 0.0
        %877 = vmatprep.subr.mxu0 0.0
        %878 = vmatpush1.xpose.msra.mxu0 0.0
        %879 = vmatprep.subr.mxu0 0.0
        %880 = vmatpush1.xpose.msra.mxu0 0.0
        %881 = vmatprep.subr.mxu0 0.0
        %882 = vmatpush1.xpose.msra.mxu0 0.0
        %883 = vmatprep.subr.mxu0 0.0
        %884 = vmatpush1.xpose.msra.mxu0 0.0
        %885 = vmatprep.subr.mxu0 0.0
        %886 = vmatpush1.xpose.msra.mxu0 0.0
        %887 = vmatprep.mubr.f32.mxu0 0.0
        %v888 = vand.u32 %v396, 4294901760
        %889 = vmatmul.mubr.f32.gmra.mrb[0].mxu0 %v888
        %v890 = vpop.f32.mrb[0].mxu0
        %v891 = vadd.f32 %v819, %v890
        %v892 = vpop.f32.mrb[0].mxu0
        %893 = vdwg.mxu0
        %vm894 = vcmp.eq.s32.totalorder %v398, %v388
        %v895 = vsel %vm894, %v891, 0.0
        %vm896 = vcmask 64512
        %v897 = vsel %vm896, %v895, 0.0
        %v898 = vrot.slane %v897, 4
        %v899 = vadd.f32 %v897, %v898
        %v900 = vrot.slane %v899, 2
        %v901 = vadd.f32 %v899, %v900
        %v902 = vrot.slane %v901, 1
        %v903 = vadd.f32 %v901, %v902
        %v904 = vmul.f32 %v891, 2.0
        %v905 = vsub.f32 %v903, %v904
        %v906 = vand.u32 %v401, 4294901760
        %907 = vmatprep.subr.mxu0 %v906
        %v908 = vand.u32 %v400, 4294901760
        %909 = vmatpush1.msra.mxu0 %v908
        %v910 = vand.u32 %v404, 4294901760
        %911 = vmatprep.subr.mxu0 %v910
        %v912 = vand.u32 %v403, 4294901760
        %913 = vmatpush1.msra.mxu0 %v912
        %v914 = vand.u32 %v407, 4294901760
        %915 = vmatprep.subr.mxu0 %v914
        %v916 = vand.u32 %v406, 4294901760
        %917 = vmatpush1.msra.mxu0 %v916
        %v918 = vand.u32 %v410, 4294901760
        %919 = vmatprep.subr.mxu0 %v918
        %v920 = vand.u32 %v409, 4294901760
        %921 = vmatpush1.msra.mxu0 %v920
        %v922 = vand.u32 %v413, 4294901760
        %923 = vmatprep.subr.mxu0 %v922
        %v924 = vand.u32 %v412, 4294901760
        %925 = vmatpush1.msra.mxu0 %v924
        %v926 = vand.u32 %v416, 4294901760
        %927 = vmatprep.subr.mxu0 %v926
        %v928 = vand.u32 %v415, 4294901760
        %929 = vmatpush1.msra.mxu0 %v928
        %v930 = vand.u32 %v419, 4294901760
        %931 = vmatprep.subr.mxu0 %v930
        %v932 = vand.u32 %v418, 4294901760
        %933 = vmatpush1.msra.mxu0 %v932
        %v934 = vand.u32 %v422, 4294901760
        %935 = vmatprep.subr.mxu0 %v934
        %v936 = vand.u32 %v421, 4294901760
        %937 = vmatpush1.msra.mxu0 %v936
        %v938 = vand.u32 %v425, 4294901760
        %939 = vmatprep.subr.mxu0 %v938
        %v940 = vand.u32 %v424, 4294901760
        %941 = vmatpush1.msra.mxu0 %v940
        %v942 = vand.u32 %v428, 4294901760
        %943 = vmatprep.subr.mxu0 %v942
        %v944 = vand.u32 %v427, 4294901760
        %945 = vmatpush1.msra.mxu0 %v944
        %v946 = vand.u32 %v431, 4294901760
        %947 = vmatprep.subr.mxu0 %v946
        %v948 = vand.u32 %v430, 4294901760
        %949 = vmatpush1.msra.mxu0 %v948
        %v950 = vand.u32 %v434, 4294901760
        %951 = vmatprep.subr.mxu0 %v950
        %v952 = vand.u32 %v433, 4294901760
        %953 = vmatpush1.msra.mxu0 %v952
        %v954 = vand.u32 %v437, 4294901760
        %955 = vmatprep.subr.mxu0 %v954
        %v956 = vand.u32 %v436, 4294901760
        %957 = vmatpush1.msra.mxu0 %v956
        %v958 = vand.u32 %v440, 4294901760
        %959 = vmatprep.subr.mxu0 %v958
        %v960 = vand.u32 %v439, 4294901760
        %961 = vmatpush1.msra.mxu0 %v960
        %v962 = vand.u32 %v443, 4294901760
        %963 = vmatprep.subr.mxu0 %v962
        %v964 = vand.u32 %v442, 4294901760
        %965 = vmatpush1.msra.mxu0 %v964
        %v966 = vand.u32 %v446, 4294901760
        %967 = vmatprep.subr.mxu0 %v966
        %v968 = vand.u32 %v445, 4294901760
        %969 = vmatpush1.msra.mxu0 %v968
        %970 = vmatprep.subr.mxu0 0.0
        %971 = vmatpush1.msra.mxu0 0.0
        %972 = vmatprep.subr.mxu0 0.0
        %973 = vmatpush1.msra.mxu0 0.0
        %974 = vmatprep.subr.mxu0 0.0
        %975 = vmatpush1.msra.mxu0 0.0
        %976 = vmatprep.subr.mxu0 0.0
        %977 = vmatpush1.msra.mxu0 0.0
        %978 = vmatprep.subr.mxu0 0.0
        %979 = vmatpush1.msra.mxu0 0.0
        %980 = vmatprep.subr.mxu0 0.0
        %981 = vmatpush1.msra.mxu0 0.0
        %982 = vmatprep.subr.mxu0 0.0
        %983 = vmatpush1.msra.mxu0 0.0
        %984 = vmatprep.subr.mxu0 0.0
        %985 = vmatpush1.msra.mxu0 0.0
        %986 = vmatprep.subr.mxu0 0.0
        %987 = vmatpush1.msra.mxu0 0.0
        %988 = vmatprep.subr.mxu0 0.0
        %989 = vmatpush1.msra.mxu0 0.0
        %990 = vmatprep.subr.mxu0 0.0
        %991 = vmatpush1.msra.mxu0 0.0
        %992 = vmatprep.subr.mxu0 0.0
        %993 = vmatpush1.msra.mxu0 0.0
        %994 = vmatprep.subr.mxu0 0.0
        %995 = vmatpush1.msra.mxu0 0.0
        %996 = vmatprep.subr.mxu0 0.0
        %997 = vmatpush1.msra.mxu0 0.0
        %998 = vmatprep.subr.mxu0 0.0
        %999 = vmatpush1.msra.mxu0 0.0
        %1000 = vmatprep.subr.mxu0 0.0
        %1001 = vmatpush1.msra.mxu0 0.0
        %1002 = vmatprep.mubr.f32.mxu0 0.0
        %v1003 = vand.u32 %v396, 4294901760
        %v1004 = vsub.f32 %v396, %v1003
        %v1005 = vand.u32 %v1004, 4294901760
        %v1006 = vsub.f32 %v1004, %v1005
        %v1007 = vand.u32 %v1006, 4294901760
        %1008 = vmatmul.mubr.f32.gmra.mrb[0].mxu0 %v1007
        %v1009 = vpop.f32.mrb[0].mxu0
        %v1010 = vadd.f32 0.0, %v1009
        %v1011 = vpop.f32.mrb[0].mxu0
        %v1012 = vadd.f32 0.0, %v1011
        %1013 = vdwg.mxu0
        %v1014 = vand.u32 %v401, 4294901760
        %v1015 = vsub.f32 %v401, %v1014
        %v1016 = vand.u32 %v1015, 4294901760
        %v1017 = vsub.f32 %v1015, %v1016
        %v1018 = vand.u32 %v1017, 4294901760
        %1019 = vmatprep.subr.mxu0 %v1018
        %v1020 = vand.u32 %v400, 4294901760
        %v1021 = vsub.f32 %v400, %v1020
        %v1022 = vand.u32 %v1021, 4294901760
        %v1023 = vsub.f32 %v1021, %v1022
        %v1024 = vand.u32 %v1023, 4294901760
        %1025 = vmatpush1.msra.mxu0 %v1024
        %v1026 = vand.u32 %v404, 4294901760
        %v1027 = vsub.f32 %v404, %v1026
        %v1028 = vand.u32 %v1027, 4294901760
        %v1029 = vsub.f32 %v1027, %v1028
        %v1030 = vand.u32 %v1029, 4294901760
        %1031 = vmatprep.subr.mxu0 %v1030
        %v1032 = vand.u32 %v403, 4294901760
        %v1033 = vsub.f32 %v403, %v1032
        %v1034 = vand.u32 %v1033, 4294901760
        %v1035 = vsub.f32 %v1033, %v1034
        %v1036 = vand.u32 %v1035, 4294901760
        %1037 = vmatpush1.msra.mxu0 %v1036
        %v1038 = vand.u32 %v407, 4294901760
        %v1039 = vsub.f32 %v407, %v1038
        %v1040 = vand.u32 %v1039, 4294901760
        %v1041 = vsub.f32 %v1039, %v1040
        %v1042 = vand.u32 %v1041, 4294901760
        %1043 = vmatprep.subr.mxu0 %v1042
        %v1044 = vand.u32 %v406, 4294901760
        %v1045 = vsub.f32 %v406, %v1044
        %v1046 = vand.u32 %v1045, 4294901760
        %v1047 = vsub.f32 %v1045, %v1046
        %v1048 = vand.u32 %v1047, 4294901760
        %1049 = vmatpush1.msra.mxu0 %v1048
        %v1050 = vand.u32 %v410, 4294901760
        %v1051 = vsub.f32 %v410, %v1050
        %v1052 = vand.u32 %v1051, 4294901760
        %v1053 = vsub.f32 %v1051, %v1052
        %v1054 = vand.u32 %v1053, 4294901760
        %1055 = vmatprep.subr.mxu0 %v1054
        %v1056 = vand.u32 %v409, 4294901760
        %v1057 = vsub.f32 %v409, %v1056
        %v1058 = vand.u32 %v1057, 4294901760
        %v1059 = vsub.f32 %v1057, %v1058
        %v1060 = vand.u32 %v1059, 4294901760
        %1061 = vmatpush1.msra.mxu0 %v1060
        %v1062 = vand.u32 %v413, 4294901760
        %v1063 = vsub.f32 %v413, %v1062
        %v1064 = vand.u32 %v1063, 4294901760
        %v1065 = vsub.f32 %v1063, %v1064
        %v1066 = vand.u32 %v1065, 4294901760
        %1067 = vmatprep.subr.mxu0 %v1066
        %v1068 = vand.u32 %v412, 4294901760
        %v1069 = vsub.f32 %v412, %v1068
        %v1070 = vand.u32 %v1069, 4294901760
        %v1071 = vsub.f32 %v1069, %v1070
        %v1072 = vand.u32 %v1071, 4294901760
        %1073 = vmatpush1.msra.mxu0 %v1072
        %v1074 = vand.u32 %v416, 4294901760
        %v1075 = vsub.f32 %v416, %v1074
        %v1076 = vand.u32 %v1075, 4294901760
        %v1077 = vsub.f32 %v1075, %v1076
        %v1078 = vand.u32 %v1077, 4294901760
        %1079 = vmatprep.subr.mxu0 %v1078
        %v1080 = vand.u32 %v415, 4294901760
        %v1081 = vsub.f32 %v415, %v1080
        %v1082 = vand.u32 %v1081, 4294901760
        %v1083 = vsub.f32 %v1081, %v1082
        %v1084 = vand.u32 %v1083, 4294901760
        %1085 = vmatpush1.msra.mxu0 %v1084
        %v1086 = vand.u32 %v419, 4294901760
        %v1087 = vsub.f32 %v419, %v1086
        %v1088 = vand.u32 %v1087, 4294901760
        %v1089 = vsub.f32 %v1087, %v1088
        %v1090 = vand.u32 %v1089, 4294901760
        %1091 = vmatprep.subr.mxu0 %v1090
        %v1092 = vand.u32 %v418, 4294901760
        %v1093 = vsub.f32 %v418, %v1092
        %v1094 = vand.u32 %v1093, 4294901760
        %v1095 = vsub.f32 %v1093, %v1094
        %v1096 = vand.u32 %v1095, 4294901760
        %1097 = vmatpush1.msra.mxu0 %v1096
        %v1098 = vand.u32 %v422, 4294901760
        %v1099 = vsub.f32 %v422, %v1098
        %v1100 = vand.u32 %v1099, 4294901760
        %v1101 = vsub.f32 %v1099, %v1100
        %v1102 = vand.u32 %v1101, 4294901760
        %1103 = vmatprep.subr.mxu0 %v1102
        %v1104 = vand.u32 %v421, 4294901760
        %v1105 = vsub.f32 %v421, %v1104
        %v1106 = vand.u32 %v1105, 4294901760
        %v1107 = vsub.f32 %v1105, %v1106
        %v1108 = vand.u32 %v1107, 4294901760
        %1109 = vmatpush1.msra.mxu0 %v1108
        %v1110 = vand.u32 %v425, 4294901760
        %v1111 = vsub.f32 %v425, %v1110
        %v1112 = vand.u32 %v1111, 4294901760
        %v1113 = vsub.f32 %v1111, %v1112
        %v1114 = vand.u32 %v1113, 4294901760
        %1115 = vmatprep.subr.mxu0 %v1114
        %v1116 = vand.u32 %v424, 4294901760
        %v1117 = vsub.f32 %v424, %v1116
        %v1118 = vand.u32 %v1117, 4294901760
        %v1119 = vsub.f32 %v1117, %v1118
        %v1120 = vand.u32 %v1119, 4294901760
        %1121 = vmatpush1.msra.mxu0 %v1120
        %v1122 = vand.u32 %v428, 4294901760
        %v1123 = vsub.f32 %v428, %v1122
        %v1124 = vand.u32 %v1123, 4294901760
        %v1125 = vsub.f32 %v1123, %v1124
        %v1126 = vand.u32 %v1125, 4294901760
        %1127 = vmatprep.subr.mxu0 %v1126
        %v1128 = vand.u32 %v427, 4294901760
        %v1129 = vsub.f32 %v427, %v1128
        %v1130 = vand.u32 %v1129, 4294901760
        %v1131 = vsub.f32 %v1129, %v1130
        %v1132 = vand.u32 %v1131, 4294901760
        %1133 = vmatpush1.msra.mxu0 %v1132
        %v1134 = vand.u32 %v431, 4294901760
        %v1135 = vsub.f32 %v431, %v1134
        %v1136 = vand.u32 %v1135, 4294901760
        %v1137 = vsub.f32 %v1135, %v1136
        %v1138 = vand.u32 %v1137, 4294901760
        %1139 = vmatprep.subr.mxu0 %v1138
        %v1140 = vand.u32 %v430, 4294901760
        %v1141 = vsub.f32 %v430, %v1140
        %v1142 = vand.u32 %v1141, 4294901760
        %v1143 = vsub.f32 %v1141, %v1142
        %v1144 = vand.u32 %v1143, 4294901760
        %1145 = vmatpush1.msra.mxu0 %v1144
        %v1146 = vand.u32 %v434, 4294901760
        %v1147 = vsub.f32 %v434, %v1146
        %v1148 = vand.u32 %v1147, 4294901760
        %v1149 = vsub.f32 %v1147, %v1148
        %v1150 = vand.u32 %v1149, 4294901760
        %1151 = vmatprep.subr.mxu0 %v1150
        %v1152 = vand.u32 %v433, 4294901760
        %v1153 = vsub.f32 %v433, %v1152
        %v1154 = vand.u32 %v1153, 4294901760
        %v1155 = vsub.f32 %v1153, %v1154
        %v1156 = vand.u32 %v1155, 4294901760
        %1157 = vmatpush1.msra.mxu0 %v1156
        %v1158 = vand.u32 %v437, 4294901760
        %v1159 = vsub.f32 %v437, %v1158
        %v1160 = vand.u32 %v1159, 4294901760
        %v1161 = vsub.f32 %v1159, %v1160
        %v1162 = vand.u32 %v1161, 4294901760
        %1163 = vmatprep.subr.mxu0 %v1162
        %v1164 = vand.u32 %v436, 4294901760
        %v1165 = vsub.f32 %v436, %v1164
        %v1166 = vand.u32 %v1165, 4294901760
        %v1167 = vsub.f32 %v1165, %v1166
        %v1168 = vand.u32 %v1167, 4294901760
        %1169 = vmatpush1.msra.mxu0 %v1168
        %v1170 = vand.u32 %v440, 4294901760
        %v1171 = vsub.f32 %v440, %v1170
        %v1172 = vand.u32 %v1171, 4294901760
        %v1173 = vsub.f32 %v1171, %v1172
        %v1174 = vand.u32 %v1173, 4294901760
        %1175 = vmatprep.subr.mxu0 %v1174
        %v1176 = vand.u32 %v439, 4294901760
        %v1177 = vsub.f32 %v439, %v1176
        %v1178 = vand.u32 %v1177, 4294901760
        %v1179 = vsub.f32 %v1177, %v1178
        %v1180 = vand.u32 %v1179, 4294901760
        %1181 = vmatpush1.msra.mxu0 %v1180
        %v1182 = vand.u32 %v443, 4294901760
        %v1183 = vsub.f32 %v443, %v1182
        %v1184 = vand.u32 %v1183, 4294901760
        %v1185 = vsub.f32 %v1183, %v1184
        %v1186 = vand.u32 %v1185, 4294901760
        %1187 = vmatprep.subr.mxu0 %v1186
        %v1188 = vand.u32 %v442, 4294901760
        %v1189 = vsub.f32 %v442, %v1188
        %v1190 = vand.u32 %v1189, 4294901760
        %v1191 = vsub.f32 %v1189, %v1190
        %v1192 = vand.u32 %v1191, 4294901760
        %1193 = vmatpush1.msra.mxu0 %v1192
        %v1194 = vand.u32 %v446, 4294901760
        %v1195 = vsub.f32 %v446, %v1194
        %v1196 = vand.u32 %v1195, 4294901760
        %v1197 = vsub.f32 %v1195, %v1196
        %v1198 = vand.u32 %v1197, 4294901760
        %1199 = vmatprep.subr.mxu0 %v1198
        %v1200 = vand.u32 %v445, 4294901760
        %v1201 = vsub.f32 %v445, %v1200
        %v1202 = vand.u32 %v1201, 4294901760
        %v1203 = vsub.f32 %v1201, %v1202
        %v1204 = vand.u32 %v1203, 4294901760
        %1205 = vmatpush1.msra.mxu0 %v1204
        %1206 = vmatprep.subr.mxu0 0.0
        %1207 = vmatpush1.msra.mxu0 0.0
        %1208 = vmatprep.subr.mxu0 0.0
        %1209 = vmatpush1.msra.mxu0 0.0
        %1210 = vmatprep.subr.mxu0 0.0
        %1211 = vmatpush1.msra.mxu0 0.0
        %1212 = vmatprep.subr.mxu0 0.0
        %1213 = vmatpush1.msra.mxu0 0.0
        %1214 = vmatprep.subr.mxu0 0.0
        %1215 = vmatpush1.msra.mxu0 0.0
        %1216 = vmatprep.subr.mxu0 0.0
        %1217 = vmatpush1.msra.mxu0 0.0
        %1218 = vmatprep.subr.mxu0 0.0
        %1219 = vmatpush1.msra.mxu0 0.0
        %1220 = vmatprep.subr.mxu0 0.0
        %1221 = vmatpush1.msra.mxu0 0.0
        %1222 = vmatprep.subr.mxu0 0.0
        %1223 = vmatpush1.msra.mxu0 0.0
        %1224 = vmatprep.subr.mxu0 0.0
        %1225 = vmatpush1.msra.mxu0 0.0
        %1226 = vmatprep.subr.mxu0 0.0
        %1227 = vmatpush1.msra.mxu0 0.0
        %1228 = vmatprep.subr.mxu0 0.0
        %1229 = vmatpush1.msra.mxu0 0.0
        %1230 = vmatprep.subr.mxu0 0.0
        %1231 = vmatpush1.msra.mxu0 0.0
        %1232 = vmatprep.subr.mxu0 0.0
        %1233 = vmatpush1.msra.mxu0 0.0
        %1234 = vmatprep.subr.mxu0 0.0
        %1235 = vmatpush1.msra.mxu0 0.0
        %1236 = vmatprep.subr.mxu0 0.0
        %1237 = vmatpush1.msra.mxu0 0.0
        %1238 = vmatprep.mubr.f32.mxu0 0.0
        %v1239 = vand.u32 %v396, 4294901760
        %1240 = vmatmul.mubr.f32.gmra.mrb[0].mxu0 %v1239
        %v1241 = vpop.f32.mrb[0].mxu0
        %v1242 = vadd.f32 %v1010, %v1241
        %v1243 = vpop.f32.mrb[0].mxu0
        %v1244 = vadd.f32 %v1012, %v1243
        %1245 = vdwg.mxu0
        %v1246 = vand.u32 %v401, 4294901760
        %v1247 = vsub.f32 %v401, %v1246
        %1248 = vmatprep.subr.mxu0 %v1247
        %v1249 = vand.u32 %v400, 4294901760
        %v1250 = vsub.f32 %v400, %v1249
        %1251 = vmatpush1.msra.mxu0 %v1250
        %v1252 = vand.u32 %v404, 4294901760
        %v1253 = vsub.f32 %v404, %v1252
        %1254 = vmatprep.subr.mxu0 %v1253
        %v1255 = vand.u32 %v403, 4294901760
        %v1256 = vsub.f32 %v403, %v1255
        %1257 = vmatpush1.msra.mxu0 %v1256
        %v1258 = vand.u32 %v407, 4294901760
        %v1259 = vsub.f32 %v407, %v1258
        %1260 = vmatprep.subr.mxu0 %v1259
        %v1261 = vand.u32 %v406, 4294901760
        %v1262 = vsub.f32 %v406, %v1261
        %1263 = vmatpush1.msra.mxu0 %v1262
        %v1264 = vand.u32 %v410, 4294901760
        %v1265 = vsub.f32 %v410, %v1264
        %1266 = vmatprep.subr.mxu0 %v1265
        %v1267 = vand.u32 %v409, 4294901760
        %v1268 = vsub.f32 %v409, %v1267
        %1269 = vmatpush1.msra.mxu0 %v1268
        %v1270 = vand.u32 %v413, 4294901760
        %v1271 = vsub.f32 %v413, %v1270
        %1272 = vmatprep.subr.mxu0 %v1271
        %v1273 = vand.u32 %v412, 4294901760
        %v1274 = vsub.f32 %v412, %v1273
        %1275 = vmatpush1.msra.mxu0 %v1274
        %v1276 = vand.u32 %v416, 4294901760
        %v1277 = vsub.f32 %v416, %v1276
        %1278 = vmatprep.subr.mxu0 %v1277
        %v1279 = vand.u32 %v415, 4294901760
        %v1280 = vsub.f32 %v415, %v1279
        %1281 = vmatpush1.msra.mxu0 %v1280
        %v1282 = vand.u32 %v419, 4294901760
        %v1283 = vsub.f32 %v419, %v1282
        %1284 = vmatprep.subr.mxu0 %v1283
        %v1285 = vand.u32 %v418, 4294901760
        %v1286 = vsub.f32 %v418, %v1285
        %1287 = vmatpush1.msra.mxu0 %v1286
        %v1288 = vand.u32 %v422, 4294901760
        %v1289 = vsub.f32 %v422, %v1288
        %1290 = vmatprep.subr.mxu0 %v1289
        %v1291 = vand.u32 %v421, 4294901760
        %v1292 = vsub.f32 %v421, %v1291
        %1293 = vmatpush1.msra.mxu0 %v1292
        %v1294 = vand.u32 %v425, 4294901760
        %v1295 = vsub.f32 %v425, %v1294
        %1296 = vmatprep.subr.mxu0 %v1295
        %v1297 = vand.u32 %v424, 4294901760
        %v1298 = vsub.f32 %v424, %v1297
        %1299 = vmatpush1.msra.mxu0 %v1298
        %v1300 = vand.u32 %v428, 4294901760
        %v1301 = vsub.f32 %v428, %v1300
        %1302 = vmatprep.subr.mxu0 %v1301
        %v1303 = vand.u32 %v427, 4294901760
        %v1304 = vsub.f32 %v427, %v1303
        %1305 = vmatpush1.msra.mxu0 %v1304
        %v1306 = vand.u32 %v431, 4294901760
        %v1307 = vsub.f32 %v431, %v1306
        %1308 = vmatprep.subr.mxu0 %v1307
        %v1309 = vand.u32 %v430, 4294901760
        %v1310 = vsub.f32 %v430, %v1309
        %1311 = vmatpush1.msra.mxu0 %v1310
        %v1312 = vand.u32 %v434, 4294901760
        %v1313 = vsub.f32 %v434, %v1312
        %1314 = vmatprep.subr.mxu0 %v1313
        %v1315 = vand.u32 %v433, 4294901760
        %v1316 = vsub.f32 %v433, %v1315
        %1317 = vmatpush1.msra.mxu0 %v1316
        %v1318 = vand.u32 %v437, 4294901760
        %v1319 = vsub.f32 %v437, %v1318
        %1320 = vmatprep.subr.mxu0 %v1319
        %v1321 = vand.u32 %v436, 4294901760
        %v1322 = vsub.f32 %v436, %v1321
        %1323 = vmatpush1.msra.mxu0 %v1322
        %v1324 = vand.u32 %v440, 4294901760
        %v1325 = vsub.f32 %v440, %v1324
        %1326 = vmatprep.subr.mxu0 %v1325
        %v1327 = vand.u32 %v439, 4294901760
        %v1328 = vsub.f32 %v439, %v1327
        %1329 = vmatpush1.msra.mxu0 %v1328
        %v1330 = vand.u32 %v443, 4294901760
        %v1331 = vsub.f32 %v443, %v1330
        %1332 = vmatprep.subr.mxu0 %v1331
        %v1333 = vand.u32 %v442, 4294901760
        %v1334 = vsub.f32 %v442, %v1333
        %1335 = vmatpush1.msra.mxu0 %v1334
        %v1336 = vand.u32 %v446, 4294901760
        %v1337 = vsub.f32 %v446, %v1336
        %1338 = vmatprep.subr.mxu0 %v1337
        %v1339 = vand.u32 %v445, 4294901760
        %v1340 = vsub.f32 %v445, %v1339
        %1341 = vmatpush1.msra.mxu0 %v1340
        %1342 = vmatprep.subr.mxu0 0.0
        %1343 = vmatpush1.msra.mxu0 0.0
        %1344 = vmatprep.subr.mxu0 0.0
        %1345 = vmatpush1.msra.mxu0 0.0
        %1346 = vmatprep.subr.mxu0 0.0
        %1347 = vmatpush1.msra.mxu0 0.0
        %1348 = vmatprep.subr.mxu0 0.0
        %1349 = vmatpush1.msra.mxu0 0.0
        %1350 = vmatprep.subr.mxu0 0.0
        %1351 = vmatpush1.msra.mxu0 0.0
        %1352 = vmatprep.subr.mxu0 0.0
        %1353 = vmatpush1.msra.mxu0 0.0
        %1354 = vmatprep.subr.mxu0 0.0
        %1355 = vmatpush1.msra.mxu0 0.0
        %1356 = vmatprep.subr.mxu0 0.0
        %1357 = vmatpush1.msra.mxu0 0.0
        %1358 = vmatprep.subr.mxu0 0.0
        %1359 = vmatpush1.msra.mxu0 0.0
        %1360 = vmatprep.subr.mxu0 0.0
        %1361 = vmatpush1.msra.mxu0 0.0
        %1362 = vmatprep.subr.mxu0 0.0
        %1363 = vmatpush1.msra.mxu0 0.0
        %1364 = vmatprep.subr.mxu0 0.0
        %1365 = vmatpush1.msra.mxu0 0.0
        %1366 = vmatprep.subr.mxu0 0.0
        %1367 = vmatpush1.msra.mxu0 0.0
        %1368 = vmatprep.subr.mxu0 0.0
        %1369 = vmatpush1.msra.mxu0 0.0
        %1370 = vmatprep.subr.mxu0 0.0
        %1371 = vmatpush1.msra.mxu0 0.0
        %1372 = vmatprep.subr.mxu0 0.0
        %1373 = vmatpush1.msra.mxu0 0.0
        %1374 = vmatprep.mubr.f32.mxu0 0.0
        %v1375 = vand.u32 %v396, 4294901760
        %v1376 = vsub.f32 %v396, %v1375
        %1377 = vmatmul.mubr.f32.gmra.mrb[0].mxu0 %v1376
        %v1378 = vpop.f32.mrb[0].mxu0
        %v1379 = vadd.f32 %v1242, %v1378
        %v1380 = vpop.f32.mrb[0].mxu0
        %v1381 = vadd.f32 %v1244, %v1380
        %1382 = vdwg.mxu0
        %v1383 = vand.u32 %v401, 4294901760
        %1384 = vmatprep.subr.mxu0 %v1383
        %v1385 = vand.u32 %v400, 4294901760
        %1386 = vmatpush1.msra.mxu0 %v1385
        %v1387 = vand.u32 %v404, 4294901760
        %1388 = vmatprep.subr.mxu0 %v1387
        %v1389 = vand.u32 %v403, 4294901760
        %1390 = vmatpush1.msra.mxu0 %v1389
        %v1391 = vand.u32 %v407, 4294901760
        %1392 = vmatprep.subr.mxu0 %v1391
        %v1393 = vand.u32 %v406, 4294901760
        %1394 = vmatpush1.msra.mxu0 %v1393
        %v1395 = vand.u32 %v410, 4294901760
        %1396 = vmatprep.subr.mxu0 %v1395
        %v1397 = vand.u32 %v409, 4294901760
        %1398 = vmatpush1.msra.mxu0 %v1397
        %v1399 = vand.u32 %v413, 4294901760
        %1400 = vmatprep.subr.mxu0 %v1399
        %v1401 = vand.u32 %v412, 4294901760
        %1402 = vmatpush1.msra.mxu0 %v1401
        %v1403 = vand.u32 %v416, 4294901760
        %1404 = vmatprep.subr.mxu0 %v1403
        %v1405 = vand.u32 %v415, 4294901760
        %1406 = vmatpush1.msra.mxu0 %v1405
        %v1407 = vand.u32 %v419, 4294901760
        %1408 = vmatprep.subr.mxu0 %v1407
        %v1409 = vand.u32 %v418, 4294901760
        %1410 = vmatpush1.msra.mxu0 %v1409
        %v1411 = vand.u32 %v422, 4294901760
        %1412 = vmatprep.subr.mxu0 %v1411
        %v1413 = vand.u32 %v421, 4294901760
        %1414 = vmatpush1.msra.mxu0 %v1413
        %v1415 = vand.u32 %v425, 4294901760
        %1416 = vmatprep.subr.mxu0 %v1415
        %v1417 = vand.u32 %v424, 4294901760
        %1418 = vmatpush1.msra.mxu0 %v1417
        %v1419 = vand.u32 %v428, 4294901760
        %1420 = vmatprep.subr.mxu0 %v1419
        %v1421 = vand.u32 %v427, 4294901760
        %1422 = vmatpush1.msra.mxu0 %v1421
        %v1423 = vand.u32 %v431, 4294901760
        %1424 = vmatprep.subr.mxu0 %v1423
        %v1425 = vand.u32 %v430, 4294901760
        %1426 = vmatpush1.msra.mxu0 %v1425
        %v1427 = vand.u32 %v434, 4294901760
        %1428 = vmatprep.subr.mxu0 %v1427
        %v1429 = vand.u32 %v433, 4294901760
        %1430 = vmatpush1.msra.mxu0 %v1429
        %v1431 = vand.u32 %v437, 4294901760
        %1432 = vmatprep.subr.mxu0 %v1431
        %v1433 = vand.u32 %v436, 4294901760
        %1434 = vmatpush1.msra.mxu0 %v1433
        %v1435 = vand.u32 %v440, 4294901760
        %1436 = vmatprep.subr.mxu0 %v1435
        %v1437 = vand.u32 %v439, 4294901760
        %1438 = vmatpush1.msra.mxu0 %v1437
        %v1439 = vand.u32 %v443, 4294901760
        %1440 = vmatprep.subr.mxu0 %v1439
        %v1441 = vand.u32 %v442, 4294901760
        %1442 = vmatpush1.msra.mxu0 %v1441
        %v1443 = vand.u32 %v446, 4294901760
        %1444 = vmatprep.subr.mxu0 %v1443
        %v1445 = vand.u32 %v445, 4294901760
        %1446 = vmatpush1.msra.mxu0 %v1445
        %1447 = vmatprep.subr.mxu0 0.0
        %1448 = vmatpush1.msra.mxu0 0.0
        %1449 = vmatprep.subr.mxu0 0.0
        %1450 = vmatpush1.msra.mxu0 0.0
        %1451 = vmatprep.subr.mxu0 0.0
        %1452 = vmatpush1.msra.mxu0 0.0
        %1453 = vmatprep.subr.mxu0 0.0
        %1454 = vmatpush1.msra.mxu0 0.0
        %1455 = vmatprep.subr.mxu0 0.0
        %1456 = vmatpush1.msra.mxu0 0.0
        %1457 = vmatprep.subr.mxu0 0.0
        %1458 = vmatpush1.msra.mxu0 0.0
        %1459 = vmatprep.subr.mxu0 0.0
        %1460 = vmatpush1.msra.mxu0 0.0
        %1461 = vmatprep.subr.mxu0 0.0
        %1462 = vmatpush1.msra.mxu0 0.0
        %1463 = vmatprep.subr.mxu0 0.0
        %1464 = vmatpush1.msra.mxu0 0.0
        %1465 = vmatprep.subr.mxu0 0.0
        %1466 = vmatpush1.msra.mxu0 0.0
        %1467 = vmatprep.subr.mxu0 0.0
        %1468 = vmatpush1.msra.mxu0 0.0
        %1469 = vmatprep.subr.mxu0 0.0
        %1470 = vmatpush1.msra.mxu0 0.0
        %1471 = vmatprep.subr.mxu0 0.0
        %1472 = vmatpush1.msra.mxu0 0.0
        %1473 = vmatprep.subr.mxu0 0.0
        %1474 = vmatpush1.msra.mxu0 0.0
        %1475 = vmatprep.subr.mxu0 0.0
        %1476 = vmatpush1.msra.mxu0 0.0
        %1477 = vmatprep.subr.mxu0 0.0
        %1478 = vmatpush1.msra.mxu0 0.0
        %1479 = vmatprep.mubr.f32.mxu0 0.0
        %v1480 = vand.u32 %v396, 4294901760
        %v1481 = vsub.f32 %v396, %v1480
        %v1482 = vand.u32 %v1481, 4294901760
        %1483 = vmatmul.mubr.f32.gmra.mrb[0].mxu0 %v1482
        %v1484 = vpop.f32.mrb[0].mxu0
        %v1485 = vadd.f32 %v1379, %v1484
        %v1486 = vpop.f32.mrb[0].mxu0
        %v1487 = vadd.f32 %v1381, %v1486
        %1488 = vdwg.mxu0
        %v1489 = vand.u32 %v401, 4294901760
        %v1490 = vsub.f32 %v401, %v1489
        %v1491 = vand.u32 %v1490, 4294901760
        %1492 = vmatprep.subr.mxu0 %v1491
        %v1493 = vand.u32 %v400, 4294901760
        %v1494 = vsub.f32 %v400, %v1493
        %v1495 = vand.u32 %v1494, 4294901760
        %1496 = vmatpush1.msra.mxu0 %v1495
        %v1497 = vand.u32 %v404, 4294901760
        %v1498 = vsub.f32 %v404, %v1497
        %v1499 = vand.u32 %v1498, 4294901760
        %1500 = vmatprep.subr.mxu0 %v1499
        %v1501 = vand.u32 %v403, 4294901760
        %v1502 = vsub.f32 %v403, %v1501
        %v1503 = vand.u32 %v1502, 4294901760
        %1504 = vmatpush1.msra.mxu0 %v1503
        %v1505 = vand.u32 %v407, 4294901760
        %v1506 = vsub.f32 %v407, %v1505
        %v1507 = vand.u32 %v1506, 4294901760
        %1508 = vmatprep.subr.mxu0 %v1507
        %v1509 = vand.u32 %v406, 4294901760
        %v1510 = vsub.f32 %v406, %v1509
        %v1511 = vand.u32 %v1510, 4294901760
        %1512 = vmatpush1.msra.mxu0 %v1511
        %v1513 = vand.u32 %v410, 4294901760
        %v1514 = vsub.f32 %v410, %v1513
        %v1515 = vand.u32 %v1514, 4294901760
        %1516 = vmatprep.subr.mxu0 %v1515
        %v1517 = vand.u32 %v409, 4294901760
        %v1518 = vsub.f32 %v409, %v1517
        %v1519 = vand.u32 %v1518, 4294901760
        %1520 = vmatpush1.msra.mxu0 %v1519
        %v1521 = vand.u32 %v413, 4294901760
        %v1522 = vsub.f32 %v413, %v1521
        %v1523 = vand.u32 %v1522, 4294901760
        %1524 = vmatprep.subr.mxu0 %v1523
        %v1525 = vand.u32 %v412, 4294901760
        %v1526 = vsub.f32 %v412, %v1525
        %v1527 = vand.u32 %v1526, 4294901760
        %1528 = vmatpush1.msra.mxu0 %v1527
        %v1529 = vand.u32 %v416, 4294901760
        %v1530 = vsub.f32 %v416, %v1529
        %v1531 = vand.u32 %v1530, 4294901760
        %1532 = vmatprep.subr.mxu0 %v1531
        %v1533 = vand.u32 %v415, 4294901760
        %v1534 = vsub.f32 %v415, %v1533
        %v1535 = vand.u32 %v1534, 4294901760
        %1536 = vmatpush1.msra.mxu0 %v1535
        %v1537 = vand.u32 %v419, 4294901760
        %v1538 = vsub.f32 %v419, %v1537
        %v1539 = vand.u32 %v1538, 4294901760
        %1540 = vmatprep.subr.mxu0 %v1539
        %v1541 = vand.u32 %v418, 4294901760
        %v1542 = vsub.f32 %v418, %v1541
        %v1543 = vand.u32 %v1542, 4294901760
        %1544 = vmatpush1.msra.mxu0 %v1543
        %v1545 = vand.u32 %v422, 4294901760
        %v1546 = vsub.f32 %v422, %v1545
        %v1547 = vand.u32 %v1546, 4294901760
        %1548 = vmatprep.subr.mxu0 %v1547
        %v1549 = vand.u32 %v421, 4294901760
        %v1550 = vsub.f32 %v421, %v1549
        %v1551 = vand.u32 %v1550, 4294901760
        %1552 = vmatpush1.msra.mxu0 %v1551
        %v1553 = vand.u32 %v425, 4294901760
        %v1554 = vsub.f32 %v425, %v1553
        %v1555 = vand.u32 %v1554, 4294901760
        %1556 = vmatprep.subr.mxu0 %v1555
        %v1557 = vand.u32 %v424, 4294901760
        %v1558 = vsub.f32 %v424, %v1557
        %v1559 = vand.u32 %v1558, 4294901760
        %1560 = vmatpush1.msra.mxu0 %v1559
        %v1561 = vand.u32 %v428, 4294901760
        %v1562 = vsub.f32 %v428, %v1561
        %v1563 = vand.u32 %v1562, 4294901760
        %1564 = vmatprep.subr.mxu0 %v1563
        %v1565 = vand.u32 %v427, 4294901760
        %v1566 = vsub.f32 %v427, %v1565
        %v1567 = vand.u32 %v1566, 4294901760
        %1568 = vmatpush1.msra.mxu0 %v1567
        %v1569 = vand.u32 %v431, 4294901760
        %v1570 = vsub.f32 %v431, %v1569
        %v1571 = vand.u32 %v1570, 4294901760
        %1572 = vmatprep.subr.mxu0 %v1571
        %v1573 = vand.u32 %v430, 4294901760
        %v1574 = vsub.f32 %v430, %v1573
        %v1575 = vand.u32 %v1574, 4294901760
        %1576 = vmatpush1.msra.mxu0 %v1575
        %v1577 = vand.u32 %v434, 4294901760
        %v1578 = vsub.f32 %v434, %v1577
        %v1579 = vand.u32 %v1578, 4294901760
        %1580 = vmatprep.subr.mxu0 %v1579
        %v1581 = vand.u32 %v433, 4294901760
        %v1582 = vsub.f32 %v433, %v1581
        %v1583 = vand.u32 %v1582, 4294901760
        %1584 = vmatpush1.msra.mxu0 %v1583
        %v1585 = vand.u32 %v437, 4294901760
        %v1586 = vsub.f32 %v437, %v1585
        %v1587 = vand.u32 %v1586, 4294901760
        %1588 = vmatprep.subr.mxu0 %v1587
        %v1589 = vand.u32 %v436, 4294901760
        %v1590 = vsub.f32 %v436, %v1589
        %v1591 = vand.u32 %v1590, 4294901760
        %1592 = vmatpush1.msra.mxu0 %v1591
        %v1593 = vand.u32 %v440, 4294901760
        %v1594 = vsub.f32 %v440, %v1593
        %v1595 = vand.u32 %v1594, 4294901760
        %1596 = vmatprep.subr.mxu0 %v1595
        %v1597 = vand.u32 %v439, 4294901760
        %v1598 = vsub.f32 %v439, %v1597
        %v1599 = vand.u32 %v1598, 4294901760
        %1600 = vmatpush1.msra.mxu0 %v1599
        %v1601 = vand.u32 %v443, 4294901760
        %v1602 = vsub.f32 %v443, %v1601
        %v1603 = vand.u32 %v1602, 4294901760
        %1604 = vmatprep.subr.mxu0 %v1603
        %v1605 = vand.u32 %v442, 4294901760
        %v1606 = vsub.f32 %v442, %v1605
        %v1607 = vand.u32 %v1606, 4294901760
        %1608 = vmatpush1.msra.mxu0 %v1607
        %v1609 = vand.u32 %v446, 4294901760
        %v1610 = vsub.f32 %v446, %v1609
        %v1611 = vand.u32 %v1610, 4294901760
        %1612 = vmatprep.subr.mxu0 %v1611
        %v1613 = vand.u32 %v445, 4294901760
        %v1614 = vsub.f32 %v445, %v1613
        %v1615 = vand.u32 %v1614, 4294901760
        %1616 = vmatpush1.msra.mxu0 %v1615
        %1617 = vmatprep.subr.mxu0 0.0
        %1618 = vmatpush1.msra.mxu0 0.0
        %1619 = vmatprep.subr.mxu0 0.0
        %1620 = vmatpush1.msra.mxu0 0.0
        %1621 = vmatprep.subr.mxu0 0.0
        %1622 = vmatpush1.msra.mxu0 0.0
        %1623 = vmatprep.subr.mxu0 0.0
        %1624 = vmatpush1.msra.mxu0 0.0
        %1625 = vmatprep.subr.mxu0 0.0
        %1626 = vmatpush1.msra.mxu0 0.0
        %1627 = vmatprep.subr.mxu0 0.0
        %1628 = vmatpush1.msra.mxu0 0.0
        %1629 = vmatprep.subr.mxu0 0.0
        %1630 = vmatpush1.msra.mxu0 0.0
        %1631 = vmatprep.subr.mxu0 0.0
        %1632 = vmatpush1.msra.mxu0 0.0
        %1633 = vmatprep.subr.mxu0 0.0
        %1634 = vmatpush1.msra.mxu0 0.0
        %1635 = vmatprep.subr.mxu0 0.0
        %1636 = vmatpush1.msra.mxu0 0.0
        %1637 = vmatprep.subr.mxu0 0.0
        %1638 = vmatpush1.msra.mxu0 0.0
        %1639 = vmatprep.subr.mxu0 0.0
        %1640 = vmatpush1.msra.mxu0 0.0
        %1641 = vmatprep.subr.mxu0 0.0
        %1642 = vmatpush1.msra.mxu0 0.0
        %1643 = vmatprep.subr.mxu0 0.0
        %1644 = vmatpush1.msra.mxu0 0.0
        %1645 = vmatprep.subr.mxu0 0.0
        %1646 = vmatpush1.msra.mxu0 0.0
        %1647 = vmatprep.subr.mxu0 0.0
        %1648 = vmatpush1.msra.mxu0 0.0
        %1649 = vmatprep.mubr.f32.mxu0 0.0
        %v1650 = vand.u32 %v396, 4294901760
        %1651 = vmatmul.mubr.f32.gmra.mrb[0].mxu0 %v1650
        %v1652 = vpop.f32.mrb[0].mxu0
        %v1653 = vadd.f32 %v1485, %v1652
        %v1654 = vpop.f32.mrb[0].mxu0
        %v1655 = vadd.f32 %v1487, %v1654
        %1656 = vdwg.mxu0
        %v1657 = vand.u32 %v401, 4294901760
        %1658 = vmatprep.subr.mxu0 %v1657
        %v1659 = vand.u32 %v400, 4294901760
        %1660 = vmatpush1.msra.mxu0 %v1659
        %v1661 = vand.u32 %v404, 4294901760
        %1662 = vmatprep.subr.mxu0 %v1661
        %v1663 = vand.u32 %v403, 4294901760
        %1664 = vmatpush1.msra.mxu0 %v1663
        %v1665 = vand.u32 %v407, 4294901760
        %1666 = vmatprep.subr.mxu0 %v1665
        %v1667 = vand.u32 %v406, 4294901760
        %1668 = vmatpush1.msra.mxu0 %v1667
        %v1669 = vand.u32 %v410, 4294901760
        %1670 = vmatprep.subr.mxu0 %v1669
        %v1671 = vand.u32 %v409, 4294901760
        %1672 = vmatpush1.msra.mxu0 %v1671
        %v1673 = vand.u32 %v413, 4294901760
        %1674 = vmatprep.subr.mxu0 %v1673
        %v1675 = vand.u32 %v412, 4294901760
        %1676 = vmatpush1.msra.mxu0 %v1675
        %v1677 = vand.u32 %v416, 4294901760
        %1678 = vmatprep.subr.mxu0 %v1677
        %v1679 = vand.u32 %v415, 4294901760
        %1680 = vmatpush1.msra.mxu0 %v1679
        %v1681 = vand.u32 %v419, 4294901760
        %1682 = vmatprep.subr.mxu0 %v1681
        %v1683 = vand.u32 %v418, 4294901760
        %1684 = vmatpush1.msra.mxu0 %v1683
        %v1685 = vand.u32 %v422, 4294901760
        %1686 = vmatprep.subr.mxu0 %v1685
        %v1687 = vand.u32 %v421, 4294901760
        %1688 = vmatpush1.msra.mxu0 %v1687
        %v1689 = vand.u32 %v425, 4294901760
        %1690 = vmatprep.subr.mxu0 %v1689
        %v1691 = vand.u32 %v424, 4294901760
        %1692 = vmatpush1.msra.mxu0 %v1691
        %v1693 = vand.u32 %v428, 4294901760
        %1694 = vmatprep.subr.mxu0 %v1693
        %v1695 = vand.u32 %v427, 4294901760
        %1696 = vmatpush1.msra.mxu0 %v1695
        %v1697 = vand.u32 %v431, 4294901760
        %1698 = vmatprep.subr.mxu0 %v1697
        %v1699 = vand.u32 %v430, 4294901760
        %1700 = vmatpush1.msra.mxu0 %v1699
        %v1701 = vand.u32 %v434, 4294901760
        %1702 = vmatprep.subr.mxu0 %v1701
        %v1703 = vand.u32 %v433, 4294901760
        %1704 = vmatpush1.msra.mxu0 %v1703
        %v1705 = vand.u32 %v437, 4294901760
        %1706 = vmatprep.subr.mxu0 %v1705
        %v1707 = vand.u32 %v436, 4294901760
        %1708 = vmatpush1.msra.mxu0 %v1707
        %v1709 = vand.u32 %v440, 4294901760
        %1710 = vmatprep.subr.mxu0 %v1709
        %v1711 = vand.u32 %v439, 4294901760
        %1712 = vmatpush1.msra.mxu0 %v1711
        %v1713 = vand.u32 %v443, 4294901760
        %1714 = vmatprep.subr.mxu0 %v1713
        %v1715 = vand.u32 %v442, 4294901760
        %1716 = vmatpush1.msra.mxu0 %v1715
        %v1717 = vand.u32 %v446, 4294901760
        %1718 = vmatprep.subr.mxu0 %v1717
        %v1719 = vand.u32 %v445, 4294901760
        %1720 = vmatpush1.msra.mxu0 %v1719
        %1721 = vmatprep.subr.mxu0 0.0
        %1722 = vmatpush1.msra.mxu0 0.0
        %1723 = vmatprep.subr.mxu0 0.0
        %1724 = vmatpush1.msra.mxu0 0.0
        %1725 = vmatprep.subr.mxu0 0.0
        %1726 = vmatpush1.msra.mxu0 0.0
        %1727 = vmatprep.subr.mxu0 0.0
        %1728 = vmatpush1.msra.mxu0 0.0
        %1729 = vmatprep.subr.mxu0 0.0
        %1730 = vmatpush1.msra.mxu0 0.0
        %1731 = vmatprep.subr.mxu0 0.0
        %1732 = vmatpush1.msra.mxu0 0.0
        %1733 = vmatprep.subr.mxu0 0.0
        %1734 = vmatpush1.msra.mxu0 0.0
        %1735 = vmatprep.subr.mxu0 0.0
        %1736 = vmatpush1.msra.mxu0 0.0
        %1737 = vmatprep.subr.mxu0 0.0
        %1738 = vmatpush1.msra.mxu0 0.0
        %1739 = vmatprep.subr.mxu0 0.0
        %1740 = vmatpush1.msra.mxu0 0.0
        %1741 = vmatprep.subr.mxu0 0.0
        %1742 = vmatpush1.msra.mxu0 0.0
        %1743 = vmatprep.subr.mxu0 0.0
        %1744 = vmatpush1.msra.mxu0 0.0
        %1745 = vmatprep.subr.mxu0 0.0
        %1746 = vmatpush1.msra.mxu0 0.0
        %1747 = vmatprep.subr.mxu0 0.0
        %1748 = vmatpush1.msra.mxu0 0.0
        %1749 = vmatprep.subr.mxu0 0.0
        %1750 = vmatpush1.msra.mxu0 0.0
        %1751 = vmatprep.subr.mxu0 0.0
        %1752 = vmatpush1.msra.mxu0 0.0
        %1753 = vmatprep.mubr.f32.mxu0 0.0
        %v1754 = vand.u32 %v396, 4294901760
        %1755 = vmatmul.mubr.f32.gmra.mrb[0].mxu0 %v1754
        %v1756 = vpop.f32.mrb[0].mxu0
        %v1757 = vadd.f32 %v1653, %v1756
        %v1758 = vpop.f32.mrb[0].mxu0
        %v1759 = vadd.f32 %v1655, %v1758
        %1760 = vdwg.mxu0
        %1761 = vmatprep.subr.mxu0 0.0
        %v1762 = vand.u32 %v402, 4294901760
        %1763 = vmatpush1.msra.mxu0 %v1762
        %1764 = vmatprep.subr.mxu0 0.0
        %v1765 = vand.u32 %v405, 4294901760
        %1766 = vmatpush1.msra.mxu0 %v1765
        %1767 = vmatprep.subr.mxu0 0.0
        %v1768 = vand.u32 %v408, 4294901760
        %1769 = vmatpush1.msra.mxu0 %v1768
        %1770 = vmatprep.subr.mxu0 0.0
        %v1771 = vand.u32 %v411, 4294901760
        %1772 = vmatpush1.msra.mxu0 %v1771
        %1773 = vmatprep.subr.mxu0 0.0
        %v1774 = vand.u32 %v414, 4294901760
        %1775 = vmatpush1.msra.mxu0 %v1774
        %1776 = vmatprep.subr.mxu0 0.0
        %v1777 = vand.u32 %v417, 4294901760
        %1778 = vmatpush1.msra.mxu0 %v1777
        %1779 = vmatprep.subr.mxu0 0.0
        %v1780 = vand.u32 %v420, 4294901760
        %1781 = vmatpush1.msra.mxu0 %v1780
        %1782 = vmatprep.subr.mxu0 0.0
        %v1783 = vand.u32 %v423, 4294901760
        %1784 = vmatpush1.msra.mxu0 %v1783
        %1785 = vmatprep.subr.mxu0 0.0
        %v1786 = vand.u32 %v426, 4294901760
        %1787 = vmatpush1.msra.mxu0 %v1786
        %1788 = vmatprep.subr.mxu0 0.0
        %v1789 = vand.u32 %v429, 4294901760
        %1790 = vmatpush1.msra.mxu0 %v1789
        %1791 = vmatprep.subr.mxu0 0.0
        %v1792 = vand.u32 %v432, 4294901760
        %1793 = vmatpush1.msra.mxu0 %v1792
        %1794 = vmatprep.subr.mxu0 0.0
        %v1795 = vand.u32 %v435, 4294901760
        %1796 = vmatpush1.msra.mxu0 %v1795
        %1797 = vmatprep.subr.mxu0 0.0
        %v1798 = vand.u32 %v438, 4294901760
        %1799 = vmatpush1.msra.mxu0 %v1798
        %1800 = vmatprep.subr.mxu0 0.0
        %v1801 = vand.u32 %v441, 4294901760
        %1802 = vmatpush1.msra.mxu0 %v1801
        %1803 = vmatprep.subr.mxu0 0.0
        %v1804 = vand.u32 %v444, 4294901760
        %1805 = vmatpush1.msra.mxu0 %v1804
        %1806 = vmatprep.subr.mxu0 0.0
        %v1807 = vand.u32 %v447, 4294901760
        %1808 = vmatpush1.msra.mxu0 %v1807
        %1809 = vmatprep.subr.mxu0 0.0
        %1810 = vmatpush1.msra.mxu0 0.0
        %1811 = vmatprep.subr.mxu0 0.0
        %1812 = vmatpush1.msra.mxu0 0.0
        %1813 = vmatprep.subr.mxu0 0.0
        %1814 = vmatpush1.msra.mxu0 0.0
        %1815 = vmatprep.subr.mxu0 0.0
        %1816 = vmatpush1.msra.mxu0 0.0
        %1817 = vmatprep.subr.mxu0 0.0
        %1818 = vmatpush1.msra.mxu0 0.0
        %1819 = vmatprep.subr.mxu0 0.0
        %1820 = vmatpush1.msra.mxu0 0.0
        %1821 = vmatprep.subr.mxu0 0.0
        %1822 = vmatpush1.msra.mxu0 0.0
        %1823 = vmatprep.subr.mxu0 0.0
        %1824 = vmatpush1.msra.mxu0 0.0
        %1825 = vmatprep.subr.mxu0 0.0
        %1826 = vmatpush1.msra.mxu0 0.0
        %1827 = vmatprep.subr.mxu0 0.0
        %1828 = vmatpush1.msra.mxu0 0.0
        %1829 = vmatprep.subr.mxu0 0.0
        %1830 = vmatpush1.msra.mxu0 0.0
        %1831 = vmatprep.subr.mxu0 0.0
        %1832 = vmatpush1.msra.mxu0 0.0
        %1833 = vmatprep.subr.mxu0 0.0
        %1834 = vmatpush1.msra.mxu0 0.0
        %1835 = vmatprep.subr.mxu0 0.0
        %1836 = vmatpush1.msra.mxu0 0.0
        %1837 = vmatprep.subr.mxu0 0.0
        %1838 = vmatpush1.msra.mxu0 0.0
        %1839 = vmatprep.subr.mxu0 0.0
        %1840 = vmatpush1.msra.mxu0 0.0
        %1841 = vmatprep.mubr.f32.mxu0 0.0
        %v1842 = vand.u32 %v396, 4294901760
        %v1843 = vsub.f32 %v396, %v1842
        %v1844 = vand.u32 %v1843, 4294901760
        %v1845 = vsub.f32 %v1843, %v1844
        %v1846 = vand.u32 %v1845, 4294901760
        %1847 = vmatmul.mubr.f32.gmra.mrb[0].mxu0 %v1846
        %v1848 = vpop.f32.mrb[0].mxu0
        %v1849 = vadd.f32 0.0, %v1848
        %v1850 = vpop.f32.mrb[0].mxu0
        %1851 = vdwg.mxu0
        %1852 = vmatprep.subr.mxu0 0.0
        %v1853 = vand.u32 %v402, 4294901760
        %v1854 = vsub.f32 %v402, %v1853
        %v1855 = vand.u32 %v1854, 4294901760
        %v1856 = vsub.f32 %v1854, %v1855
        %v1857 = vand.u32 %v1856, 4294901760
        %1858 = vmatpush1.msra.mxu0 %v1857
        %1859 = vmatprep.subr.mxu0 0.0
        %v1860 = vand.u32 %v405, 4294901760
        %v1861 = vsub.f32 %v405, %v1860
        %v1862 = vand.u32 %v1861, 4294901760
        %v1863 = vsub.f32 %v1861, %v1862
        %v1864 = vand.u32 %v1863, 4294901760
        %1865 = vmatpush1.msra.mxu0 %v1864
        %1866 = vmatprep.subr.mxu0 0.0
        %v1867 = vand.u32 %v408, 4294901760
        %v1868 = vsub.f32 %v408, %v1867
        %v1869 = vand.u32 %v1868, 4294901760
        %v1870 = vsub.f32 %v1868, %v1869
        %v1871 = vand.u32 %v1870, 4294901760
        %1872 = vmatpush1.msra.mxu0 %v1871
        %1873 = vmatprep.subr.mxu0 0.0
        %v1874 = vand.u32 %v411, 4294901760
        %v1875 = vsub.f32 %v411, %v1874
        %v1876 = vand.u32 %v1875, 4294901760
        %v1877 = vsub.f32 %v1875, %v1876
        %v1878 = vand.u32 %v1877, 4294901760
        %1879 = vmatpush1.msra.mxu0 %v1878
        %1880 = vmatprep.subr.mxu0 0.0
        %v1881 = vand.u32 %v414, 4294901760
        %v1882 = vsub.f32 %v414, %v1881
        %v1883 = vand.u32 %v1882, 4294901760
        %v1884 = vsub.f32 %v1882, %v1883
        %v1885 = vand.u32 %v1884, 4294901760
        %1886 = vmatpush1.msra.mxu0 %v1885
        %1887 = vmatprep.subr.mxu0 0.0
        %v1888 = vand.u32 %v417, 4294901760
        %v1889 = vsub.f32 %v417, %v1888
        %v1890 = vand.u32 %v1889, 4294901760
        %v1891 = vsub.f32 %v1889, %v1890
        %v1892 = vand.u32 %v1891, 4294901760
        %1893 = vmatpush1.msra.mxu0 %v1892
        %1894 = vmatprep.subr.mxu0 0.0
        %v1895 = vand.u32 %v420, 4294901760
        %v1896 = vsub.f32 %v420, %v1895
        %v1897 = vand.u32 %v1896, 4294901760
        %v1898 = vsub.f32 %v1896, %v1897
        %v1899 = vand.u32 %v1898, 4294901760
        %1900 = vmatpush1.msra.mxu0 %v1899
        %1901 = vmatprep.subr.mxu0 0.0
        %v1902 = vand.u32 %v423, 4294901760
        %v1903 = vsub.f32 %v423, %v1902
        %v1904 = vand.u32 %v1903, 4294901760
        %v1905 = vsub.f32 %v1903, %v1904
        %v1906 = vand.u32 %v1905, 4294901760
        %1907 = vmatpush1.msra.mxu0 %v1906
        %1908 = vmatprep.subr.mxu0 0.0
        %v1909 = vand.u32 %v426, 4294901760
        %v1910 = vsub.f32 %v426, %v1909
        %v1911 = vand.u32 %v1910, 4294901760
        %v1912 = vsub.f32 %v1910, %v1911
        %v1913 = vand.u32 %v1912, 4294901760
        %1914 = vmatpush1.msra.mxu0 %v1913
        %1915 = vmatprep.subr.mxu0 0.0
        %v1916 = vand.u32 %v429, 4294901760
        %v1917 = vsub.f32 %v429, %v1916
        %v1918 = vand.u32 %v1917, 4294901760
        %v1919 = vsub.f32 %v1917, %v1918
        %v1920 = vand.u32 %v1919, 4294901760
        %1921 = vmatpush1.msra.mxu0 %v1920
        %1922 = vmatprep.subr.mxu0 0.0
        %v1923 = vand.u32 %v432, 4294901760
        %v1924 = vsub.f32 %v432, %v1923
        %v1925 = vand.u32 %v1924, 4294901760
        %v1926 = vsub.f32 %v1924, %v1925
        %v1927 = vand.u32 %v1926, 4294901760
        %1928 = vmatpush1.msra.mxu0 %v1927
        %1929 = vmatprep.subr.mxu0 0.0
        %v1930 = vand.u32 %v435, 4294901760
        %v1931 = vsub.f32 %v435, %v1930
        %v1932 = vand.u32 %v1931, 4294901760
        %v1933 = vsub.f32 %v1931, %v1932
        %v1934 = vand.u32 %v1933, 4294901760
        %1935 = vmatpush1.msra.mxu0 %v1934
        %1936 = vmatprep.subr.mxu0 0.0
        %v1937 = vand.u32 %v438, 4294901760
        %v1938 = vsub.f32 %v438, %v1937
        %v1939 = vand.u32 %v1938, 4294901760
        %v1940 = vsub.f32 %v1938, %v1939
        %v1941 = vand.u32 %v1940, 4294901760
        %1942 = vmatpush1.msra.mxu0 %v1941
        %1943 = vmatprep.subr.mxu0 0.0
        %v1944 = vand.u32 %v441, 4294901760
        %v1945 = vsub.f32 %v441, %v1944
        %v1946 = vand.u32 %v1945, 4294901760
        %v1947 = vsub.f32 %v1945, %v1946
        %v1948 = vand.u32 %v1947, 4294901760
        %1949 = vmatpush1.msra.mxu0 %v1948
        %1950 = vmatprep.subr.mxu0 0.0
        %v1951 = vand.u32 %v444, 4294901760
        %v1952 = vsub.f32 %v444, %v1951
        %v1953 = vand.u32 %v1952, 4294901760
        %v1954 = vsub.f32 %v1952, %v1953
        %v1955 = vand.u32 %v1954, 4294901760
        %1956 = vmatpush1.msra.mxu0 %v1955
        %1957 = vmatprep.subr.mxu0 0.0
        %v1958 = vand.u32 %v447, 4294901760
        %v1959 = vsub.f32 %v447, %v1958
        %v1960 = vand.u32 %v1959, 4294901760
        %v1961 = vsub.f32 %v1959, %v1960
        %v1962 = vand.u32 %v1961, 4294901760
        %1963 = vmatpush1.msra.mxu0 %v1962
        %1964 = vmatprep.subr.mxu0 0.0
        %1965 = vmatpush1.msra.mxu0 0.0
        %1966 = vmatprep.subr.mxu0 0.0
        %1967 = vmatpush1.msra.mxu0 0.0
        %1968 = vmatprep.subr.mxu0 0.0
        %1969 = vmatpush1.msra.mxu0 0.0
        %1970 = vmatprep.subr.mxu0 0.0
        %1971 = vmatpush1.msra.mxu0 0.0
        %1972 = vmatprep.subr.mxu0 0.0
        %1973 = vmatpush1.msra.mxu0 0.0
        %1974 = vmatprep.subr.mxu0 0.0
        %1975 = vmatpush1.msra.mxu0 0.0
        %1976 = vmatprep.subr.mxu0 0.0
        %1977 = vmatpush1.msra.mxu0 0.0
        %1978 = vmatprep.subr.mxu0 0.0
        %1979 = vmatpush1.msra.mxu0 0.0
        %1980 = vmatprep.subr.mxu0 0.0
        %1981 = vmatpush1.msra.mxu0 0.0
        %1982 = vmatprep.subr.mxu0 0.0
        %1983 = vmatpush1.msra.mxu0 0.0
        %1984 = vmatprep.subr.mxu0 0.0
        %1985 = vmatpush1.msra.mxu0 0.0
        %1986 = vmatprep.subr.mxu0 0.0
        %1987 = vmatpush1.msra.mxu0 0.0
        %1988 = vmatprep.subr.mxu0 0.0
        %1989 = vmatpush1.msra.mxu0 0.0
        %1990 = vmatprep.subr.mxu0 0.0
        %1991 = vmatpush1.msra.mxu0 0.0
        %1992 = vmatprep.subr.mxu0 0.0
        %1993 = vmatpush1.msra.mxu0 0.0
        %1994 = vmatprep.subr.mxu0 0.0
        %1995 = vmatpush1.msra.mxu0 0.0
        %1996 = vmatprep.mubr.f32.mxu0 0.0
        %v1997 = vand.u32 %v396, 4294901760
        %1998 = vmatmul.mubr.f32.gmra.mrb[0].mxu0 %v1997
        %v1999 = vpop.f32.mrb[0].mxu0
        %v2000 = vadd.f32 %v1849, %v1999
        %v2001 = vpop.f32.mrb[0].mxu0
        %2002 = vdwg.mxu0
        %2003 = vmatprep.subr.mxu0 0.0
        %v2004 = vand.u32 %v402, 4294901760
        %v2005 = vsub.f32 %v402, %v2004
        %2006 = vmatpush1.msra.mxu0 %v2005
        %2007 = vmatprep.subr.mxu0 0.0
        %v2008 = vand.u32 %v405, 4294901760
        %v2009 = vsub.f32 %v405, %v2008
        %2010 = vmatpush1.msra.mxu0 %v2009
        %2011 = vmatprep.subr.mxu0 0.0
        %v2012 = vand.u32 %v408, 4294901760
        %v2013 = vsub.f32 %v408, %v2012
        %2014 = vmatpush1.msra.mxu0 %v2013
        %2015 = vmatprep.subr.mxu0 0.0
        %v2016 = vand.u32 %v411, 4294901760
        %v2017 = vsub.f32 %v411, %v2016
        %2018 = vmatpush1.msra.mxu0 %v2017
        %2019 = vmatprep.subr.mxu0 0.0
        %v2020 = vand.u32 %v414, 4294901760
        %v2021 = vsub.f32 %v414, %v2020
        %2022 = vmatpush1.msra.mxu0 %v2021
        %2023 = vmatprep.subr.mxu0 0.0
        %v2024 = vand.u32 %v417, 4294901760
        %v2025 = vsub.f32 %v417, %v2024
        %2026 = vmatpush1.msra.mxu0 %v2025
        %2027 = vmatprep.subr.mxu0 0.0
        %v2028 = vand.u32 %v420, 4294901760
        %v2029 = vsub.f32 %v420, %v2028
        %2030 = vmatpush1.msra.mxu0 %v2029
        %2031 = vmatprep.subr.mxu0 0.0
        %v2032 = vand.u32 %v423, 4294901760
        %v2033 = vsub.f32 %v423, %v2032
        %2034 = vmatpush1.msra.mxu0 %v2033
        %2035 = vmatprep.subr.mxu0 0.0
        %v2036 = vand.u32 %v426, 4294901760
        %v2037 = vsub.f32 %v426, %v2036
        %2038 = vmatpush1.msra.mxu0 %v2037
        %2039 = vmatprep.subr.mxu0 0.0
        %v2040 = vand.u32 %v429, 4294901760
        %v2041 = vsub.f32 %v429, %v2040
        %2042 = vmatpush1.msra.mxu0 %v2041
        %2043 = vmatprep.subr.mxu0 0.0
        %v2044 = vand.u32 %v432, 4294901760
        %v2045 = vsub.f32 %v432, %v2044
        %2046 = vmatpush1.msra.mxu0 %v2045
        %2047 = vmatprep.subr.mxu0 0.0
        %v2048 = vand.u32 %v435, 4294901760
        %v2049 = vsub.f32 %v435, %v2048
        %2050 = vmatpush1.msra.mxu0 %v2049
        %2051 = vmatprep.subr.mxu0 0.0
        %v2052 = vand.u32 %v438, 4294901760
        %v2053 = vsub.f32 %v438, %v2052
        %2054 = vmatpush1.msra.mxu0 %v2053
        %2055 = vmatprep.subr.mxu0 0.0
        %v2056 = vand.u32 %v441, 4294901760
        %v2057 = vsub.f32 %v441, %v2056
        %2058 = vmatpush1.msra.mxu0 %v2057
        %2059 = vmatprep.subr.mxu0 0.0
        %v2060 = vand.u32 %v444, 4294901760
        %v2061 = vsub.f32 %v444, %v2060
        %2062 = vmatpush1.msra.mxu0 %v2061
        %2063 = vmatprep.subr.mxu0 0.0
        %v2064 = vand.u32 %v447, 4294901760
        %v2065 = vsub.f32 %v447, %v2064
        %2066 = vmatpush1.msra.mxu0 %v2065
        %2067 = vmatprep.subr.mxu0 0.0
        %2068 = vmatpush1.msra.mxu0 0.0
        %2069 = vmatprep.subr.mxu0 0.0
        %2070 = vmatpush1.msra.mxu0 0.0
        %2071 = vmatprep.subr.mxu0 0.0
        %2072 = vmatpush1.msra.mxu0 0.0
        %2073 = vmatprep.subr.mxu0 0.0
        %2074 = vmatpush1.msra.mxu0 0.0
        %2075 = vmatprep.subr.mxu0 0.0
        %2076 = vmatpush1.msra.mxu0 0.0
        %2077 = vmatprep.subr.mxu0 0.0
        %2078 = vmatpush1.msra.mxu0 0.0
        %2079 = vmatprep.subr.mxu0 0.0
        %2080 = vmatpush1.msra.mxu0 0.0
        %2081 = vmatprep.subr.mxu0 0.0
        %2082 = vmatpush1.msra.mxu0 0.0
        %2083 = vmatprep.subr.mxu0 0.0
        %2084 = vmatpush1.msra.mxu0 0.0
        %2085 = vmatprep.subr.mxu0 0.0
        %2086 = vmatpush1.msra.mxu0 0.0
        %2087 = vmatprep.subr.mxu0 0.0
        %2088 = vmatpush1.msra.mxu0 0.0
        %2089 = vmatprep.subr.mxu0 0.0
        %2090 = vmatpush1.msra.mxu0 0.0
        %2091 = vmatprep.subr.mxu0 0.0
        %2092 = vmatpush1.msra.mxu0 0.0
        %2093 = vmatprep.subr.mxu0 0.0
        %2094 = vmatpush1.msra.mxu0 0.0
        %2095 = vmatprep.subr.mxu0 0.0
        %2096 = vmatpush1.msra.mxu0 0.0
        %2097 = vmatprep.subr.mxu0 0.0
        %2098 = vmatpush1.msra.mxu0 0.0
        %2099 = vmatprep.mubr.f32.mxu0 0.0
        %v2100 = vand.u32 %v396, 4294901760
        %v2101 = vsub.f32 %v396, %v2100
        %2102 = vmatmul.mubr.f32.gmra.mrb[0].mxu0 %v2101
        %v2103 = vpop.f32.mrb[0].mxu0
        %v2104 = vadd.f32 %v2000, %v2103
        %v2105 = vpop.f32.mrb[0].mxu0
        %2106 = vdwg.mxu0
        %2107 = vmatprep.subr.mxu0 0.0
        %v2108 = vand.u32 %v402, 4294901760
        %2109 = vmatpush1.msra.mxu0 %v2108
        %2110 = vmatprep.subr.mxu0 0.0
        %v2111 = vand.u32 %v405, 4294901760
        %2112 = vmatpush1.msra.mxu0 %v2111
        %2113 = vmatprep.subr.mxu0 0.0
        %v2114 = vand.u32 %v408, 4294901760
        %2115 = vmatpush1.msra.mxu0 %v2114
        %2116 = vmatprep.subr.mxu0 0.0
        %v2117 = vand.u32 %v411, 4294901760
        %2118 = vmatpush1.msra.mxu0 %v2117
        %2119 = vmatprep.subr.mxu0 0.0
        %v2120 = vand.u32 %v414, 4294901760
        %2121 = vmatpush1.msra.mxu0 %v2120
        %2122 = vmatprep.subr.mxu0 0.0
        %v2123 = vand.u32 %v417, 4294901760
        %2124 = vmatpush1.msra.mxu0 %v2123
        %2125 = vmatprep.subr.mxu0 0.0
        %v2126 = vand.u32 %v420, 4294901760
        %2127 = vmatpush1.msra.mxu0 %v2126
        %2128 = vmatprep.subr.mxu0 0.0
        %v2129 = vand.u32 %v423, 4294901760
        %2130 = vmatpush1.msra.mxu0 %v2129
        %2131 = vmatprep.subr.mxu0 0.0
        %v2132 = vand.u32 %v426, 4294901760
        %2133 = vmatpush1.msra.mxu0 %v2132
        %2134 = vmatprep.subr.mxu0 0.0
        %v2135 = vand.u32 %v429, 4294901760
        %2136 = vmatpush1.msra.mxu0 %v2135
        %2137 = vmatprep.subr.mxu0 0.0
        %v2138 = vand.u32 %v432, 4294901760
        %2139 = vmatpush1.msra.mxu0 %v2138
        %2140 = vmatprep.subr.mxu0 0.0
        %v2141 = vand.u32 %v435, 4294901760
        %2142 = vmatpush1.msra.mxu0 %v2141
        %2143 = vmatprep.subr.mxu0 0.0
        %v2144 = vand.u32 %v438, 4294901760
        %2145 = vmatpush1.msra.mxu0 %v2144
        %2146 = vmatprep.subr.mxu0 0.0
        %v2147 = vand.u32 %v441, 4294901760
        %2148 = vmatpush1.msra.mxu0 %v2147
        %2149 = vmatprep.subr.mxu0 0.0
        %v2150 = vand.u32 %v444, 4294901760
        %2151 = vmatpush1.msra.mxu0 %v2150
        %2152 = vmatprep.subr.mxu0 0.0
        %v2153 = vand.u32 %v447, 4294901760
        %2154 = vmatpush1.msra.mxu0 %v2153
        %2155 = vmatprep.subr.mxu0 0.0
        %2156 = vmatpush1.msra.mxu0 0.0
        %2157 = vmatprep.subr.mxu0 0.0
        %2158 = vmatpush1.msra.mxu0 0.0
        %2159 = vmatprep.subr.mxu0 0.0
        %2160 = vmatpush1.msra.mxu0 0.0
        %2161 = vmatprep.subr.mxu0 0.0
        %2162 = vmatpush1.msra.mxu0 0.0
        %2163 = vmatprep.subr.mxu0 0.0
        %2164 = vmatpush1.msra.mxu0 0.0
        %2165 = vmatprep.subr.mxu0 0.0
        %2166 = vmatpush1.msra.mxu0 0.0
        %2167 = vmatprep.subr.mxu0 0.0
        %2168 = vmatpush1.msra.mxu0 0.0
        %2169 = vmatprep.subr.mxu0 0.0
        %2170 = vmatpush1.msra.mxu0 0.0
        %2171 = vmatprep.subr.mxu0 0.0
        %2172 = vmatpush1.msra.mxu0 0.0
        %2173 = vmatprep.subr.mxu0 0.0
        %2174 = vmatpush1.msra.mxu0 0.0
        %2175 = vmatprep.subr.mxu0 0.0
        %2176 = vmatpush1.msra.mxu0 0.0
        %2177 = vmatprep.subr.mxu0 0.0
        %2178 = vmatpush1.msra.mxu0 0.0
        %2179 = vmatprep.subr.mxu0 0.0
        %2180 = vmatpush1.msra.mxu0 0.0
        %2181 = vmatprep.subr.mxu0 0.0
        %2182 = vmatpush1.msra.mxu0 0.0
        %2183 = vmatprep.subr.mxu0 0.0
        %2184 = vmatpush1.msra.mxu0 0.0
        %2185 = vmatprep.subr.mxu0 0.0
        %2186 = vmatpush1.msra.mxu0 0.0
        %2187 = vmatprep.mubr.f32.mxu0 0.0
        %v2188 = vand.u32 %v396, 4294901760
        %v2189 = vsub.f32 %v396, %v2188
        %v2190 = vand.u32 %v2189, 4294901760
        %2191 = vmatmul.mubr.f32.gmra.mrb[0].mxu0 %v2190
        %v2192 = vpop.f32.mrb[0].mxu0
        %v2193 = vadd.f32 %v2104, %v2192
        %v2194 = vpop.f32.mrb[0].mxu0
        %2195 = vdwg.mxu0
        %2196 = vmatprep.subr.mxu0 0.0
        %v2197 = vand.u32 %v402, 4294901760
        %v2198 = vsub.f32 %v402, %v2197
        %v2199 = vand.u32 %v2198, 4294901760
        %2200 = vmatpush1.msra.mxu0 %v2199
        %2201 = vmatprep.subr.mxu0 0.0
        %v2202 = vand.u32 %v405, 4294901760
        %v2203 = vsub.f32 %v405, %v2202
        %v2204 = vand.u32 %v2203, 4294901760
        %2205 = vmatpush1.msra.mxu0 %v2204
        %2206 = vmatprep.subr.mxu0 0.0
        %v2207 = vand.u32 %v408, 4294901760
        %v2208 = vsub.f32 %v408, %v2207
        %v2209 = vand.u32 %v2208, 4294901760
        %2210 = vmatpush1.msra.mxu0 %v2209
        %2211 = vmatprep.subr.mxu0 0.0
        %v2212 = vand.u32 %v411, 4294901760
        %v2213 = vsub.f32 %v411, %v2212
        %v2214 = vand.u32 %v2213, 4294901760
        %2215 = vmatpush1.msra.mxu0 %v2214
        %2216 = vmatprep.subr.mxu0 0.0
        %v2217 = vand.u32 %v414, 4294901760
        %v2218 = vsub.f32 %v414, %v2217
        %v2219 = vand.u32 %v2218, 4294901760
        %2220 = vmatpush1.msra.mxu0 %v2219
        %2221 = vmatprep.subr.mxu0 0.0
        %v2222 = vand.u32 %v417, 4294901760
        %v2223 = vsub.f32 %v417, %v2222
        %v2224 = vand.u32 %v2223, 4294901760
        %2225 = vmatpush1.msra.mxu0 %v2224
        %2226 = vmatprep.subr.mxu0 0.0
        %v2227 = vand.u32 %v420, 4294901760
        %v2228 = vsub.f32 %v420, %v2227
        %v2229 = vand.u32 %v2228, 4294901760
        %2230 = vmatpush1.msra.mxu0 %v2229
        %2231 = vmatprep.subr.mxu0 0.0
        %v2232 = vand.u32 %v423, 4294901760
        %v2233 = vsub.f32 %v423, %v2232
        %v2234 = vand.u32 %v2233, 4294901760
        %2235 = vmatpush1.msra.mxu0 %v2234
        %2236 = vmatprep.subr.mxu0 0.0
        %v2237 = vand.u32 %v426, 4294901760
        %v2238 = vsub.f32 %v426, %v2237
        %v2239 = vand.u32 %v2238, 4294901760
        %2240 = vmatpush1.msra.mxu0 %v2239
        %2241 = vmatprep.subr.mxu0 0.0
        %v2242 = vand.u32 %v429, 4294901760
        %v2243 = vsub.f32 %v429, %v2242
        %v2244 = vand.u32 %v2243, 4294901760
        %2245 = vmatpush1.msra.mxu0 %v2244
        %2246 = vmatprep.subr.mxu0 0.0
        %v2247 = vand.u32 %v432, 4294901760
        %v2248 = vsub.f32 %v432, %v2247
        %v2249 = vand.u32 %v2248, 4294901760
        %2250 = vmatpush1.msra.mxu0 %v2249
        %2251 = vmatprep.subr.mxu0 0.0
        %v2252 = vand.u32 %v435, 4294901760
        %v2253 = vsub.f32 %v435, %v2252
        %v2254 = vand.u32 %v2253, 4294901760
        %2255 = vmatpush1.msra.mxu0 %v2254
        %2256 = vmatprep.subr.mxu0 0.0
        %v2257 = vand.u32 %v438, 4294901760
        %v2258 = vsub.f32 %v438, %v2257
        %v2259 = vand.u32 %v2258, 4294901760
        %2260 = vmatpush1.msra.mxu0 %v2259
        %2261 = vmatprep.subr.mxu0 0.0
        %v2262 = vand.u32 %v441, 4294901760
        %v2263 = vsub.f32 %v441, %v2262
        %v2264 = vand.u32 %v2263, 4294901760
        %2265 = vmatpush1.msra.mxu0 %v2264
        %2266 = vmatprep.subr.mxu0 0.0
        %v2267 = vand.u32 %v444, 4294901760
        %v2268 = vsub.f32 %v444, %v2267
        %v2269 = vand.u32 %v2268, 4294901760
        %2270 = vmatpush1.msra.mxu0 %v2269
        %2271 = vmatprep.subr.mxu0 0.0
        %v2272 = vand.u32 %v447, 4294901760
        %v2273 = vsub.f32 %v447, %v2272
        %v2274 = vand.u32 %v2273, 4294901760
        %2275 = vmatpush1.msra.mxu0 %v2274
        %2276 = vmatprep.subr.mxu0 0.0
        %2277 = vmatpush1.msra.mxu0 0.0
        %2278 = vmatprep.subr.mxu0 0.0
        %2279 = vmatpush1.msra.mxu0 0.0
        %2280 = vmatprep.subr.mxu0 0.0
        %2281 = vmatpush1.msra.mxu0 0.0
        %2282 = vmatprep.subr.mxu0 0.0
        %2283 = vmatpush1.msra.mxu0 0.0
        %2284 = vmatprep.subr.mxu0 0.0
        %2285 = vmatpush1.msra.mxu0 0.0
        %2286 = vmatprep.subr.mxu0 0.0
        %2287 = vmatpush1.msra.mxu0 0.0
        %2288 = vmatprep.subr.mxu0 0.0
        %2289 = vmatpush1.msra.mxu0 0.0
        %2290 = vmatprep.subr.mxu0 0.0
        %2291 = vmatpush1.msra.mxu0 0.0
        %2292 = vmatprep.subr.mxu0 0.0
        %2293 = vmatpush1.msra.mxu0 0.0
        %2294 = vmatprep.subr.mxu0 0.0
        %2295 = vmatpush1.msra.mxu0 0.0
        %2296 = vmatprep.subr.mxu0 0.0
        %2297 = vmatpush1.msra.mxu0 0.0
        %2298 = vmatprep.subr.mxu0 0.0
        %2299 = vmatpush1.msra.mxu0 0.0
        %2300 = vmatprep.subr.mxu0 0.0
        %2301 = vmatpush1.msra.mxu0 0.0
        %2302 = vmatprep.subr.mxu0 0.0
        %2303 = vmatpush1.msra.mxu0 0.0
        %2304 = vmatprep.subr.mxu0 0.0
        %2305 = vmatpush1.msra.mxu0 0.0
        %2306 = vmatprep.subr.mxu0 0.0
        %2307 = vmatpush1.msra.mxu0 0.0
        %2308 = vmatprep.mubr.f32.mxu0 0.0
        %v2309 = vand.u32 %v396, 4294901760
        %2310 = vmatmul.mubr.f32.gmra.mrb[0].mxu0 %v2309
        %v2311 = vpop.f32.mrb[0].mxu0
        %v2312 = vadd.f32 %v2193, %v2311
        %v2313 = vpop.f32.mrb[0].mxu0
        %2314 = vdwg.mxu0
        %2315 = vmatprep.subr.mxu0 0.0
        %v2316 = vand.u32 %v402, 4294901760
        %2317 = vmatpush1.msra.mxu0 %v2316
        %2318 = vmatprep.subr.mxu0 0.0
        %v2319 = vand.u32 %v405, 4294901760
        %2320 = vmatpush1.msra.mxu0 %v2319
        %2321 = vmatprep.subr.mxu0 0.0
        %v2322 = vand.u32 %v408, 4294901760
        %2323 = vmatpush1.msra.mxu0 %v2322
        %2324 = vmatprep.subr.mxu0 0.0
        %v2325 = vand.u32 %v411, 4294901760
        %2326 = vmatpush1.msra.mxu0 %v2325
        %2327 = vmatprep.subr.mxu0 0.0
        %v2328 = vand.u32 %v414, 4294901760
        %2329 = vmatpush1.msra.mxu0 %v2328
        %2330 = vmatprep.subr.mxu0 0.0
        %v2331 = vand.u32 %v417, 4294901760
        %2332 = vmatpush1.msra.mxu0 %v2331
        %2333 = vmatprep.subr.mxu0 0.0
        %v2334 = vand.u32 %v420, 4294901760
        %2335 = vmatpush1.msra.mxu0 %v2334
        %2336 = vmatprep.subr.mxu0 0.0
        %v2337 = vand.u32 %v423, 4294901760
        %2338 = vmatpush1.msra.mxu0 %v2337
        %2339 = vmatprep.subr.mxu0 0.0
        %v2340 = vand.u32 %v426, 4294901760
        %2341 = vmatpush1.msra.mxu0 %v2340
        %2342 = vmatprep.subr.mxu0 0.0
        %v2343 = vand.u32 %v429, 4294901760
        %2344 = vmatpush1.msra.mxu0 %v2343
        %2345 = vmatprep.subr.mxu0 0.0
        %v2346 = vand.u32 %v432, 4294901760
        %2347 = vmatpush1.msra.mxu0 %v2346
        %2348 = vmatprep.subr.mxu0 0.0
        %v2349 = vand.u32 %v435, 4294901760
        %2350 = vmatpush1.msra.mxu0 %v2349
        %2351 = vmatprep.subr.mxu0 0.0
        %v2352 = vand.u32 %v438, 4294901760
        %2353 = vmatpush1.msra.mxu0 %v2352
        %2354 = vmatprep.subr.mxu0 0.0
        %v2355 = vand.u32 %v441, 4294901760
        %2356 = vmatpush1.msra.mxu0 %v2355
        %2357 = vmatprep.subr.mxu0 0.0
        %v2358 = vand.u32 %v444, 4294901760
        %2359 = vmatpush1.msra.mxu0 %v2358
        %2360 = vmatprep.subr.mxu0 0.0
        %v2361 = vand.u32 %v447, 4294901760
        %2362 = vmatpush1.msra.mxu0 %v2361
        %2363 = vmatprep.subr.mxu0 0.0
        %2364 = vmatpush1.msra.mxu0 0.0
        %2365 = vmatprep.subr.mxu0 0.0
        %2366 = vmatpush1.msra.mxu0 0.0
        %2367 = vmatprep.subr.mxu0 0.0
        %2368 = vmatpush1.msra.mxu0 0.0
        %2369 = vmatprep.subr.mxu0 0.0
        %2370 = vmatpush1.msra.mxu0 0.0
        %2371 = vmatprep.subr.mxu0 0.0
        %2372 = vmatpush1.msra.mxu0 0.0
        %2373 = vmatprep.subr.mxu0 0.0
        %2374 = vmatpush1.msra.mxu0 0.0
        %2375 = vmatprep.subr.mxu0 0.0
        %2376 = vmatpush1.msra.mxu0 0.0
        %2377 = vmatprep.subr.mxu0 0.0
        %2378 = vmatpush1.msra.mxu0 0.0
        %2379 = vmatprep.subr.mxu0 0.0
        %2380 = vmatpush1.msra.mxu0 0.0
        %2381 = vmatprep.subr.mxu0 0.0
        %2382 = vmatpush1.msra.mxu0 0.0
        %2383 = vmatprep.subr.mxu0 0.0
        %2384 = vmatpush1.msra.mxu0 0.0
        %2385 = vmatprep.subr.mxu0 0.0
        %2386 = vmatpush1.msra.mxu0 0.0
        %2387 = vmatprep.subr.mxu0 0.0
        %2388 = vmatpush1.msra.mxu0 0.0
        %2389 = vmatprep.subr.mxu0 0.0
        %2390 = vmatpush1.msra.mxu0 0.0
        %2391 = vmatprep.subr.mxu0 0.0
        %2392 = vmatpush1.msra.mxu0 0.0
        %2393 = vmatprep.subr.mxu0 0.0
        %2394 = vmatpush1.msra.mxu0 0.0
        %2395 = vmatprep.mubr.f32.mxu0 0.0
        %v2396 = vand.u32 %v396, 4294901760
        %2397 = vmatmul.mubr.f32.gmra.mrb[0].mxu0 %v2396
        %v2398 = vpop.f32.mrb[0].mxu0
        %v2399 = vadd.f32 %v2312, %v2398
        %v2400 = vpop.f32.mrb[0].mxu0
        %2401 = vdwg.mxu0
        %v2402 = vsel %vm896, %v905, inf
        %2403 = vmin.xlane.f32.xlu0 %v2402
        %v2404 = vpop.xlane.xlu0 %2403
        %vm2405 = vcmp.le.f32.partialorder %v905, %v2404
        %v2406 = vsel %vm2405, %v399, 1e+30
        %v2407 = vsel %vm896, %v2406, inf
        %2408 = vmin.xlane.f32.xlu0 %v2407
        %v2409 = vpop.xlane.xlu0 %2408
        %vm2410 = vcmp.eq.f32.partialorder %v399, %v2409
        %v2411 = vsel %vm2410, 1, 0
        %v2412 = vcvt.s32.f32 %v2411
        %v2413 = vsel %vm2410, 1e+30, %v905
        %v2414 = vsel %vm896, %v2413, inf
        %2415 = vmin.xlane.f32.xlu0 %v2414
        %v2416 = vpop.xlane.xlu0 %2415
        %vm2417 = vcmp.le.f32.partialorder %v2413, %v2416
        %v2418 = vsel %vm2417, %v399, 1e+30
        %v2419 = vsel %vm896, %v2418, inf
        %2420 = vmin.xlane.f32.xlu0 %v2419
        %v2421 = vpop.xlane.xlu0 %2420
        %vm2422 = vcmp.eq.f32.partialorder %v399, %v2421
        %v2423 = vsel %vm2422, 1, 0
        %v2424 = vcvt.s32.f32 %v2423
        %v2426 = vsel %vm896, %v2424, 0
        %2428 = vmatprep.subr.mxu0 0.0
        %v2429 = vand.u32 %v1759, 4294901760
        %2430 = vmatpush1.msra.mxu0 %v2429
        %2431 = vmatprep.subr.mxu0 0.0
        %2432 = vmatpush1.msra.mxu0 0.0
        %2433 = vmatprep.subr.mxu0 0.0
        %2434 = vmatpush1.msra.mxu0 0.0
        %2435 = vmatprep.subr.mxu0 0.0
        %2436 = vmatpush1.msra.mxu0 0.0
        %2437 = vmatprep.subr.mxu0 0.0
        %2438 = vmatpush1.msra.mxu0 0.0
        %2439 = vmatprep.subr.mxu0 0.0
        %2440 = vmatpush1.msra.mxu0 0.0
        %2441 = vmatprep.subr.mxu0 0.0
        %2442 = vmatpush1.msra.mxu0 0.0
        %2443 = vmatprep.subr.mxu0 0.0
        %2444 = vmatpush1.msra.mxu0 0.0
        %2445 = vmatprep.subr.mxu0 0.0
        %2446 = vmatpush1.msra.mxu0 0.0
        %2447 = vmatprep.subr.mxu0 0.0
        %2448 = vmatpush1.msra.mxu0 0.0
        %2449 = vmatprep.subr.mxu0 0.0
        %2450 = vmatpush1.msra.mxu0 0.0
        %2451 = vmatprep.subr.mxu0 0.0
        %2452 = vmatpush1.msra.mxu0 0.0
        %2453 = vmatprep.subr.mxu0 0.0
        %2454 = vmatpush1.msra.mxu0 0.0
        %2455 = vmatprep.subr.mxu0 0.0
        %2456 = vmatpush1.msra.mxu0 0.0
        %2457 = vmatprep.subr.mxu0 0.0
        %2458 = vmatpush1.msra.mxu0 0.0
        %2459 = vmatprep.subr.mxu0 0.0
        %2460 = vmatpush1.msra.mxu0 0.0
        %2461 = vmatprep.subr.mxu0 0.0
        %2462 = vmatpush1.msra.mxu0 0.0
        %2463 = vmatprep.subr.mxu0 0.0
        %2464 = vmatpush1.msra.mxu0 0.0
        %2465 = vmatprep.subr.mxu0 0.0
        %2466 = vmatpush1.msra.mxu0 0.0
        %2467 = vmatprep.subr.mxu0 0.0
        %2468 = vmatpush1.msra.mxu0 0.0
        %2469 = vmatprep.subr.mxu0 0.0
        %2470 = vmatpush1.msra.mxu0 0.0
        %2471 = vmatprep.subr.mxu0 0.0
        %2472 = vmatpush1.msra.mxu0 0.0
        %2473 = vmatprep.subr.mxu0 0.0
        %2474 = vmatpush1.msra.mxu0 0.0
        %2475 = vmatprep.subr.mxu0 0.0
        %2476 = vmatpush1.msra.mxu0 0.0
        %2477 = vmatprep.subr.mxu0 0.0
        %2478 = vmatpush1.msra.mxu0 0.0
        %2479 = vmatprep.subr.mxu0 0.0
        %2480 = vmatpush1.msra.mxu0 0.0
        %2481 = vmatprep.subr.mxu0 0.0
        %2482 = vmatpush1.msra.mxu0 0.0
        %2483 = vmatprep.subr.mxu0 0.0
        %2484 = vmatpush1.msra.mxu0 0.0
        %2485 = vmatprep.subr.mxu0 0.0
        %2486 = vmatpush1.msra.mxu0 0.0
        %2487 = vmatprep.subr.mxu0 0.0
        %2488 = vmatpush1.msra.mxu0 0.0
        %2489 = vmatprep.subr.mxu0 0.0
        %2490 = vmatpush1.msra.mxu0 0.0
        %2491 = vmatprep.subr.mxu0 0.0
        %2492 = vmatpush1.msra.mxu0 0.0
        %2493 = vmatprep.mubr.f32.mxu0 0.0
        %v2494 = vand.u32 %v2426, 4294901760
        %v2495 = vsub.f32 %v2426, %v2494
        %v2496 = vand.u32 %v2495, 4294901760
        %v2497 = vsub.f32 %v2495, %v2496
        %v2498 = vand.u32 %v2497, 4294901760
        %2499 = vmatmul.mubr.f32.gmra.mrb[0].mxu0 %v2498
        %v2500 = vpop.f32.mrb[0].mxu0
        %v2501 = vadd.f32 0.0, %v2500
        %v2502 = vpop.f32.mrb[0].mxu0
        %2503 = vdwg.mxu0
        %2504 = vmatprep.subr.mxu0 0.0
        %v2505 = vand.u32 %v1759, 4294901760
        %v2506 = vsub.f32 %v1759, %v2505
        %v2507 = vand.u32 %v2506, 4294901760
        %v2508 = vsub.f32 %v2506, %v2507
        %v2509 = vand.u32 %v2508, 4294901760
        %2510 = vmatpush1.msra.mxu0 %v2509
        %2511 = vmatprep.subr.mxu0 0.0
        %2512 = vmatpush1.msra.mxu0 0.0
        %2513 = vmatprep.subr.mxu0 0.0
        %2514 = vmatpush1.msra.mxu0 0.0
        %2515 = vmatprep.subr.mxu0 0.0
        %2516 = vmatpush1.msra.mxu0 0.0
        %2517 = vmatprep.subr.mxu0 0.0
        %2518 = vmatpush1.msra.mxu0 0.0
        %2519 = vmatprep.subr.mxu0 0.0
        %2520 = vmatpush1.msra.mxu0 0.0
        %2521 = vmatprep.subr.mxu0 0.0
        %2522 = vmatpush1.msra.mxu0 0.0
        %2523 = vmatprep.subr.mxu0 0.0
        %2524 = vmatpush1.msra.mxu0 0.0
        %2525 = vmatprep.subr.mxu0 0.0
        %2526 = vmatpush1.msra.mxu0 0.0
        %2527 = vmatprep.subr.mxu0 0.0
        %2528 = vmatpush1.msra.mxu0 0.0
        %2529 = vmatprep.subr.mxu0 0.0
        %2530 = vmatpush1.msra.mxu0 0.0
        %2531 = vmatprep.subr.mxu0 0.0
        %2532 = vmatpush1.msra.mxu0 0.0
        %2533 = vmatprep.subr.mxu0 0.0
        %2534 = vmatpush1.msra.mxu0 0.0
        %2535 = vmatprep.subr.mxu0 0.0
        %2536 = vmatpush1.msra.mxu0 0.0
        %2537 = vmatprep.subr.mxu0 0.0
        %2538 = vmatpush1.msra.mxu0 0.0
        %2539 = vmatprep.subr.mxu0 0.0
        %2540 = vmatpush1.msra.mxu0 0.0
        %2541 = vmatprep.subr.mxu0 0.0
        %2542 = vmatpush1.msra.mxu0 0.0
        %2543 = vmatprep.subr.mxu0 0.0
        %2544 = vmatpush1.msra.mxu0 0.0
        %2545 = vmatprep.subr.mxu0 0.0
        %2546 = vmatpush1.msra.mxu0 0.0
        %2547 = vmatprep.subr.mxu0 0.0
        %2548 = vmatpush1.msra.mxu0 0.0
        %2549 = vmatprep.subr.mxu0 0.0
        %2550 = vmatpush1.msra.mxu0 0.0
        %2551 = vmatprep.subr.mxu0 0.0
        %2552 = vmatpush1.msra.mxu0 0.0
        %2553 = vmatprep.subr.mxu0 0.0
        %2554 = vmatpush1.msra.mxu0 0.0
        %2555 = vmatprep.subr.mxu0 0.0
        %2556 = vmatpush1.msra.mxu0 0.0
        %2557 = vmatprep.subr.mxu0 0.0
        %2558 = vmatpush1.msra.mxu0 0.0
        %2559 = vmatprep.subr.mxu0 0.0
        %2560 = vmatpush1.msra.mxu0 0.0
        %2561 = vmatprep.subr.mxu0 0.0
        %2562 = vmatpush1.msra.mxu0 0.0
        %2563 = vmatprep.subr.mxu0 0.0
        %2564 = vmatpush1.msra.mxu0 0.0
        %2565 = vmatprep.subr.mxu0 0.0
        %2566 = vmatpush1.msra.mxu0 0.0
        %2567 = vmatprep.subr.mxu0 0.0
        %2568 = vmatpush1.msra.mxu0 0.0
        %2569 = vmatprep.subr.mxu0 0.0
        %2570 = vmatpush1.msra.mxu0 0.0
        %2571 = vmatprep.subr.mxu0 0.0
        %2572 = vmatpush1.msra.mxu0 0.0
        %2573 = vmatprep.mubr.f32.mxu0 0.0
        %v2574 = vand.u32 %v2426, 4294901760
        %2575 = vmatmul.mubr.f32.gmra.mrb[0].mxu0 %v2574
        %v2576 = vpop.f32.mrb[0].mxu0
        %v2577 = vadd.f32 %v2501, %v2576
        %v2578 = vpop.f32.mrb[0].mxu0
        %2579 = vdwg.mxu0
        %2580 = vmatprep.subr.mxu0 0.0
        %v2581 = vand.u32 %v1759, 4294901760
        %v2582 = vsub.f32 %v1759, %v2581
        %2583 = vmatpush1.msra.mxu0 %v2582
        %2584 = vmatprep.subr.mxu0 0.0
        %2585 = vmatpush1.msra.mxu0 0.0
        %2586 = vmatprep.subr.mxu0 0.0
        %2587 = vmatpush1.msra.mxu0 0.0
        %2588 = vmatprep.subr.mxu0 0.0
        %2589 = vmatpush1.msra.mxu0 0.0
        %2590 = vmatprep.subr.mxu0 0.0
        %2591 = vmatpush1.msra.mxu0 0.0
        %2592 = vmatprep.subr.mxu0 0.0
        %2593 = vmatpush1.msra.mxu0 0.0
        %2594 = vmatprep.subr.mxu0 0.0
        %2595 = vmatpush1.msra.mxu0 0.0
        %2596 = vmatprep.subr.mxu0 0.0
        %2597 = vmatpush1.msra.mxu0 0.0
        %2598 = vmatprep.subr.mxu0 0.0
        %2599 = vmatpush1.msra.mxu0 0.0
        %2600 = vmatprep.subr.mxu0 0.0
        %2601 = vmatpush1.msra.mxu0 0.0
        %2602 = vmatprep.subr.mxu0 0.0
        %2603 = vmatpush1.msra.mxu0 0.0
        %2604 = vmatprep.subr.mxu0 0.0
        %2605 = vmatpush1.msra.mxu0 0.0
        %2606 = vmatprep.subr.mxu0 0.0
        %2607 = vmatpush1.msra.mxu0 0.0
        %2608 = vmatprep.subr.mxu0 0.0
        %2609 = vmatpush1.msra.mxu0 0.0
        %2610 = vmatprep.subr.mxu0 0.0
        %2611 = vmatpush1.msra.mxu0 0.0
        %2612 = vmatprep.subr.mxu0 0.0
        %2613 = vmatpush1.msra.mxu0 0.0
        %2614 = vmatprep.subr.mxu0 0.0
        %2615 = vmatpush1.msra.mxu0 0.0
        %2616 = vmatprep.subr.mxu0 0.0
        %2617 = vmatpush1.msra.mxu0 0.0
        %2618 = vmatprep.subr.mxu0 0.0
        %2619 = vmatpush1.msra.mxu0 0.0
        %2620 = vmatprep.subr.mxu0 0.0
        %2621 = vmatpush1.msra.mxu0 0.0
        %2622 = vmatprep.subr.mxu0 0.0
        %2623 = vmatpush1.msra.mxu0 0.0
        %2624 = vmatprep.subr.mxu0 0.0
        %2625 = vmatpush1.msra.mxu0 0.0
        %2626 = vmatprep.subr.mxu0 0.0
        %2627 = vmatpush1.msra.mxu0 0.0
        %2628 = vmatprep.subr.mxu0 0.0
        %2629 = vmatpush1.msra.mxu0 0.0
        %2630 = vmatprep.subr.mxu0 0.0
        %2631 = vmatpush1.msra.mxu0 0.0
        %2632 = vmatprep.subr.mxu0 0.0
        %2633 = vmatpush1.msra.mxu0 0.0
        %2634 = vmatprep.subr.mxu0 0.0
        %2635 = vmatpush1.msra.mxu0 0.0
        %2636 = vmatprep.subr.mxu0 0.0
        %2637 = vmatpush1.msra.mxu0 0.0
        %2638 = vmatprep.subr.mxu0 0.0
        %2639 = vmatpush1.msra.mxu0 0.0
        %2640 = vmatprep.subr.mxu0 0.0
        %2641 = vmatpush1.msra.mxu0 0.0
        %2642 = vmatprep.subr.mxu0 0.0
        %2643 = vmatpush1.msra.mxu0 0.0
        %2644 = vmatprep.subr.mxu0 0.0
        %2645 = vmatpush1.msra.mxu0 0.0
        %2646 = vmatprep.mubr.f32.mxu0 0.0
        %v2647 = vand.u32 %v2426, 4294901760
        %v2648 = vsub.f32 %v2426, %v2647
        %2649 = vmatmul.mubr.f32.gmra.mrb[0].mxu0 %v2648
        %v2650 = vpop.f32.mrb[0].mxu0
        %v2651 = vadd.f32 %v2577, %v2650
        %v2652 = vpop.f32.mrb[0].mxu0
        %2653 = vdwg.mxu0
        %2654 = vmatprep.subr.mxu0 0.0
        %v2655 = vand.u32 %v1759, 4294901760
        %2656 = vmatpush1.msra.mxu0 %v2655
        %2657 = vmatprep.subr.mxu0 0.0
        %2658 = vmatpush1.msra.mxu0 0.0
        %2659 = vmatprep.subr.mxu0 0.0
        %2660 = vmatpush1.msra.mxu0 0.0
        %2661 = vmatprep.subr.mxu0 0.0
        %2662 = vmatpush1.msra.mxu0 0.0
        %2663 = vmatprep.subr.mxu0 0.0
        %2664 = vmatpush1.msra.mxu0 0.0
        %2665 = vmatprep.subr.mxu0 0.0
        %2666 = vmatpush1.msra.mxu0 0.0
        %2667 = vmatprep.subr.mxu0 0.0
        %2668 = vmatpush1.msra.mxu0 0.0
        %2669 = vmatprep.subr.mxu0 0.0
        %2670 = vmatpush1.msra.mxu0 0.0
        %2671 = vmatprep.subr.mxu0 0.0
        %2672 = vmatpush1.msra.mxu0 0.0
        %2673 = vmatprep.subr.mxu0 0.0
        %2674 = vmatpush1.msra.mxu0 0.0
        %2675 = vmatprep.subr.mxu0 0.0
        %2676 = vmatpush1.msra.mxu0 0.0
        %2677 = vmatprep.subr.mxu0 0.0
        %2678 = vmatpush1.msra.mxu0 0.0
        %2679 = vmatprep.subr.mxu0 0.0
        %2680 = vmatpush1.msra.mxu0 0.0
        %2681 = vmatprep.subr.mxu0 0.0
        %2682 = vmatpush1.msra.mxu0 0.0
        %2683 = vmatprep.subr.mxu0 0.0
        %2684 = vmatpush1.msra.mxu0 0.0
        %2685 = vmatprep.subr.mxu0 0.0
        %2686 = vmatpush1.msra.mxu0 0.0
        %2687 = vmatprep.subr.mxu0 0.0
        %2688 = vmatpush1.msra.mxu0 0.0
        %2689 = vmatprep.subr.mxu0 0.0
        %2690 = vmatpush1.msra.mxu0 0.0
        %2691 = vmatprep.subr.mxu0 0.0
        %2692 = vmatpush1.msra.mxu0 0.0
        %2693 = vmatprep.subr.mxu0 0.0
        %2694 = vmatpush1.msra.mxu0 0.0
        %2695 = vmatprep.subr.mxu0 0.0
        %2696 = vmatpush1.msra.mxu0 0.0
        %2697 = vmatprep.subr.mxu0 0.0
        %2698 = vmatpush1.msra.mxu0 0.0
        %2699 = vmatprep.subr.mxu0 0.0
        %2700 = vmatpush1.msra.mxu0 0.0
        %2701 = vmatprep.subr.mxu0 0.0
        %2702 = vmatpush1.msra.mxu0 0.0
        %2703 = vmatprep.subr.mxu0 0.0
        %2704 = vmatpush1.msra.mxu0 0.0
        %2705 = vmatprep.subr.mxu0 0.0
        %2706 = vmatpush1.msra.mxu0 0.0
        %2707 = vmatprep.subr.mxu0 0.0
        %2708 = vmatpush1.msra.mxu0 0.0
        %2709 = vmatprep.subr.mxu0 0.0
        %2710 = vmatpush1.msra.mxu0 0.0
        %2711 = vmatprep.subr.mxu0 0.0
        %2712 = vmatpush1.msra.mxu0 0.0
        %2713 = vmatprep.subr.mxu0 0.0
        %2714 = vmatpush1.msra.mxu0 0.0
        %2715 = vmatprep.subr.mxu0 0.0
        %2716 = vmatpush1.msra.mxu0 0.0
        %2717 = vmatprep.subr.mxu0 0.0
        %2718 = vmatpush1.msra.mxu0 0.0
        %2719 = vmatprep.mubr.f32.mxu0 0.0
        %v2720 = vand.u32 %v2426, 4294901760
        %v2721 = vsub.f32 %v2426, %v2720
        %v2722 = vand.u32 %v2721, 4294901760
        %2723 = vmatmul.mubr.f32.gmra.mrb[0].mxu0 %v2722
        %v2724 = vpop.f32.mrb[0].mxu0
        %v2725 = vadd.f32 %v2651, %v2724
        %v2726 = vpop.f32.mrb[0].mxu0
        %2727 = vdwg.mxu0
        %2728 = vmatprep.subr.mxu0 0.0
        %v2729 = vand.u32 %v1759, 4294901760
        %v2730 = vsub.f32 %v1759, %v2729
        %v2731 = vand.u32 %v2730, 4294901760
        %2732 = vmatpush1.msra.mxu0 %v2731
        %2733 = vmatprep.subr.mxu0 0.0
        %2734 = vmatpush1.msra.mxu0 0.0
        %2735 = vmatprep.subr.mxu0 0.0
        %2736 = vmatpush1.msra.mxu0 0.0
        %2737 = vmatprep.subr.mxu0 0.0
        %2738 = vmatpush1.msra.mxu0 0.0
        %2739 = vmatprep.subr.mxu0 0.0
        %2740 = vmatpush1.msra.mxu0 0.0
        %2741 = vmatprep.subr.mxu0 0.0
        %2742 = vmatpush1.msra.mxu0 0.0
        %2743 = vmatprep.subr.mxu0 0.0
        %2744 = vmatpush1.msra.mxu0 0.0
        %2745 = vmatprep.subr.mxu0 0.0
        %2746 = vmatpush1.msra.mxu0 0.0
        %2747 = vmatprep.subr.mxu0 0.0
        %2748 = vmatpush1.msra.mxu0 0.0
        %2749 = vmatprep.subr.mxu0 0.0
        %2750 = vmatpush1.msra.mxu0 0.0
        %2751 = vmatprep.subr.mxu0 0.0
        %2752 = vmatpush1.msra.mxu0 0.0
        %2753 = vmatprep.subr.mxu0 0.0
        %2754 = vmatpush1.msra.mxu0 0.0
        %2755 = vmatprep.subr.mxu0 0.0
        %2756 = vmatpush1.msra.mxu0 0.0
        %2757 = vmatprep.subr.mxu0 0.0
        %2758 = vmatpush1.msra.mxu0 0.0
        %2759 = vmatprep.subr.mxu0 0.0
        %2760 = vmatpush1.msra.mxu0 0.0
        %2761 = vmatprep.subr.mxu0 0.0
        %2762 = vmatpush1.msra.mxu0 0.0
        %2763 = vmatprep.subr.mxu0 0.0
        %2764 = vmatpush1.msra.mxu0 0.0
        %2765 = vmatprep.subr.mxu0 0.0
        %2766 = vmatpush1.msra.mxu0 0.0
        %2767 = vmatprep.subr.mxu0 0.0
        %2768 = vmatpush1.msra.mxu0 0.0
        %2769 = vmatprep.subr.mxu0 0.0
        %2770 = vmatpush1.msra.mxu0 0.0
        %2771 = vmatprep.subr.mxu0 0.0
        %2772 = vmatpush1.msra.mxu0 0.0
        %2773 = vmatprep.subr.mxu0 0.0
        %2774 = vmatpush1.msra.mxu0 0.0
        %2775 = vmatprep.subr.mxu0 0.0
        %2776 = vmatpush1.msra.mxu0 0.0
        %2777 = vmatprep.subr.mxu0 0.0
        %2778 = vmatpush1.msra.mxu0 0.0
        %2779 = vmatprep.subr.mxu0 0.0
        %2780 = vmatpush1.msra.mxu0 0.0
        %2781 = vmatprep.subr.mxu0 0.0
        %2782 = vmatpush1.msra.mxu0 0.0
        %2783 = vmatprep.subr.mxu0 0.0
        %2784 = vmatpush1.msra.mxu0 0.0
        %2785 = vmatprep.subr.mxu0 0.0
        %2786 = vmatpush1.msra.mxu0 0.0
        %2787 = vmatprep.subr.mxu0 0.0
        %2788 = vmatpush1.msra.mxu0 0.0
        %2789 = vmatprep.subr.mxu0 0.0
        %2790 = vmatpush1.msra.mxu0 0.0
        %2791 = vmatprep.subr.mxu0 0.0
        %2792 = vmatpush1.msra.mxu0 0.0
        %2793 = vmatprep.subr.mxu0 0.0
        %2794 = vmatpush1.msra.mxu0 0.0
        %2795 = vmatprep.mubr.f32.mxu0 0.0
        %v2796 = vand.u32 %v2426, 4294901760
        %2797 = vmatmul.mubr.f32.gmra.mrb[0].mxu0 %v2796
        %v2798 = vpop.f32.mrb[0].mxu0
        %v2799 = vadd.f32 %v2725, %v2798
        %v2800 = vpop.f32.mrb[0].mxu0
        %2801 = vdwg.mxu0
        %2802 = vmatprep.subr.mxu0 0.0
        %v2803 = vand.u32 %v1759, 4294901760
        %2804 = vmatpush1.msra.mxu0 %v2803
        %2805 = vmatprep.subr.mxu0 0.0
        %2806 = vmatpush1.msra.mxu0 0.0
        %2807 = vmatprep.subr.mxu0 0.0
        %2808 = vmatpush1.msra.mxu0 0.0
        %2809 = vmatprep.subr.mxu0 0.0
        %2810 = vmatpush1.msra.mxu0 0.0
        %2811 = vmatprep.subr.mxu0 0.0
        %2812 = vmatpush1.msra.mxu0 0.0
        %2813 = vmatprep.subr.mxu0 0.0
        %2814 = vmatpush1.msra.mxu0 0.0
        %2815 = vmatprep.subr.mxu0 0.0
        %2816 = vmatpush1.msra.mxu0 0.0
        %2817 = vmatprep.subr.mxu0 0.0
        %2818 = vmatpush1.msra.mxu0 0.0
        %2819 = vmatprep.subr.mxu0 0.0
        %2820 = vmatpush1.msra.mxu0 0.0
        %2821 = vmatprep.subr.mxu0 0.0
        %2822 = vmatpush1.msra.mxu0 0.0
        %2823 = vmatprep.subr.mxu0 0.0
        %2824 = vmatpush1.msra.mxu0 0.0
        %2825 = vmatprep.subr.mxu0 0.0
        %2826 = vmatpush1.msra.mxu0 0.0
        %2827 = vmatprep.subr.mxu0 0.0
        %2828 = vmatpush1.msra.mxu0 0.0
        %2829 = vmatprep.subr.mxu0 0.0
        %2830 = vmatpush1.msra.mxu0 0.0
        %2831 = vmatprep.subr.mxu0 0.0
        %2832 = vmatpush1.msra.mxu0 0.0
        %2833 = vmatprep.subr.mxu0 0.0
        %2834 = vmatpush1.msra.mxu0 0.0
        %2835 = vmatprep.subr.mxu0 0.0
        %2836 = vmatpush1.msra.mxu0 0.0
        %2837 = vmatprep.subr.mxu0 0.0
        %2838 = vmatpush1.msra.mxu0 0.0
        %2839 = vmatprep.subr.mxu0 0.0
        %2840 = vmatpush1.msra.mxu0 0.0
        %2841 = vmatprep.subr.mxu0 0.0
        %2842 = vmatpush1.msra.mxu0 0.0
        %2843 = vmatprep.subr.mxu0 0.0
        %2844 = vmatpush1.msra.mxu0 0.0
        %2845 = vmatprep.subr.mxu0 0.0
        %2846 = vmatpush1.msra.mxu0 0.0
        %2847 = vmatprep.subr.mxu0 0.0
        %2848 = vmatpush1.msra.mxu0 0.0
        %2849 = vmatprep.subr.mxu0 0.0
        %2850 = vmatpush1.msra.mxu0 0.0
        %2851 = vmatprep.subr.mxu0 0.0
        %2852 = vmatpush1.msra.mxu0 0.0
        %2853 = vmatprep.subr.mxu0 0.0
        %2854 = vmatpush1.msra.mxu0 0.0
        %2855 = vmatprep.subr.mxu0 0.0
        %2856 = vmatpush1.msra.mxu0 0.0
        %2857 = vmatprep.subr.mxu0 0.0
        %2858 = vmatpush1.msra.mxu0 0.0
        %2859 = vmatprep.subr.mxu0 0.0
        %2860 = vmatpush1.msra.mxu0 0.0
        %2861 = vmatprep.subr.mxu0 0.0
        %2862 = vmatpush1.msra.mxu0 0.0
        %2863 = vmatprep.subr.mxu0 0.0
        %2864 = vmatpush1.msra.mxu0 0.0
        %2865 = vmatprep.subr.mxu0 0.0
        %2866 = vmatpush1.msra.mxu0 0.0
        %2867 = vmatprep.mubr.f32.mxu0 0.0
        %v2868 = vand.u32 %v2426, 4294901760
        %2869 = vmatmul.mubr.f32.gmra.mrb[0].mxu0 %v2868
        %v2870 = vpop.f32.mrb[0].mxu0
        %v2871 = vadd.f32 %v2799, %v2870
        %v2872 = vpop.f32.mrb[0].mxu0
        %2873 = vdwg.mxu0
        %v2875 = vsel %vm896, %v2412, 0
        %2877 = vmatprep.subr.mxu0 0.0
        %v2878 = vand.u32 %v1757, 4294901760
        %2879 = vmatpush1.msra.mxu0 %v2878
        %2880 = vmatprep.subr.mxu0 0.0
        %2881 = vmatpush1.msra.mxu0 0.0
        %2882 = vmatprep.subr.mxu0 0.0
        %2883 = vmatpush1.msra.mxu0 0.0
        %2884 = vmatprep.subr.mxu0 0.0
        %2885 = vmatpush1.msra.mxu0 0.0
        %2886 = vmatprep.subr.mxu0 0.0
        %2887 = vmatpush1.msra.mxu0 0.0
        %2888 = vmatprep.subr.mxu0 0.0
        %2889 = vmatpush1.msra.mxu0 0.0
        %2890 = vmatprep.subr.mxu0 0.0
        %2891 = vmatpush1.msra.mxu0 0.0
        %2892 = vmatprep.subr.mxu0 0.0
        %2893 = vmatpush1.msra.mxu0 0.0
        %2894 = vmatprep.subr.mxu0 0.0
        %2895 = vmatpush1.msra.mxu0 0.0
        %2896 = vmatprep.subr.mxu0 0.0
        %2897 = vmatpush1.msra.mxu0 0.0
        %2898 = vmatprep.subr.mxu0 0.0
        %2899 = vmatpush1.msra.mxu0 0.0
        %2900 = vmatprep.subr.mxu0 0.0
        %2901 = vmatpush1.msra.mxu0 0.0
        %2902 = vmatprep.subr.mxu0 0.0
        %2903 = vmatpush1.msra.mxu0 0.0
        %2904 = vmatprep.subr.mxu0 0.0
        %2905 = vmatpush1.msra.mxu0 0.0
        %2906 = vmatprep.subr.mxu0 0.0
        %2907 = vmatpush1.msra.mxu0 0.0
        %2908 = vmatprep.subr.mxu0 0.0
        %2909 = vmatpush1.msra.mxu0 0.0
        %2910 = vmatprep.subr.mxu0 0.0
        %2911 = vmatpush1.msra.mxu0 0.0
        %2912 = vmatprep.subr.mxu0 0.0
        %2913 = vmatpush1.msra.mxu0 0.0
        %2914 = vmatprep.subr.mxu0 0.0
        %2915 = vmatpush1.msra.mxu0 0.0
        %2916 = vmatprep.subr.mxu0 0.0
        %2917 = vmatpush1.msra.mxu0 0.0
        %2918 = vmatprep.subr.mxu0 0.0
        %2919 = vmatpush1.msra.mxu0 0.0
        %2920 = vmatprep.subr.mxu0 0.0
        %2921 = vmatpush1.msra.mxu0 0.0
        %2922 = vmatprep.subr.mxu0 0.0
        %2923 = vmatpush1.msra.mxu0 0.0
        %2924 = vmatprep.subr.mxu0 0.0
        %2925 = vmatpush1.msra.mxu0 0.0
        %2926 = vmatprep.subr.mxu0 0.0
        %2927 = vmatpush1.msra.mxu0 0.0
        %2928 = vmatprep.subr.mxu0 0.0
        %2929 = vmatpush1.msra.mxu0 0.0
        %2930 = vmatprep.subr.mxu0 0.0
        %2931 = vmatpush1.msra.mxu0 0.0
        %2932 = vmatprep.subr.mxu0 0.0
        %2933 = vmatpush1.msra.mxu0 0.0
        %2934 = vmatprep.subr.mxu0 0.0
        %2935 = vmatpush1.msra.mxu0 0.0
        %2936 = vmatprep.subr.mxu0 0.0
        %2937 = vmatpush1.msra.mxu0 0.0
        %2938 = vmatprep.subr.mxu0 0.0
        %2939 = vmatpush1.msra.mxu0 0.0
        %2940 = vmatprep.subr.mxu0 0.0
        %2941 = vmatpush1.msra.mxu0 0.0
        %2942 = vmatprep.mubr.f32.mxu0 0.0
        %v2943 = vand.u32 %v2875, 4294901760
        %v2944 = vsub.f32 %v2875, %v2943
        %v2945 = vand.u32 %v2944, 4294901760
        %v2946 = vsub.f32 %v2944, %v2945
        %v2947 = vand.u32 %v2946, 4294901760
        %2948 = vmatmul.mubr.f32.gmra.mrb[0].mxu0 %v2947
        %v2949 = vpop.f32.mrb[0].mxu0
        %v2950 = vadd.f32 %v2871, %v2949
        %v2951 = vpop.f32.mrb[0].mxu0
        %2952 = vdwg.mxu0
        %2953 = vmatprep.subr.mxu0 0.0
        %v2954 = vand.u32 %v1757, 4294901760
        %v2955 = vsub.f32 %v1757, %v2954
        %v2956 = vand.u32 %v2955, 4294901760
        %v2957 = vsub.f32 %v2955, %v2956
        %v2958 = vand.u32 %v2957, 4294901760
        %2959 = vmatpush1.msra.mxu0 %v2958
        %2960 = vmatprep.subr.mxu0 0.0
        %2961 = vmatpush1.msra.mxu0 0.0
        %2962 = vmatprep.subr.mxu0 0.0
        %2963 = vmatpush1.msra.mxu0 0.0
        %2964 = vmatprep.subr.mxu0 0.0
        %2965 = vmatpush1.msra.mxu0 0.0
        %2966 = vmatprep.subr.mxu0 0.0
        %2967 = vmatpush1.msra.mxu0 0.0
        %2968 = vmatprep.subr.mxu0 0.0
        %2969 = vmatpush1.msra.mxu0 0.0
        %2970 = vmatprep.subr.mxu0 0.0
        %2971 = vmatpush1.msra.mxu0 0.0
        %2972 = vmatprep.subr.mxu0 0.0
        %2973 = vmatpush1.msra.mxu0 0.0
        %2974 = vmatprep.subr.mxu0 0.0
        %2975 = vmatpush1.msra.mxu0 0.0
        %2976 = vmatprep.subr.mxu0 0.0
        %2977 = vmatpush1.msra.mxu0 0.0
        %2978 = vmatprep.subr.mxu0 0.0
        %2979 = vmatpush1.msra.mxu0 0.0
        %2980 = vmatprep.subr.mxu0 0.0
        %2981 = vmatpush1.msra.mxu0 0.0
        %2982 = vmatprep.subr.mxu0 0.0
        %2983 = vmatpush1.msra.mxu0 0.0
        %2984 = vmatprep.subr.mxu0 0.0
        %2985 = vmatpush1.msra.mxu0 0.0
        %2986 = vmatprep.subr.mxu0 0.0
        %2987 = vmatpush1.msra.mxu0 0.0
        %2988 = vmatprep.subr.mxu0 0.0
        %2989 = vmatpush1.msra.mxu0 0.0
        %2990 = vmatprep.subr.mxu0 0.0
        %2991 = vmatpush1.msra.mxu0 0.0
        %2992 = vmatprep.subr.mxu0 0.0
        %2993 = vmatpush1.msra.mxu0 0.0
        %2994 = vmatprep.subr.mxu0 0.0
        %2995 = vmatpush1.msra.mxu0 0.0
        %2996 = vmatprep.subr.mxu0 0.0
        %2997 = vmatpush1.msra.mxu0 0.0
        %2998 = vmatprep.subr.mxu0 0.0
        %2999 = vmatpush1.msra.mxu0 0.0
        %3000 = vmatprep.subr.mxu0 0.0
        %3001 = vmatpush1.msra.mxu0 0.0
        %3002 = vmatprep.subr.mxu0 0.0
        %3003 = vmatpush1.msra.mxu0 0.0
        %3004 = vmatprep.subr.mxu0 0.0
        %3005 = vmatpush1.msra.mxu0 0.0
        %3006 = vmatprep.subr.mxu0 0.0
        %3007 = vmatpush1.msra.mxu0 0.0
        %3008 = vmatprep.subr.mxu0 0.0
        %3009 = vmatpush1.msra.mxu0 0.0
        %3010 = vmatprep.subr.mxu0 0.0
        %3011 = vmatpush1.msra.mxu0 0.0
        %3012 = vmatprep.subr.mxu0 0.0
        %3013 = vmatpush1.msra.mxu0 0.0
        %3014 = vmatprep.subr.mxu0 0.0
        %3015 = vmatpush1.msra.mxu0 0.0
        %3016 = vmatprep.subr.mxu0 0.0
        %3017 = vmatpush1.msra.mxu0 0.0
        %3018 = vmatprep.subr.mxu0 0.0
        %3019 = vmatpush1.msra.mxu0 0.0
        %3020 = vmatprep.subr.mxu0 0.0
        %3021 = vmatpush1.msra.mxu0 0.0
        %3022 = vmatprep.mubr.f32.mxu0 0.0
        %v3023 = vand.u32 %v2875, 4294901760
        %3024 = vmatmul.mubr.f32.gmra.mrb[0].mxu0 %v3023
        %v3025 = vpop.f32.mrb[0].mxu0
        %v3026 = vadd.f32 %v2950, %v3025
        %v3027 = vpop.f32.mrb[0].mxu0
        %3028 = vdwg.mxu0
        %3029 = vmatprep.subr.mxu0 0.0
        %v3030 = vand.u32 %v1757, 4294901760
        %v3031 = vsub.f32 %v1757, %v3030
        %3032 = vmatpush1.msra.mxu0 %v3031
        %3033 = vmatprep.subr.mxu0 0.0
        %3034 = vmatpush1.msra.mxu0 0.0
        %3035 = vmatprep.subr.mxu0 0.0
        %3036 = vmatpush1.msra.mxu0 0.0
        %3037 = vmatprep.subr.mxu0 0.0
        %3038 = vmatpush1.msra.mxu0 0.0
        %3039 = vmatprep.subr.mxu0 0.0
        %3040 = vmatpush1.msra.mxu0 0.0
        %3041 = vmatprep.subr.mxu0 0.0
        %3042 = vmatpush1.msra.mxu0 0.0
        %3043 = vmatprep.subr.mxu0 0.0
        %3044 = vmatpush1.msra.mxu0 0.0
        %3045 = vmatprep.subr.mxu0 0.0
        %3046 = vmatpush1.msra.mxu0 0.0
        %3047 = vmatprep.subr.mxu0 0.0
        %3048 = vmatpush1.msra.mxu0 0.0
        %3049 = vmatprep.subr.mxu0 0.0
        %3050 = vmatpush1.msra.mxu0 0.0
        %3051 = vmatprep.subr.mxu0 0.0
        %3052 = vmatpush1.msra.mxu0 0.0
        %3053 = vmatprep.subr.mxu0 0.0
        %3054 = vmatpush1.msra.mxu0 0.0
        %3055 = vmatprep.subr.mxu0 0.0
        %3056 = vmatpush1.msra.mxu0 0.0
        %3057 = vmatprep.subr.mxu0 0.0
        %3058 = vmatpush1.msra.mxu0 0.0
        %3059 = vmatprep.subr.mxu0 0.0
        %3060 = vmatpush1.msra.mxu0 0.0
        %3061 = vmatprep.subr.mxu0 0.0
        %3062 = vmatpush1.msra.mxu0 0.0
        %3063 = vmatprep.subr.mxu0 0.0
        %3064 = vmatpush1.msra.mxu0 0.0
        %3065 = vmatprep.subr.mxu0 0.0
        %3066 = vmatpush1.msra.mxu0 0.0
        %3067 = vmatprep.subr.mxu0 0.0
        %3068 = vmatpush1.msra.mxu0 0.0
        %3069 = vmatprep.subr.mxu0 0.0
        %3070 = vmatpush1.msra.mxu0 0.0
        %3071 = vmatprep.subr.mxu0 0.0
        %3072 = vmatpush1.msra.mxu0 0.0
        %3073 = vmatprep.subr.mxu0 0.0
        %3074 = vmatpush1.msra.mxu0 0.0
        %3075 = vmatprep.subr.mxu0 0.0
        %3076 = vmatpush1.msra.mxu0 0.0
        %3077 = vmatprep.subr.mxu0 0.0
        %3078 = vmatpush1.msra.mxu0 0.0
        %3079 = vmatprep.subr.mxu0 0.0
        %3080 = vmatpush1.msra.mxu0 0.0
        %3081 = vmatprep.subr.mxu0 0.0
        %3082 = vmatpush1.msra.mxu0 0.0
        %3083 = vmatprep.subr.mxu0 0.0
        %3084 = vmatpush1.msra.mxu0 0.0
        %3085 = vmatprep.subr.mxu0 0.0
        %3086 = vmatpush1.msra.mxu0 0.0
        %3087 = vmatprep.subr.mxu0 0.0
        %3088 = vmatpush1.msra.mxu0 0.0
        %3089 = vmatprep.subr.mxu0 0.0
        %3090 = vmatpush1.msra.mxu0 0.0
        %3091 = vmatprep.subr.mxu0 0.0
        %3092 = vmatpush1.msra.mxu0 0.0
        %3093 = vmatprep.subr.mxu0 0.0
        %3094 = vmatpush1.msra.mxu0 0.0
        %3095 = vmatprep.mubr.f32.mxu0 0.0
        %v3096 = vand.u32 %v2875, 4294901760
        %v3097 = vsub.f32 %v2875, %v3096
        %3098 = vmatmul.mubr.f32.gmra.mrb[0].mxu0 %v3097
        %v3099 = vpop.f32.mrb[0].mxu0
        %v3100 = vadd.f32 %v3026, %v3099
        %v3101 = vpop.f32.mrb[0].mxu0
        %3102 = vdwg.mxu0
        %3103 = vmatprep.subr.mxu0 0.0
        %v3104 = vand.u32 %v1757, 4294901760
        %3105 = vmatpush1.msra.mxu0 %v3104
        %3106 = vmatprep.subr.mxu0 0.0
        %3107 = vmatpush1.msra.mxu0 0.0
        %3108 = vmatprep.subr.mxu0 0.0
        %3109 = vmatpush1.msra.mxu0 0.0
        %3110 = vmatprep.subr.mxu0 0.0
        %3111 = vmatpush1.msra.mxu0 0.0
        %3112 = vmatprep.subr.mxu0 0.0
        %3113 = vmatpush1.msra.mxu0 0.0
        %3114 = vmatprep.subr.mxu0 0.0
        %3115 = vmatpush1.msra.mxu0 0.0
        %3116 = vmatprep.subr.mxu0 0.0
        %3117 = vmatpush1.msra.mxu0 0.0
        %3118 = vmatprep.subr.mxu0 0.0
        %3119 = vmatpush1.msra.mxu0 0.0
        %3120 = vmatprep.subr.mxu0 0.0
        %3121 = vmatpush1.msra.mxu0 0.0
        %3122 = vmatprep.subr.mxu0 0.0
        %3123 = vmatpush1.msra.mxu0 0.0
        %3124 = vmatprep.subr.mxu0 0.0
        %3125 = vmatpush1.msra.mxu0 0.0
        %3126 = vmatprep.subr.mxu0 0.0
        %3127 = vmatpush1.msra.mxu0 0.0
        %3128 = vmatprep.subr.mxu0 0.0
        %3129 = vmatpush1.msra.mxu0 0.0
        %3130 = vmatprep.subr.mxu0 0.0
        %3131 = vmatpush1.msra.mxu0 0.0
        %3132 = vmatprep.subr.mxu0 0.0
        %3133 = vmatpush1.msra.mxu0 0.0
        %3134 = vmatprep.subr.mxu0 0.0
        %3135 = vmatpush1.msra.mxu0 0.0
        %3136 = vmatprep.subr.mxu0 0.0
        %3137 = vmatpush1.msra.mxu0 0.0
        %3138 = vmatprep.subr.mxu0 0.0
        %3139 = vmatpush1.msra.mxu0 0.0
        %3140 = vmatprep.subr.mxu0 0.0
        %3141 = vmatpush1.msra.mxu0 0.0
        %3142 = vmatprep.subr.mxu0 0.0
        %3143 = vmatpush1.msra.mxu0 0.0
        %3144 = vmatprep.subr.mxu0 0.0
        %3145 = vmatpush1.msra.mxu0 0.0
        %3146 = vmatprep.subr.mxu0 0.0
        %3147 = vmatpush1.msra.mxu0 0.0
        %3148 = vmatprep.subr.mxu0 0.0
        %3149 = vmatpush1.msra.mxu0 0.0
        %3150 = vmatprep.subr.mxu0 0.0
        %3151 = vmatpush1.msra.mxu0 0.0
        %3152 = vmatprep.subr.mxu0 0.0
        %3153 = vmatpush1.msra.mxu0 0.0
        %3154 = vmatprep.subr.mxu0 0.0
        %3155 = vmatpush1.msra.mxu0 0.0
        %3156 = vmatprep.subr.mxu0 0.0
        %3157 = vmatpush1.msra.mxu0 0.0
        %3158 = vmatprep.subr.mxu0 0.0
        %3159 = vmatpush1.msra.mxu0 0.0
        %3160 = vmatprep.subr.mxu0 0.0
        %3161 = vmatpush1.msra.mxu0 0.0
        %3162 = vmatprep.subr.mxu0 0.0
        %3163 = vmatpush1.msra.mxu0 0.0
        %3164 = vmatprep.subr.mxu0 0.0
        %3165 = vmatpush1.msra.mxu0 0.0
        %3166 = vmatprep.subr.mxu0 0.0
        %3167 = vmatpush1.msra.mxu0 0.0
        %3168 = vmatprep.mubr.f32.mxu0 0.0
        %v3169 = vand.u32 %v2875, 4294901760
        %v3170 = vsub.f32 %v2875, %v3169
        %v3171 = vand.u32 %v3170, 4294901760
        %3172 = vmatmul.mubr.f32.gmra.mrb[0].mxu0 %v3171
        %v3173 = vpop.f32.mrb[0].mxu0
        %v3174 = vadd.f32 %v3100, %v3173
        %v3175 = vpop.f32.mrb[0].mxu0
        %3176 = vdwg.mxu0
        %3177 = vmatprep.subr.mxu0 0.0
        %v3178 = vand.u32 %v1757, 4294901760
        %v3179 = vsub.f32 %v1757, %v3178
        %v3180 = vand.u32 %v3179, 4294901760
        %3181 = vmatpush1.msra.mxu0 %v3180
        %3182 = vmatprep.subr.mxu0 0.0
        %3183 = vmatpush1.msra.mxu0 0.0
        %3184 = vmatprep.subr.mxu0 0.0
        %3185 = vmatpush1.msra.mxu0 0.0
        %3186 = vmatprep.subr.mxu0 0.0
        %3187 = vmatpush1.msra.mxu0 0.0
        %3188 = vmatprep.subr.mxu0 0.0
        %3189 = vmatpush1.msra.mxu0 0.0
        %3190 = vmatprep.subr.mxu0 0.0
        %3191 = vmatpush1.msra.mxu0 0.0
        %3192 = vmatprep.subr.mxu0 0.0
        %3193 = vmatpush1.msra.mxu0 0.0
        %3194 = vmatprep.subr.mxu0 0.0
        %3195 = vmatpush1.msra.mxu0 0.0
        %3196 = vmatprep.subr.mxu0 0.0
        %3197 = vmatpush1.msra.mxu0 0.0
        %3198 = vmatprep.subr.mxu0 0.0
        %3199 = vmatpush1.msra.mxu0 0.0
        %3200 = vmatprep.subr.mxu0 0.0
        %3201 = vmatpush1.msra.mxu0 0.0
        %3202 = vmatprep.subr.mxu0 0.0
        %3203 = vmatpush1.msra.mxu0 0.0
        %3204 = vmatprep.subr.mxu0 0.0
        %3205 = vmatpush1.msra.mxu0 0.0
        %3206 = vmatprep.subr.mxu0 0.0
        %3207 = vmatpush1.msra.mxu0 0.0
        %3208 = vmatprep.subr.mxu0 0.0
        %3209 = vmatpush1.msra.mxu0 0.0
        %3210 = vmatprep.subr.mxu0 0.0
        %3211 = vmatpush1.msra.mxu0 0.0
        %3212 = vmatprep.subr.mxu0 0.0
        %3213 = vmatpush1.msra.mxu0 0.0
        %3214 = vmatprep.subr.mxu0 0.0
        %3215 = vmatpush1.msra.mxu0 0.0
        %3216 = vmatprep.subr.mxu0 0.0
        %3217 = vmatpush1.msra.mxu0 0.0
        %3218 = vmatprep.subr.mxu0 0.0
        %3219 = vmatpush1.msra.mxu0 0.0
        %3220 = vmatprep.subr.mxu0 0.0
        %3221 = vmatpush1.msra.mxu0 0.0
        %3222 = vmatprep.subr.mxu0 0.0
        %3223 = vmatpush1.msra.mxu0 0.0
        %3224 = vmatprep.subr.mxu0 0.0
        %3225 = vmatpush1.msra.mxu0 0.0
        %3226 = vmatprep.subr.mxu0 0.0
        %3227 = vmatpush1.msra.mxu0 0.0
        %3228 = vmatprep.subr.mxu0 0.0
        %3229 = vmatpush1.msra.mxu0 0.0
        %3230 = vmatprep.subr.mxu0 0.0
        %3231 = vmatpush1.msra.mxu0 0.0
        %3232 = vmatprep.subr.mxu0 0.0
        %3233 = vmatpush1.msra.mxu0 0.0
        %3234 = vmatprep.subr.mxu0 0.0
        %3235 = vmatpush1.msra.mxu0 0.0
        %3236 = vmatprep.subr.mxu0 0.0
        %3237 = vmatpush1.msra.mxu0 0.0
        %3238 = vmatprep.subr.mxu0 0.0
        %3239 = vmatpush1.msra.mxu0 0.0
        %3240 = vmatprep.subr.mxu0 0.0
        %3241 = vmatpush1.msra.mxu0 0.0
        %3242 = vmatprep.subr.mxu0 0.0
        %3243 = vmatpush1.msra.mxu0 0.0
        %3244 = vmatprep.mubr.f32.mxu0 0.0
        %v3245 = vand.u32 %v2875, 4294901760
        %3246 = vmatmul.mubr.f32.gmra.mrb[0].mxu0 %v3245
        %v3247 = vpop.f32.mrb[0].mxu0
        %v3248 = vadd.f32 %v3174, %v3247
        %v3249 = vpop.f32.mrb[0].mxu0
        %3250 = vdwg.mxu0
        %3251 = vmatprep.subr.mxu0 0.0
        %v3252 = vand.u32 %v1757, 4294901760
        %3253 = vmatpush1.msra.mxu0 %v3252
        %3254 = vmatprep.subr.mxu0 0.0
        %3255 = vmatpush1.msra.mxu0 0.0
        %3256 = vmatprep.subr.mxu0 0.0
        %3257 = vmatpush1.msra.mxu0 0.0
        %3258 = vmatprep.subr.mxu0 0.0
        %3259 = vmatpush1.msra.mxu0 0.0
        %3260 = vmatprep.subr.mxu0 0.0
        %3261 = vmatpush1.msra.mxu0 0.0
        %3262 = vmatprep.subr.mxu0 0.0
        %3263 = vmatpush1.msra.mxu0 0.0
        %3264 = vmatprep.subr.mxu0 0.0
        %3265 = vmatpush1.msra.mxu0 0.0
        %3266 = vmatprep.subr.mxu0 0.0
        %3267 = vmatpush1.msra.mxu0 0.0
        %3268 = vmatprep.subr.mxu0 0.0
        %3269 = vmatpush1.msra.mxu0 0.0
        %3270 = vmatprep.subr.mxu0 0.0
        %3271 = vmatpush1.msra.mxu0 0.0
        %3272 = vmatprep.subr.mxu0 0.0
        %3273 = vmatpush1.msra.mxu0 0.0
        %3274 = vmatprep.subr.mxu0 0.0
        %3275 = vmatpush1.msra.mxu0 0.0
        %3276 = vmatprep.subr.mxu0 0.0
        %3277 = vmatpush1.msra.mxu0 0.0
        %3278 = vmatprep.subr.mxu0 0.0
        %3279 = vmatpush1.msra.mxu0 0.0
        %3280 = vmatprep.subr.mxu0 0.0
        %3281 = vmatpush1.msra.mxu0 0.0
        %3282 = vmatprep.subr.mxu0 0.0
        %3283 = vmatpush1.msra.mxu0 0.0
        %3284 = vmatprep.subr.mxu0 0.0
        %3285 = vmatpush1.msra.mxu0 0.0
        %3286 = vmatprep.subr.mxu0 0.0
        %3287 = vmatpush1.msra.mxu0 0.0
        %3288 = vmatprep.subr.mxu0 0.0
        %3289 = vmatpush1.msra.mxu0 0.0
        %3290 = vmatprep.subr.mxu0 0.0
        %3291 = vmatpush1.msra.mxu0 0.0
        %3292 = vmatprep.subr.mxu0 0.0
        %3293 = vmatpush1.msra.mxu0 0.0
        %3294 = vmatprep.subr.mxu0 0.0
        %3295 = vmatpush1.msra.mxu0 0.0
        %3296 = vmatprep.subr.mxu0 0.0
        %3297 = vmatpush1.msra.mxu0 0.0
        %3298 = vmatprep.subr.mxu0 0.0
        %3299 = vmatpush1.msra.mxu0 0.0
        %3300 = vmatprep.subr.mxu0 0.0
        %3301 = vmatpush1.msra.mxu0 0.0
        %3302 = vmatprep.subr.mxu0 0.0
        %3303 = vmatpush1.msra.mxu0 0.0
        %3304 = vmatprep.subr.mxu0 0.0
        %3305 = vmatpush1.msra.mxu0 0.0
        %3306 = vmatprep.subr.mxu0 0.0
        %3307 = vmatpush1.msra.mxu0 0.0
        %3308 = vmatprep.subr.mxu0 0.0
        %3309 = vmatpush1.msra.mxu0 0.0
        %3310 = vmatprep.subr.mxu0 0.0
        %3311 = vmatpush1.msra.mxu0 0.0
        %3312 = vmatprep.subr.mxu0 0.0
        %3313 = vmatpush1.msra.mxu0 0.0
        %3314 = vmatprep.subr.mxu0 0.0
        %3315 = vmatpush1.msra.mxu0 0.0
        %3316 = vmatprep.mubr.f32.mxu0 0.0
        %v3317 = vand.u32 %v2875, 4294901760
        %3318 = vmatmul.mubr.f32.gmra.mrb[0].mxu0 %v3317
        %v3319 = vpop.f32.mrb[0].mxu0
        %v3320 = vadd.f32 %v3248, %v3319
        %v3321 = vpop.f32.mrb[0].mxu0
        %3322 = vdwg.mxu0
        %v3323 = vsel %vm2422, 1e+30, %v2413
        %v3324 = vsel %vm896, %v3323, inf
        %3325 = vmin.xlane.f32.xlu0 %v3324
        %v3326 = vpop.xlane.xlu0 %3325
        %vm3327 = vcmp.le.f32.partialorder %v3323, %v3326
        %v3328 = vsel %vm3327, %v399, 1e+30
        %v3329 = vsel %vm896, %v3328, inf
        %3330 = vmin.xlane.f32.xlu0 %v3329
        %v3331 = vpop.xlane.xlu0 %3330
        %vm3332 = vcmp.eq.f32.partialorder %v399, %v3331
        %v3333 = vsel %vm3332, 1, 0
        %v3334 = vcvt.s32.f32 %v3333
        %v3336 = vsel %vm896, %v3334, 0
        %3338 = vmatprep.subr.mxu0 0.0
        %v3339 = vand.u32 %v2399, 4294901760
        %3340 = vmatpush1.msra.mxu0 %v3339
        %3341 = vmatprep.subr.mxu0 0.0
        %3342 = vmatpush1.msra.mxu0 0.0
        %3343 = vmatprep.subr.mxu0 0.0
        %3344 = vmatpush1.msra.mxu0 0.0
        %3345 = vmatprep.subr.mxu0 0.0
        %3346 = vmatpush1.msra.mxu0 0.0
        %3347 = vmatprep.subr.mxu0 0.0
        %3348 = vmatpush1.msra.mxu0 0.0
        %3349 = vmatprep.subr.mxu0 0.0
        %3350 = vmatpush1.msra.mxu0 0.0
        %3351 = vmatprep.subr.mxu0 0.0
        %3352 = vmatpush1.msra.mxu0 0.0
        %3353 = vmatprep.subr.mxu0 0.0
        %3354 = vmatpush1.msra.mxu0 0.0
        %3355 = vmatprep.subr.mxu0 0.0
        %3356 = vmatpush1.msra.mxu0 0.0
        %3357 = vmatprep.subr.mxu0 0.0
        %3358 = vmatpush1.msra.mxu0 0.0
        %3359 = vmatprep.subr.mxu0 0.0
        %3360 = vmatpush1.msra.mxu0 0.0
        %3361 = vmatprep.subr.mxu0 0.0
        %3362 = vmatpush1.msra.mxu0 0.0
        %3363 = vmatprep.subr.mxu0 0.0
        %3364 = vmatpush1.msra.mxu0 0.0
        %3365 = vmatprep.subr.mxu0 0.0
        %3366 = vmatpush1.msra.mxu0 0.0
        %3367 = vmatprep.subr.mxu0 0.0
        %3368 = vmatpush1.msra.mxu0 0.0
        %3369 = vmatprep.subr.mxu0 0.0
        %3370 = vmatpush1.msra.mxu0 0.0
        %3371 = vmatprep.subr.mxu0 0.0
        %3372 = vmatpush1.msra.mxu0 0.0
        %3373 = vmatprep.subr.mxu0 0.0
        %3374 = vmatpush1.msra.mxu0 0.0
        %3375 = vmatprep.subr.mxu0 0.0
        %3376 = vmatpush1.msra.mxu0 0.0
        %3377 = vmatprep.subr.mxu0 0.0
        %3378 = vmatpush1.msra.mxu0 0.0
        %3379 = vmatprep.subr.mxu0 0.0
        %3380 = vmatpush1.msra.mxu0 0.0
        %3381 = vmatprep.subr.mxu0 0.0
        %3382 = vmatpush1.msra.mxu0 0.0
        %3383 = vmatprep.subr.mxu0 0.0
        %3384 = vmatpush1.msra.mxu0 0.0
        %3385 = vmatprep.subr.mxu0 0.0
        %3386 = vmatpush1.msra.mxu0 0.0
        %3387 = vmatprep.subr.mxu0 0.0
        %3388 = vmatpush1.msra.mxu0 0.0
        %3389 = vmatprep.subr.mxu0 0.0
        %3390 = vmatpush1.msra.mxu0 0.0
        %3391 = vmatprep.subr.mxu0 0.0
        %3392 = vmatpush1.msra.mxu0 0.0
        %3393 = vmatprep.subr.mxu0 0.0
        %3394 = vmatpush1.msra.mxu0 0.0
        %3395 = vmatprep.subr.mxu0 0.0
        %3396 = vmatpush1.msra.mxu0 0.0
        %3397 = vmatprep.subr.mxu0 0.0
        %3398 = vmatpush1.msra.mxu0 0.0
        %3399 = vmatprep.subr.mxu0 0.0
        %3400 = vmatpush1.msra.mxu0 0.0
        %3401 = vmatprep.subr.mxu0 0.0
        %3402 = vmatpush1.msra.mxu0 0.0
        %3403 = vmatprep.mubr.f32.mxu0 0.0
        %v3404 = vand.u32 %v3336, 4294901760
        %v3405 = vsub.f32 %v3336, %v3404
        %v3406 = vand.u32 %v3405, 4294901760
        %v3407 = vsub.f32 %v3405, %v3406
        %v3408 = vand.u32 %v3407, 4294901760
        %3409 = vmatmul.mubr.f32.gmra.mrb[0].mxu0 %v3408
        %v3410 = vpop.f32.mrb[0].mxu0
        %v3411 = vadd.f32 0.0, %v3410
        %v3412 = vpop.f32.mrb[0].mxu0
        %3413 = vdwg.mxu0
        %3414 = vmatprep.subr.mxu0 0.0
        %v3415 = vand.u32 %v2399, 4294901760
        %v3416 = vsub.f32 %v2399, %v3415
        %v3417 = vand.u32 %v3416, 4294901760
        %v3418 = vsub.f32 %v3416, %v3417
        %v3419 = vand.u32 %v3418, 4294901760
        %3420 = vmatpush1.msra.mxu0 %v3419
        %3421 = vmatprep.subr.mxu0 0.0
        %3422 = vmatpush1.msra.mxu0 0.0
        %3423 = vmatprep.subr.mxu0 0.0
        %3424 = vmatpush1.msra.mxu0 0.0
        %3425 = vmatprep.subr.mxu0 0.0
        %3426 = vmatpush1.msra.mxu0 0.0
        %3427 = vmatprep.subr.mxu0 0.0
        %3428 = vmatpush1.msra.mxu0 0.0
        %3429 = vmatprep.subr.mxu0 0.0
        %3430 = vmatpush1.msra.mxu0 0.0
        %3431 = vmatprep.subr.mxu0 0.0
        %3432 = vmatpush1.msra.mxu0 0.0
        %3433 = vmatprep.subr.mxu0 0.0
        %3434 = vmatpush1.msra.mxu0 0.0
        %3435 = vmatprep.subr.mxu0 0.0
        %3436 = vmatpush1.msra.mxu0 0.0
        %3437 = vmatprep.subr.mxu0 0.0
        %3438 = vmatpush1.msra.mxu0 0.0
        %3439 = vmatprep.subr.mxu0 0.0
        %3440 = vmatpush1.msra.mxu0 0.0
        %3441 = vmatprep.subr.mxu0 0.0
        %3442 = vmatpush1.msra.mxu0 0.0
        %3443 = vmatprep.subr.mxu0 0.0
        %3444 = vmatpush1.msra.mxu0 0.0
        %3445 = vmatprep.subr.mxu0 0.0
        %3446 = vmatpush1.msra.mxu0 0.0
        %3447 = vmatprep.subr.mxu0 0.0
        %3448 = vmatpush1.msra.mxu0 0.0
        %3449 = vmatprep.subr.mxu0 0.0
        %3450 = vmatpush1.msra.mxu0 0.0
        %3451 = vmatprep.subr.mxu0 0.0
        %3452 = vmatpush1.msra.mxu0 0.0
        %3453 = vmatprep.subr.mxu0 0.0
        %3454 = vmatpush1.msra.mxu0 0.0
        %3455 = vmatprep.subr.mxu0 0.0
        %3456 = vmatpush1.msra.mxu0 0.0
        %3457 = vmatprep.subr.mxu0 0.0
        %3458 = vmatpush1.msra.mxu0 0.0
        %3459 = vmatprep.subr.mxu0 0.0
        %3460 = vmatpush1.msra.mxu0 0.0
        %3461 = vmatprep.subr.mxu0 0.0
        %3462 = vmatpush1.msra.mxu0 0.0
        %3463 = vmatprep.subr.mxu0 0.0
        %3464 = vmatpush1.msra.mxu0 0.0
        %3465 = vmatprep.subr.mxu0 0.0
        %3466 = vmatpush1.msra.mxu0 0.0
        %3467 = vmatprep.subr.mxu0 0.0
        %3468 = vmatpush1.msra.mxu0 0.0
        %3469 = vmatprep.subr.mxu0 0.0
        %3470 = vmatpush1.msra.mxu0 0.0
        %3471 = vmatprep.subr.mxu0 0.0
        %3472 = vmatpush1.msra.mxu0 0.0
        %3473 = vmatprep.subr.mxu0 0.0
        %3474 = vmatpush1.msra.mxu0 0.0
        %3475 = vmatprep.subr.mxu0 0.0
        %3476 = vmatpush1.msra.mxu0 0.0
        %3477 = vmatprep.subr.mxu0 0.0
        %3478 = vmatpush1.msra.mxu0 0.0
        %3479 = vmatprep.subr.mxu0 0.0
        %3480 = vmatpush1.msra.mxu0 0.0
        %3481 = vmatprep.subr.mxu0 0.0
        %3482 = vmatpush1.msra.mxu0 0.0
        %3483 = vmatprep.mubr.f32.mxu0 0.0
        %v3484 = vand.u32 %v3336, 4294901760
        %3485 = vmatmul.mubr.f32.gmra.mrb[0].mxu0 %v3484
        %v3486 = vpop.f32.mrb[0].mxu0
        %v3487 = vadd.f32 %v3411, %v3486
        %v3488 = vpop.f32.mrb[0].mxu0
        %3489 = vdwg.mxu0
        %3490 = vmatprep.subr.mxu0 0.0
        %v3491 = vand.u32 %v2399, 4294901760
        %v3492 = vsub.f32 %v2399, %v3491
        %3493 = vmatpush1.msra.mxu0 %v3492
        %3494 = vmatprep.subr.mxu0 0.0
        %3495 = vmatpush1.msra.mxu0 0.0
        %3496 = vmatprep.subr.mxu0 0.0
        %3497 = vmatpush1.msra.mxu0 0.0
        %3498 = vmatprep.subr.mxu0 0.0
        %3499 = vmatpush1.msra.mxu0 0.0
        %3500 = vmatprep.subr.mxu0 0.0
        %3501 = vmatpush1.msra.mxu0 0.0
        %3502 = vmatprep.subr.mxu0 0.0
        %3503 = vmatpush1.msra.mxu0 0.0
        %3504 = vmatprep.subr.mxu0 0.0
        %3505 = vmatpush1.msra.mxu0 0.0
        %3506 = vmatprep.subr.mxu0 0.0
        %3507 = vmatpush1.msra.mxu0 0.0
        %3508 = vmatprep.subr.mxu0 0.0
        %3509 = vmatpush1.msra.mxu0 0.0
        %3510 = vmatprep.subr.mxu0 0.0
        %3511 = vmatpush1.msra.mxu0 0.0
        %3512 = vmatprep.subr.mxu0 0.0
        %3513 = vmatpush1.msra.mxu0 0.0
        %3514 = vmatprep.subr.mxu0 0.0
        %3515 = vmatpush1.msra.mxu0 0.0
        %3516 = vmatprep.subr.mxu0 0.0
        %3517 = vmatpush1.msra.mxu0 0.0
        %3518 = vmatprep.subr.mxu0 0.0
        %3519 = vmatpush1.msra.mxu0 0.0
        %3520 = vmatprep.subr.mxu0 0.0
        %3521 = vmatpush1.msra.mxu0 0.0
        %3522 = vmatprep.subr.mxu0 0.0
        %3523 = vmatpush1.msra.mxu0 0.0
        %3524 = vmatprep.subr.mxu0 0.0
        %3525 = vmatpush1.msra.mxu0 0.0
        %3526 = vmatprep.subr.mxu0 0.0
        %3527 = vmatpush1.msra.mxu0 0.0
        %3528 = vmatprep.subr.mxu0 0.0
        %3529 = vmatpush1.msra.mxu0 0.0
        %3530 = vmatprep.subr.mxu0 0.0
        %3531 = vmatpush1.msra.mxu0 0.0
        %3532 = vmatprep.subr.mxu0 0.0
        %3533 = vmatpush1.msra.mxu0 0.0
        %3534 = vmatprep.subr.mxu0 0.0
        %3535 = vmatpush1.msra.mxu0 0.0
        %3536 = vmatprep.subr.mxu0 0.0
        %3537 = vmatpush1.msra.mxu0 0.0
        %3538 = vmatprep.subr.mxu0 0.0
        %3539 = vmatpush1.msra.mxu0 0.0
        %3540 = vmatprep.subr.mxu0 0.0
        %3541 = vmatpush1.msra.mxu0 0.0
        %3542 = vmatprep.subr.mxu0 0.0
        %3543 = vmatpush1.msra.mxu0 0.0
        %3544 = vmatprep.subr.mxu0 0.0
        %3545 = vmatpush1.msra.mxu0 0.0
        %3546 = vmatprep.subr.mxu0 0.0
        %3547 = vmatpush1.msra.mxu0 0.0
        %3548 = vmatprep.subr.mxu0 0.0
        %3549 = vmatpush1.msra.mxu0 0.0
        %3550 = vmatprep.subr.mxu0 0.0
        %3551 = vmatpush1.msra.mxu0 0.0
        %3552 = vmatprep.subr.mxu0 0.0
        %3553 = vmatpush1.msra.mxu0 0.0
        %3554 = vmatprep.subr.mxu0 0.0
        %3555 = vmatpush1.msra.mxu0 0.0
        %3556 = vmatprep.mubr.f32.mxu0 0.0
        %v3557 = vand.u32 %v3336, 4294901760
        %v3558 = vsub.f32 %v3336, %v3557
        %3559 = vmatmul.mubr.f32.gmra.mrb[0].mxu0 %v3558
        %v3560 = vpop.f32.mrb[0].mxu0
        %v3561 = vadd.f32 %v3487, %v3560
        %v3562 = vpop.f32.mrb[0].mxu0
        %3563 = vdwg.mxu0
        %3564 = vmatprep.subr.mxu0 0.0
        %v3565 = vand.u32 %v2399, 4294901760
        %3566 = vmatpush1.msra.mxu0 %v3565
        %3567 = vmatprep.subr.mxu0 0.0
        %3568 = vmatpush1.msra.mxu0 0.0
        %3569 = vmatprep.subr.mxu0 0.0
        %3570 = vmatpush1.msra.mxu0 0.0
        %3571 = vmatprep.subr.mxu0 0.0
        %3572 = vmatpush1.msra.mxu0 0.0
        %3573 = vmatprep.subr.mxu0 0.0
        %3574 = vmatpush1.msra.mxu0 0.0
        %3575 = vmatprep.subr.mxu0 0.0
        %3576 = vmatpush1.msra.mxu0 0.0
        %3577 = vmatprep.subr.mxu0 0.0
        %3578 = vmatpush1.msra.mxu0 0.0
        %3579 = vmatprep.subr.mxu0 0.0
        %3580 = vmatpush1.msra.mxu0 0.0
        %3581 = vmatprep.subr.mxu0 0.0
        %3582 = vmatpush1.msra.mxu0 0.0
        %3583 = vmatprep.subr.mxu0 0.0
        %3584 = vmatpush1.msra.mxu0 0.0
        %3585 = vmatprep.subr.mxu0 0.0
        %3586 = vmatpush1.msra.mxu0 0.0
        %3587 = vmatprep.subr.mxu0 0.0
        %3588 = vmatpush1.msra.mxu0 0.0
        %3589 = vmatprep.subr.mxu0 0.0
        %3590 = vmatpush1.msra.mxu0 0.0
        %3591 = vmatprep.subr.mxu0 0.0
        %3592 = vmatpush1.msra.mxu0 0.0
        %3593 = vmatprep.subr.mxu0 0.0
        %3594 = vmatpush1.msra.mxu0 0.0
        %3595 = vmatprep.subr.mxu0 0.0
        %3596 = vmatpush1.msra.mxu0 0.0
        %3597 = vmatprep.subr.mxu0 0.0
        %3598 = vmatpush1.msra.mxu0 0.0
        %3599 = vmatprep.subr.mxu0 0.0
        %3600 = vmatpush1.msra.mxu0 0.0
        %3601 = vmatprep.subr.mxu0 0.0
        %3602 = vmatpush1.msra.mxu0 0.0
        %3603 = vmatprep.subr.mxu0 0.0
        %3604 = vmatpush1.msra.mxu0 0.0
        %3605 = vmatprep.subr.mxu0 0.0
        %3606 = vmatpush1.msra.mxu0 0.0
        %3607 = vmatprep.subr.mxu0 0.0
        %3608 = vmatpush1.msra.mxu0 0.0
        %3609 = vmatprep.subr.mxu0 0.0
        %3610 = vmatpush1.msra.mxu0 0.0
        %3611 = vmatprep.subr.mxu0 0.0
        %3612 = vmatpush1.msra.mxu0 0.0
        %3613 = vmatprep.subr.mxu0 0.0
        %3614 = vmatpush1.msra.mxu0 0.0
        %3615 = vmatprep.subr.mxu0 0.0
        %3616 = vmatpush1.msra.mxu0 0.0
        %3617 = vmatprep.subr.mxu0 0.0
        %3618 = vmatpush1.msra.mxu0 0.0
        %3619 = vmatprep.subr.mxu0 0.0
        %3620 = vmatpush1.msra.mxu0 0.0
        %3621 = vmatprep.subr.mxu0 0.0
        %3622 = vmatpush1.msra.mxu0 0.0
        %3623 = vmatprep.subr.mxu0 0.0
        %3624 = vmatpush1.msra.mxu0 0.0
        %3625 = vmatprep.subr.mxu0 0.0
        %3626 = vmatpush1.msra.mxu0 0.0
        %3627 = vmatprep.subr.mxu0 0.0
        %3628 = vmatpush1.msra.mxu0 0.0
        %3629 = vmatprep.mubr.f32.mxu0 0.0
        %v3630 = vand.u32 %v3336, 4294901760
        %v3631 = vsub.f32 %v3336, %v3630
        %v3632 = vand.u32 %v3631, 4294901760
        %3633 = vmatmul.mubr.f32.gmra.mrb[0].mxu0 %v3632
        %v3634 = vpop.f32.mrb[0].mxu0
        %v3635 = vadd.f32 %v3561, %v3634
        %v3636 = vpop.f32.mrb[0].mxu0
        %3637 = vdwg.mxu0
        %3638 = vmatprep.subr.mxu0 0.0
        %v3639 = vand.u32 %v2399, 4294901760
        %v3640 = vsub.f32 %v2399, %v3639
        %v3641 = vand.u32 %v3640, 4294901760
        %3642 = vmatpush1.msra.mxu0 %v3641
        %3643 = vmatprep.subr.mxu0 0.0
        %3644 = vmatpush1.msra.mxu0 0.0
        %3645 = vmatprep.subr.mxu0 0.0
        %3646 = vmatpush1.msra.mxu0 0.0
        %3647 = vmatprep.subr.mxu0 0.0
        %3648 = vmatpush1.msra.mxu0 0.0
        %3649 = vmatprep.subr.mxu0 0.0
        %3650 = vmatpush1.msra.mxu0 0.0
        %3651 = vmatprep.subr.mxu0 0.0
        %3652 = vmatpush1.msra.mxu0 0.0
        %3653 = vmatprep.subr.mxu0 0.0
        %3654 = vmatpush1.msra.mxu0 0.0
        %3655 = vmatprep.subr.mxu0 0.0
        %3656 = vmatpush1.msra.mxu0 0.0
        %3657 = vmatprep.subr.mxu0 0.0
        %3658 = vmatpush1.msra.mxu0 0.0
        %3659 = vmatprep.subr.mxu0 0.0
        %3660 = vmatpush1.msra.mxu0 0.0
        %3661 = vmatprep.subr.mxu0 0.0
        %3662 = vmatpush1.msra.mxu0 0.0
        %3663 = vmatprep.subr.mxu0 0.0
        %3664 = vmatpush1.msra.mxu0 0.0
        %3665 = vmatprep.subr.mxu0 0.0
        %3666 = vmatpush1.msra.mxu0 0.0
        %3667 = vmatprep.subr.mxu0 0.0
        %3668 = vmatpush1.msra.mxu0 0.0
        %3669 = vmatprep.subr.mxu0 0.0
        %3670 = vmatpush1.msra.mxu0 0.0
        %3671 = vmatprep.subr.mxu0 0.0
        %3672 = vmatpush1.msra.mxu0 0.0
        %3673 = vmatprep.subr.mxu0 0.0
        %3674 = vmatpush1.msra.mxu0 0.0
        %3675 = vmatprep.subr.mxu0 0.0
        %3676 = vmatpush1.msra.mxu0 0.0
        %3677 = vmatprep.subr.mxu0 0.0
        %3678 = vmatpush1.msra.mxu0 0.0
        %3679 = vmatprep.subr.mxu0 0.0
        %3680 = vmatpush1.msra.mxu0 0.0
        %3681 = vmatprep.subr.mxu0 0.0
        %3682 = vmatpush1.msra.mxu0 0.0
        %3683 = vmatprep.subr.mxu0 0.0
        %3684 = vmatpush1.msra.mxu0 0.0
        %3685 = vmatprep.subr.mxu0 0.0
        %3686 = vmatpush1.msra.mxu0 0.0
        %3687 = vmatprep.subr.mxu0 0.0
        %3688 = vmatpush1.msra.mxu0 0.0
        %3689 = vmatprep.subr.mxu0 0.0
        %3690 = vmatpush1.msra.mxu0 0.0
        %3691 = vmatprep.subr.mxu0 0.0
        %3692 = vmatpush1.msra.mxu0 0.0
        %3693 = vmatprep.subr.mxu0 0.0
        %3694 = vmatpush1.msra.mxu0 0.0
        %3695 = vmatprep.subr.mxu0 0.0
        %3696 = vmatpush1.msra.mxu0 0.0
        %3697 = vmatprep.subr.mxu0 0.0
        %3698 = vmatpush1.msra.mxu0 0.0
        %3699 = vmatprep.subr.mxu0 0.0
        %3700 = vmatpush1.msra.mxu0 0.0
        %3701 = vmatprep.subr.mxu0 0.0
        %3702 = vmatpush1.msra.mxu0 0.0
        %3703 = vmatprep.subr.mxu0 0.0
        %3704 = vmatpush1.msra.mxu0 0.0
        %3705 = vmatprep.mubr.f32.mxu0 0.0
        %v3706 = vand.u32 %v3336, 4294901760
        %3707 = vmatmul.mubr.f32.gmra.mrb[0].mxu0 %v3706
        %v3708 = vpop.f32.mrb[0].mxu0
        %v3709 = vadd.f32 %v3635, %v3708
        %v3710 = vpop.f32.mrb[0].mxu0
        %3711 = vdwg.mxu0
        %3712 = vmatprep.subr.mxu0 0.0
        %v3713 = vand.u32 %v2399, 4294901760
        %3714 = vmatpush1.msra.mxu0 %v3713
        %3715 = vmatprep.subr.mxu0 0.0
        %3716 = vmatpush1.msra.mxu0 0.0
        %3717 = vmatprep.subr.mxu0 0.0
        %3718 = vmatpush1.msra.mxu0 0.0
        %3719 = vmatprep.subr.mxu0 0.0
        %3720 = vmatpush1.msra.mxu0 0.0
        %3721 = vmatprep.subr.mxu0 0.0
        %3722 = vmatpush1.msra.mxu0 0.0
        %3723 = vmatprep.subr.mxu0 0.0
        %3724 = vmatpush1.msra.mxu0 0.0
        %3725 = vmatprep.subr.mxu0 0.0
        %3726 = vmatpush1.msra.mxu0 0.0
        %3727 = vmatprep.subr.mxu0 0.0
        %3728 = vmatpush1.msra.mxu0 0.0
        %3729 = vmatprep.subr.mxu0 0.0
        %3730 = vmatpush1.msra.mxu0 0.0
        %3731 = vmatprep.subr.mxu0 0.0
        %3732 = vmatpush1.msra.mxu0 0.0
        %3733 = vmatprep.subr.mxu0 0.0
        %3734 = vmatpush1.msra.mxu0 0.0
        %3735 = vmatprep.subr.mxu0 0.0
        %3736 = vmatpush1.msra.mxu0 0.0
        %3737 = vmatprep.subr.mxu0 0.0
        %3738 = vmatpush1.msra.mxu0 0.0
        %3739 = vmatprep.subr.mxu0 0.0
        %3740 = vmatpush1.msra.mxu0 0.0
        %3741 = vmatprep.subr.mxu0 0.0
        %3742 = vmatpush1.msra.mxu0 0.0
        %3743 = vmatprep.subr.mxu0 0.0
        %3744 = vmatpush1.msra.mxu0 0.0
        %3745 = vmatprep.subr.mxu0 0.0
        %3746 = vmatpush1.msra.mxu0 0.0
        %3747 = vmatprep.subr.mxu0 0.0
        %3748 = vmatpush1.msra.mxu0 0.0
        %3749 = vmatprep.subr.mxu0 0.0
        %3750 = vmatpush1.msra.mxu0 0.0
        %3751 = vmatprep.subr.mxu0 0.0
        %3752 = vmatpush1.msra.mxu0 0.0
        %3753 = vmatprep.subr.mxu0 0.0
        %3754 = vmatpush1.msra.mxu0 0.0
        %3755 = vmatprep.subr.mxu0 0.0
        %3756 = vmatpush1.msra.mxu0 0.0
        %3757 = vmatprep.subr.mxu0 0.0
        %3758 = vmatpush1.msra.mxu0 0.0
        %3759 = vmatprep.subr.mxu0 0.0
        %3760 = vmatpush1.msra.mxu0 0.0
        %3761 = vmatprep.subr.mxu0 0.0
        %3762 = vmatpush1.msra.mxu0 0.0
        %3763 = vmatprep.subr.mxu0 0.0
        %3764 = vmatpush1.msra.mxu0 0.0
        %3765 = vmatprep.subr.mxu0 0.0
        %3766 = vmatpush1.msra.mxu0 0.0
        %3767 = vmatprep.subr.mxu0 0.0
        %3768 = vmatpush1.msra.mxu0 0.0
        %3769 = vmatprep.subr.mxu0 0.0
        %3770 = vmatpush1.msra.mxu0 0.0
        %3771 = vmatprep.subr.mxu0 0.0
        %3772 = vmatpush1.msra.mxu0 0.0
        %3773 = vmatprep.subr.mxu0 0.0
        %3774 = vmatpush1.msra.mxu0 0.0
        %3775 = vmatprep.subr.mxu0 0.0
        %3776 = vmatpush1.msra.mxu0 0.0
        %3777 = vmatprep.mubr.f32.mxu0 0.0
        %v3778 = vand.u32 %v3336, 4294901760
        %3779 = vmatmul.mubr.f32.gmra.mrb[0].mxu0 %v3778
        %v3780 = vpop.f32.mrb[0].mxu0
        %v3781 = vadd.f32 %v3709, %v3780
        %v3782 = vpop.f32.mrb[0].mxu0
        %3783 = vdwg.mxu0
        %v3784 = vadd.f32 %v3320, %v3781
        %v3785 = vld [vmem:[%s2] sm:$0x1]
        %v3787 = vlaneseq
        %v3788 = vshrl.u32 %v3787, 7
        %v3789 = vsub.s32 0, %v3788
        %v3790 = vrot.slane %v3785, %v3789
        %v3792 = vadd.f32 %v3784, %v3790
        %v3793 = vmax.f32 %v3792, 0.0
        %v3794 = vld [vmem:[#allocation5] sm:$0xff]
        %v3795 = vld [vmem:[#allocation5 + $0x8] sm:$0xff]
        %v3796 = vld [vmem:[#allocation5 + $0x10] sm:$0xff]
        %v3797 = vld [vmem:[#allocation5 + $0x18] sm:$0xff]
        %v3798 = vld [vmem:[#allocation5 + $0x20] sm:$0xff]
        %v3799 = vld [vmem:[#allocation5 + $0x28] sm:$0xff]
        %v3800 = vld [vmem:[#allocation5 + $0x30] sm:$0xff]
        %v3801 = vld [vmem:[#allocation5 + $0x38] sm:$0xff]
        %v3802 = vld [vmem:[#allocation5 + $0x40] sm:$0xff]
        %v3803 = vld [vmem:[#allocation5 + $0x48] sm:$0xff]
        %v3804 = vld [vmem:[#allocation5 + $0x50] sm:$0xff]
        %v3805 = vld [vmem:[#allocation5 + $0x58] sm:$0xff]
        %v3806 = vld [vmem:[#allocation5 + $0x60] sm:$0xff]
        %v3807 = vld [vmem:[#allocation5 + $0x68] sm:$0xff]
        %v3808 = vld [vmem:[#allocation5 + $0x70] sm:$0xff]
        %v3809 = vld [vmem:[#allocation5 + $0x78] sm:$0xff]
        %v3810 = vld [vmem:[#allocation5 + $0x80] sm:$0xff]
        %v3811 = vld [vmem:[#allocation5 + $0x88] sm:$0xff]
        %v3812 = vld [vmem:[#allocation5 + $0x90] sm:$0xff]
        %v3813 = vld [vmem:[#allocation5 + $0x98] sm:$0xff]
        %v3814 = vld [vmem:[#allocation5 + $0xa0] sm:$0xff]
        %v3815 = vld [vmem:[#allocation5 + $0xa8] sm:$0xff]
        %v3816 = vld [vmem:[#allocation5 + $0xb0] sm:$0xff]
        %v3817 = vld [vmem:[#allocation5 + $0xb8] sm:$0xff]
        %v3818 = vld [vmem:[#allocation5 + $0xc0] sm:$0xff]
        %v3819 = vld [vmem:[#allocation5 + $0xc8] sm:$0xff]
        %v3820 = vld [vmem:[#allocation5 + $0xd0] sm:$0xff]
        %v3821 = vld [vmem:[#allocation5 + $0xd8] sm:$0xff]
        %v3822 = vld [vmem:[#allocation5 + $0xe0] sm:$0xff]
        %v3823 = vld [vmem:[#allocation5 + $0xe8] sm:$0xff]
        %v3824 = vld [vmem:[#allocation5 + $0xf0] sm:$0xff]
        %v3825 = vld [vmem:[#allocation5 + $0xf8] sm:$0xff]
        %v3826 = vld [vmem:[#allocation5 + $0x100] sm:$0xff]
        %v3827 = vld [vmem:[#allocation5 + $0x108] sm:$0xff]
        %v3828 = vld [vmem:[#allocation5 + $0x110] sm:$0xff]
        %v3829 = vld [vmem:[#allocation5 + $0x118] sm:$0xff]
        %v3830 = vld [vmem:[#allocation5 + $0x120] sm:$0xff]
        %v3831 = vld [vmem:[#allocation5 + $0x128] sm:$0xff]
        %v3832 = vld [vmem:[#allocation5 + $0x130] sm:$0xff]
        %v3833 = vld [vmem:[#allocation5 + $0x138] sm:$0xff]
        %v3834 = vld [vmem:[#allocation5 + $0x140] sm:$0xff]
        %v3835 = vld [vmem:[#allocation5 + $0x148] sm:$0xff]
        %v3836 = vld [vmem:[#allocation5 + $0x150] sm:$0xff]
        %v3837 = vld [vmem:[#allocation5 + $0x158] sm:$0xff]
        %v3838 = vld [vmem:[#allocation5 + $0x160] sm:$0xff]
        %v3839 = vld [vmem:[#allocation5 + $0x168] sm:$0xff]
        %v3840 = vld [vmem:[#allocation5 + $0x170] sm:$0xff]
        %v3841 = vld [vmem:[#allocation5 + $0x178] sm:$0xff]
        %3842 = vmatprep.subr.mxu0 0.0
        %v3843 = vand.u32 %v3793, 4294901760
        %3844 = vmatpush1.xpose.msra.mxu0 %v3843
        %3845 = vmatprep.subr.mxu0 0.0
        %3846 = vmatpush1.xpose.msra.mxu0 0.0
        %3847 = vmatprep.subr.mxu0 0.0
        %3848 = vmatpush1.xpose.msra.mxu0 0.0
        %3849 = vmatprep.subr.mxu0 0.0
        %3850 = vmatpush1.xpose.msra.mxu0 0.0
        %3851 = vmatprep.subr.mxu0 0.0
        %3852 = vmatpush1.xpose.msra.mxu0 0.0
        %3853 = vmatprep.subr.mxu0 0.0
        %3854 = vmatpush1.xpose.msra.mxu0 0.0
        %3855 = vmatprep.subr.mxu0 0.0
        %3856 = vmatpush1.xpose.msra.mxu0 0.0
        %3857 = vmatprep.subr.mxu0 0.0
        %3858 = vmatpush1.xpose.msra.mxu0 0.0
        %3859 = vmatprep.subr.mxu0 0.0
        %3860 = vmatpush1.xpose.msra.mxu0 0.0
        %3861 = vmatprep.subr.mxu0 0.0
        %3862 = vmatpush1.xpose.msra.mxu0 0.0
        %3863 = vmatprep.subr.mxu0 0.0
        %3864 = vmatpush1.xpose.msra.mxu0 0.0
        %3865 = vmatprep.subr.mxu0 0.0
        %3866 = vmatpush1.xpose.msra.mxu0 0.0
        %3867 = vmatprep.subr.mxu0 0.0
        %3868 = vmatpush1.xpose.msra.mxu0 0.0
        %3869 = vmatprep.subr.mxu0 0.0
        %3870 = vmatpush1.xpose.msra.mxu0 0.0
        %3871 = vmatprep.subr.mxu0 0.0
        %3872 = vmatpush1.xpose.msra.mxu0 0.0
        %3873 = vmatprep.subr.mxu0 0.0
        %3874 = vmatpush1.xpose.msra.mxu0 0.0
        %3875 = vmatprep.subr.mxu0 0.0
        %3876 = vmatpush1.xpose.msra.mxu0 0.0
        %3877 = vmatprep.subr.mxu0 0.0
        %3878 = vmatpush1.xpose.msra.mxu0 0.0
        %3879 = vmatprep.subr.mxu0 0.0
        %3880 = vmatpush1.xpose.msra.mxu0 0.0
        %3881 = vmatprep.subr.mxu0 0.0
        %3882 = vmatpush1.xpose.msra.mxu0 0.0
        %3883 = vmatprep.subr.mxu0 0.0
        %3884 = vmatpush1.xpose.msra.mxu0 0.0
        %3885 = vmatprep.subr.mxu0 0.0
        %3886 = vmatpush1.xpose.msra.mxu0 0.0
        %3887 = vmatprep.subr.mxu0 0.0
        %3888 = vmatpush1.xpose.msra.mxu0 0.0
        %3889 = vmatprep.subr.mxu0 0.0
        %3890 = vmatpush1.xpose.msra.mxu0 0.0
        %3891 = vmatprep.subr.mxu0 0.0
        %3892 = vmatpush1.xpose.msra.mxu0 0.0
        %3893 = vmatprep.subr.mxu0 0.0
        %3894 = vmatpush1.xpose.msra.mxu0 0.0
        %3895 = vmatprep.subr.mxu0 0.0
        %3896 = vmatpush1.xpose.msra.mxu0 0.0
        %3897 = vmatprep.subr.mxu0 0.0
        %3898 = vmatpush1.xpose.msra.mxu0 0.0
        %3899 = vmatprep.subr.mxu0 0.0
        %3900 = vmatpush1.xpose.msra.mxu0 0.0
        %3901 = vmatprep.subr.mxu0 0.0
        %3902 = vmatpush1.xpose.msra.mxu0 0.0
        %3903 = vmatprep.subr.mxu0 0.0
        %3904 = vmatpush1.xpose.msra.mxu0 0.0
        %3905 = vmatprep.subr.mxu0 0.0
        %3906 = vmatpush1.xpose.msra.mxu0 0.0
        %3907 = vmatprep.mubr.f32.mxu0 0.0
        %v3908 = vand.u32 %v3793, 4294901760
        %v3909 = vsub.f32 %v3793, %v3908
        %v3910 = vand.u32 %v3909, 4294901760
        %v3911 = vsub.f32 %v3909, %v3910
        %v3912 = vand.u32 %v3911, 4294901760
        %3913 = vmatmul.mubr.f32.gmra.mrb[0].mxu0 %v3912
        %v3914 = vpop.f32.mrb[0].mxu0
        %v3915 = vadd.f32 0.0, %v3914
        %v3916 = vpop.f32.mrb[0].mxu0
        %3917 = vdwg.mxu0
        %3918 = vmatprep.subr.mxu0 0.0
        %v3919 = vand.u32 %v3793, 4294901760
        %v3920 = vsub.f32 %v3793, %v3919
        %v3921 = vand.u32 %v3920, 4294901760
        %v3922 = vsub.f32 %v3920, %v3921
        %v3923 = vand.u32 %v3922, 4294901760
        %3924 = vmatpush1.xpose.msra.mxu0 %v3923
        %3925 = vmatprep.subr.mxu0 0.0
        %3926 = vmatpush1.xpose.msra.mxu0 0.0
        %3927 = vmatprep.subr.mxu0 0.0
        %3928 = vmatpush1.xpose.msra.mxu0 0.0
        %3929 = vmatprep.subr.mxu0 0.0
        %3930 = vmatpush1.xpose.msra.mxu0 0.0
        %3931 = vmatprep.subr.mxu0 0.0
        %3932 = vmatpush1.xpose.msra.mxu0 0.0
        %3933 = vmatprep.subr.mxu0 0.0
        %3934 = vmatpush1.xpose.msra.mxu0 0.0
        %3935 = vmatprep.subr.mxu0 0.0
        %3936 = vmatpush1.xpose.msra.mxu0 0.0
        %3937 = vmatprep.subr.mxu0 0.0
        %3938 = vmatpush1.xpose.msra.mxu0 0.0
        %3939 = vmatprep.subr.mxu0 0.0
        %3940 = vmatpush1.xpose.msra.mxu0 0.0
        %3941 = vmatprep.subr.mxu0 0.0
        %3942 = vmatpush1.xpose.msra.mxu0 0.0
        %3943 = vmatprep.subr.mxu0 0.0
        %3944 = vmatpush1.xpose.msra.mxu0 0.0
        %3945 = vmatprep.subr.mxu0 0.0
        %3946 = vmatpush1.xpose.msra.mxu0 0.0
        %3947 = vmatprep.subr.mxu0 0.0
        %3948 = vmatpush1.xpose.msra.mxu0 0.0
        %3949 = vmatprep.subr.mxu0 0.0
        %3950 = vmatpush1.xpose.msra.mxu0 0.0
        %3951 = vmatprep.subr.mxu0 0.0
        %3952 = vmatpush1.xpose.msra.mxu0 0.0
        %3953 = vmatprep.subr.mxu0 0.0
        %3954 = vmatpush1.xpose.msra.mxu0 0.0
        %3955 = vmatprep.subr.mxu0 0.0
        %3956 = vmatpush1.xpose.msra.mxu0 0.0
        %3957 = vmatprep.subr.mxu0 0.0
        %3958 = vmatpush1.xpose.msra.mxu0 0.0
        %3959 = vmatprep.subr.mxu0 0.0
        %3960 = vmatpush1.xpose.msra.mxu0 0.0
        %3961 = vmatprep.subr.mxu0 0.0
        %3962 = vmatpush1.xpose.msra.mxu0 0.0
        %3963 = vmatprep.subr.mxu0 0.0
        %3964 = vmatpush1.xpose.msra.mxu0 0.0
        %3965 = vmatprep.subr.mxu0 0.0
        %3966 = vmatpush1.xpose.msra.mxu0 0.0
        %3967 = vmatprep.subr.mxu0 0.0
        %3968 = vmatpush1.xpose.msra.mxu0 0.0
        %3969 = vmatprep.subr.mxu0 0.0
        %3970 = vmatpush1.xpose.msra.mxu0 0.0
        %3971 = vmatprep.subr.mxu0 0.0
        %3972 = vmatpush1.xpose.msra.mxu0 0.0
        %3973 = vmatprep.subr.mxu0 0.0
        %3974 = vmatpush1.xpose.msra.mxu0 0.0
        %3975 = vmatprep.subr.mxu0 0.0
        %3976 = vmatpush1.xpose.msra.mxu0 0.0
        %3977 = vmatprep.subr.mxu0 0.0
        %3978 = vmatpush1.xpose.msra.mxu0 0.0
        %3979 = vmatprep.subr.mxu0 0.0
        %3980 = vmatpush1.xpose.msra.mxu0 0.0
        %3981 = vmatprep.subr.mxu0 0.0
        %3982 = vmatpush1.xpose.msra.mxu0 0.0
        %3983 = vmatprep.subr.mxu0 0.0
        %3984 = vmatpush1.xpose.msra.mxu0 0.0
        %3985 = vmatprep.subr.mxu0 0.0
        %3986 = vmatpush1.xpose.msra.mxu0 0.0
        %3987 = vmatprep.mubr.f32.mxu0 0.0
        %v3988 = vand.u32 %v3793, 4294901760
        %3989 = vmatmul.mubr.f32.gmra.mrb[0].mxu0 %v3988
        %v3990 = vpop.f32.mrb[0].mxu0
        %v3991 = vadd.f32 %v3915, %v3990
        %v3992 = vpop.f32.mrb[0].mxu0
        %3993 = vdwg.mxu0
        %3994 = vmatprep.subr.mxu0 0.0
        %v3995 = vand.u32 %v3793, 4294901760
        %v3996 = vsub.f32 %v3793, %v3995
        %3997 = vmatpush1.xpose.msra.mxu0 %v3996
        %3998 = vmatprep.subr.mxu0 0.0
        %3999 = vmatpush1.xpose.msra.mxu0 0.0
        %4000 = vmatprep.subr.mxu0 0.0
        %4001 = vmatpush1.xpose.msra.mxu0 0.0
        %4002 = vmatprep.subr.mxu0 0.0
        %4003 = vmatpush1.xpose.msra.mxu0 0.0
        %4004 = vmatprep.subr.mxu0 0.0
        %4005 = vmatpush1.xpose.msra.mxu0 0.0
        %4006 = vmatprep.subr.mxu0 0.0
        %4007 = vmatpush1.xpose.msra.mxu0 0.0
        %4008 = vmatprep.subr.mxu0 0.0
        %4009 = vmatpush1.xpose.msra.mxu0 0.0
        %4010 = vmatprep.subr.mxu0 0.0
        %4011 = vmatpush1.xpose.msra.mxu0 0.0
        %4012 = vmatprep.subr.mxu0 0.0
        %4013 = vmatpush1.xpose.msra.mxu0 0.0
        %4014 = vmatprep.subr.mxu0 0.0
        %4015 = vmatpush1.xpose.msra.mxu0 0.0
        %4016 = vmatprep.subr.mxu0 0.0
        %4017 = vmatpush1.xpose.msra.mxu0 0.0
        %4018 = vmatprep.subr.mxu0 0.0
        %4019 = vmatpush1.xpose.msra.mxu0 0.0
        %4020 = vmatprep.subr.mxu0 0.0
        %4021 = vmatpush1.xpose.msra.mxu0 0.0
        %4022 = vmatprep.subr.mxu0 0.0
        %4023 = vmatpush1.xpose.msra.mxu0 0.0
        %4024 = vmatprep.subr.mxu0 0.0
        %4025 = vmatpush1.xpose.msra.mxu0 0.0
        %4026 = vmatprep.subr.mxu0 0.0
        %4027 = vmatpush1.xpose.msra.mxu0 0.0
        %4028 = vmatprep.subr.mxu0 0.0
        %4029 = vmatpush1.xpose.msra.mxu0 0.0
        %4030 = vmatprep.subr.mxu0 0.0
        %4031 = vmatpush1.xpose.msra.mxu0 0.0
        %4032 = vmatprep.subr.mxu0 0.0
        %4033 = vmatpush1.xpose.msra.mxu0 0.0
        %4034 = vmatprep.subr.mxu0 0.0
        %4035 = vmatpush1.xpose.msra.mxu0 0.0
        %4036 = vmatprep.subr.mxu0 0.0
        %4037 = vmatpush1.xpose.msra.mxu0 0.0
        %4038 = vmatprep.subr.mxu0 0.0
        %4039 = vmatpush1.xpose.msra.mxu0 0.0
        %4040 = vmatprep.subr.mxu0 0.0
        %4041 = vmatpush1.xpose.msra.mxu0 0.0
        %4042 = vmatprep.subr.mxu0 0.0
        %4043 = vmatpush1.xpose.msra.mxu0 0.0
        %4044 = vmatprep.subr.mxu0 0.0
        %4045 = vmatpush1.xpose.msra.mxu0 0.0
        %4046 = vmatprep.subr.mxu0 0.0
        %4047 = vmatpush1.xpose.msra.mxu0 0.0
        %4048 = vmatprep.subr.mxu0 0.0
        %4049 = vmatpush1.xpose.msra.mxu0 0.0
        %4050 = vmatprep.subr.mxu0 0.0
        %4051 = vmatpush1.xpose.msra.mxu0 0.0
        %4052 = vmatprep.subr.mxu0 0.0
        %4053 = vmatpush1.xpose.msra.mxu0 0.0
        %4054 = vmatprep.subr.mxu0 0.0
        %4055 = vmatpush1.xpose.msra.mxu0 0.0
        %4056 = vmatprep.subr.mxu0 0.0
        %4057 = vmatpush1.xpose.msra.mxu0 0.0
        %4058 = vmatprep.subr.mxu0 0.0
        %4059 = vmatpush1.xpose.msra.mxu0 0.0
        %4060 = vmatprep.mubr.f32.mxu0 0.0
        %v4061 = vand.u32 %v3793, 4294901760
        %v4062 = vsub.f32 %v3793, %v4061
        %4063 = vmatmul.mubr.f32.gmra.mrb[0].mxu0 %v4062
        %v4064 = vpop.f32.mrb[0].mxu0
        %v4065 = vadd.f32 %v3991, %v4064
        %v4066 = vpop.f32.mrb[0].mxu0
        %4067 = vdwg.mxu0
        %4068 = vmatprep.subr.mxu0 0.0
        %v4069 = vand.u32 %v3793, 4294901760
        %4070 = vmatpush1.xpose.msra.mxu0 %v4069
        %4071 = vmatprep.subr.mxu0 0.0
        %4072 = vmatpush1.xpose.msra.mxu0 0.0
        %4073 = vmatprep.subr.mxu0 0.0
        %4074 = vmatpush1.xpose.msra.mxu0 0.0
        %4075 = vmatprep.subr.mxu0 0.0
        %4076 = vmatpush1.xpose.msra.mxu0 0.0
        %4077 = vmatprep.subr.mxu0 0.0
        %4078 = vmatpush1.xpose.msra.mxu0 0.0
        %4079 = vmatprep.subr.mxu0 0.0
        %4080 = vmatpush1.xpose.msra.mxu0 0.0
        %4081 = vmatprep.subr.mxu0 0.0
        %4082 = vmatpush1.xpose.msra.mxu0 0.0
        %4083 = vmatprep.subr.mxu0 0.0
        %4084 = vmatpush1.xpose.msra.mxu0 0.0
        %4085 = vmatprep.subr.mxu0 0.0
        %4086 = vmatpush1.xpose.msra.mxu0 0.0
        %4087 = vmatprep.subr.mxu0 0.0
        %4088 = vmatpush1.xpose.msra.mxu0 0.0
        %4089 = vmatprep.subr.mxu0 0.0
        %4090 = vmatpush1.xpose.msra.mxu0 0.0
        %4091 = vmatprep.subr.mxu0 0.0
        %4092 = vmatpush1.xpose.msra.mxu0 0.0
        %4093 = vmatprep.subr.mxu0 0.0
        %4094 = vmatpush1.xpose.msra.mxu0 0.0
        %4095 = vmatprep.subr.mxu0 0.0
        %4096 = vmatpush1.xpose.msra.mxu0 0.0
        %4097 = vmatprep.subr.mxu0 0.0
        %4098 = vmatpush1.xpose.msra.mxu0 0.0
        %4099 = vmatprep.subr.mxu0 0.0
        %4100 = vmatpush1.xpose.msra.mxu0 0.0
        %4101 = vmatprep.subr.mxu0 0.0
        %4102 = vmatpush1.xpose.msra.mxu0 0.0
        %4103 = vmatprep.subr.mxu0 0.0
        %4104 = vmatpush1.xpose.msra.mxu0 0.0
        %4105 = vmatprep.subr.mxu0 0.0
        %4106 = vmatpush1.xpose.msra.mxu0 0.0
        %4107 = vmatprep.subr.mxu0 0.0
        %4108 = vmatpush1.xpose.msra.mxu0 0.0
        %4109 = vmatprep.subr.mxu0 0.0
        %4110 = vmatpush1.xpose.msra.mxu0 0.0
        %4111 = vmatprep.subr.mxu0 0.0
        %4112 = vmatpush1.xpose.msra.mxu0 0.0
        %4113 = vmatprep.subr.mxu0 0.0
        %4114 = vmatpush1.xpose.msra.mxu0 0.0
        %4115 = vmatprep.subr.mxu0 0.0
        %4116 = vmatpush1.xpose.msra.mxu0 0.0
        %4117 = vmatprep.subr.mxu0 0.0
        %4118 = vmatpush1.xpose.msra.mxu0 0.0
        %4119 = vmatprep.subr.mxu0 0.0
        %4120 = vmatpush1.xpose.msra.mxu0 0.0
        %4121 = vmatprep.subr.mxu0 0.0
        %4122 = vmatpush1.xpose.msra.mxu0 0.0
        %4123 = vmatprep.subr.mxu0 0.0
        %4124 = vmatpush1.xpose.msra.mxu0 0.0
        %4125 = vmatprep.subr.mxu0 0.0
        %4126 = vmatpush1.xpose.msra.mxu0 0.0
        %4127 = vmatprep.subr.mxu0 0.0
        %4128 = vmatpush1.xpose.msra.mxu0 0.0
        %4129 = vmatprep.subr.mxu0 0.0
        %4130 = vmatpush1.xpose.msra.mxu0 0.0
        %4131 = vmatprep.subr.mxu0 0.0
        %4132 = vmatpush1.xpose.msra.mxu0 0.0
        %4133 = vmatprep.mubr.f32.mxu0 0.0
        %v4134 = vand.u32 %v3793, 4294901760
        %v4135 = vsub.f32 %v3793, %v4134
        %v4136 = vand.u32 %v4135, 4294901760
        %4137 = vmatmul.mubr.f32.gmra.mrb[0].mxu0 %v4136
        %v4138 = vpop.f32.mrb[0].mxu0
        %v4139 = vadd.f32 %v4065, %v4138
        %v4140 = vpop.f32.mrb[0].mxu0
        %4141 = vdwg.mxu0
        %4142 = vmatprep.subr.mxu0 0.0
        %v4143 = vand.u32 %v3793, 4294901760
        %v4144 = vsub.f32 %v3793, %v4143
        %v4145 = vand.u32 %v4144, 4294901760
        %4146 = vmatpush1.xpose.msra.mxu0 %v4145
        %4147 = vmatprep.subr.mxu0 0.0
        %4148 = vmatpush1.xpose.msra.mxu0 0.0
        %4149 = vmatprep.subr.mxu0 0.0
        %4150 = vmatpush1.xpose.msra.mxu0 0.0
        %4151 = vmatprep.subr.mxu0 0.0
        %4152 = vmatpush1.xpose.msra.mxu0 0.0
        %4153 = vmatprep.subr.mxu0 0.0
        %4154 = vmatpush1.xpose.msra.mxu0 0.0
        %4155 = vmatprep.subr.mxu0 0.0
        %4156 = vmatpush1.xpose.msra.mxu0 0.0
        %4157 = vmatprep.subr.mxu0 0.0
        %4158 = vmatpush1.xpose.msra.mxu0 0.0
        %4159 = vmatprep.subr.mxu0 0.0
        %4160 = vmatpush1.xpose.msra.mxu0 0.0
        %4161 = vmatprep.subr.mxu0 0.0
        %4162 = vmatpush1.xpose.msra.mxu0 0.0
        %4163 = vmatprep.subr.mxu0 0.0
        %4164 = vmatpush1.xpose.msra.mxu0 0.0
        %4165 = vmatprep.subr.mxu0 0.0
        %4166 = vmatpush1.xpose.msra.mxu0 0.0
        %4167 = vmatprep.subr.mxu0 0.0
        %4168 = vmatpush1.xpose.msra.mxu0 0.0
        %4169 = vmatprep.subr.mxu0 0.0
        %4170 = vmatpush1.xpose.msra.mxu0 0.0
        %4171 = vmatprep.subr.mxu0 0.0
        %4172 = vmatpush1.xpose.msra.mxu0 0.0
        %4173 = vmatprep.subr.mxu0 0.0
        %4174 = vmatpush1.xpose.msra.mxu0 0.0
        %4175 = vmatprep.subr.mxu0 0.0
        %4176 = vmatpush1.xpose.msra.mxu0 0.0
        %4177 = vmatprep.subr.mxu0 0.0
        %4178 = vmatpush1.xpose.msra.mxu0 0.0
        %4179 = vmatprep.subr.mxu0 0.0
        %4180 = vmatpush1.xpose.msra.mxu0 0.0
        %4181 = vmatprep.subr.mxu0 0.0
        %4182 = vmatpush1.xpose.msra.mxu0 0.0
        %4183 = vmatprep.subr.mxu0 0.0
        %4184 = vmatpush1.xpose.msra.mxu0 0.0
        %4185 = vmatprep.subr.mxu0 0.0
        %4186 = vmatpush1.xpose.msra.mxu0 0.0
        %4187 = vmatprep.subr.mxu0 0.0
        %4188 = vmatpush1.xpose.msra.mxu0 0.0
        %4189 = vmatprep.subr.mxu0 0.0
        %4190 = vmatpush1.xpose.msra.mxu0 0.0
        %4191 = vmatprep.subr.mxu0 0.0
        %4192 = vmatpush1.xpose.msra.mxu0 0.0
        %4193 = vmatprep.subr.mxu0 0.0
        %4194 = vmatpush1.xpose.msra.mxu0 0.0
        %4195 = vmatprep.subr.mxu0 0.0
        %4196 = vmatpush1.xpose.msra.mxu0 0.0
        %4197 = vmatprep.subr.mxu0 0.0
        %4198 = vmatpush1.xpose.msra.mxu0 0.0
        %4199 = vmatprep.subr.mxu0 0.0
        %4200 = vmatpush1.xpose.msra.mxu0 0.0
        %4201 = vmatprep.subr.mxu0 0.0
        %4202 = vmatpush1.xpose.msra.mxu0 0.0
        %4203 = vmatprep.subr.mxu0 0.0
        %4204 = vmatpush1.xpose.msra.mxu0 0.0
        %4205 = vmatprep.subr.mxu0 0.0
        %4206 = vmatpush1.xpose.msra.mxu0 0.0
        %4207 = vmatprep.subr.mxu0 0.0
        %4208 = vmatpush1.xpose.msra.mxu0 0.0
        %4209 = vmatprep.mubr.f32.mxu0 0.0
        %v4210 = vand.u32 %v3793, 4294901760
        %4211 = vmatmul.mubr.f32.gmra.mrb[0].mxu0 %v4210
        %v4212 = vpop.f32.mrb[0].mxu0
        %v4213 = vadd.f32 %v4139, %v4212
        %v4214 = vpop.f32.mrb[0].mxu0
        %4215 = vdwg.mxu0
        %4216 = vmatprep.subr.mxu0 0.0
        %v4217 = vand.u32 %v3793, 4294901760
        %4218 = vmatpush1.xpose.msra.mxu0 %v4217
        %4219 = vmatprep.subr.mxu0 0.0
        %4220 = vmatpush1.xpose.msra.mxu0 0.0
        %4221 = vmatprep.subr.mxu0 0.0
        %4222 = vmatpush1.xpose.msra.mxu0 0.0
        %4223 = vmatprep.subr.mxu0 0.0
        %4224 = vmatpush1.xpose.msra.mxu0 0.0
        %4225 = vmatprep.subr.mxu0 0.0
        %4226 = vmatpush1.xpose.msra.mxu0 0.0
        %4227 = vmatprep.subr.mxu0 0.0
        %4228 = vmatpush1.xpose.msra.mxu0 0.0
        %4229 = vmatprep.subr.mxu0 0.0
        %4230 = vmatpush1.xpose.msra.mxu0 0.0
        %4231 = vmatprep.subr.mxu0 0.0
        %4232 = vmatpush1.xpose.msra.mxu0 0.0
        %4233 = vmatprep.subr.mxu0 0.0
        %4234 = vmatpush1.xpose.msra.mxu0 0.0
        %4235 = vmatprep.subr.mxu0 0.0
        %4236 = vmatpush1.xpose.msra.mxu0 0.0
        %4237 = vmatprep.subr.mxu0 0.0
        %4238 = vmatpush1.xpose.msra.mxu0 0.0
        %4239 = vmatprep.subr.mxu0 0.0
        %4240 = vmatpush1.xpose.msra.mxu0 0.0
        %4241 = vmatprep.subr.mxu0 0.0
        %4242 = vmatpush1.xpose.msra.mxu0 0.0
        %4243 = vmatprep.subr.mxu0 0.0
        %4244 = vmatpush1.xpose.msra.mxu0 0.0
        %4245 = vmatprep.subr.mxu0 0.0
        %4246 = vmatpush1.xpose.msra.mxu0 0.0
        %4247 = vmatprep.subr.mxu0 0.0
        %4248 = vmatpush1.xpose.msra.mxu0 0.0
        %4249 = vmatprep.subr.mxu0 0.0
        %4250 = vmatpush1.xpose.msra.mxu0 0.0
        %4251 = vmatprep.subr.mxu0 0.0
        %4252 = vmatpush1.xpose.msra.mxu0 0.0
        %4253 = vmatprep.subr.mxu0 0.0
        %4254 = vmatpush1.xpose.msra.mxu0 0.0
        %4255 = vmatprep.subr.mxu0 0.0
        %4256 = vmatpush1.xpose.msra.mxu0 0.0
        %4257 = vmatprep.subr.mxu0 0.0
        %4258 = vmatpush1.xpose.msra.mxu0 0.0
        %4259 = vmatprep.subr.mxu0 0.0
        %4260 = vmatpush1.xpose.msra.mxu0 0.0
        %4261 = vmatprep.subr.mxu0 0.0
        %4262 = vmatpush1.xpose.msra.mxu0 0.0
        %4263 = vmatprep.subr.mxu0 0.0
        %4264 = vmatpush1.xpose.msra.mxu0 0.0
        %4265 = vmatprep.subr.mxu0 0.0
        %4266 = vmatpush1.xpose.msra.mxu0 0.0
        %4267 = vmatprep.subr.mxu0 0.0
        %4268 = vmatpush1.xpose.msra.mxu0 0.0
        %4269 = vmatprep.subr.mxu0 0.0
        %4270 = vmatpush1.xpose.msra.mxu0 0.0
        %4271 = vmatprep.subr.mxu0 0.0
        %4272 = vmatpush1.xpose.msra.mxu0 0.0
        %4273 = vmatprep.subr.mxu0 0.0
        %4274 = vmatpush1.xpose.msra.mxu0 0.0
        %4275 = vmatprep.subr.mxu0 0.0
        %4276 = vmatpush1.xpose.msra.mxu0 0.0
        %4277 = vmatprep.subr.mxu0 0.0
        %4278 = vmatpush1.xpose.msra.mxu0 0.0
        %4279 = vmatprep.subr.mxu0 0.0
        %4280 = vmatpush1.xpose.msra.mxu0 0.0
        %4281 = vmatprep.mubr.f32.mxu0 0.0
        %v4282 = vand.u32 %v3793, 4294901760
        %4283 = vmatmul.mubr.f32.gmra.mrb[0].mxu0 %v4282
        %v4284 = vpop.f32.mrb[0].mxu0
        %v4285 = vadd.f32 %v4213, %v4284
        %v4286 = vpop.f32.mrb[0].mxu0
        %4287 = vdwg.mxu0
        %v4288 = vsel %vm894, %v4285, 0.0
        %v4289 = vsel %vm896, %v4288, 0.0
        %v4290 = vrot.slane %v4289, 4
        %v4291 = vadd.f32 %v4289, %v4290
        %v4292 = vrot.slane %v4291, 2
        %v4293 = vadd.f32 %v4291, %v4292
        %v4294 = vrot.slane %v4293, 1
        %v4295 = vadd.f32 %v4293, %v4294
        %v4296 = vmul.f32 %v4285, 2.0
        %v4297 = vsub.f32 %v4295, %v4296
        %v4298 = vand.u32 %v3795, 4294901760
        %4299 = vmatprep.subr.mxu0 %v4298
        %v4300 = vand.u32 %v3794, 4294901760
        %4301 = vmatpush1.msra.mxu0 %v4300
        %v4302 = vand.u32 %v3798, 4294901760
        %4303 = vmatprep.subr.mxu0 %v4302
        %v4304 = vand.u32 %v3797, 4294901760
        %4305 = vmatpush1.msra.mxu0 %v4304
        %v4306 = vand.u32 %v3801, 4294901760
        %4307 = vmatprep.subr.mxu0 %v4306
        %v4308 = vand.u32 %v3800, 4294901760
        %4309 = vmatpush1.msra.mxu0 %v4308
        %v4310 = vand.u32 %v3804, 4294901760
        %4311 = vmatprep.subr.mxu0 %v4310
        %v4312 = vand.u32 %v3803, 4294901760
        %4313 = vmatpush1.msra.mxu0 %v4312
        %v4314 = vand.u32 %v3807, 4294901760
        %4315 = vmatprep.subr.mxu0 %v4314
        %v4316 = vand.u32 %v3806, 4294901760
        %4317 = vmatpush1.msra.mxu0 %v4316
        %v4318 = vand.u32 %v3810, 4294901760
        %4319 = vmatprep.subr.mxu0 %v4318
        %v4320 = vand.u32 %v3809, 4294901760
        %4321 = vmatpush1.msra.mxu0 %v4320
        %v4322 = vand.u32 %v3813, 4294901760
        %4323 = vmatprep.subr.mxu0 %v4322
        %v4324 = vand.u32 %v3812, 4294901760
        %4325 = vmatpush1.msra.mxu0 %v4324
        %v4326 = vand.u32 %v3816, 4294901760
        %4327 = vmatprep.subr.mxu0 %v4326
        %v4328 = vand.u32 %v3815, 4294901760
        %4329 = vmatpush1.msra.mxu0 %v4328
        %v4330 = vand.u32 %v3819, 4294901760
        %4331 = vmatprep.subr.mxu0 %v4330
        %v4332 = vand.u32 %v3818, 4294901760
        %4333 = vmatpush1.msra.mxu0 %v4332
        %v4334 = vand.u32 %v3822, 4294901760
        %4335 = vmatprep.subr.mxu0 %v4334
        %v4336 = vand.u32 %v3821, 4294901760
        %4337 = vmatpush1.msra.mxu0 %v4336
        %v4338 = vand.u32 %v3825, 4294901760
        %4339 = vmatprep.subr.mxu0 %v4338
        %v4340 = vand.u32 %v3824, 4294901760
        %4341 = vmatpush1.msra.mxu0 %v4340
        %v4342 = vand.u32 %v3828, 4294901760
        %4343 = vmatprep.subr.mxu0 %v4342
        %v4344 = vand.u32 %v3827, 4294901760
        %4345 = vmatpush1.msra.mxu0 %v4344
        %v4346 = vand.u32 %v3831, 4294901760
        %4347 = vmatprep.subr.mxu0 %v4346
        %v4348 = vand.u32 %v3830, 4294901760
        %4349 = vmatpush1.msra.mxu0 %v4348
        %v4350 = vand.u32 %v3834, 4294901760
        %4351 = vmatprep.subr.mxu0 %v4350
        %v4352 = vand.u32 %v3833, 4294901760
        %4353 = vmatpush1.msra.mxu0 %v4352
        %v4354 = vand.u32 %v3837, 4294901760
        %4355 = vmatprep.subr.mxu0 %v4354
        %v4356 = vand.u32 %v3836, 4294901760
        %4357 = vmatpush1.msra.mxu0 %v4356
        %v4358 = vand.u32 %v3840, 4294901760
        %4359 = vmatprep.subr.mxu0 %v4358
        %v4360 = vand.u32 %v3839, 4294901760
        %4361 = vmatpush1.msra.mxu0 %v4360
        %4362 = vmatprep.subr.mxu0 0.0
        %4363 = vmatpush1.msra.mxu0 0.0
        %4364 = vmatprep.subr.mxu0 0.0
        %4365 = vmatpush1.msra.mxu0 0.0
        %4366 = vmatprep.subr.mxu0 0.0
        %4367 = vmatpush1.msra.mxu0 0.0
        %4368 = vmatprep.subr.mxu0 0.0
        %4369 = vmatpush1.msra.mxu0 0.0
        %4370 = vmatprep.subr.mxu0 0.0
        %4371 = vmatpush1.msra.mxu0 0.0
        %4372 = vmatprep.subr.mxu0 0.0
        %4373 = vmatpush1.msra.mxu0 0.0
        %4374 = vmatprep.subr.mxu0 0.0
        %4375 = vmatpush1.msra.mxu0 0.0
        %4376 = vmatprep.subr.mxu0 0.0
        %4377 = vmatpush1.msra.mxu0 0.0
        %4378 = vmatprep.subr.mxu0 0.0
        %4379 = vmatpush1.msra.mxu0 0.0
        %4380 = vmatprep.subr.mxu0 0.0
        %4381 = vmatpush1.msra.mxu0 0.0
        %4382 = vmatprep.subr.mxu0 0.0
        %4383 = vmatpush1.msra.mxu0 0.0
        %4384 = vmatprep.subr.mxu0 0.0
        %4385 = vmatpush1.msra.mxu0 0.0
        %4386 = vmatprep.subr.mxu0 0.0
        %4387 = vmatpush1.msra.mxu0 0.0
        %4388 = vmatprep.subr.mxu0 0.0
        %4389 = vmatpush1.msra.mxu0 0.0
        %4390 = vmatprep.subr.mxu0 0.0
        %4391 = vmatpush1.msra.mxu0 0.0
        %4392 = vmatprep.subr.mxu0 0.0
        %4393 = vmatpush1.msra.mxu0 0.0
        %4394 = vmatprep.mubr.f32.mxu0 0.0
        %v4395 = vand.u32 %v3793, 4294901760
        %v4396 = vsub.f32 %v3793, %v4395
        %v4397 = vand.u32 %v4396, 4294901760
        %v4398 = vsub.f32 %v4396, %v4397
        %v4399 = vand.u32 %v4398, 4294901760
        %4400 = vmatmul.mubr.f32.gmra.mrb[0].mxu0 %v4399
        %v4401 = vpop.f32.mrb[0].mxu0
        %v4402 = vadd.f32 0.0, %v4401
        %v4403 = vpop.f32.mrb[0].mxu0
        %v4404 = vadd.f32 0.0, %v4403
        %4405 = vdwg.mxu0
        %v4406 = vand.u32 %v3795, 4294901760
        %v4407 = vsub.f32 %v3795, %v4406
        %v4408 = vand.u32 %v4407, 4294901760
        %v4409 = vsub.f32 %v4407, %v4408
        %v4410 = vand.u32 %v4409, 4294901760
        %4411 = vmatprep.subr.mxu0 %v4410
        %v4412 = vand.u32 %v3794, 4294901760
        %v4413 = vsub.f32 %v3794, %v4412
        %v4414 = vand.u32 %v4413, 4294901760
        %v4415 = vsub.f32 %v4413, %v4414
        %v4416 = vand.u32 %v4415, 4294901760
        %4417 = vmatpush1.msra.mxu0 %v4416
        %v4418 = vand.u32 %v3798, 4294901760
        %v4419 = vsub.f32 %v3798, %v4418
        %v4420 = vand.u32 %v4419, 4294901760
        %v4421 = vsub.f32 %v4419, %v4420
        %v4422 = vand.u32 %v4421, 4294901760
        %4423 = vmatprep.subr.mxu0 %v4422
        %v4424 = vand.u32 %v3797, 4294901760
        %v4425 = vsub.f32 %v3797, %v4424
        %v4426 = vand.u32 %v4425, 4294901760
        %v4427 = vsub.f32 %v4425, %v4426
        %v4428 = vand.u32 %v4427, 4294901760
        %4429 = vmatpush1.msra.mxu0 %v4428
        %v4430 = vand.u32 %v3801, 4294901760
        %v4431 = vsub.f32 %v3801, %v4430
        %v4432 = vand.u32 %v4431, 4294901760
        %v4433 = vsub.f32 %v4431, %v4432
        %v4434 = vand.u32 %v4433, 4294901760
        %4435 = vmatprep.subr.mxu0 %v4434
        %v4436 = vand.u32 %v3800, 4294901760
        %v4437 = vsub.f32 %v3800, %v4436
        %v4438 = vand.u32 %v4437, 4294901760
        %v4439 = vsub.f32 %v4437, %v4438
        %v4440 = vand.u32 %v4439, 4294901760
        %4441 = vmatpush1.msra.mxu0 %v4440
        %v4442 = vand.u32 %v3804, 4294901760
        %v4443 = vsub.f32 %v3804, %v4442
        %v4444 = vand.u32 %v4443, 4294901760
        %v4445 = vsub.f32 %v4443, %v4444
        %v4446 = vand.u32 %v4445, 4294901760
        %4447 = vmatprep.subr.mxu0 %v4446
        %v4448 = vand.u32 %v3803, 4294901760
        %v4449 = vsub.f32 %v3803, %v4448
        %v4450 = vand.u32 %v4449, 4294901760
        %v4451 = vsub.f32 %v4449, %v4450
        %v4452 = vand.u32 %v4451, 4294901760
        %4453 = vmatpush1.msra.mxu0 %v4452
        %v4454 = vand.u32 %v3807, 4294901760
        %v4455 = vsub.f32 %v3807, %v4454
        %v4456 = vand.u32 %v4455, 4294901760
        %v4457 = vsub.f32 %v4455, %v4456
        %v4458 = vand.u32 %v4457, 4294901760
        %4459 = vmatprep.subr.mxu0 %v4458
        %v4460 = vand.u32 %v3806, 4294901760
        %v4461 = vsub.f32 %v3806, %v4460
        %v4462 = vand.u32 %v4461, 4294901760
        %v4463 = vsub.f32 %v4461, %v4462
        %v4464 = vand.u32 %v4463, 4294901760
        %4465 = vmatpush1.msra.mxu0 %v4464
        %v4466 = vand.u32 %v3810, 4294901760
        %v4467 = vsub.f32 %v3810, %v4466
        %v4468 = vand.u32 %v4467, 4294901760
        %v4469 = vsub.f32 %v4467, %v4468
        %v4470 = vand.u32 %v4469, 4294901760
        %4471 = vmatprep.subr.mxu0 %v4470
        %v4472 = vand.u32 %v3809, 4294901760
        %v4473 = vsub.f32 %v3809, %v4472
        %v4474 = vand.u32 %v4473, 4294901760
        %v4475 = vsub.f32 %v4473, %v4474
        %v4476 = vand.u32 %v4475, 4294901760
        %4477 = vmatpush1.msra.mxu0 %v4476
        %v4478 = vand.u32 %v3813, 4294901760
        %v4479 = vsub.f32 %v3813, %v4478
        %v4480 = vand.u32 %v4479, 4294901760
        %v4481 = vsub.f32 %v4479, %v4480
        %v4482 = vand.u32 %v4481, 4294901760
        %4483 = vmatprep.subr.mxu0 %v4482
        %v4484 = vand.u32 %v3812, 4294901760
        %v4485 = vsub.f32 %v3812, %v4484
        %v4486 = vand.u32 %v4485, 4294901760
        %v4487 = vsub.f32 %v4485, %v4486
        %v4488 = vand.u32 %v4487, 4294901760
        %4489 = vmatpush1.msra.mxu0 %v4488
        %v4490 = vand.u32 %v3816, 4294901760
        %v4491 = vsub.f32 %v3816, %v4490
        %v4492 = vand.u32 %v4491, 4294901760
        %v4493 = vsub.f32 %v4491, %v4492
        %v4494 = vand.u32 %v4493, 4294901760
        %4495 = vmatprep.subr.mxu0 %v4494
        %v4496 = vand.u32 %v3815, 4294901760
        %v4497 = vsub.f32 %v3815, %v4496
        %v4498 = vand.u32 %v4497, 4294901760
        %v4499 = vsub.f32 %v4497, %v4498
        %v4500 = vand.u32 %v4499, 4294901760
        %4501 = vmatpush1.msra.mxu0 %v4500
        %v4502 = vand.u32 %v3819, 4294901760
        %v4503 = vsub.f32 %v3819, %v4502
        %v4504 = vand.u32 %v4503, 4294901760
        %v4505 = vsub.f32 %v4503, %v4504
        %v4506 = vand.u32 %v4505, 4294901760
        %4507 = vmatprep.subr.mxu0 %v4506
        %v4508 = vand.u32 %v3818, 4294901760
        %v4509 = vsub.f32 %v3818, %v4508
        %v4510 = vand.u32 %v4509, 4294901760
        %v4511 = vsub.f32 %v4509, %v4510
        %v4512 = vand.u32 %v4511, 4294901760
        %4513 = vmatpush1.msra.mxu0 %v4512
        %v4514 = vand.u32 %v3822, 4294901760
        %v4515 = vsub.f32 %v3822, %v4514
        %v4516 = vand.u32 %v4515, 4294901760
        %v4517 = vsub.f32 %v4515, %v4516
        %v4518 = vand.u32 %v4517, 4294901760
        %4519 = vmatprep.subr.mxu0 %v4518
        %v4520 = vand.u32 %v3821, 4294901760
        %v4521 = vsub.f32 %v3821, %v4520
        %v4522 = vand.u32 %v4521, 4294901760
        %v4523 = vsub.f32 %v4521, %v4522
        %v4524 = vand.u32 %v4523, 4294901760
        %4525 = vmatpush1.msra.mxu0 %v4524
        %v4526 = vand.u32 %v3825, 4294901760
        %v4527 = vsub.f32 %v3825, %v4526
        %v4528 = vand.u32 %v4527, 4294901760
        %v4529 = vsub.f32 %v4527, %v4528
        %v4530 = vand.u32 %v4529, 4294901760
        %4531 = vmatprep.subr.mxu0 %v4530
        %v4532 = vand.u32 %v3824, 4294901760
        %v4533 = vsub.f32 %v3824, %v4532
        %v4534 = vand.u32 %v4533, 4294901760
        %v4535 = vsub.f32 %v4533, %v4534
        %v4536 = vand.u32 %v4535, 4294901760
        %4537 = vmatpush1.msra.mxu0 %v4536
        %v4538 = vand.u32 %v3828, 4294901760
        %v4539 = vsub.f32 %v3828, %v4538
        %v4540 = vand.u32 %v4539, 4294901760
        %v4541 = vsub.f32 %v4539, %v4540
        %v4542 = vand.u32 %v4541, 4294901760
        %4543 = vmatprep.subr.mxu0 %v4542
        %v4544 = vand.u32 %v3827, 4294901760
        %v4545 = vsub.f32 %v3827, %v4544
        %v4546 = vand.u32 %v4545, 4294901760
        %v4547 = vsub.f32 %v4545, %v4546
        %v4548 = vand.u32 %v4547, 4294901760
        %4549 = vmatpush1.msra.mxu0 %v4548
        %v4550 = vand.u32 %v3831, 4294901760
        %v4551 = vsub.f32 %v3831, %v4550
        %v4552 = vand.u32 %v4551, 4294901760
        %v4553 = vsub.f32 %v4551, %v4552
        %v4554 = vand.u32 %v4553, 4294901760
        %4555 = vmatprep.subr.mxu0 %v4554
        %v4556 = vand.u32 %v3830, 4294901760
        %v4557 = vsub.f32 %v3830, %v4556
        %v4558 = vand.u32 %v4557, 4294901760
        %v4559 = vsub.f32 %v4557, %v4558
        %v4560 = vand.u32 %v4559, 4294901760
        %4561 = vmatpush1.msra.mxu0 %v4560
        %v4562 = vand.u32 %v3834, 4294901760
        %v4563 = vsub.f32 %v3834, %v4562
        %v4564 = vand.u32 %v4563, 4294901760
        %v4565 = vsub.f32 %v4563, %v4564
        %v4566 = vand.u32 %v4565, 4294901760
        %4567 = vmatprep.subr.mxu0 %v4566
        %v4568 = vand.u32 %v3833, 4294901760
        %v4569 = vsub.f32 %v3833, %v4568
        %v4570 = vand.u32 %v4569, 4294901760
        %v4571 = vsub.f32 %v4569, %v4570
        %v4572 = vand.u32 %v4571, 4294901760
        %4573 = vmatpush1.msra.mxu0 %v4572
        %v4574 = vand.u32 %v3837, 4294901760
        %v4575 = vsub.f32 %v3837, %v4574
        %v4576 = vand.u32 %v4575, 4294901760
        %v4577 = vsub.f32 %v4575, %v4576
        %v4578 = vand.u32 %v4577, 4294901760
        %4579 = vmatprep.subr.mxu0 %v4578
        %v4580 = vand.u32 %v3836, 4294901760
        %v4581 = vsub.f32 %v3836, %v4580
        %v4582 = vand.u32 %v4581, 4294901760
        %v4583 = vsub.f32 %v4581, %v4582
        %v4584 = vand.u32 %v4583, 4294901760
        %4585 = vmatpush1.msra.mxu0 %v4584
        %v4586 = vand.u32 %v3840, 4294901760
        %v4587 = vsub.f32 %v3840, %v4586
        %v4588 = vand.u32 %v4587, 4294901760
        %v4589 = vsub.f32 %v4587, %v4588
        %v4590 = vand.u32 %v4589, 4294901760
        %4591 = vmatprep.subr.mxu0 %v4590
        %v4592 = vand.u32 %v3839, 4294901760
        %v4593 = vsub.f32 %v3839, %v4592
        %v4594 = vand.u32 %v4593, 4294901760
        %v4595 = vsub.f32 %v4593, %v4594
        %v4596 = vand.u32 %v4595, 4294901760
        %4597 = vmatpush1.msra.mxu0 %v4596
        %4598 = vmatprep.subr.mxu0 0.0
        %4599 = vmatpush1.msra.mxu0 0.0
        %4600 = vmatprep.subr.mxu0 0.0
        %4601 = vmatpush1.msra.mxu0 0.0
        %4602 = vmatprep.subr.mxu0 0.0
        %4603 = vmatpush1.msra.mxu0 0.0
        %4604 = vmatprep.subr.mxu0 0.0
        %4605 = vmatpush1.msra.mxu0 0.0
        %4606 = vmatprep.subr.mxu0 0.0
        %4607 = vmatpush1.msra.mxu0 0.0
        %4608 = vmatprep.subr.mxu0 0.0
        %4609 = vmatpush1.msra.mxu0 0.0
        %4610 = vmatprep.subr.mxu0 0.0
        %4611 = vmatpush1.msra.mxu0 0.0
        %4612 = vmatprep.subr.mxu0 0.0
        %4613 = vmatpush1.msra.mxu0 0.0
        %4614 = vmatprep.subr.mxu0 0.0
        %4615 = vmatpush1.msra.mxu0 0.0
        %4616 = vmatprep.subr.mxu0 0.0
        %4617 = vmatpush1.msra.mxu0 0.0
        %4618 = vmatprep.subr.mxu0 0.0
        %4619 = vmatpush1.msra.mxu0 0.0
        %4620 = vmatprep.subr.mxu0 0.0
        %4621 = vmatpush1.msra.mxu0 0.0
        %4622 = vmatprep.subr.mxu0 0.0
        %4623 = vmatpush1.msra.mxu0 0.0
        %4624 = vmatprep.subr.mxu0 0.0
        %4625 = vmatpush1.msra.mxu0 0.0
        %4626 = vmatprep.subr.mxu0 0.0
        %4627 = vmatpush1.msra.mxu0 0.0
        %4628 = vmatprep.subr.mxu0 0.0
        %4629 = vmatpush1.msra.mxu0 0.0
        %4630 = vmatprep.mubr.f32.mxu0 0.0
        %v4631 = vand.u32 %v3793, 4294901760
        %4632 = vmatmul.mubr.f32.gmra.mrb[0].mxu0 %v4631
        %v4633 = vpop.f32.mrb[0].mxu0
        %v4634 = vadd.f32 %v4402, %v4633
        %v4635 = vpop.f32.mrb[0].mxu0
        %v4636 = vadd.f32 %v4404, %v4635
        %4637 = vdwg.mxu0
        %v4638 = vand.u32 %v3795, 4294901760
        %v4639 = vsub.f32 %v3795, %v4638
        %4640 = vmatprep.subr.mxu0 %v4639
        %v4641 = vand.u32 %v3794, 4294901760
        %v4642 = vsub.f32 %v3794, %v4641
        %4643 = vmatpush1.msra.mxu0 %v4642
        %v4644 = vand.u32 %v3798, 4294901760
        %v4645 = vsub.f32 %v3798, %v4644
        %4646 = vmatprep.subr.mxu0 %v4645
        %v4647 = vand.u32 %v3797, 4294901760
        %v4648 = vsub.f32 %v3797, %v4647
        %4649 = vmatpush1.msra.mxu0 %v4648
        %v4650 = vand.u32 %v3801, 4294901760
        %v4651 = vsub.f32 %v3801, %v4650
        %4652 = vmatprep.subr.mxu0 %v4651
        %v4653 = vand.u32 %v3800, 4294901760
        %v4654 = vsub.f32 %v3800, %v4653
        %4655 = vmatpush1.msra.mxu0 %v4654
        %v4656 = vand.u32 %v3804, 4294901760
        %v4657 = vsub.f32 %v3804, %v4656
        %4658 = vmatprep.subr.mxu0 %v4657
        %v4659 = vand.u32 %v3803, 4294901760
        %v4660 = vsub.f32 %v3803, %v4659
        %4661 = vmatpush1.msra.mxu0 %v4660
        %v4662 = vand.u32 %v3807, 4294901760
        %v4663 = vsub.f32 %v3807, %v4662
        %4664 = vmatprep.subr.mxu0 %v4663
        %v4665 = vand.u32 %v3806, 4294901760
        %v4666 = vsub.f32 %v3806, %v4665
        %4667 = vmatpush1.msra.mxu0 %v4666
        %v4668 = vand.u32 %v3810, 4294901760
        %v4669 = vsub.f32 %v3810, %v4668
        %4670 = vmatprep.subr.mxu0 %v4669
        %v4671 = vand.u32 %v3809, 4294901760
        %v4672 = vsub.f32 %v3809, %v4671
        %4673 = vmatpush1.msra.mxu0 %v4672
        %v4674 = vand.u32 %v3813, 4294901760
        %v4675 = vsub.f32 %v3813, %v4674
        %4676 = vmatprep.subr.mxu0 %v4675
        %v4677 = vand.u32 %v3812, 4294901760
        %v4678 = vsub.f32 %v3812, %v4677
        %4679 = vmatpush1.msra.mxu0 %v4678
        %v4680 = vand.u32 %v3816, 4294901760
        %v4681 = vsub.f32 %v3816, %v4680
        %4682 = vmatprep.subr.mxu0 %v4681
        %v4683 = vand.u32 %v3815, 4294901760
        %v4684 = vsub.f32 %v3815, %v4683
        %4685 = vmatpush1.msra.mxu0 %v4684
        %v4686 = vand.u32 %v3819, 4294901760
        %v4687 = vsub.f32 %v3819, %v4686
        %4688 = vmatprep.subr.mxu0 %v4687
        %v4689 = vand.u32 %v3818, 4294901760
        %v4690 = vsub.f32 %v3818, %v4689
        %4691 = vmatpush1.msra.mxu0 %v4690
        %v4692 = vand.u32 %v3822, 4294901760
        %v4693 = vsub.f32 %v3822, %v4692
        %4694 = vmatprep.subr.mxu0 %v4693
        %v4695 = vand.u32 %v3821, 4294901760
        %v4696 = vsub.f32 %v3821, %v4695
        %4697 = vmatpush1.msra.mxu0 %v4696
        %v4698 = vand.u32 %v3825, 4294901760
        %v4699 = vsub.f32 %v3825, %v4698
        %4700 = vmatprep.subr.mxu0 %v4699
        %v4701 = vand.u32 %v3824, 4294901760
        %v4702 = vsub.f32 %v3824, %v4701
        %4703 = vmatpush1.msra.mxu0 %v4702
        %v4704 = vand.u32 %v3828, 4294901760
        %v4705 = vsub.f32 %v3828, %v4704
        %4706 = vmatprep.subr.mxu0 %v4705
        %v4707 = vand.u32 %v3827, 4294901760
        %v4708 = vsub.f32 %v3827, %v4707
        %4709 = vmatpush1.msra.mxu0 %v4708
        %v4710 = vand.u32 %v3831, 4294901760
        %v4711 = vsub.f32 %v3831, %v4710
        %4712 = vmatprep.subr.mxu0 %v4711
        %v4713 = vand.u32 %v3830, 4294901760
        %v4714 = vsub.f32 %v3830, %v4713
        %4715 = vmatpush1.msra.mxu0 %v4714
        %v4716 = vand.u32 %v3834, 4294901760
        %v4717 = vsub.f32 %v3834, %v4716
        %4718 = vmatprep.subr.mxu0 %v4717
        %v4719 = vand.u32 %v3833, 4294901760
        %v4720 = vsub.f32 %v3833, %v4719
        %4721 = vmatpush1.msra.mxu0 %v4720
        %v4722 = vand.u32 %v3837, 4294901760
        %v4723 = vsub.f32 %v3837, %v4722
        %4724 = vmatprep.subr.mxu0 %v4723
        %v4725 = vand.u32 %v3836, 4294901760
        %v4726 = vsub.f32 %v3836, %v4725
        %4727 = vmatpush1.msra.mxu0 %v4726
        %v4728 = vand.u32 %v3840, 4294901760
        %v4729 = vsub.f32 %v3840, %v4728
        %4730 = vmatprep.subr.mxu0 %v4729
        %v4731 = vand.u32 %v3839, 4294901760
        %v4732 = vsub.f32 %v3839, %v4731
        %4733 = vmatpush1.msra.mxu0 %v4732
        %4734 = vmatprep.subr.mxu0 0.0
        %4735 = vmatpush1.msra.mxu0 0.0
        %4736 = vmatprep.subr.mxu0 0.0
        %4737 = vmatpush1.msra.mxu0 0.0
        %4738 = vmatprep.subr.mxu0 0.0
        %4739 = vmatpush1.msra.mxu0 0.0
        %4740 = vmatprep.subr.mxu0 0.0
        %4741 = vmatpush1.msra.mxu0 0.0
        %4742 = vmatprep.subr.mxu0 0.0
        %4743 = vmatpush1.msra.mxu0 0.0
        %4744 = vmatprep.subr.mxu0 0.0
        %4745 = vmatpush1.msra.mxu0 0.0
        %4746 = vmatprep.subr.mxu0 0.0
        %4747 = vmatpush1.msra.mxu0 0.0
        %4748 = vmatprep.subr.mxu0 0.0
        %4749 = vmatpush1.msra.mxu0 0.0
        %4750 = vmatprep.subr.mxu0 0.0
        %4751 = vmatpush1.msra.mxu0 0.0
        %4752 = vmatprep.subr.mxu0 0.0
        %4753 = vmatpush1.msra.mxu0 0.0
        %4754 = vmatprep.subr.mxu0 0.0
        %4755 = vmatpush1.msra.mxu0 0.0
        %4756 = vmatprep.subr.mxu0 0.0
        %4757 = vmatpush1.msra.mxu0 0.0
        %4758 = vmatprep.subr.mxu0 0.0
        %4759 = vmatpush1.msra.mxu0 0.0
        %4760 = vmatprep.subr.mxu0 0.0
        %4761 = vmatpush1.msra.mxu0 0.0
        %4762 = vmatprep.subr.mxu0 0.0
        %4763 = vmatpush1.msra.mxu0 0.0
        %4764 = vmatprep.subr.mxu0 0.0
        %4765 = vmatpush1.msra.mxu0 0.0
        %4766 = vmatprep.mubr.f32.mxu0 0.0
        %v4767 = vand.u32 %v3793, 4294901760
        %v4768 = vsub.f32 %v3793, %v4767
        %4769 = vmatmul.mubr.f32.gmra.mrb[0].mxu0 %v4768
        %v4770 = vpop.f32.mrb[0].mxu0
        %v4771 = vadd.f32 %v4634, %v4770
        %v4772 = vpop.f32.mrb[0].mxu0
        %v4773 = vadd.f32 %v4636, %v4772
        %4774 = vdwg.mxu0
        %v4775 = vand.u32 %v3795, 4294901760
        %4776 = vmatprep.subr.mxu0 %v4775
        %v4777 = vand.u32 %v3794, 4294901760
        %4778 = vmatpush1.msra.mxu0 %v4777
        %v4779 = vand.u32 %v3798, 4294901760
        %4780 = vmatprep.subr.mxu0 %v4779
        %v4781 = vand.u32 %v3797, 4294901760
        %4782 = vmatpush1.msra.mxu0 %v4781
        %v4783 = vand.u32 %v3801, 4294901760
        %4784 = vmatprep.subr.mxu0 %v4783
        %v4785 = vand.u32 %v3800, 4294901760
        %4786 = vmatpush1.msra.mxu0 %v4785
        %v4787 = vand.u32 %v3804, 4294901760
        %4788 = vmatprep.subr.mxu0 %v4787
        %v4789 = vand.u32 %v3803, 4294901760
        %4790 = vmatpush1.msra.mxu0 %v4789
        %v4791 = vand.u32 %v3807, 4294901760
        %4792 = vmatprep.subr.mxu0 %v4791
        %v4793 = vand.u32 %v3806, 4294901760
        %4794 = vmatpush1.msra.mxu0 %v4793
        %v4795 = vand.u32 %v3810, 4294901760
        %4796 = vmatprep.subr.mxu0 %v4795
        %v4797 = vand.u32 %v3809, 4294901760
        %4798 = vmatpush1.msra.mxu0 %v4797
        %v4799 = vand.u32 %v3813, 4294901760
        %4800 = vmatprep.subr.mxu0 %v4799
        %v4801 = vand.u32 %v3812, 4294901760
        %4802 = vmatpush1.msra.mxu0 %v4801
        %v4803 = vand.u32 %v3816, 4294901760
        %4804 = vmatprep.subr.mxu0 %v4803
        %v4805 = vand.u32 %v3815, 4294901760
        %4806 = vmatpush1.msra.mxu0 %v4805
        %v4807 = vand.u32 %v3819, 4294901760
        %4808 = vmatprep.subr.mxu0 %v4807
        %v4809 = vand.u32 %v3818, 4294901760
        %4810 = vmatpush1.msra.mxu0 %v4809
        %v4811 = vand.u32 %v3822, 4294901760
        %4812 = vmatprep.subr.mxu0 %v4811
        %v4813 = vand.u32 %v3821, 4294901760
        %4814 = vmatpush1.msra.mxu0 %v4813
        %v4815 = vand.u32 %v3825, 4294901760
        %4816 = vmatprep.subr.mxu0 %v4815
        %v4817 = vand.u32 %v3824, 4294901760
        %4818 = vmatpush1.msra.mxu0 %v4817
        %v4819 = vand.u32 %v3828, 4294901760
        %4820 = vmatprep.subr.mxu0 %v4819
        %v4821 = vand.u32 %v3827, 4294901760
        %4822 = vmatpush1.msra.mxu0 %v4821
        %v4823 = vand.u32 %v3831, 4294901760
        %4824 = vmatprep.subr.mxu0 %v4823
        %v4825 = vand.u32 %v3830, 4294901760
        %4826 = vmatpush1.msra.mxu0 %v4825
        %v4827 = vand.u32 %v3834, 4294901760
        %4828 = vmatprep.subr.mxu0 %v4827
        %v4829 = vand.u32 %v3833, 4294901760
        %4830 = vmatpush1.msra.mxu0 %v4829
        %v4831 = vand.u32 %v3837, 4294901760
        %4832 = vmatprep.subr.mxu0 %v4831
        %v4833 = vand.u32 %v3836, 4294901760
        %4834 = vmatpush1.msra.mxu0 %v4833
        %v4835 = vand.u32 %v3840, 4294901760
        %4836 = vmatprep.subr.mxu0 %v4835
        %v4837 = vand.u32 %v3839, 4294901760
        %4838 = vmatpush1.msra.mxu0 %v4837
        %4839 = vmatprep.subr.mxu0 0.0
        %4840 = vmatpush1.msra.mxu0 0.0
        %4841 = vmatprep.subr.mxu0 0.0
        %4842 = vmatpush1.msra.mxu0 0.0
        %4843 = vmatprep.subr.mxu0 0.0
        %4844 = vmatpush1.msra.mxu0 0.0
        %4845 = vmatprep.subr.mxu0 0.0
        %4846 = vmatpush1.msra.mxu0 0.0
        %4847 = vmatprep.subr.mxu0 0.0
        %4848 = vmatpush1.msra.mxu0 0.0
        %4849 = vmatprep.subr.mxu0 0.0
        %4850 = vmatpush1.msra.mxu0 0.0
        %4851 = vmatprep.subr.mxu0 0.0
        %4852 = vmatpush1.msra.mxu0 0.0
        %4853 = vmatprep.subr.mxu0 0.0
        %4854 = vmatpush1.msra.mxu0 0.0
        %4855 = vmatprep.subr.mxu0 0.0
        %4856 = vmatpush1.msra.mxu0 0.0
        %4857 = vmatprep.subr.mxu0 0.0
        %4858 = vmatpush1.msra.mxu0 0.0
        %4859 = vmatprep.subr.mxu0 0.0
        %4860 = vmatpush1.msra.mxu0 0.0
        %4861 = vmatprep.subr.mxu0 0.0
        %4862 = vmatpush1.msra.mxu0 0.0
        %4863 = vmatprep.subr.mxu0 0.0
        %4864 = vmatpush1.msra.mxu0 0.0
        %4865 = vmatprep.subr.mxu0 0.0
        %4866 = vmatpush1.msra.mxu0 0.0
        %4867 = vmatprep.subr.mxu0 0.0
        %4868 = vmatpush1.msra.mxu0 0.0
        %4869 = vmatprep.subr.mxu0 0.0
        %4870 = vmatpush1.msra.mxu0 0.0
        %4871 = vmatprep.mubr.f32.mxu0 0.0
        %v4872 = vand.u32 %v3793, 4294901760
        %v4873 = vsub.f32 %v3793, %v4872
        %v4874 = vand.u32 %v4873, 4294901760
        %4875 = vmatmul.mubr.f32.gmra.mrb[0].mxu0 %v4874
        %v4876 = vpop.f32.mrb[0].mxu0
        %v4877 = vadd.f32 %v4771, %v4876
        %v4878 = vpop.f32.mrb[0].mxu0
        %v4879 = vadd.f32 %v4773, %v4878
        %4880 = vdwg.mxu0
        %v4881 = vand.u32 %v3795, 4294901760
        %v4882 = vsub.f32 %v3795, %v4881
        %v4883 = vand.u32 %v4882, 4294901760
        %4884 = vmatprep.subr.mxu0 %v4883
        %v4885 = vand.u32 %v3794, 4294901760
        %v4886 = vsub.f32 %v3794, %v4885
        %v4887 = vand.u32 %v4886, 4294901760
        %4888 = vmatpush1.msra.mxu0 %v4887
        %v4889 = vand.u32 %v3798, 4294901760
        %v4890 = vsub.f32 %v3798, %v4889
        %v4891 = vand.u32 %v4890, 4294901760
        %4892 = vmatprep.subr.mxu0 %v4891
        %v4893 = vand.u32 %v3797, 4294901760
        %v4894 = vsub.f32 %v3797, %v4893
        %v4895 = vand.u32 %v4894, 4294901760
        %4896 = vmatpush1.msra.mxu0 %v4895
        %v4897 = vand.u32 %v3801, 4294901760
        %v4898 = vsub.f32 %v3801, %v4897
        %v4899 = vand.u32 %v4898, 4294901760
        %4900 = vmatprep.subr.mxu0 %v4899
        %v4901 = vand.u32 %v3800, 4294901760
        %v4902 = vsub.f32 %v3800, %v4901
        %v4903 = vand.u32 %v4902, 4294901760
        %4904 = vmatpush1.msra.mxu0 %v4903
        %v4905 = vand.u32 %v3804, 4294901760
        %v4906 = vsub.f32 %v3804, %v4905
        %v4907 = vand.u32 %v4906, 4294901760
        %4908 = vmatprep.subr.mxu0 %v4907
        %v4909 = vand.u32 %v3803, 4294901760
        %v4910 = vsub.f32 %v3803, %v4909
        %v4911 = vand.u32 %v4910, 4294901760
        %4912 = vmatpush1.msra.mxu0 %v4911
        %v4913 = vand.u32 %v3807, 4294901760
        %v4914 = vsub.f32 %v3807, %v4913
        %v4915 = vand.u32 %v4914, 4294901760
        %4916 = vmatprep.subr.mxu0 %v4915
        %v4917 = vand.u32 %v3806, 4294901760
        %v4918 = vsub.f32 %v3806, %v4917
        %v4919 = vand.u32 %v4918, 4294901760
        %4920 = vmatpush1.msra.mxu0 %v4919
        %v4921 = vand.u32 %v3810, 4294901760
        %v4922 = vsub.f32 %v3810, %v4921
        %v4923 = vand.u32 %v4922, 4294901760
        %4924 = vmatprep.subr.mxu0 %v4923
        %v4925 = vand.u32 %v3809, 4294901760
        %v4926 = vsub.f32 %v3809, %v4925
        %v4927 = vand.u32 %v4926, 4294901760
        %4928 = vmatpush1.msra.mxu0 %v4927
        %v4929 = vand.u32 %v3813, 4294901760
        %v4930 = vsub.f32 %v3813, %v4929
        %v4931 = vand.u32 %v4930, 4294901760
        %4932 = vmatprep.subr.mxu0 %v4931
        %v4933 = vand.u32 %v3812, 4294901760
        %v4934 = vsub.f32 %v3812, %v4933
        %v4935 = vand.u32 %v4934, 4294901760
        %4936 = vmatpush1.msra.mxu0 %v4935
        %v4937 = vand.u32 %v3816, 4294901760
        %v4938 = vsub.f32 %v3816, %v4937
        %v4939 = vand.u32 %v4938, 4294901760
        %4940 = vmatprep.subr.mxu0 %v4939
        %v4941 = vand.u32 %v3815, 4294901760
        %v4942 = vsub.f32 %v3815, %v4941
        %v4943 = vand.u32 %v4942, 4294901760
        %4944 = vmatpush1.msra.mxu0 %v4943
        %v4945 = vand.u32 %v3819, 4294901760
        %v4946 = vsub.f32 %v3819, %v4945
        %v4947 = vand.u32 %v4946, 4294901760
        %4948 = vmatprep.subr.mxu0 %v4947
        %v4949 = vand.u32 %v3818, 4294901760
        %v4950 = vsub.f32 %v3818, %v4949
        %v4951 = vand.u32 %v4950, 4294901760
        %4952 = vmatpush1.msra.mxu0 %v4951
        %v4953 = vand.u32 %v3822, 4294901760
        %v4954 = vsub.f32 %v3822, %v4953
        %v4955 = vand.u32 %v4954, 4294901760
        %4956 = vmatprep.subr.mxu0 %v4955
        %v4957 = vand.u32 %v3821, 4294901760
        %v4958 = vsub.f32 %v3821, %v4957
        %v4959 = vand.u32 %v4958, 4294901760
        %4960 = vmatpush1.msra.mxu0 %v4959
        %v4961 = vand.u32 %v3825, 4294901760
        %v4962 = vsub.f32 %v3825, %v4961
        %v4963 = vand.u32 %v4962, 4294901760
        %4964 = vmatprep.subr.mxu0 %v4963
        %v4965 = vand.u32 %v3824, 4294901760
        %v4966 = vsub.f32 %v3824, %v4965
        %v4967 = vand.u32 %v4966, 4294901760
        %4968 = vmatpush1.msra.mxu0 %v4967
        %v4969 = vand.u32 %v3828, 4294901760
        %v4970 = vsub.f32 %v3828, %v4969
        %v4971 = vand.u32 %v4970, 4294901760
        %4972 = vmatprep.subr.mxu0 %v4971
        %v4973 = vand.u32 %v3827, 4294901760
        %v4974 = vsub.f32 %v3827, %v4973
        %v4975 = vand.u32 %v4974, 4294901760
        %4976 = vmatpush1.msra.mxu0 %v4975
        %v4977 = vand.u32 %v3831, 4294901760
        %v4978 = vsub.f32 %v3831, %v4977
        %v4979 = vand.u32 %v4978, 4294901760
        %4980 = vmatprep.subr.mxu0 %v4979
        %v4981 = vand.u32 %v3830, 4294901760
        %v4982 = vsub.f32 %v3830, %v4981
        %v4983 = vand.u32 %v4982, 4294901760
        %4984 = vmatpush1.msra.mxu0 %v4983
        %v4985 = vand.u32 %v3834, 4294901760
        %v4986 = vsub.f32 %v3834, %v4985
        %v4987 = vand.u32 %v4986, 4294901760
        %4988 = vmatprep.subr.mxu0 %v4987
        %v4989 = vand.u32 %v3833, 4294901760
        %v4990 = vsub.f32 %v3833, %v4989
        %v4991 = vand.u32 %v4990, 4294901760
        %4992 = vmatpush1.msra.mxu0 %v4991
        %v4993 = vand.u32 %v3837, 4294901760
        %v4994 = vsub.f32 %v3837, %v4993
        %v4995 = vand.u32 %v4994, 4294901760
        %4996 = vmatprep.subr.mxu0 %v4995
        %v4997 = vand.u32 %v3836, 4294901760
        %v4998 = vsub.f32 %v3836, %v4997
        %v4999 = vand.u32 %v4998, 4294901760
        %5000 = vmatpush1.msra.mxu0 %v4999
        %v5001 = vand.u32 %v3840, 4294901760
        %v5002 = vsub.f32 %v3840, %v5001
        %v5003 = vand.u32 %v5002, 4294901760
        %5004 = vmatprep.subr.mxu0 %v5003
        %v5005 = vand.u32 %v3839, 4294901760
        %v5006 = vsub.f32 %v3839, %v5005
        %v5007 = vand.u32 %v5006, 4294901760
        %5008 = vmatpush1.msra.mxu0 %v5007
        %5009 = vmatprep.subr.mxu0 0.0
        %5010 = vmatpush1.msra.mxu0 0.0
        %5011 = vmatprep.subr.mxu0 0.0
        %5012 = vmatpush1.msra.mxu0 0.0
        %5013 = vmatprep.subr.mxu0 0.0
        %5014 = vmatpush1.msra.mxu0 0.0
        %5015 = vmatprep.subr.mxu0 0.0
        %5016 = vmatpush1.msra.mxu0 0.0
        %5017 = vmatprep.subr.mxu0 0.0
        %5018 = vmatpush1.msra.mxu0 0.0
        %5019 = vmatprep.subr.mxu0 0.0
        %5020 = vmatpush1.msra.mxu0 0.0
        %5021 = vmatprep.subr.mxu0 0.0
        %5022 = vmatpush1.msra.mxu0 0.0
        %5023 = vmatprep.subr.mxu0 0.0
        %5024 = vmatpush1.msra.mxu0 0.0
        %5025 = vmatprep.subr.mxu0 0.0
        %5026 = vmatpush1.msra.mxu0 0.0
        %5027 = vmatprep.subr.mxu0 0.0
        %5028 = vmatpush1.msra.mxu0 0.0
        %5029 = vmatprep.subr.mxu0 0.0
        %5030 = vmatpush1.msra.mxu0 0.0
        %5031 = vmatprep.subr.mxu0 0.0
        %5032 = vmatpush1.msra.mxu0 0.0
        %5033 = vmatprep.subr.mxu0 0.0
        %5034 = vmatpush1.msra.mxu0 0.0
        %5035 = vmatprep.subr.mxu0 0.0
        %5036 = vmatpush1.msra.mxu0 0.0
        %5037 = vmatprep.subr.mxu0 0.0
        %5038 = vmatpush1.msra.mxu0 0.0
        %5039 = vmatprep.subr.mxu0 0.0
        %5040 = vmatpush1.msra.mxu0 0.0
        %5041 = vmatprep.mubr.f32.mxu0 0.0
        %v5042 = vand.u32 %v3793, 4294901760
        %5043 = vmatmul.mubr.f32.gmra.mrb[0].mxu0 %v5042
        %v5044 = vpop.f32.mrb[0].mxu0
        %v5045 = vadd.f32 %v4877, %v5044
        %v5046 = vpop.f32.mrb[0].mxu0
        %v5047 = vadd.f32 %v4879, %v5046
        %5048 = vdwg.mxu0
        %v5049 = vand.u32 %v3795, 4294901760
        %5050 = vmatprep.subr.mxu0 %v5049
        %v5051 = vand.u32 %v3794, 4294901760
        %5052 = vmatpush1.msra.mxu0 %v5051
        %v5053 = vand.u32 %v3798, 4294901760
        %5054 = vmatprep.subr.mxu0 %v5053
        %v5055 = vand.u32 %v3797, 4294901760
        %5056 = vmatpush1.msra.mxu0 %v5055
        %v5057 = vand.u32 %v3801, 4294901760
        %5058 = vmatprep.subr.mxu0 %v5057
        %v5059 = vand.u32 %v3800, 4294901760
        %5060 = vmatpush1.msra.mxu0 %v5059
        %v5061 = vand.u32 %v3804, 4294901760
        %5062 = vmatprep.subr.mxu0 %v5061
        %v5063 = vand.u32 %v3803, 4294901760
        %5064 = vmatpush1.msra.mxu0 %v5063
        %v5065 = vand.u32 %v3807, 4294901760
        %5066 = vmatprep.subr.mxu0 %v5065
        %v5067 = vand.u32 %v3806, 4294901760
        %5068 = vmatpush1.msra.mxu0 %v5067
        %v5069 = vand.u32 %v3810, 4294901760
        %5070 = vmatprep.subr.mxu0 %v5069
        %v5071 = vand.u32 %v3809, 4294901760
        %5072 = vmatpush1.msra.mxu0 %v5071
        %v5073 = vand.u32 %v3813, 4294901760
        %5074 = vmatprep.subr.mxu0 %v5073
        %v5075 = vand.u32 %v3812, 4294901760
        %5076 = vmatpush1.msra.mxu0 %v5075
        %v5077 = vand.u32 %v3816, 4294901760
        %5078 = vmatprep.subr.mxu0 %v5077
        %v5079 = vand.u32 %v3815, 4294901760
        %5080 = vmatpush1.msra.mxu0 %v5079
        %v5081 = vand.u32 %v3819, 4294901760
        %5082 = vmatprep.subr.mxu0 %v5081
        %v5083 = vand.u32 %v3818, 4294901760
        %5084 = vmatpush1.msra.mxu0 %v5083
        %v5085 = vand.u32 %v3822, 4294901760
        %5086 = vmatprep.subr.mxu0 %v5085
        %v5087 = vand.u32 %v3821, 4294901760
        %5088 = vmatpush1.msra.mxu0 %v5087
        %v5089 = vand.u32 %v3825, 4294901760
        %5090 = vmatprep.subr.mxu0 %v5089
        %v5091 = vand.u32 %v3824, 4294901760
        %5092 = vmatpush1.msra.mxu0 %v5091
        %v5093 = vand.u32 %v3828, 4294901760
        %5094 = vmatprep.subr.mxu0 %v5093
        %v5095 = vand.u32 %v3827, 4294901760
        %5096 = vmatpush1.msra.mxu0 %v5095
        %v5097 = vand.u32 %v3831, 4294901760
        %5098 = vmatprep.subr.mxu0 %v5097
        %v5099 = vand.u32 %v3830, 4294901760
        %5100 = vmatpush1.msra.mxu0 %v5099
        %v5101 = vand.u32 %v3834, 4294901760
        %5102 = vmatprep.subr.mxu0 %v5101
        %v5103 = vand.u32 %v3833, 4294901760
        %5104 = vmatpush1.msra.mxu0 %v5103
        %v5105 = vand.u32 %v3837, 4294901760
        %5106 = vmatprep.subr.mxu0 %v5105
        %v5107 = vand.u32 %v3836, 4294901760
        %5108 = vmatpush1.msra.mxu0 %v5107
        %v5109 = vand.u32 %v3840, 4294901760
        %5110 = vmatprep.subr.mxu0 %v5109
        %v5111 = vand.u32 %v3839, 4294901760
        %5112 = vmatpush1.msra.mxu0 %v5111
        %5113 = vmatprep.subr.mxu0 0.0
        %5114 = vmatpush1.msra.mxu0 0.0
        %5115 = vmatprep.subr.mxu0 0.0
        %5116 = vmatpush1.msra.mxu0 0.0
        %5117 = vmatprep.subr.mxu0 0.0
        %5118 = vmatpush1.msra.mxu0 0.0
        %5119 = vmatprep.subr.mxu0 0.0
        %5120 = vmatpush1.msra.mxu0 0.0
        %5121 = vmatprep.subr.mxu0 0.0
        %5122 = vmatpush1.msra.mxu0 0.0
        %5123 = vmatprep.subr.mxu0 0.0
        %5124 = vmatpush1.msra.mxu0 0.0
        %5125 = vmatprep.subr.mxu0 0.0
        %5126 = vmatpush1.msra.mxu0 0.0
        %5127 = vmatprep.subr.mxu0 0.0
        %5128 = vmatpush1.msra.mxu0 0.0
        %5129 = vmatprep.subr.mxu0 0.0
        %5130 = vmatpush1.msra.mxu0 0.0
        %5131 = vmatprep.subr.mxu0 0.0
        %5132 = vmatpush1.msra.mxu0 0.0
        %5133 = vmatprep.subr.mxu0 0.0
        %5134 = vmatpush1.msra.mxu0 0.0
        %5135 = vmatprep.subr.mxu0 0.0
        %5136 = vmatpush1.msra.mxu0 0.0
        %5137 = vmatprep.subr.mxu0 0.0
        %5138 = vmatpush1.msra.mxu0 0.0
        %5139 = vmatprep.subr.mxu0 0.0
        %5140 = vmatpush1.msra.mxu0 0.0
        %5141 = vmatprep.subr.mxu0 0.0
        %5142 = vmatpush1.msra.mxu0 0.0
        %5143 = vmatprep.subr.mxu0 0.0
        %5144 = vmatpush1.msra.mxu0 0.0
        %5145 = vmatprep.mubr.f32.mxu0 0.0
        %v5146 = vand.u32 %v3793, 4294901760
        %5147 = vmatmul.mubr.f32.gmra.mrb[0].mxu0 %v5146
        %v5148 = vpop.f32.mrb[0].mxu0
        %v5149 = vadd.f32 %v5045, %v5148
        %v5150 = vpop.f32.mrb[0].mxu0
        %v5151 = vadd.f32 %v5047, %v5150
        %5152 = vdwg.mxu0
        %5153 = vmatprep.subr.mxu0 0.0
        %v5154 = vand.u32 %v3796, 4294901760
        %5155 = vmatpush1.msra.mxu0 %v5154
        %5156 = vmatprep.subr.mxu0 0.0
        %v5157 = vand.u32 %v3799, 4294901760
        %5158 = vmatpush1.msra.mxu0 %v5157
        %5159 = vmatprep.subr.mxu0 0.0
        %v5160 = vand.u32 %v3802, 4294901760
        %5161 = vmatpush1.msra.mxu0 %v5160
        %5162 = vmatprep.subr.mxu0 0.0
        %v5163 = vand.u32 %v3805, 4294901760
        %5164 = vmatpush1.msra.mxu0 %v5163
        %5165 = vmatprep.subr.mxu0 0.0
        %v5166 = vand.u32 %v3808, 4294901760
        %5167 = vmatpush1.msra.mxu0 %v5166
        %5168 = vmatprep.subr.mxu0 0.0
        %v5169 = vand.u32 %v3811, 4294901760
        %5170 = vmatpush1.msra.mxu0 %v5169
        %5171 = vmatprep.subr.mxu0 0.0
        %v5172 = vand.u32 %v3814, 4294901760
        %5173 = vmatpush1.msra.mxu0 %v5172
        %5174 = vmatprep.subr.mxu0 0.0
        %v5175 = vand.u32 %v3817, 4294901760
        %5176 = vmatpush1.msra.mxu0 %v5175
        %5177 = vmatprep.subr.mxu0 0.0
        %v5178 = vand.u32 %v3820, 4294901760
        %5179 = vmatpush1.msra.mxu0 %v5178
        %5180 = vmatprep.subr.mxu0 0.0
        %v5181 = vand.u32 %v3823, 4294901760
        %5182 = vmatpush1.msra.mxu0 %v5181
        %5183 = vmatprep.subr.mxu0 0.0
        %v5184 = vand.u32 %v3826, 4294901760
        %5185 = vmatpush1.msra.mxu0 %v5184
        %5186 = vmatprep.subr.mxu0 0.0
        %v5187 = vand.u32 %v3829, 4294901760
        %5188 = vmatpush1.msra.mxu0 %v5187
        %5189 = vmatprep.subr.mxu0 0.0
        %v5190 = vand.u32 %v3832, 4294901760
        %5191 = vmatpush1.msra.mxu0 %v5190
        %5192 = vmatprep.subr.mxu0 0.0
        %v5193 = vand.u32 %v3835, 4294901760
        %5194 = vmatpush1.msra.mxu0 %v5193
        %5195 = vmatprep.subr.mxu0 0.0
        %v5196 = vand.u32 %v3838, 4294901760
        %5197 = vmatpush1.msra.mxu0 %v5196
        %5198 = vmatprep.subr.mxu0 0.0
        %v5199 = vand.u32 %v3841, 4294901760
        %5200 = vmatpush1.msra.mxu0 %v5199
        %5201 = vmatprep.subr.mxu0 0.0
        %5202 = vmatpush1.msra.mxu0 0.0
        %5203 = vmatprep.subr.mxu0 0.0
        %5204 = vmatpush1.msra.mxu0 0.0
        %5205 = vmatprep.subr.mxu0 0.0
        %5206 = vmatpush1.msra.mxu0 0.0
        %5207 = vmatprep.subr.mxu0 0.0
        %5208 = vmatpush1.msra.mxu0 0.0
        %5209 = vmatprep.subr.mxu0 0.0
        %5210 = vmatpush1.msra.mxu0 0.0
        %5211 = vmatprep.subr.mxu0 0.0
        %5212 = vmatpush1.msra.mxu0 0.0
        %5213 = vmatprep.subr.mxu0 0.0
        %5214 = vmatpush1.msra.mxu0 0.0
        %5215 = vmatprep.subr.mxu0 0.0
        %5216 = vmatpush1.msra.mxu0 0.0
        %5217 = vmatprep.subr.mxu0 0.0
        %5218 = vmatpush1.msra.mxu0 0.0
        %5219 = vmatprep.subr.mxu0 0.0
        %5220 = vmatpush1.msra.mxu0 0.0
        %5221 = vmatprep.subr.mxu0 0.0
        %5222 = vmatpush1.msra.mxu0 0.0
        %5223 = vmatprep.subr.mxu0 0.0
        %5224 = vmatpush1.msra.mxu0 0.0
        %5225 = vmatprep.subr.mxu0 0.0
        %5226 = vmatpush1.msra.mxu0 0.0
        %5227 = vmatprep.subr.mxu0 0.0
        %5228 = vmatpush1.msra.mxu0 0.0
        %5229 = vmatprep.subr.mxu0 0.0
        %5230 = vmatpush1.msra.mxu0 0.0
        %5231 = vmatprep.subr.mxu0 0.0
        %5232 = vmatpush1.msra.mxu0 0.0
        %5233 = vmatprep.mubr.f32.mxu0 0.0
        %v5234 = vand.u32 %v3793, 4294901760
        %v5235 = vsub.f32 %v3793, %v5234
        %v5236 = vand.u32 %v5235, 4294901760
        %v5237 = vsub.f32 %v5235, %v5236
        %v5238 = vand.u32 %v5237, 4294901760
        %5239 = vmatmul.mubr.f32.gmra.mrb[0].mxu0 %v5238
        %v5240 = vpop.f32.mrb[0].mxu0
        %v5241 = vadd.f32 0.0, %v5240
        %v5242 = vpop.f32.mrb[0].mxu0
        %5243 = vdwg.mxu0
        %5244 = vmatprep.subr.mxu0 0.0
        %v5245 = vand.u32 %v3796, 4294901760
        %v5246 = vsub.f32 %v3796, %v5245
        %v5247 = vand.u32 %v5246, 4294901760
        %v5248 = vsub.f32 %v5246, %v5247
        %v5249 = vand.u32 %v5248, 4294901760
        %5250 = vmatpush1.msra.mxu0 %v5249
        %5251 = vmatprep.subr.mxu0 0.0
        %v5252 = vand.u32 %v3799, 4294901760
        %v5253 = vsub.f32 %v3799, %v5252
        %v5254 = vand.u32 %v5253, 4294901760
        %v5255 = vsub.f32 %v5253, %v5254
        %v5256 = vand.u32 %v5255, 4294901760
        %5257 = vmatpush1.msra.mxu0 %v5256
        %5258 = vmatprep.subr.mxu0 0.0
        %v5259 = vand.u32 %v3802, 4294901760
        %v5260 = vsub.f32 %v3802, %v5259
        %v5261 = vand.u32 %v5260, 4294901760
        %v5262 = vsub.f32 %v5260, %v5261
        %v5263 = vand.u32 %v5262, 4294901760
        %5264 = vmatpush1.msra.mxu0 %v5263
        %5265 = vmatprep.subr.mxu0 0.0
        %v5266 = vand.u32 %v3805, 4294901760
        %v5267 = vsub.f32 %v3805, %v5266
        %v5268 = vand.u32 %v5267, 4294901760
        %v5269 = vsub.f32 %v5267, %v5268
        %v5270 = vand.u32 %v5269, 4294901760
        %5271 = vmatpush1.msra.mxu0 %v5270
        %5272 = vmatprep.subr.mxu0 0.0
        %v5273 = vand.u32 %v3808, 4294901760
        %v5274 = vsub.f32 %v3808, %v5273
        %v5275 = vand.u32 %v5274, 4294901760
        %v5276 = vsub.f32 %v5274, %v5275
        %v5277 = vand.u32 %v5276, 4294901760
        %5278 = vmatpush1.msra.mxu0 %v5277
        %5279 = vmatprep.subr.mxu0 0.0
        %v5280 = vand.u32 %v3811, 4294901760
        %v5281 = vsub.f32 %v3811, %v5280
        %v5282 = vand.u32 %v5281, 4294901760
        %v5283 = vsub.f32 %v5281, %v5282
        %v5284 = vand.u32 %v5283, 4294901760
        %5285 = vmatpush1.msra.mxu0 %v5284
        %5286 = vmatprep.subr.mxu0 0.0
        %v5287 = vand.u32 %v3814, 4294901760
        %v5288 = vsub.f32 %v3814, %v5287
        %v5289 = vand.u32 %v5288, 4294901760
        %v5290 = vsub.f32 %v5288, %v5289
        %v5291 = vand.u32 %v5290, 4294901760
        %5292 = vmatpush1.msra.mxu0 %v5291
        %5293 = vmatprep.subr.mxu0 0.0
        %v5294 = vand.u32 %v3817, 4294901760
        %v5295 = vsub.f32 %v3817, %v5294
        %v5296 = vand.u32 %v5295, 4294901760
        %v5297 = vsub.f32 %v5295, %v5296
        %v5298 = vand.u32 %v5297, 4294901760
        %5299 = vmatpush1.msra.mxu0 %v5298
        %5300 = vmatprep.subr.mxu0 0.0
        %v5301 = vand.u32 %v3820, 4294901760
        %v5302 = vsub.f32 %v3820, %v5301
        %v5303 = vand.u32 %v5302, 4294901760
        %v5304 = vsub.f32 %v5302, %v5303
        %v5305 = vand.u32 %v5304, 4294901760
        %5306 = vmatpush1.msra.mxu0 %v5305
        %5307 = vmatprep.subr.mxu0 0.0
        %v5308 = vand.u32 %v3823, 4294901760
        %v5309 = vsub.f32 %v3823, %v5308
        %v5310 = vand.u32 %v5309, 4294901760
        %v5311 = vsub.f32 %v5309, %v5310
        %v5312 = vand.u32 %v5311, 4294901760
        %5313 = vmatpush1.msra.mxu0 %v5312
        %5314 = vmatprep.subr.mxu0 0.0
        %v5315 = vand.u32 %v3826, 4294901760
        %v5316 = vsub.f32 %v3826, %v5315
        %v5317 = vand.u32 %v5316, 4294901760
        %v5318 = vsub.f32 %v5316, %v5317
        %v5319 = vand.u32 %v5318, 4294901760
        %5320 = vmatpush1.msra.mxu0 %v5319
        %5321 = vmatprep.subr.mxu0 0.0
        %v5322 = vand.u32 %v3829, 4294901760
        %v5323 = vsub.f32 %v3829, %v5322
        %v5324 = vand.u32 %v5323, 4294901760
        %v5325 = vsub.f32 %v5323, %v5324
        %v5326 = vand.u32 %v5325, 4294901760
        %5327 = vmatpush1.msra.mxu0 %v5326
        %5328 = vmatprep.subr.mxu0 0.0
        %v5329 = vand.u32 %v3832, 4294901760
        %v5330 = vsub.f32 %v3832, %v5329
        %v5331 = vand.u32 %v5330, 4294901760
        %v5332 = vsub.f32 %v5330, %v5331
        %v5333 = vand.u32 %v5332, 4294901760
        %5334 = vmatpush1.msra.mxu0 %v5333
        %5335 = vmatprep.subr.mxu0 0.0
        %v5336 = vand.u32 %v3835, 4294901760
        %v5337 = vsub.f32 %v3835, %v5336
        %v5338 = vand.u32 %v5337, 4294901760
        %v5339 = vsub.f32 %v5337, %v5338
        %v5340 = vand.u32 %v5339, 4294901760
        %5341 = vmatpush1.msra.mxu0 %v5340
        %5342 = vmatprep.subr.mxu0 0.0
        %v5343 = vand.u32 %v3838, 4294901760
        %v5344 = vsub.f32 %v3838, %v5343
        %v5345 = vand.u32 %v5344, 4294901760
        %v5346 = vsub.f32 %v5344, %v5345
        %v5347 = vand.u32 %v5346, 4294901760
        %5348 = vmatpush1.msra.mxu0 %v5347
        %5349 = vmatprep.subr.mxu0 0.0
        %v5350 = vand.u32 %v3841, 4294901760
        %v5351 = vsub.f32 %v3841, %v5350
        %v5352 = vand.u32 %v5351, 4294901760
        %v5353 = vsub.f32 %v5351, %v5352
        %v5354 = vand.u32 %v5353, 4294901760
        %5355 = vmatpush1.msra.mxu0 %v5354
        %5356 = vmatprep.subr.mxu0 0.0
        %5357 = vmatpush1.msra.mxu0 0.0
        %5358 = vmatprep.subr.mxu0 0.0
        %5359 = vmatpush1.msra.mxu0 0.0
        %5360 = vmatprep.subr.mxu0 0.0
        %5361 = vmatpush1.msra.mxu0 0.0
        %5362 = vmatprep.subr.mxu0 0.0
        %5363 = vmatpush1.msra.mxu0 0.0
        %5364 = vmatprep.subr.mxu0 0.0
        %5365 = vmatpush1.msra.mxu0 0.0
        %5366 = vmatprep.subr.mxu0 0.0
        %5367 = vmatpush1.msra.mxu0 0.0
        %5368 = vmatprep.subr.mxu0 0.0
        %5369 = vmatpush1.msra.mxu0 0.0
        %5370 = vmatprep.subr.mxu0 0.0
        %5371 = vmatpush1.msra.mxu0 0.0
        %5372 = vmatprep.subr.mxu0 0.0
        %5373 = vmatpush1.msra.mxu0 0.0
        %5374 = vmatprep.subr.mxu0 0.0
        %5375 = vmatpush1.msra.mxu0 0.0
        %5376 = vmatprep.subr.mxu0 0.0
        %5377 = vmatpush1.msra.mxu0 0.0
        %5378 = vmatprep.subr.mxu0 0.0
        %5379 = vmatpush1.msra.mxu0 0.0
        %5380 = vmatprep.subr.mxu0 0.0
        %5381 = vmatpush1.msra.mxu0 0.0
        %5382 = vmatprep.subr.mxu0 0.0
        %5383 = vmatpush1.msra.mxu0 0.0
        %5384 = vmatprep.subr.mxu0 0.0
        %5385 = vmatpush1.msra.mxu0 0.0
        %5386 = vmatprep.subr.mxu0 0.0
        %5387 = vmatpush1.msra.mxu0 0.0
        %5388 = vmatprep.mubr.f32.mxu0 0.0
        %v5389 = vand.u32 %v3793, 4294901760
        %5390 = vmatmul.mubr.f32.gmra.mrb[0].mxu0 %v5389
        %v5391 = vpop.f32.mrb[0].mxu0
        %v5392 = vadd.f32 %v5241, %v5391
        %v5393 = vpop.f32.mrb[0].mxu0
        %5394 = vdwg.mxu0
        %5395 = vmatprep.subr.mxu0 0.0
        %v5396 = vand.u32 %v3796, 4294901760
        %v5397 = vsub.f32 %v3796, %v5396
        %5398 = vmatpush1.msra.mxu0 %v5397
        %5399 = vmatprep.subr.mxu0 0.0
        %v5400 = vand.u32 %v3799, 4294901760
        %v5401 = vsub.f32 %v3799, %v5400
        %5402 = vmatpush1.msra.mxu0 %v5401
        %5403 = vmatprep.subr.mxu0 0.0
        %v5404 = vand.u32 %v3802, 4294901760
        %v5405 = vsub.f32 %v3802, %v5404
        %5406 = vmatpush1.msra.mxu0 %v5405
        %5407 = vmatprep.subr.mxu0 0.0
        %v5408 = vand.u32 %v3805, 4294901760
        %v5409 = vsub.f32 %v3805, %v5408
        %5410 = vmatpush1.msra.mxu0 %v5409
        %5411 = vmatprep.subr.mxu0 0.0
        %v5412 = vand.u32 %v3808, 4294901760
        %v5413 = vsub.f32 %v3808, %v5412
        %5414 = vmatpush1.msra.mxu0 %v5413
        %5415 = vmatprep.subr.mxu0 0.0
        %v5416 = vand.u32 %v3811, 4294901760
        %v5417 = vsub.f32 %v3811, %v5416
        %5418 = vmatpush1.msra.mxu0 %v5417
        %5419 = vmatprep.subr.mxu0 0.0
        %v5420 = vand.u32 %v3814, 4294901760
        %v5421 = vsub.f32 %v3814, %v5420
        %5422 = vmatpush1.msra.mxu0 %v5421
        %5423 = vmatprep.subr.mxu0 0.0
        %v5424 = vand.u32 %v3817, 4294901760
        %v5425 = vsub.f32 %v3817, %v5424
        %5426 = vmatpush1.msra.mxu0 %v5425
        %5427 = vmatprep.subr.mxu0 0.0
        %v5428 = vand.u32 %v3820, 4294901760
        %v5429 = vsub.f32 %v3820, %v5428
        %5430 = vmatpush1.msra.mxu0 %v5429
        %5431 = vmatprep.subr.mxu0 0.0
        %v5432 = vand.u32 %v3823, 4294901760
        %v5433 = vsub.f32 %v3823, %v5432
        %5434 = vmatpush1.msra.mxu0 %v5433
        %5435 = vmatprep.subr.mxu0 0.0
        %v5436 = vand.u32 %v3826, 4294901760
        %v5437 = vsub.f32 %v3826, %v5436
        %5438 = vmatpush1.msra.mxu0 %v5437
        %5439 = vmatprep.subr.mxu0 0.0
        %v5440 = vand.u32 %v3829, 4294901760
        %v5441 = vsub.f32 %v3829, %v5440
        %5442 = vmatpush1.msra.mxu0 %v5441
        %5443 = vmatprep.subr.mxu0 0.0
        %v5444 = vand.u32 %v3832, 4294901760
        %v5445 = vsub.f32 %v3832, %v5444
        %5446 = vmatpush1.msra.mxu0 %v5445
        %5447 = vmatprep.subr.mxu0 0.0
        %v5448 = vand.u32 %v3835, 4294901760
        %v5449 = vsub.f32 %v3835, %v5448
        %5450 = vmatpush1.msra.mxu0 %v5449
        %5451 = vmatprep.subr.mxu0 0.0
        %v5452 = vand.u32 %v3838, 4294901760
        %v5453 = vsub.f32 %v3838, %v5452
        %5454 = vmatpush1.msra.mxu0 %v5453
        %5455 = vmatprep.subr.mxu0 0.0
        %v5456 = vand.u32 %v3841, 4294901760
        %v5457 = vsub.f32 %v3841, %v5456
        %5458 = vmatpush1.msra.mxu0 %v5457
        %5459 = vmatprep.subr.mxu0 0.0
        %5460 = vmatpush1.msra.mxu0 0.0
        %5461 = vmatprep.subr.mxu0 0.0
        %5462 = vmatpush1.msra.mxu0 0.0
        %5463 = vmatprep.subr.mxu0 0.0
        %5464 = vmatpush1.msra.mxu0 0.0
        %5465 = vmatprep.subr.mxu0 0.0
        %5466 = vmatpush1.msra.mxu0 0.0
        %5467 = vmatprep.subr.mxu0 0.0
        %5468 = vmatpush1.msra.mxu0 0.0
        %5469 = vmatprep.subr.mxu0 0.0
        %5470 = vmatpush1.msra.mxu0 0.0
        %5471 = vmatprep.subr.mxu0 0.0
        %5472 = vmatpush1.msra.mxu0 0.0
        %5473 = vmatprep.subr.mxu0 0.0
        %5474 = vmatpush1.msra.mxu0 0.0
        %5475 = vmatprep.subr.mxu0 0.0
        %5476 = vmatpush1.msra.mxu0 0.0
        %5477 = vmatprep.subr.mxu0 0.0
        %5478 = vmatpush1.msra.mxu0 0.0
        %5479 = vmatprep.subr.mxu0 0.0
        %5480 = vmatpush1.msra.mxu0 0.0
        %5481 = vmatprep.subr.mxu0 0.0
        %5482 = vmatpush1.msra.mxu0 0.0
        %5483 = vmatprep.subr.mxu0 0.0
        %5484 = vmatpush1.msra.mxu0 0.0
        %5485 = vmatprep.subr.mxu0 0.0
        %5486 = vmatpush1.msra.mxu0 0.0
        %5487 = vmatprep.subr.mxu0 0.0
        %5488 = vmatpush1.msra.mxu0 0.0
        %5489 = vmatprep.subr.mxu0 0.0
        %5490 = vmatpush1.msra.mxu0 0.0
        %5491 = vmatprep.mubr.f32.mxu0 0.0
        %v5492 = vand.u32 %v3793, 4294901760
        %v5493 = vsub.f32 %v3793, %v5492
        %5494 = vmatmul.mubr.f32.gmra.mrb[0].mxu0 %v5493
        %v5495 = vpop.f32.mrb[0].mxu0
        %v5496 = vadd.f32 %v5392, %v5495
        %v5497 = vpop.f32.mrb[0].mxu0
        %5498 = vdwg.mxu0
        %5499 = vmatprep.subr.mxu0 0.0
        %v5500 = vand.u32 %v3796, 4294901760
        %5501 = vmatpush1.msra.mxu0 %v5500
        %5502 = vmatprep.subr.mxu0 0.0
        %v5503 = vand.u32 %v3799, 4294901760
        %5504 = vmatpush1.msra.mxu0 %v5503
        %5505 = vmatprep.subr.mxu0 0.0
        %v5506 = vand.u32 %v3802, 4294901760
        %5507 = vmatpush1.msra.mxu0 %v5506
        %5508 = vmatprep.subr.mxu0 0.0
        %v5509 = vand.u32 %v3805, 4294901760
        %5510 = vmatpush1.msra.mxu0 %v5509
        %5511 = vmatprep.subr.mxu0 0.0
        %v5512 = vand.u32 %v3808, 4294901760
        %5513 = vmatpush1.msra.mxu0 %v5512
        %5514 = vmatprep.subr.mxu0 0.0
        %v5515 = vand.u32 %v3811, 4294901760
        %5516 = vmatpush1.msra.mxu0 %v5515
        %5517 = vmatprep.subr.mxu0 0.0
        %v5518 = vand.u32 %v3814, 4294901760
        %5519 = vmatpush1.msra.mxu0 %v5518
        %5520 = vmatprep.subr.mxu0 0.0
        %v5521 = vand.u32 %v3817, 4294901760
        %5522 = vmatpush1.msra.mxu0 %v5521
        %5523 = vmatprep.subr.mxu0 0.0
        %v5524 = vand.u32 %v3820, 4294901760
        %5525 = vmatpush1.msra.mxu0 %v5524
        %5526 = vmatprep.subr.mxu0 0.0
        %v5527 = vand.u32 %v3823, 4294901760
        %5528 = vmatpush1.msra.mxu0 %v5527
        %5529 = vmatprep.subr.mxu0 0.0
        %v5530 = vand.u32 %v3826, 4294901760
        %5531 = vmatpush1.msra.mxu0 %v5530
        %5532 = vmatprep.subr.mxu0 0.0
        %v5533 = vand.u32 %v3829, 4294901760
        %5534 = vmatpush1.msra.mxu0 %v5533
        %5535 = vmatprep.subr.mxu0 0.0
        %v5536 = vand.u32 %v3832, 4294901760
        %5537 = vmatpush1.msra.mxu0 %v5536
        %5538 = vmatprep.subr.mxu0 0.0
        %v5539 = vand.u32 %v3835, 4294901760
        %5540 = vmatpush1.msra.mxu0 %v5539
        %5541 = vmatprep.subr.mxu0 0.0
        %v5542 = vand.u32 %v3838, 4294901760
        %5543 = vmatpush1.msra.mxu0 %v5542
        %5544 = vmatprep.subr.mxu0 0.0
        %v5545 = vand.u32 %v3841, 4294901760
        %5546 = vmatpush1.msra.mxu0 %v5545
        %5547 = vmatprep.subr.mxu0 0.0
        %5548 = vmatpush1.msra.mxu0 0.0
        %5549 = vmatprep.subr.mxu0 0.0
        %5550 = vmatpush1.msra.mxu0 0.0
        %5551 = vmatprep.subr.mxu0 0.0
        %5552 = vmatpush1.msra.mxu0 0.0
        %5553 = vmatprep.subr.mxu0 0.0
        %5554 = vmatpush1.msra.mxu0 0.0
        %5555 = vmatprep.subr.mxu0 0.0
        %5556 = vmatpush1.msra.mxu0 0.0
        %5557 = vmatprep.subr.mxu0 0.0
        %5558 = vmatpush1.msra.mxu0 0.0
        %5559 = vmatprep.subr.mxu0 0.0
        %5560 = vmatpush1.msra.mxu0 0.0
        %5561 = vmatprep.subr.mxu0 0.0
        %5562 = vmatpush1.msra.mxu0 0.0
        %5563 = vmatprep.subr.mxu0 0.0
        %5564 = vmatpush1.msra.mxu0 0.0
        %5565 = vmatprep.subr.mxu0 0.0
        %5566 = vmatpush1.msra.mxu0 0.0
        %5567 = vmatprep.subr.mxu0 0.0
        %5568 = vmatpush1.msra.mxu0 0.0
        %5569 = vmatprep.subr.mxu0 0.0
        %5570 = vmatpush1.msra.mxu0 0.0
        %5571 = vmatprep.subr.mxu0 0.0
        %5572 = vmatpush1.msra.mxu0 0.0
        %5573 = vmatprep.subr.mxu0 0.0
        %5574 = vmatpush1.msra.mxu0 0.0
        %5575 = vmatprep.subr.mxu0 0.0
        %5576 = vmatpush1.msra.mxu0 0.0
        %5577 = vmatprep.subr.mxu0 0.0
        %5578 = vmatpush1.msra.mxu0 0.0
        %5579 = vmatprep.mubr.f32.mxu0 0.0
        %v5580 = vand.u32 %v3793, 4294901760
        %v5581 = vsub.f32 %v3793, %v5580
        %v5582 = vand.u32 %v5581, 4294901760
        %5583 = vmatmul.mubr.f32.gmra.mrb[0].mxu0 %v5582
        %v5584 = vpop.f32.mrb[0].mxu0
        %v5585 = vadd.f32 %v5496, %v5584
        %v5586 = vpop.f32.mrb[0].mxu0
        %5587 = vdwg.mxu0
        %5588 = vmatprep.subr.mxu0 0.0
        %v5589 = vand.u32 %v3796, 4294901760
        %v5590 = vsub.f32 %v3796, %v5589
        %v5591 = vand.u32 %v5590, 4294901760
        %5592 = vmatpush1.msra.mxu0 %v5591
        %5593 = vmatprep.subr.mxu0 0.0
        %v5594 = vand.u32 %v3799, 4294901760
        %v5595 = vsub.f32 %v3799, %v5594
        %v5596 = vand.u32 %v5595, 4294901760
        %5597 = vmatpush1.msra.mxu0 %v5596
        %5598 = vmatprep.subr.mxu0 0.0
        %v5599 = vand.u32 %v3802, 4294901760
        %v5600 = vsub.f32 %v3802, %v5599
        %v5601 = vand.u32 %v5600, 4294901760
        %5602 = vmatpush1.msra.mxu0 %v5601
        %5603 = vmatprep.subr.mxu0 0.0
        %v5604 = vand.u32 %v3805, 4294901760
        %v5605 = vsub.f32 %v3805, %v5604
        %v5606 = vand.u32 %v5605, 4294901760
        %5607 = vmatpush1.msra.mxu0 %v5606
        %5608 = vmatprep.subr.mxu0 0.0
        %v5609 = vand.u32 %v3808, 4294901760
        %v5610 = vsub.f32 %v3808, %v5609
        %v5611 = vand.u32 %v5610, 4294901760
        %5612 = vmatpush1.msra.mxu0 %v5611
        %5613 = vmatprep.subr.mxu0 0.0
        %v5614 = vand.u32 %v3811, 4294901760
        %v5615 = vsub.f32 %v3811, %v5614
        %v5616 = vand.u32 %v5615, 4294901760
        %5617 = vmatpush1.msra.mxu0 %v5616
        %5618 = vmatprep.subr.mxu0 0.0
        %v5619 = vand.u32 %v3814, 4294901760
        %v5620 = vsub.f32 %v3814, %v5619
        %v5621 = vand.u32 %v5620, 4294901760
        %5622 = vmatpush1.msra.mxu0 %v5621
        %5623 = vmatprep.subr.mxu0 0.0
        %v5624 = vand.u32 %v3817, 4294901760
        %v5625 = vsub.f32 %v3817, %v5624
        %v5626 = vand.u32 %v5625, 4294901760
        %5627 = vmatpush1.msra.mxu0 %v5626
        %5628 = vmatprep.subr.mxu0 0.0
        %v5629 = vand.u32 %v3820, 4294901760
        %v5630 = vsub.f32 %v3820, %v5629
        %v5631 = vand.u32 %v5630, 4294901760
        %5632 = vmatpush1.msra.mxu0 %v5631
        %5633 = vmatprep.subr.mxu0 0.0
        %v5634 = vand.u32 %v3823, 4294901760
        %v5635 = vsub.f32 %v3823, %v5634
        %v5636 = vand.u32 %v5635, 4294901760
        %5637 = vmatpush1.msra.mxu0 %v5636
        %5638 = vmatprep.subr.mxu0 0.0
        %v5639 = vand.u32 %v3826, 4294901760
        %v5640 = vsub.f32 %v3826, %v5639
        %v5641 = vand.u32 %v5640, 4294901760
        %5642 = vmatpush1.msra.mxu0 %v5641
        %5643 = vmatprep.subr.mxu0 0.0
        %v5644 = vand.u32 %v3829, 4294901760
        %v5645 = vsub.f32 %v3829, %v5644
        %v5646 = vand.u32 %v5645, 4294901760
        %5647 = vmatpush1.msra.mxu0 %v5646
        %5648 = vmatprep.subr.mxu0 0.0
        %v5649 = vand.u32 %v3832, 4294901760
        %v5650 = vsub.f32 %v3832, %v5649
        %v5651 = vand.u32 %v5650, 4294901760
        %5652 = vmatpush1.msra.mxu0 %v5651
        %5653 = vmatprep.subr.mxu0 0.0
        %v5654 = vand.u32 %v3835, 4294901760
        %v5655 = vsub.f32 %v3835, %v5654
        %v5656 = vand.u32 %v5655, 4294901760
        %5657 = vmatpush1.msra.mxu0 %v5656
        %5658 = vmatprep.subr.mxu0 0.0
        %v5659 = vand.u32 %v3838, 4294901760
        %v5660 = vsub.f32 %v3838, %v5659
        %v5661 = vand.u32 %v5660, 4294901760
        %5662 = vmatpush1.msra.mxu0 %v5661
        %5663 = vmatprep.subr.mxu0 0.0
        %v5664 = vand.u32 %v3841, 4294901760
        %v5665 = vsub.f32 %v3841, %v5664
        %v5666 = vand.u32 %v5665, 4294901760
        %5667 = vmatpush1.msra.mxu0 %v5666
        %5668 = vmatprep.subr.mxu0 0.0
        %5669 = vmatpush1.msra.mxu0 0.0
        %5670 = vmatprep.subr.mxu0 0.0
        %5671 = vmatpush1.msra.mxu0 0.0
        %5672 = vmatprep.subr.mxu0 0.0
        %5673 = vmatpush1.msra.mxu0 0.0
        %5674 = vmatprep.subr.mxu0 0.0
        %5675 = vmatpush1.msra.mxu0 0.0
        %5676 = vmatprep.subr.mxu0 0.0
        %5677 = vmatpush1.msra.mxu0 0.0
        %5678 = vmatprep.subr.mxu0 0.0
        %5679 = vmatpush1.msra.mxu0 0.0
        %5680 = vmatprep.subr.mxu0 0.0
        %5681 = vmatpush1.msra.mxu0 0.0
        %5682 = vmatprep.subr.mxu0 0.0
        %5683 = vmatpush1.msra.mxu0 0.0
        %5684 = vmatprep.subr.mxu0 0.0
        %5685 = vmatpush1.msra.mxu0 0.0
        %5686 = vmatprep.subr.mxu0 0.0
        %5687 = vmatpush1.msra.mxu0 0.0
        %5688 = vmatprep.subr.mxu0 0.0
        %5689 = vmatpush1.msra.mxu0 0.0
        %5690 = vmatprep.subr.mxu0 0.0
        %5691 = vmatpush1.msra.mxu0 0.0
        %5692 = vmatprep.subr.mxu0 0.0
        %5693 = vmatpush1.msra.mxu0 0.0
        %5694 = vmatprep.subr.mxu0 0.0
        %5695 = vmatpush1.msra.mxu0 0.0
        %5696 = vmatprep.subr.mxu0 0.0
        %5697 = vmatpush1.msra.mxu0 0.0
        %5698 = vmatprep.subr.mxu0 0.0
        %5699 = vmatpush1.msra.mxu0 0.0
        %5700 = vmatprep.mubr.f32.mxu0 0.0
        %v5701 = vand.u32 %v3793, 4294901760
        %5702 = vmatmul.mubr.f32.gmra.mrb[0].mxu0 %v5701
        %v5703 = vpop.f32.mrb[0].mxu0
        %v5704 = vadd.f32 %v5585, %v5703
        %v5705 = vpop.f32.mrb[0].mxu0
        %5706 = vdwg.mxu0
        %5707 = vmatprep.subr.mxu0 0.0
        %v5708 = vand.u32 %v3796, 4294901760
        %5709 = vmatpush1.msra.mxu0 %v5708
        %5710 = vmatprep.subr.mxu0 0.0
        %v5711 = vand.u32 %v3799, 4294901760
        %5712 = vmatpush1.msra.mxu0 %v5711
        %5713 = vmatprep.subr.mxu0 0.0
        %v5714 = vand.u32 %v3802, 4294901760
        %5715 = vmatpush1.msra.mxu0 %v5714
        %5716 = vmatprep.subr.mxu0 0.0
        %v5717 = vand.u32 %v3805, 4294901760
        %5718 = vmatpush1.msra.mxu0 %v5717
        %5719 = vmatprep.subr.mxu0 0.0
        %v5720 = vand.u32 %v3808, 4294901760
        %5721 = vmatpush1.msra.mxu0 %v5720
        %5722 = vmatprep.subr.mxu0 0.0
        %v5723 = vand.u32 %v3811, 4294901760
        %5724 = vmatpush1.msra.mxu0 %v5723
        %5725 = vmatprep.subr.mxu0 0.0
        %v5726 = vand.u32 %v3814, 4294901760
        %5727 = vmatpush1.msra.mxu0 %v5726
        %5728 = vmatprep.subr.mxu0 0.0
        %v5729 = vand.u32 %v3817, 4294901760
        %5730 = vmatpush1.msra.mxu0 %v5729
        %5731 = vmatprep.subr.mxu0 0.0
        %v5732 = vand.u32 %v3820, 4294901760
        %5733 = vmatpush1.msra.mxu0 %v5732
        %5734 = vmatprep.subr.mxu0 0.0
        %v5735 = vand.u32 %v3823, 4294901760
        %5736 = vmatpush1.msra.mxu0 %v5735
        %5737 = vmatprep.subr.mxu0 0.0
        %v5738 = vand.u32 %v3826, 4294901760
        %5739 = vmatpush1.msra.mxu0 %v5738
        %5740 = vmatprep.subr.mxu0 0.0
        %v5741 = vand.u32 %v3829, 4294901760
        %5742 = vmatpush1.msra.mxu0 %v5741
        %5743 = vmatprep.subr.mxu0 0.0
        %v5744 = vand.u32 %v3832, 4294901760
        %5745 = vmatpush1.msra.mxu0 %v5744
        %5746 = vmatprep.subr.mxu0 0.0
        %v5747 = vand.u32 %v3835, 4294901760
        %5748 = vmatpush1.msra.mxu0 %v5747
        %5749 = vmatprep.subr.mxu0 0.0
        %v5750 = vand.u32 %v3838, 4294901760
        %5751 = vmatpush1.msra.mxu0 %v5750
        %5752 = vmatprep.subr.mxu0 0.0
        %v5753 = vand.u32 %v3841, 4294901760
        %5754 = vmatpush1.msra.mxu0 %v5753
        %5755 = vmatprep.subr.mxu0 0.0
        %5756 = vmatpush1.msra.mxu0 0.0
        %5757 = vmatprep.subr.mxu0 0.0
        %5758 = vmatpush1.msra.mxu0 0.0
        %5759 = vmatprep.subr.mxu0 0.0
        %5760 = vmatpush1.msra.mxu0 0.0
        %5761 = vmatprep.subr.mxu0 0.0
        %5762 = vmatpush1.msra.mxu0 0.0
        %5763 = vmatprep.subr.mxu0 0.0
        %5764 = vmatpush1.msra.mxu0 0.0
        %5765 = vmatprep.subr.mxu0 0.0
        %5766 = vmatpush1.msra.mxu0 0.0
        %5767 = vmatprep.subr.mxu0 0.0
        %5768 = vmatpush1.msra.mxu0 0.0
        %5769 = vmatprep.subr.mxu0 0.0
        %5770 = vmatpush1.msra.mxu0 0.0
        %5771 = vmatprep.subr.mxu0 0.0
        %5772 = vmatpush1.msra.mxu0 0.0
        %5773 = vmatprep.subr.mxu0 0.0
        %5774 = vmatpush1.msra.mxu0 0.0
        %5775 = vmatprep.subr.mxu0 0.0
        %5776 = vmatpush1.msra.mxu0 0.0
        %5777 = vmatprep.subr.mxu0 0.0
        %5778 = vmatpush1.msra.mxu0 0.0
        %5779 = vmatprep.subr.mxu0 0.0
        %5780 = vmatpush1.msra.mxu0 0.0
        %5781 = vmatprep.subr.mxu0 0.0
        %5782 = vmatpush1.msra.mxu0 0.0
        %5783 = vmatprep.subr.mxu0 0.0
        %5784 = vmatpush1.msra.mxu0 0.0
        %5785 = vmatprep.subr.mxu0 0.0
        %5786 = vmatpush1.msra.mxu0 0.0
        %5787 = vmatprep.mubr.f32.mxu0 0.0
        %v5788 = vand.u32 %v3793, 4294901760
        %5789 = vmatmul.mubr.f32.gmra.mrb[0].mxu0 %v5788
        %v5790 = vpop.f32.mrb[0].mxu0
        %v5791 = vadd.f32 %v5704, %v5790
        %v5792 = vpop.f32.mrb[0].mxu0
        %5793 = vdwg.mxu0
        %v5794 = vsel %vm896, %v4297, inf
        %5795 = vmin.xlane.f32.xlu0 %v5794
        %v5796 = vpop.xlane.xlu0 %5795
        %vm5797 = vcmp.le.f32.partialorder %v4297, %v5796
        %v5798 = vsel %vm5797, %v399, 1e+30
        %v5799 = vsel %vm896, %v5798, inf
        %5800 = vmin.xlane.f32.xlu0 %v5799
        %v5801 = vpop.xlane.xlu0 %5800
        %vm5802 = vcmp.eq.f32.partialorder %v399, %v5801
        %v5803 = vsel %vm5802, 1, 0
        %v5804 = vcvt.s32.f32 %v5803
        %v5805 = vsel %vm5802, 1e+30, %v4297
        %v5806 = vsel %vm896, %v5805, inf
        %5807 = vmin.xlane.f32.xlu0 %v5806
        %v5808 = vpop.xlane.xlu0 %5807
        %vm5809 = vcmp.le.f32.partialorder %v5805, %v5808
        %v5810 = vsel %vm5809, %v399, 1e+30
        %v5811 = vsel %vm896, %v5810, inf
        %5812 = vmin.xlane.f32.xlu0 %v5811
        %v5813 = vpop.xlane.xlu0 %5812
        %vm5814 = vcmp.eq.f32.partialorder %v399, %v5813
        %v5815 = vsel %vm5814, 1, 0
        %v5816 = vcvt.s32.f32 %v5815
        %v5818 = vsel %vm896, %v5816, 0
        %5820 = vmatprep.subr.mxu0 0.0
        %v5821 = vand.u32 %v5151, 4294901760
        %5822 = vmatpush1.msra.mxu0 %v5821
        %5823 = vmatprep.subr.mxu0 0.0
        %5824 = vmatpush1.msra.mxu0 0.0
        %5825 = vmatprep.subr.mxu0 0.0
        %5826 = vmatpush1.msra.mxu0 0.0
        %5827 = vmatprep.subr.mxu0 0.0
        %5828 = vmatpush1.msra.mxu0 0.0
        %5829 = vmatprep.subr.mxu0 0.0
        %5830 = vmatpush1.msra.mxu0 0.0
        %5831 = vmatprep.subr.mxu0 0.0
        %5832 = vmatpush1.msra.mxu0 0.0
        %5833 = vmatprep.subr.mxu0 0.0
        %5834 = vmatpush1.msra.mxu0 0.0
        %5835 = vmatprep.subr.mxu0 0.0
        %5836 = vmatpush1.msra.mxu0 0.0
        %5837 = vmatprep.subr.mxu0 0.0
        %5838 = vmatpush1.msra.mxu0 0.0
        %5839 = vmatprep.subr.mxu0 0.0
        %5840 = vmatpush1.msra.mxu0 0.0
        %5841 = vmatprep.subr.mxu0 0.0
        %5842 = vmatpush1.msra.mxu0 0.0
        %5843 = vmatprep.subr.mxu0 0.0
        %5844 = vmatpush1.msra.mxu0 0.0
        %5845 = vmatprep.subr.mxu0 0.0
        %5846 = vmatpush1.msra.mxu0 0.0
        %5847 = vmatprep.subr.mxu0 0.0
        %5848 = vmatpush1.msra.mxu0 0.0
        %5849 = vmatprep.subr.mxu0 0.0
        %5850 = vmatpush1.msra.mxu0 0.0
        %5851 = vmatprep.subr.mxu0 0.0
        %5852 = vmatpush1.msra.mxu0 0.0
        %5853 = vmatprep.subr.mxu0 0.0
        %5854 = vmatpush1.msra.mxu0 0.0
        %5855 = vmatprep.subr.mxu0 0.0
        %5856 = vmatpush1.msra.mxu0 0.0
        %5857 = vmatprep.subr.mxu0 0.0
        %5858 = vmatpush1.msra.mxu0 0.0
        %5859 = vmatprep.subr.mxu0 0.0
        %5860 = vmatpush1.msra.mxu0 0.0
        %5861 = vmatprep.subr.mxu0 0.0
        %5862 = vmatpush1.msra.mxu0 0.0
        %5863 = vmatprep.subr.mxu0 0.0
        %5864 = vmatpush1.msra.mxu0 0.0
        %5865 = vmatprep.subr.mxu0 0.0
        %5866 = vmatpush1.msra.mxu0 0.0
        %5867 = vmatprep.subr.mxu0 0.0
        %5868 = vmatpush1.msra.mxu0 0.0
        %5869 = vmatprep.subr.mxu0 0.0
        %5870 = vmatpush1.msra.mxu0 0.0
        %5871 = vmatprep.subr.mxu0 0.0
        %5872 = vmatpush1.msra.mxu0 0.0
        %5873 = vmatprep.subr.mxu0 0.0
        %5874 = vmatpush1.msra.mxu0 0.0
        %5875 = vmatprep.subr.mxu0 0.0
        %5876 = vmatpush1.msra.mxu0 0.0
        %5877 = vmatprep.subr.mxu0 0.0
        %5878 = vmatpush1.msra.mxu0 0.0
        %5879 = vmatprep.subr.mxu0 0.0
        %5880 = vmatpush1.msra.mxu0 0.0
        %5881 = vmatprep.subr.mxu0 0.0
        %5882 = vmatpush1.msra.mxu0 0.0
        %5883 = vmatprep.subr.mxu0 0.0
        %5884 = vmatpush1.msra.mxu0 0.0
        %5885 = vmatprep.mubr.f32.mxu0 0.0
        %v5886 = vand.u32 %v5818, 4294901760
        %v5887 = vsub.f32 %v5818, %v5886
        %v5888 = vand.u32 %v5887, 4294901760
        %v5889 = vsub.f32 %v5887, %v5888
        %v5890 = vand.u32 %v5889, 4294901760
        %5891 = vmatmul.mubr.f32.gmra.mrb[0].mxu0 %v5890
        %v5892 = vpop.f32.mrb[0].mxu0
        %v5893 = vadd.f32 0.0, %v5892
        %v5894 = vpop.f32.mrb[0].mxu0
        %5895 = vdwg.mxu0
        %5896 = vmatprep.subr.mxu0 0.0
        %v5897 = vand.u32 %v5151, 4294901760
        %v5898 = vsub.f32 %v5151, %v5897
        %v5899 = vand.u32 %v5898, 4294901760
        %v5900 = vsub.f32 %v5898, %v5899
        %v5901 = vand.u32 %v5900, 4294901760
        %5902 = vmatpush1.msra.mxu0 %v5901
        %5903 = vmatprep.subr.mxu0 0.0
        %5904 = vmatpush1.msra.mxu0 0.0
        %5905 = vmatprep.subr.mxu0 0.0
        %5906 = vmatpush1.msra.mxu0 0.0
        %5907 = vmatprep.subr.mxu0 0.0
        %5908 = vmatpush1.msra.mxu0 0.0
        %5909 = vmatprep.subr.mxu0 0.0
        %5910 = vmatpush1.msra.mxu0 0.0
        %5911 = vmatprep.subr.mxu0 0.0
        %5912 = vmatpush1.msra.mxu0 0.0
        %5913 = vmatprep.subr.mxu0 0.0
        %5914 = vmatpush1.msra.mxu0 0.0
        %5915 = vmatprep.subr.mxu0 0.0
        %5916 = vmatpush1.msra.mxu0 0.0
        %5917 = vmatprep.subr.mxu0 0.0
        %5918 = vmatpush1.msra.mxu0 0.0
        %5919 = vmatprep.subr.mxu0 0.0
        %5920 = vmatpush1.msra.mxu0 0.0
        %5921 = vmatprep.subr.mxu0 0.0
        %5922 = vmatpush1.msra.mxu0 0.0
        %5923 = vmatprep.subr.mxu0 0.0
        %5924 = vmatpush1.msra.mxu0 0.0
        %5925 = vmatprep.subr.mxu0 0.0
        %5926 = vmatpush1.msra.mxu0 0.0
        %5927 = vmatprep.subr.mxu0 0.0
        %5928 = vmatpush1.msra.mxu0 0.0
        %5929 = vmatprep.subr.mxu0 0.0
        %5930 = vmatpush1.msra.mxu0 0.0
        %5931 = vmatprep.subr.mxu0 0.0
        %5932 = vmatpush1.msra.mxu0 0.0
        %5933 = vmatprep.subr.mxu0 0.0
        %5934 = vmatpush1.msra.mxu0 0.0
        %5935 = vmatprep.subr.mxu0 0.0
        %5936 = vmatpush1.msra.mxu0 0.0
        %5937 = vmatprep.subr.mxu0 0.0
        %5938 = vmatpush1.msra.mxu0 0.0
        %5939 = vmatprep.subr.mxu0 0.0
        %5940 = vmatpush1.msra.mxu0 0.0
        %5941 = vmatprep.subr.mxu0 0.0
        %5942 = vmatpush1.msra.mxu0 0.0
        %5943 = vmatprep.subr.mxu0 0.0
        %5944 = vmatpush1.msra.mxu0 0.0
        %5945 = vmatprep.subr.mxu0 0.0
        %5946 = vmatpush1.msra.mxu0 0.0
        %5947 = vmatprep.subr.mxu0 0.0
        %5948 = vmatpush1.msra.mxu0 0.0
        %5949 = vmatprep.subr.mxu0 0.0
        %5950 = vmatpush1.msra.mxu0 0.0
        %5951 = vmatprep.subr.mxu0 0.0
        %5952 = vmatpush1.msra.mxu0 0.0
        %5953 = vmatprep.subr.mxu0 0.0
        %5954 = vmatpush1.msra.mxu0 0.0
        %5955 = vmatprep.subr.mxu0 0.0
        %5956 = vmatpush1.msra.mxu0 0.0
        %5957 = vmatprep.subr.mxu0 0.0
        %5958 = vmatpush1.msra.mxu0 0.0
        %5959 = vmatprep.subr.mxu0 0.0
        %5960 = vmatpush1.msra.mxu0 0.0
        %5961 = vmatprep.subr.mxu0 0.0
        %5962 = vmatpush1.msra.mxu0 0.0
        %5963 = vmatprep.subr.mxu0 0.0
        %5964 = vmatpush1.msra.mxu0 0.0
        %5965 = vmatprep.mubr.f32.mxu0 0.0
        %v5966 = vand.u32 %v5818, 4294901760
        %5967 = vmatmul.mubr.f32.gmra.mrb[0].mxu0 %v5966
        %v5968 = vpop.f32.mrb[0].mxu0
        %v5969 = vadd.f32 %v5893, %v5968
        %v5970 = vpop.f32.mrb[0].mxu0
        %5971 = vdwg.mxu0
        %5972 = vmatprep.subr.mxu0 0.0
        %v5973 = vand.u32 %v5151, 4294901760
        %v5974 = vsub.f32 %v5151, %v5973
        %5975 = vmatpush1.msra.mxu0 %v5974
        %5976 = vmatprep.subr.mxu0 0.0
        %5977 = vmatpush1.msra.mxu0 0.0
        %5978 = vmatprep.subr.mxu0 0.0
        %5979 = vmatpush1.msra.mxu0 0.0
        %5980 = vmatprep.subr.mxu0 0.0
        %5981 = vmatpush1.msra.mxu0 0.0
        %5982 = vmatprep.subr.mxu0 0.0
        %5983 = vmatpush1.msra.mxu0 0.0
        %5984 = vmatprep.subr.mxu0 0.0
        %5985 = vmatpush1.msra.mxu0 0.0
        %5986 = vmatprep.subr.mxu0 0.0
        %5987 = vmatpush1.msra.mxu0 0.0
        %5988 = vmatprep.subr.mxu0 0.0
        %5989 = vmatpush1.msra.mxu0 0.0
        %5990 = vmatprep.subr.mxu0 0.0
        %5991 = vmatpush1.msra.mxu0 0.0
        %5992 = vmatprep.subr.mxu0 0.0
        %5993 = vmatpush1.msra.mxu0 0.0
        %5994 = vmatprep.subr.mxu0 0.0
        %5995 = vmatpush1.msra.mxu0 0.0
        %5996 = vmatprep.subr.mxu0 0.0
        %5997 = vmatpush1.msra.mxu0 0.0
        %5998 = vmatprep.subr.mxu0 0.0
        %5999 = vmatpush1.msra.mxu0 0.0
        %6000 = vmatprep.subr.mxu0 0.0
        %6001 = vmatpush1.msra.mxu0 0.0
        %6002 = vmatprep.subr.mxu0 0.0
        %6003 = vmatpush1.msra.mxu0 0.0
        %6004 = vmatprep.subr.mxu0 0.0
        %6005 = vmatpush1.msra.mxu0 0.0
        %6006 = vmatprep.subr.mxu0 0.0
        %6007 = vmatpush1.msra.mxu0 0.0
        %6008 = vmatprep.subr.mxu0 0.0
        %6009 = vmatpush1.msra.mxu0 0.0
        %6010 = vmatprep.subr.mxu0 0.0
        %6011 = vmatpush1.msra.mxu0 0.0
        %6012 = vmatprep.subr.mxu0 0.0
        %6013 = vmatpush1.msra.mxu0 0.0
        %6014 = vmatprep.subr.mxu0 0.0
        %6015 = vmatpush1.msra.mxu0 0.0
        %6016 = vmatprep.subr.mxu0 0.0
        %6017 = vmatpush1.msra.mxu0 0.0
        %6018 = vmatprep.subr.mxu0 0.0
        %6019 = vmatpush1.msra.mxu0 0.0
        %6020 = vmatprep.subr.mxu0 0.0
        %6021 = vmatpush1.msra.mxu0 0.0
        %6022 = vmatprep.subr.mxu0 0.0
        %6023 = vmatpush1.msra.mxu0 0.0
        %6024 = vmatprep.subr.mxu0 0.0
        %6025 = vmatpush1.msra.mxu0 0.0
        %6026 = vmatprep.subr.mxu0 0.0
        %6027 = vmatpush1.msra.mxu0 0.0
        %6028 = vmatprep.subr.mxu0 0.0
        %6029 = vmatpush1.msra.mxu0 0.0
        %6030 = vmatprep.subr.mxu0 0.0
        %6031 = vmatpush1.msra.mxu0 0.0
        %6032 = vmatprep.subr.mxu0 0.0
        %6033 = vmatpush1.msra.mxu0 0.0
        %6034 = vmatprep.subr.mxu0 0.0
        %6035 = vmatpush1.msra.mxu0 0.0
        %6036 = vmatprep.subr.mxu0 0.0
        %6037 = vmatpush1.msra.mxu0 0.0
        %6038 = vmatprep.mubr.f32.mxu0 0.0
        %v6039 = vand.u32 %v5818, 4294901760
        %v6040 = vsub.f32 %v5818, %v6039
        %6041 = vmatmul.mubr.f32.gmra.mrb[0].mxu0 %v6040
        %v6042 = vpop.f32.mrb[0].mxu0
        %v6043 = vadd.f32 %v5969, %v6042
        %v6044 = vpop.f32.mrb[0].mxu0
        %6045 = vdwg.mxu0
        %6046 = vmatprep.subr.mxu0 0.0
        %v6047 = vand.u32 %v5151, 4294901760
        %6048 = vmatpush1.msra.mxu0 %v6047
        %6049 = vmatprep.subr.mxu0 0.0
        %6050 = vmatpush1.msra.mxu0 0.0
        %6051 = vmatprep.subr.mxu0 0.0
        %6052 = vmatpush1.msra.mxu0 0.0
        %6053 = vmatprep.subr.mxu0 0.0
        %6054 = vmatpush1.msra.mxu0 0.0
        %6055 = vmatprep.subr.mxu0 0.0
        %6056 = vmatpush1.msra.mxu0 0.0
        %6057 = vmatprep.subr.mxu0 0.0
        %6058 = vmatpush1.msra.mxu0 0.0
        %6059 = vmatprep.subr.mxu0 0.0
        %6060 = vmatpush1.msra.mxu0 0.0
        %6061 = vmatprep.subr.mxu0 0.0
        %6062 = vmatpush1.msra.mxu0 0.0
        %6063 = vmatprep.subr.mxu0 0.0
        %6064 = vmatpush1.msra.mxu0 0.0
        %6065 = vmatprep.subr.mxu0 0.0
        %6066 = vmatpush1.msra.mxu0 0.0
        %6067 = vmatprep.subr.mxu0 0.0
        %6068 = vmatpush1.msra.mxu0 0.0
        %6069 = vmatprep.subr.mxu0 0.0
        %6070 = vmatpush1.msra.mxu0 0.0
        %6071 = vmatprep.subr.mxu0 0.0
        %6072 = vmatpush1.msra.mxu0 0.0
        %6073 = vmatprep.subr.mxu0 0.0
        %6074 = vmatpush1.msra.mxu0 0.0
        %6075 = vmatprep.subr.mxu0 0.0
        %6076 = vmatpush1.msra.mxu0 0.0
        %6077 = vmatprep.subr.mxu0 0.0
        %6078 = vmatpush1.msra.mxu0 0.0
        %6079 = vmatprep.subr.mxu0 0.0
        %6080 = vmatpush1.msra.mxu0 0.0
        %6081 = vmatprep.subr.mxu0 0.0
        %6082 = vmatpush1.msra.mxu0 0.0
        %6083 = vmatprep.subr.mxu0 0.0
        %6084 = vmatpush1.msra.mxu0 0.0
        %6085 = vmatprep.subr.mxu0 0.0
        %6086 = vmatpush1.msra.mxu0 0.0
        %6087 = vmatprep.subr.mxu0 0.0
        %6088 = vmatpush1.msra.mxu0 0.0
        %6089 = vmatprep.subr.mxu0 0.0
        %6090 = vmatpush1.msra.mxu0 0.0
        %6091 = vmatprep.subr.mxu0 0.0
        %6092 = vmatpush1.msra.mxu0 0.0
        %6093 = vmatprep.subr.mxu0 0.0
        %6094 = vmatpush1.msra.mxu0 0.0
        %6095 = vmatprep.subr.mxu0 0.0
        %6096 = vmatpush1.msra.mxu0 0.0
        %6097 = vmatprep.subr.mxu0 0.0
        %6098 = vmatpush1.msra.mxu0 0.0
        %6099 = vmatprep.subr.mxu0 0.0
        %6100 = vmatpush1.msra.mxu0 0.0
        %6101 = vmatprep.subr.mxu0 0.0
        %6102 = vmatpush1.msra.mxu0 0.0
        %6103 = vmatprep.subr.mxu0 0.0
        %6104 = vmatpush1.msra.mxu0 0.0
        %6105 = vmatprep.subr.mxu0 0.0
        %6106 = vmatpush1.msra.mxu0 0.0
        %6107 = vmatprep.subr.mxu0 0.0
        %6108 = vmatpush1.msra.mxu0 0.0
        %6109 = vmatprep.subr.mxu0 0.0
        %6110 = vmatpush1.msra.mxu0 0.0
        %6111 = vmatprep.mubr.f32.mxu0 0.0
        %v6112 = vand.u32 %v5818, 4294901760
        %v6113 = vsub.f32 %v5818, %v6112
        %v6114 = vand.u32 %v6113, 4294901760
        %6115 = vmatmul.mubr.f32.gmra.mrb[0].mxu0 %v6114
        %v6116 = vpop.f32.mrb[0].mxu0
        %v6117 = vadd.f32 %v6043, %v6116
        %v6118 = vpop.f32.mrb[0].mxu0
        %6119 = vdwg.mxu0
        %6120 = vmatprep.subr.mxu0 0.0
        %v6121 = vand.u32 %v5151, 4294901760
        %v6122 = vsub.f32 %v5151, %v6121
        %v6123 = vand.u32 %v6122, 4294901760
        %6124 = vmatpush1.msra.mxu0 %v6123
        %6125 = vmatprep.subr.mxu0 0.0
        %6126 = vmatpush1.msra.mxu0 0.0
        %6127 = vmatprep.subr.mxu0 0.0
        %6128 = vmatpush1.msra.mxu0 0.0
        %6129 = vmatprep.subr.mxu0 0.0
        %6130 = vmatpush1.msra.mxu0 0.0
        %6131 = vmatprep.subr.mxu0 0.0
        %6132 = vmatpush1.msra.mxu0 0.0
        %6133 = vmatprep.subr.mxu0 0.0
        %6134 = vmatpush1.msra.mxu0 0.0
        %6135 = vmatprep.subr.mxu0 0.0
        %6136 = vmatpush1.msra.mxu0 0.0
        %6137 = vmatprep.subr.mxu0 0.0
        %6138 = vmatpush1.msra.mxu0 0.0
        %6139 = vmatprep.subr.mxu0 0.0
        %6140 = vmatpush1.msra.mxu0 0.0
        %6141 = vmatprep.subr.mxu0 0.0
        %6142 = vmatpush1.msra.mxu0 0.0
        %6143 = vmatprep.subr.mxu0 0.0
        %6144 = vmatpush1.msra.mxu0 0.0
        %6145 = vmatprep.subr.mxu0 0.0
        %6146 = vmatpush1.msra.mxu0 0.0
        %6147 = vmatprep.subr.mxu0 0.0
        %6148 = vmatpush1.msra.mxu0 0.0
        %6149 = vmatprep.subr.mxu0 0.0
        %6150 = vmatpush1.msra.mxu0 0.0
        %6151 = vmatprep.subr.mxu0 0.0
        %6152 = vmatpush1.msra.mxu0 0.0
        %6153 = vmatprep.subr.mxu0 0.0
        %6154 = vmatpush1.msra.mxu0 0.0
        %6155 = vmatprep.subr.mxu0 0.0
        %6156 = vmatpush1.msra.mxu0 0.0
        %6157 = vmatprep.subr.mxu0 0.0
        %6158 = vmatpush1.msra.mxu0 0.0
        %6159 = vmatprep.subr.mxu0 0.0
        %6160 = vmatpush1.msra.mxu0 0.0
        %6161 = vmatprep.subr.mxu0 0.0
        %6162 = vmatpush1.msra.mxu0 0.0
        %6163 = vmatprep.subr.mxu0 0.0
        %6164 = vmatpush1.msra.mxu0 0.0
        %6165 = vmatprep.subr.mxu0 0.0
        %6166 = vmatpush1.msra.mxu0 0.0
        %6167 = vmatprep.subr.mxu0 0.0
        %6168 = vmatpush1.msra.mxu0 0.0
        %6169 = vmatprep.subr.mxu0 0.0
        %6170 = vmatpush1.msra.mxu0 0.0
        %6171 = vmatprep.subr.mxu0 0.0
        %6172 = vmatpush1.msra.mxu0 0.0
        %6173 = vmatprep.subr.mxu0 0.0
        %6174 = vmatpush1.msra.mxu0 0.0
        %6175 = vmatprep.subr.mxu0 0.0
        %6176 = vmatpush1.msra.mxu0 0.0
        %6177 = vmatprep.subr.mxu0 0.0
        %6178 = vmatpush1.msra.mxu0 0.0
        %6179 = vmatprep.subr.mxu0 0.0
        %6180 = vmatpush1.msra.mxu0 0.0
        %6181 = vmatprep.subr.mxu0 0.0
        %6182 = vmatpush1.msra.mxu0 0.0
        %6183 = vmatprep.subr.mxu0 0.0
        %6184 = vmatpush1.msra.mxu0 0.0
        %6185 = vmatprep.subr.mxu0 0.0
        %6186 = vmatpush1.msra.mxu0 0.0
        %6187 = vmatprep.mubr.f32.mxu0 0.0
        %v6188 = vand.u32 %v5818, 4294901760
        %6189 = vmatmul.mubr.f32.gmra.mrb[0].mxu0 %v6188
        %v6190 = vpop.f32.mrb[0].mxu0
        %v6191 = vadd.f32 %v6117, %v6190
        %v6192 = vpop.f32.mrb[0].mxu0
        %6193 = vdwg.mxu0
        %6194 = vmatprep.subr.mxu0 0.0
        %v6195 = vand.u32 %v5151, 4294901760
        %6196 = vmatpush1.msra.mxu0 %v6195
        %6197 = vmatprep.subr.mxu0 0.0
        %6198 = vmatpush1.msra.mxu0 0.0
        %6199 = vmatprep.subr.mxu0 0.0
        %6200 = vmatpush1.msra.mxu0 0.0
        %6201 = vmatprep.subr.mxu0 0.0
        %6202 = vmatpush1.msra.mxu0 0.0
        %6203 = vmatprep.subr.mxu0 0.0
        %6204 = vmatpush1.msra.mxu0 0.0
        %6205 = vmatprep.subr.mxu0 0.0
        %6206 = vmatpush1.msra.mxu0 0.0
        %6207 = vmatprep.subr.mxu0 0.0
        %6208 = vmatpush1.msra.mxu0 0.0
        %6209 = vmatprep.subr.mxu0 0.0
        %6210 = vmatpush1.msra.mxu0 0.0
        %6211 = vmatprep.subr.mxu0 0.0
        %6212 = vmatpush1.msra.mxu0 0.0
        %6213 = vmatprep.subr.mxu0 0.0
        %6214 = vmatpush1.msra.mxu0 0.0
        %6215 = vmatprep.subr.mxu0 0.0
        %6216 = vmatpush1.msra.mxu0 0.0
        %6217 = vmatprep.subr.mxu0 0.0
        %6218 = vmatpush1.msra.mxu0 0.0
        %6219 = vmatprep.subr.mxu0 0.0
        %6220 = vmatpush1.msra.mxu0 0.0
        %6221 = vmatprep.subr.mxu0 0.0
        %6222 = vmatpush1.msra.mxu0 0.0
        %6223 = vmatprep.subr.mxu0 0.0
        %6224 = vmatpush1.msra.mxu0 0.0
        %6225 = vmatprep.subr.mxu0 0.0
        %6226 = vmatpush1.msra.mxu0 0.0
        %6227 = vmatprep.subr.mxu0 0.0
        %6228 = vmatpush1.msra.mxu0 0.0
        %6229 = vmatprep.subr.mxu0 0.0
        %6230 = vmatpush1.msra.mxu0 0.0
        %6231 = vmatprep.subr.mxu0 0.0
        %6232 = vmatpush1.msra.mxu0 0.0
        %6233 = vmatprep.subr.mxu0 0.0
        %6234 = vmatpush1.msra.mxu0 0.0
        %6235 = vmatprep.subr.mxu0 0.0
        %6236 = vmatpush1.msra.mxu0 0.0
        %6237 = vmatprep.subr.mxu0 0.0
        %6238 = vmatpush1.msra.mxu0 0.0
        %6239 = vmatprep.subr.mxu0 0.0
        %6240 = vmatpush1.msra.mxu0 0.0
        %6241 = vmatprep.subr.mxu0 0.0
        %6242 = vmatpush1.msra.mxu0 0.0
        %6243 = vmatprep.subr.mxu0 0.0
        %6244 = vmatpush1.msra.mxu0 0.0
        %6245 = vmatprep.subr.mxu0 0.0
        %6246 = vmatpush1.msra.mxu0 0.0
        %6247 = vmatprep.subr.mxu0 0.0
        %6248 = vmatpush1.msra.mxu0 0.0
        %6249 = vmatprep.subr.mxu0 0.0
        %6250 = vmatpush1.msra.mxu0 0.0
        %6251 = vmatprep.subr.mxu0 0.0
        %6252 = vmatpush1.msra.mxu0 0.0
        %6253 = vmatprep.subr.mxu0 0.0
        %6254 = vmatpush1.msra.mxu0 0.0
        %6255 = vmatprep.subr.mxu0 0.0
        %6256 = vmatpush1.msra.mxu0 0.0
        %6257 = vmatprep.subr.mxu0 0.0
        %6258 = vmatpush1.msra.mxu0 0.0
        %6259 = vmatprep.mubr.f32.mxu0 0.0
        %v6260 = vand.u32 %v5818, 4294901760
        %6261 = vmatmul.mubr.f32.gmra.mrb[0].mxu0 %v6260
        %v6262 = vpop.f32.mrb[0].mxu0
        %v6263 = vadd.f32 %v6191, %v6262
        %v6264 = vpop.f32.mrb[0].mxu0
        %6265 = vdwg.mxu0
        %v6267 = vsel %vm896, %v5804, 0
        %6269 = vmatprep.subr.mxu0 0.0
        %v6270 = vand.u32 %v5149, 4294901760
        %6271 = vmatpush1.msra.mxu0 %v6270
        %6272 = vmatprep.subr.mxu0 0.0
        %6273 = vmatpush1.msra.mxu0 0.0
        %6274 = vmatprep.subr.mxu0 0.0
        %6275 = vmatpush1.msra.mxu0 0.0
        %6276 = vmatprep.subr.mxu0 0.0
        %6277 = vmatpush1.msra.mxu0 0.0
        %6278 = vmatprep.subr.mxu0 0.0
        %6279 = vmatpush1.msra.mxu0 0.0
        %6280 = vmatprep.subr.mxu0 0.0
        %6281 = vmatpush1.msra.mxu0 0.0
        %6282 = vmatprep.subr.mxu0 0.0
        %6283 = vmatpush1.msra.mxu0 0.0
        %6284 = vmatprep.subr.mxu0 0.0
        %6285 = vmatpush1.msra.mxu0 0.0
        %6286 = vmatprep.subr.mxu0 0.0
        %6287 = vmatpush1.msra.mxu0 0.0
        %6288 = vmatprep.subr.mxu0 0.0
        %6289 = vmatpush1.msra.mxu0 0.0
        %6290 = vmatprep.subr.mxu0 0.0
        %6291 = vmatpush1.msra.mxu0 0.0
        %6292 = vmatprep.subr.mxu0 0.0
        %6293 = vmatpush1.msra.mxu0 0.0
        %6294 = vmatprep.subr.mxu0 0.0
        %6295 = vmatpush1.msra.mxu0 0.0
        %6296 = vmatprep.subr.mxu0 0.0
        %6297 = vmatpush1.msra.mxu0 0.0
        %6298 = vmatprep.subr.mxu0 0.0
        %6299 = vmatpush1.msra.mxu0 0.0
        %6300 = vmatprep.subr.mxu0 0.0
        %6301 = vmatpush1.msra.mxu0 0.0
        %6302 = vmatprep.subr.mxu0 0.0
        %6303 = vmatpush1.msra.mxu0 0.0
        %6304 = vmatprep.subr.mxu0 0.0
        %6305 = vmatpush1.msra.mxu0 0.0
        %6306 = vmatprep.subr.mxu0 0.0
        %6307 = vmatpush1.msra.mxu0 0.0
        %6308 = vmatprep.subr.mxu0 0.0
        %6309 = vmatpush1.msra.mxu0 0.0
        %6310 = vmatprep.subr.mxu0 0.0
        %6311 = vmatpush1.msra.mxu0 0.0
        %6312 = vmatprep.subr.mxu0 0.0
        %6313 = vmatpush1.msra.mxu0 0.0
        %6314 = vmatprep.subr.mxu0 0.0
        %6315 = vmatpush1.msra.mxu0 0.0
        %6316 = vmatprep.subr.mxu0 0.0
        %6317 = vmatpush1.msra.mxu0 0.0
        %6318 = vmatprep.subr.mxu0 0.0
        %6319 = vmatpush1.msra.mxu0 0.0
        %6320 = vmatprep.subr.mxu0 0.0
        %6321 = vmatpush1.msra.mxu0 0.0
        %6322 = vmatprep.subr.mxu0 0.0
        %6323 = vmatpush1.msra.mxu0 0.0
        %6324 = vmatprep.subr.mxu0 0.0
        %6325 = vmatpush1.msra.mxu0 0.0
        %6326 = vmatprep.subr.mxu0 0.0
        %6327 = vmatpush1.msra.mxu0 0.0
        %6328 = vmatprep.subr.mxu0 0.0
        %6329 = vmatpush1.msra.mxu0 0.0
        %6330 = vmatprep.subr.mxu0 0.0
        %6331 = vmatpush1.msra.mxu0 0.0
        %6332 = vmatprep.subr.mxu0 0.0
        %6333 = vmatpush1.msra.mxu0 0.0
        %6334 = vmatprep.mubr.f32.mxu0 0.0
        %v6335 = vand.u32 %v6267, 4294901760
        %v6336 = vsub.f32 %v6267, %v6335
        %v6337 = vand.u32 %v6336, 4294901760
        %v6338 = vsub.f32 %v6336, %v6337
        %v6339 = vand.u32 %v6338, 4294901760
        %6340 = vmatmul.mubr.f32.gmra.mrb[0].mxu0 %v6339
        %v6341 = vpop.f32.mrb[0].mxu0
        %v6342 = vadd.f32 %v6263, %v6341
        %v6343 = vpop.f32.mrb[0].mxu0
        %6344 = vdwg.mxu0
        %6345 = vmatprep.subr.mxu0 0.0
        %v6346 = vand.u32 %v5149, 4294901760
        %v6347 = vsub.f32 %v5149, %v6346
        %v6348 = vand.u32 %v6347, 4294901760
        %v6349 = vsub.f32 %v6347, %v6348
        %v6350 = vand.u32 %v6349, 4294901760
        %6351 = vmatpush1.msra.mxu0 %v6350
        %6352 = vmatprep.subr.mxu0 0.0
        %6353 = vmatpush1.msra.mxu0 0.0
        %6354 = vmatprep.subr.mxu0 0.0
        %6355 = vmatpush1.msra.mxu0 0.0
        %6356 = vmatprep.subr.mxu0 0.0
        %6357 = vmatpush1.msra.mxu0 0.0
        %6358 = vmatprep.subr.mxu0 0.0
        %6359 = vmatpush1.msra.mxu0 0.0
        %6360 = vmatprep.subr.mxu0 0.0
        %6361 = vmatpush1.msra.mxu0 0.0
        %6362 = vmatprep.subr.mxu0 0.0
        %6363 = vmatpush1.msra.mxu0 0.0
        %6364 = vmatprep.subr.mxu0 0.0
        %6365 = vmatpush1.msra.mxu0 0.0
        %6366 = vmatprep.subr.mxu0 0.0
        %6367 = vmatpush1.msra.mxu0 0.0
        %6368 = vmatprep.subr.mxu0 0.0
        %6369 = vmatpush1.msra.mxu0 0.0
        %6370 = vmatprep.subr.mxu0 0.0
        %6371 = vmatpush1.msra.mxu0 0.0
        %6372 = vmatprep.subr.mxu0 0.0
        %6373 = vmatpush1.msra.mxu0 0.0
        %6374 = vmatprep.subr.mxu0 0.0
        %6375 = vmatpush1.msra.mxu0 0.0
        %6376 = vmatprep.subr.mxu0 0.0
        %6377 = vmatpush1.msra.mxu0 0.0
        %6378 = vmatprep.subr.mxu0 0.0
        %6379 = vmatpush1.msra.mxu0 0.0
        %6380 = vmatprep.subr.mxu0 0.0
        %6381 = vmatpush1.msra.mxu0 0.0
        %6382 = vmatprep.subr.mxu0 0.0
        %6383 = vmatpush1.msra.mxu0 0.0
        %6384 = vmatprep.subr.mxu0 0.0
        %6385 = vmatpush1.msra.mxu0 0.0
        %6386 = vmatprep.subr.mxu0 0.0
        %6387 = vmatpush1.msra.mxu0 0.0
        %6388 = vmatprep.subr.mxu0 0.0
        %6389 = vmatpush1.msra.mxu0 0.0
        %6390 = vmatprep.subr.mxu0 0.0
        %6391 = vmatpush1.msra.mxu0 0.0
        %6392 = vmatprep.subr.mxu0 0.0
        %6393 = vmatpush1.msra.mxu0 0.0
        %6394 = vmatprep.subr.mxu0 0.0
        %6395 = vmatpush1.msra.mxu0 0.0
        %6396 = vmatprep.subr.mxu0 0.0
        %6397 = vmatpush1.msra.mxu0 0.0
        %6398 = vmatprep.subr.mxu0 0.0
        %6399 = vmatpush1.msra.mxu0 0.0
        %6400 = vmatprep.subr.mxu0 0.0
        %6401 = vmatpush1.msra.mxu0 0.0
        %6402 = vmatprep.subr.mxu0 0.0
        %6403 = vmatpush1.msra.mxu0 0.0
        %6404 = vmatprep.subr.mxu0 0.0
        %6405 = vmatpush1.msra.mxu0 0.0
        %6406 = vmatprep.subr.mxu0 0.0
        %6407 = vmatpush1.msra.mxu0 0.0
        %6408 = vmatprep.subr.mxu0 0.0
        %6409 = vmatpush1.msra.mxu0 0.0
        %6410 = vmatprep.subr.mxu0 0.0
        %6411 = vmatpush1.msra.mxu0 0.0
        %6412 = vmatprep.subr.mxu0 0.0
        %6413 = vmatpush1.msra.mxu0 0.0
        %6414 = vmatprep.mubr.f32.mxu0 0.0
        %v6415 = vand.u32 %v6267, 4294901760
        %6416 = vmatmul.mubr.f32.gmra.mrb[0].mxu0 %v6415
        %v6417 = vpop.f32.mrb[0].mxu0
        %v6418 = vadd.f32 %v6342, %v6417
        %v6419 = vpop.f32.mrb[0].mxu0
        %6420 = vdwg.mxu0
        %6421 = vmatprep.subr.mxu0 0.0
        %v6422 = vand.u32 %v5149, 4294901760
        %v6423 = vsub.f32 %v5149, %v6422
        %6424 = vmatpush1.msra.mxu0 %v6423
        %6425 = vmatprep.subr.mxu0 0.0
        %6426 = vmatpush1.msra.mxu0 0.0
        %6427 = vmatprep.subr.mxu0 0.0
        %6428 = vmatpush1.msra.mxu0 0.0
        %6429 = vmatprep.subr.mxu0 0.0
        %6430 = vmatpush1.msra.mxu0 0.0
        %6431 = vmatprep.subr.mxu0 0.0
        %6432 = vmatpush1.msra.mxu0 0.0
        %6433 = vmatprep.subr.mxu0 0.0
        %6434 = vmatpush1.msra.mxu0 0.0
        %6435 = vmatprep.subr.mxu0 0.0
        %6436 = vmatpush1.msra.mxu0 0.0
        %6437 = vmatprep.subr.mxu0 0.0
        %6438 = vmatpush1.msra.mxu0 0.0
        %6439 = vmatprep.subr.mxu0 0.0
        %6440 = vmatpush1.msra.mxu0 0.0
        %6441 = vmatprep.subr.mxu0 0.0
        %6442 = vmatpush1.msra.mxu0 0.0
        %6443 = vmatprep.subr.mxu0 0.0
        %6444 = vmatpush1.msra.mxu0 0.0
        %6445 = vmatprep.subr.mxu0 0.0
        %6446 = vmatpush1.msra.mxu0 0.0
        %6447 = vmatprep.subr.mxu0 0.0
        %6448 = vmatpush1.msra.mxu0 0.0
        %6449 = vmatprep.subr.mxu0 0.0
        %6450 = vmatpush1.msra.mxu0 0.0
        %6451 = vmatprep.subr.mxu0 0.0
        %6452 = vmatpush1.msra.mxu0 0.0
        %6453 = vmatprep.subr.mxu0 0.0
        %6454 = vmatpush1.msra.mxu0 0.0
        %6455 = vmatprep.subr.mxu0 0.0
        %6456 = vmatpush1.msra.mxu0 0.0
        %6457 = vmatprep.subr.mxu0 0.0
        %6458 = vmatpush1.msra.mxu0 0.0
        %6459 = vmatprep.subr.mxu0 0.0
        %6460 = vmatpush1.msra.mxu0 0.0
        %6461 = vmatprep.subr.mxu0 0.0
        %6462 = vmatpush1.msra.mxu0 0.0
        %6463 = vmatprep.subr.mxu0 0.0
        %6464 = vmatpush1.msra.mxu0 0.0
        %6465 = vmatprep.subr.mxu0 0.0
        %6466 = vmatpush1.msra.mxu0 0.0
        %6467 = vmatprep.subr.mxu0 0.0
        %6468 = vmatpush1.msra.mxu0 0.0
        %6469 = vmatprep.subr.mxu0 0.0
        %6470 = vmatpush1.msra.mxu0 0.0
        %6471 = vmatprep.subr.mxu0 0.0
        %6472 = vmatpush1.msra.mxu0 0.0
        %6473 = vmatprep.subr.mxu0 0.0
        %6474 = vmatpush1.msra.mxu0 0.0
        %6475 = vmatprep.subr.mxu0 0.0
        %6476 = vmatpush1.msra.mxu0 0.0
        %6477 = vmatprep.subr.mxu0 0.0
        %6478 = vmatpush1.msra.mxu0 0.0
        %6479 = vmatprep.subr.mxu0 0.0
        %6480 = vmatpush1.msra.mxu0 0.0
        %6481 = vmatprep.subr.mxu0 0.0
        %6482 = vmatpush1.msra.mxu0 0.0
        %6483 = vmatprep.subr.mxu0 0.0
        %6484 = vmatpush1.msra.mxu0 0.0
        %6485 = vmatprep.subr.mxu0 0.0
        %6486 = vmatpush1.msra.mxu0 0.0
        %6487 = vmatprep.mubr.f32.mxu0 0.0
        %v6488 = vand.u32 %v6267, 4294901760
        %v6489 = vsub.f32 %v6267, %v6488
        %6490 = vmatmul.mubr.f32.gmra.mrb[0].mxu0 %v6489
        %v6491 = vpop.f32.mrb[0].mxu0
        %v6492 = vadd.f32 %v6418, %v6491
        %v6493 = vpop.f32.mrb[0].mxu0
        %6494 = vdwg.mxu0
        %6495 = vmatprep.subr.mxu0 0.0
        %v6496 = vand.u32 %v5149, 4294901760
        %6497 = vmatpush1.msra.mxu0 %v6496
        %6498 = vmatprep.subr.mxu0 0.0
        %6499 = vmatpush1.msra.mxu0 0.0
        %6500 = vmatprep.subr.mxu0 0.0
        %6501 = vmatpush1.msra.mxu0 0.0
        %6502 = vmatprep.subr.mxu0 0.0
        %6503 = vmatpush1.msra.mxu0 0.0
        %6504 = vmatprep.subr.mxu0 0.0
        %6505 = vmatpush1.msra.mxu0 0.0
        %6506 = vmatprep.subr.mxu0 0.0
        %6507 = vmatpush1.msra.mxu0 0.0
        %6508 = vmatprep.subr.mxu0 0.0
        %6509 = vmatpush1.msra.mxu0 0.0
        %6510 = vmatprep.subr.mxu0 0.0
        %6511 = vmatpush1.msra.mxu0 0.0
        %6512 = vmatprep.subr.mxu0 0.0
        %6513 = vmatpush1.msra.mxu0 0.0
        %6514 = vmatprep.subr.mxu0 0.0
        %6515 = vmatpush1.msra.mxu0 0.0
        %6516 = vmatprep.subr.mxu0 0.0
        %6517 = vmatpush1.msra.mxu0 0.0
        %6518 = vmatprep.subr.mxu0 0.0
        %6519 = vmatpush1.msra.mxu0 0.0
        %6520 = vmatprep.subr.mxu0 0.0
        %6521 = vmatpush1.msra.mxu0 0.0
        %6522 = vmatprep.subr.mxu0 0.0
        %6523 = vmatpush1.msra.mxu0 0.0
        %6524 = vmatprep.subr.mxu0 0.0
        %6525 = vmatpush1.msra.mxu0 0.0
        %6526 = vmatprep.subr.mxu0 0.0
        %6527 = vmatpush1.msra.mxu0 0.0
        %6528 = vmatprep.subr.mxu0 0.0
        %6529 = vmatpush1.msra.mxu0 0.0
        %6530 = vmatprep.subr.mxu0 0.0
        %6531 = vmatpush1.msra.mxu0 0.0
        %6532 = vmatprep.subr.mxu0 0.0
        %6533 = vmatpush1.msra.mxu0 0.0
        %6534 = vmatprep.subr.mxu0 0.0
        %6535 = vmatpush1.msra.mxu0 0.0
        %6536 = vmatprep.subr.mxu0 0.0
        %6537 = vmatpush1.msra.mxu0 0.0
        %6538 = vmatprep.subr.mxu0 0.0
        %6539 = vmatpush1.msra.mxu0 0.0
        %6540 = vmatprep.subr.mxu0 0.0
        %6541 = vmatpush1.msra.mxu0 0.0
        %6542 = vmatprep.subr.mxu0 0.0
        %6543 = vmatpush1.msra.mxu0 0.0
        %6544 = vmatprep.subr.mxu0 0.0
        %6545 = vmatpush1.msra.mxu0 0.0
        %6546 = vmatprep.subr.mxu0 0.0
        %6547 = vmatpush1.msra.mxu0 0.0
        %6548 = vmatprep.subr.mxu0 0.0
        %6549 = vmatpush1.msra.mxu0 0.0
        %6550 = vmatprep.subr.mxu0 0.0
        %6551 = vmatpush1.msra.mxu0 0.0
        %6552 = vmatprep.subr.mxu0 0.0
        %6553 = vmatpush1.msra.mxu0 0.0
        %6554 = vmatprep.subr.mxu0 0.0
        %6555 = vmatpush1.msra.mxu0 0.0
        %6556 = vmatprep.subr.mxu0 0.0
        %6557 = vmatpush1.msra.mxu0 0.0
        %6558 = vmatprep.subr.mxu0 0.0
        %6559 = vmatpush1.msra.mxu0 0.0
        %6560 = vmatprep.mubr.f32.mxu0 0.0
        %v6561 = vand.u32 %v6267, 4294901760
        %v6562 = vsub.f32 %v6267, %v6561
        %v6563 = vand.u32 %v6562, 4294901760
        %6564 = vmatmul.mubr.f32.gmra.mrb[0].mxu0 %v6563
        %v6565 = vpop.f32.mrb[0].mxu0
        %v6566 = vadd.f32 %v6492, %v6565
        %v6567 = vpop.f32.mrb[0].mxu0
        %6568 = vdwg.mxu0
        %6569 = vmatprep.subr.mxu0 0.0
        %v6570 = vand.u32 %v5149, 4294901760
        %v6571 = vsub.f32 %v5149, %v6570
        %v6572 = vand.u32 %v6571, 4294901760
        %6573 = vmatpush1.msra.mxu0 %v6572
        %6574 = vmatprep.subr.mxu0 0.0
        %6575 = vmatpush1.msra.mxu0 0.0
        %6576 = vmatprep.subr.mxu0 0.0
        %6577 = vmatpush1.msra.mxu0 0.0
        %6578 = vmatprep.subr.mxu0 0.0
        %6579 = vmatpush1.msra.mxu0 0.0
        %6580 = vmatprep.subr.mxu0 0.0
        %6581 = vmatpush1.msra.mxu0 0.0
        %6582 = vmatprep.subr.mxu0 0.0
        %6583 = vmatpush1.msra.mxu0 0.0
        %6584 = vmatprep.subr.mxu0 0.0
        %6585 = vmatpush1.msra.mxu0 0.0
        %6586 = vmatprep.subr.mxu0 0.0
        %6587 = vmatpush1.msra.mxu0 0.0
        %6588 = vmatprep.subr.mxu0 0.0
        %6589 = vmatpush1.msra.mxu0 0.0
        %6590 = vmatprep.subr.mxu0 0.0
        %6591 = vmatpush1.msra.mxu0 0.0
        %6592 = vmatprep.subr.mxu0 0.0
        %6593 = vmatpush1.msra.mxu0 0.0
        %6594 = vmatprep.subr.mxu0 0.0
        %6595 = vmatpush1.msra.mxu0 0.0
        %6596 = vmatprep.subr.mxu0 0.0
        %6597 = vmatpush1.msra.mxu0 0.0
        %6598 = vmatprep.subr.mxu0 0.0
        %6599 = vmatpush1.msra.mxu0 0.0
        %6600 = vmatprep.subr.mxu0 0.0
        %6601 = vmatpush1.msra.mxu0 0.0
        %6602 = vmatprep.subr.mxu0 0.0
        %6603 = vmatpush1.msra.mxu0 0.0
        %6604 = vmatprep.subr.mxu0 0.0
        %6605 = vmatpush1.msra.mxu0 0.0
        %6606 = vmatprep.subr.mxu0 0.0
        %6607 = vmatpush1.msra.mxu0 0.0
        %6608 = vmatprep.subr.mxu0 0.0
        %6609 = vmatpush1.msra.mxu0 0.0
        %6610 = vmatprep.subr.mxu0 0.0
        %6611 = vmatpush1.msra.mxu0 0.0
        %6612 = vmatprep.subr.mxu0 0.0
        %6613 = vmatpush1.msra.mxu0 0.0
        %6614 = vmatprep.subr.mxu0 0.0
        %6615 = vmatpush1.msra.mxu0 0.0
        %6616 = vmatprep.subr.mxu0 0.0
        %6617 = vmatpush1.msra.mxu0 0.0
        %6618 = vmatprep.subr.mxu0 0.0
        %6619 = vmatpush1.msra.mxu0 0.0
        %6620 = vmatprep.subr.mxu0 0.0
        %6621 = vmatpush1.msra.mxu0 0.0
        %6622 = vmatprep.subr.mxu0 0.0
        %6623 = vmatpush1.msra.mxu0 0.0
        %6624 = vmatprep.subr.mxu0 0.0
        %6625 = vmatpush1.msra.mxu0 0.0
        %6626 = vmatprep.subr.mxu0 0.0
        %6627 = vmatpush1.msra.mxu0 0.0
        %6628 = vmatprep.subr.mxu0 0.0
        %6629 = vmatpush1.msra.mxu0 0.0
        %6630 = vmatprep.subr.mxu0 0.0
        %6631 = vmatpush1.msra.mxu0 0.0
        %6632 = vmatprep.subr.mxu0 0.0
        %6633 = vmatpush1.msra.mxu0 0.0
        %6634 = vmatprep.subr.mxu0 0.0
        %6635 = vmatpush1.msra.mxu0 0.0
        %6636 = vmatprep.mubr.f32.mxu0 0.0
        %v6637 = vand.u32 %v6267, 4294901760
        %6638 = vmatmul.mubr.f32.gmra.mrb[0].mxu0 %v6637
        %v6639 = vpop.f32.mrb[0].mxu0
        %v6640 = vadd.f32 %v6566, %v6639
        %v6641 = vpop.f32.mrb[0].mxu0
        %6642 = vdwg.mxu0
        %6643 = vmatprep.subr.mxu0 0.0
        %v6644 = vand.u32 %v5149, 4294901760
        %6645 = vmatpush1.msra.mxu0 %v6644
        %6646 = vmatprep.subr.mxu0 0.0
        %6647 = vmatpush1.msra.mxu0 0.0
        %6648 = vmatprep.subr.mxu0 0.0
        %6649 = vmatpush1.msra.mxu0 0.0
        %6650 = vmatprep.subr.mxu0 0.0
        %6651 = vmatpush1.msra.mxu0 0.0
        %6652 = vmatprep.subr.mxu0 0.0
        %6653 = vmatpush1.msra.mxu0 0.0
        %6654 = vmatprep.subr.mxu0 0.0
        %6655 = vmatpush1.msra.mxu0 0.0
        %6656 = vmatprep.subr.mxu0 0.0
        %6657 = vmatpush1.msra.mxu0 0.0
        %6658 = vmatprep.subr.mxu0 0.0
        %6659 = vmatpush1.msra.mxu0 0.0
        %6660 = vmatprep.subr.mxu0 0.0
        %6661 = vmatpush1.msra.mxu0 0.0
        %6662 = vmatprep.subr.mxu0 0.0
        %6663 = vmatpush1.msra.mxu0 0.0
        %6664 = vmatprep.subr.mxu0 0.0
        %6665 = vmatpush1.msra.mxu0 0.0
        %6666 = vmatprep.subr.mxu0 0.0
        %6667 = vmatpush1.msra.mxu0 0.0
        %6668 = vmatprep.subr.mxu0 0.0
        %6669 = vmatpush1.msra.mxu0 0.0
        %6670 = vmatprep.subr.mxu0 0.0
        %6671 = vmatpush1.msra.mxu0 0.0
        %6672 = vmatprep.subr.mxu0 0.0
        %6673 = vmatpush1.msra.mxu0 0.0
        %6674 = vmatprep.subr.mxu0 0.0
        %6675 = vmatpush1.msra.mxu0 0.0
        %6676 = vmatprep.subr.mxu0 0.0
        %6677 = vmatpush1.msra.mxu0 0.0
        %6678 = vmatprep.subr.mxu0 0.0
        %6679 = vmatpush1.msra.mxu0 0.0
        %6680 = vmatprep.subr.mxu0 0.0
        %6681 = vmatpush1.msra.mxu0 0.0
        %6682 = vmatprep.subr.mxu0 0.0
        %6683 = vmatpush1.msra.mxu0 0.0
        %6684 = vmatprep.subr.mxu0 0.0
        %6685 = vmatpush1.msra.mxu0 0.0
        %6686 = vmatprep.subr.mxu0 0.0
        %6687 = vmatpush1.msra.mxu0 0.0
        %6688 = vmatprep.subr.mxu0 0.0
        %6689 = vmatpush1.msra.mxu0 0.0
        %6690 = vmatprep.subr.mxu0 0.0
        %6691 = vmatpush1.msra.mxu0 0.0
        %6692 = vmatprep.subr.mxu0 0.0
        %6693 = vmatpush1.msra.mxu0 0.0
        %6694 = vmatprep.subr.mxu0 0.0
        %6695 = vmatpush1.msra.mxu0 0.0
        %6696 = vmatprep.subr.mxu0 0.0
        %6697 = vmatpush1.msra.mxu0 0.0
        %6698 = vmatprep.subr.mxu0 0.0
        %6699 = vmatpush1.msra.mxu0 0.0
        %6700 = vmatprep.subr.mxu0 0.0
        %6701 = vmatpush1.msra.mxu0 0.0
        %6702 = vmatprep.subr.mxu0 0.0
        %6703 = vmatpush1.msra.mxu0 0.0
        %6704 = vmatprep.subr.mxu0 0.0
        %6705 = vmatpush1.msra.mxu0 0.0
        %6706 = vmatprep.subr.mxu0 0.0
        %6707 = vmatpush1.msra.mxu0 0.0
        %6708 = vmatprep.mubr.f32.mxu0 0.0
        %v6709 = vand.u32 %v6267, 4294901760
        %6710 = vmatmul.mubr.f32.gmra.mrb[0].mxu0 %v6709
        %v6711 = vpop.f32.mrb[0].mxu0
        %v6712 = vadd.f32 %v6640, %v6711
        %v6713 = vpop.f32.mrb[0].mxu0
        %6714 = vdwg.mxu0
        %v6715 = vsel %vm5814, 1e+30, %v5805
        %v6716 = vsel %vm896, %v6715, inf
        %6717 = vmin.xlane.f32.xlu0 %v6716
        %v6718 = vpop.xlane.xlu0 %6717
        %vm6719 = vcmp.le.f32.partialorder %v6715, %v6718
        %v6720 = vsel %vm6719, %v399, 1e+30
        %v6721 = vsel %vm896, %v6720, inf
        %6722 = vmin.xlane.f32.xlu0 %v6721
        %v6723 = vpop.xlane.xlu0 %6722
        %vm6724 = vcmp.eq.f32.partialorder %v399, %v6723
        %v6725 = vsel %vm6724, 1, 0
        %v6726 = vcvt.s32.f32 %v6725
        %v6728 = vsel %vm896, %v6726, 0
        %6730 = vmatprep.subr.mxu0 0.0
        %v6731 = vand.u32 %v5791, 4294901760
        %6732 = vmatpush1.msra.mxu0 %v6731
        %6733 = vmatprep.subr.mxu0 0.0
        %6734 = vmatpush1.msra.mxu0 0.0
        %6735 = vmatprep.subr.mxu0 0.0
        %6736 = vmatpush1.msra.mxu0 0.0
        %6737 = vmatprep.subr.mxu0 0.0
        %6738 = vmatpush1.msra.mxu0 0.0
        %6739 = vmatprep.subr.mxu0 0.0
        %6740 = vmatpush1.msra.mxu0 0.0
        %6741 = vmatprep.subr.mxu0 0.0
        %6742 = vmatpush1.msra.mxu0 0.0
        %6743 = vmatprep.subr.mxu0 0.0
        %6744 = vmatpush1.msra.mxu0 0.0
        %6745 = vmatprep.subr.mxu0 0.0
        %6746 = vmatpush1.msra.mxu0 0.0
        %6747 = vmatprep.subr.mxu0 0.0
        %6748 = vmatpush1.msra.mxu0 0.0
        %6749 = vmatprep.subr.mxu0 0.0
        %6750 = vmatpush1.msra.mxu0 0.0
        %6751 = vmatprep.subr.mxu0 0.0
        %6752 = vmatpush1.msra.mxu0 0.0
        %6753 = vmatprep.subr.mxu0 0.0
        %6754 = vmatpush1.msra.mxu0 0.0
        %6755 = vmatprep.subr.mxu0 0.0
        %6756 = vmatpush1.msra.mxu0 0.0
        %6757 = vmatprep.subr.mxu0 0.0
        %6758 = vmatpush1.msra.mxu0 0.0
        %6759 = vmatprep.subr.mxu0 0.0
        %6760 = vmatpush1.msra.mxu0 0.0
        %6761 = vmatprep.subr.mxu0 0.0
        %6762 = vmatpush1.msra.mxu0 0.0
        %6763 = vmatprep.subr.mxu0 0.0
        %6764 = vmatpush1.msra.mxu0 0.0
        %6765 = vmatprep.subr.mxu0 0.0
        %6766 = vmatpush1.msra.mxu0 0.0
        %6767 = vmatprep.subr.mxu0 0.0
        %6768 = vmatpush1.msra.mxu0 0.0
        %6769 = vmatprep.subr.mxu0 0.0
        %6770 = vmatpush1.msra.mxu0 0.0
        %6771 = vmatprep.subr.mxu0 0.0
        %6772 = vmatpush1.msra.mxu0 0.0
        %6773 = vmatprep.subr.mxu0 0.0
        %6774 = vmatpush1.msra.mxu0 0.0
        %6775 = vmatprep.subr.mxu0 0.0
        %6776 = vmatpush1.msra.mxu0 0.0
        %6777 = vmatprep.subr.mxu0 0.0
        %6778 = vmatpush1.msra.mxu0 0.0
        %6779 = vmatprep.subr.mxu0 0.0
        %6780 = vmatpush1.msra.mxu0 0.0
        %6781 = vmatprep.subr.mxu0 0.0
        %6782 = vmatpush1.msra.mxu0 0.0
        %6783 = vmatprep.subr.mxu0 0.0
        %6784 = vmatpush1.msra.mxu0 0.0
        %6785 = vmatprep.subr.mxu0 0.0
        %6786 = vmatpush1.msra.mxu0 0.0
        %6787 = vmatprep.subr.mxu0 0.0
        %6788 = vmatpush1.msra.mxu0 0.0
        %6789 = vmatprep.subr.mxu0 0.0
        %6790 = vmatpush1.msra.mxu0 0.0
        %6791 = vmatprep.subr.mxu0 0.0
        %6792 = vmatpush1.msra.mxu0 0.0
        %6793 = vmatprep.subr.mxu0 0.0
        %6794 = vmatpush1.msra.mxu0 0.0
        %6795 = vmatprep.mubr.f32.mxu0 0.0
        %v6796 = vand.u32 %v6728, 4294901760
        %v6797 = vsub.f32 %v6728, %v6796
        %v6798 = vand.u32 %v6797, 4294901760
        %v6799 = vsub.f32 %v6797, %v6798
        %v6800 = vand.u32 %v6799, 4294901760
        %6801 = vmatmul.mubr.f32.gmra.mrb[0].mxu0 %v6800
        %v6802 = vpop.f32.mrb[0].mxu0
        %v6803 = vadd.f32 0.0, %v6802
        %v6804 = vpop.f32.mrb[0].mxu0
        %6805 = vdwg.mxu0
        %6806 = vmatprep.subr.mxu0 0.0
        %v6807 = vand.u32 %v5791, 4294901760
        %v6808 = vsub.f32 %v5791, %v6807
        %v6809 = vand.u32 %v6808, 4294901760
        %v6810 = vsub.f32 %v6808, %v6809
        %v6811 = vand.u32 %v6810, 4294901760
        %6812 = vmatpush1.msra.mxu0 %v6811
        %6813 = vmatprep.subr.mxu0 0.0
        %6814 = vmatpush1.msra.mxu0 0.0
        %6815 = vmatprep.subr.mxu0 0.0
        %6816 = vmatpush1.msra.mxu0 0.0
        %6817 = vmatprep.subr.mxu0 0.0
        %6818 = vmatpush1.msra.mxu0 0.0
        %6819 = vmatprep.subr.mxu0 0.0
        %6820 = vmatpush1.msra.mxu0 0.0
        %6821 = vmatprep.subr.mxu0 0.0
        %6822 = vmatpush1.msra.mxu0 0.0
        %6823 = vmatprep.subr.mxu0 0.0
        %6824 = vmatpush1.msra.mxu0 0.0
        %6825 = vmatprep.subr.mxu0 0.0
        %6826 = vmatpush1.msra.mxu0 0.0
        %6827 = vmatprep.subr.mxu0 0.0
        %6828 = vmatpush1.msra.mxu0 0.0
        %6829 = vmatprep.subr.mxu0 0.0
        %6830 = vmatpush1.msra.mxu0 0.0
        %6831 = vmatprep.subr.mxu0 0.0
        %6832 = vmatpush1.msra.mxu0 0.0
        %6833 = vmatprep.subr.mxu0 0.0
        %6834 = vmatpush1.msra.mxu0 0.0
        %6835 = vmatprep.subr.mxu0 0.0
        %6836 = vmatpush1.msra.mxu0 0.0
        %6837 = vmatprep.subr.mxu0 0.0
        %6838 = vmatpush1.msra.mxu0 0.0
        %6839 = vmatprep.subr.mxu0 0.0
        %6840 = vmatpush1.msra.mxu0 0.0
        %6841 = vmatprep.subr.mxu0 0.0
        %6842 = vmatpush1.msra.mxu0 0.0
        %6843 = vmatprep.subr.mxu0 0.0
        %6844 = vmatpush1.msra.mxu0 0.0
        %6845 = vmatprep.subr.mxu0 0.0
        %6846 = vmatpush1.msra.mxu0 0.0
        %6847 = vmatprep.subr.mxu0 0.0
        %6848 = vmatpush1.msra.mxu0 0.0
        %6849 = vmatprep.subr.mxu0 0.0
        %6850 = vmatpush1.msra.mxu0 0.0
        %6851 = vmatprep.subr.mxu0 0.0
        %6852 = vmatpush1.msra.mxu0 0.0
        %6853 = vmatprep.subr.mxu0 0.0
        %6854 = vmatpush1.msra.mxu0 0.0
        %6855 = vmatprep.subr.mxu0 0.0
        %6856 = vmatpush1.msra.mxu0 0.0
        %6857 = vmatprep.subr.mxu0 0.0
        %6858 = vmatpush1.msra.mxu0 0.0
        %6859 = vmatprep.subr.mxu0 0.0
        %6860 = vmatpush1.msra.mxu0 0.0
        %6861 = vmatprep.subr.mxu0 0.0
        %6862 = vmatpush1.msra.mxu0 0.0
        %6863 = vmatprep.subr.mxu0 0.0
        %6864 = vmatpush1.msra.mxu0 0.0
        %6865 = vmatprep.subr.mxu0 0.0
        %6866 = vmatpush1.msra.mxu0 0.0
        %6867 = vmatprep.subr.mxu0 0.0
        %6868 = vmatpush1.msra.mxu0 0.0
        %6869 = vmatprep.subr.mxu0 0.0
        %6870 = vmatpush1.msra.mxu0 0.0
        %6871 = vmatprep.subr.mxu0 0.0
        %6872 = vmatpush1.msra.mxu0 0.0
        %6873 = vmatprep.subr.mxu0 0.0
        %6874 = vmatpush1.msra.mxu0 0.0
        %6875 = vmatprep.mubr.f32.mxu0 0.0
        %v6876 = vand.u32 %v6728, 4294901760
        %6877 = vmatmul.mubr.f32.gmra.mrb[0].mxu0 %v6876
        %v6878 = vpop.f32.mrb[0].mxu0
        %v6879 = vadd.f32 %v6803, %v6878
        %v6880 = vpop.f32.mrb[0].mxu0
        %6881 = vdwg.mxu0
        %6882 = vmatprep.subr.mxu0 0.0
        %v6883 = vand.u32 %v5791, 4294901760
        %v6884 = vsub.f32 %v5791, %v6883
        %6885 = vmatpush1.msra.mxu0 %v6884
        %6886 = vmatprep.subr.mxu0 0.0
        %6887 = vmatpush1.msra.mxu0 0.0
        %6888 = vmatprep.subr.mxu0 0.0
        %6889 = vmatpush1.msra.mxu0 0.0
        %6890 = vmatprep.subr.mxu0 0.0
        %6891 = vmatpush1.msra.mxu0 0.0
        %6892 = vmatprep.subr.mxu0 0.0
        %6893 = vmatpush1.msra.mxu0 0.0
        %6894 = vmatprep.subr.mxu0 0.0
        %6895 = vmatpush1.msra.mxu0 0.0
        %6896 = vmatprep.subr.mxu0 0.0
        %6897 = vmatpush1.msra.mxu0 0.0
        %6898 = vmatprep.subr.mxu0 0.0
        %6899 = vmatpush1.msra.mxu0 0.0
        %6900 = vmatprep.subr.mxu0 0.0
        %6901 = vmatpush1.msra.mxu0 0.0
        %6902 = vmatprep.subr.mxu0 0.0
        %6903 = vmatpush1.msra.mxu0 0.0
        %6904 = vmatprep.subr.mxu0 0.0
        %6905 = vmatpush1.msra.mxu0 0.0
        %6906 = vmatprep.subr.mxu0 0.0
        %6907 = vmatpush1.msra.mxu0 0.0
        %6908 = vmatprep.subr.mxu0 0.0
        %6909 = vmatpush1.msra.mxu0 0.0
        %6910 = vmatprep.subr.mxu0 0.0
        %6911 = vmatpush1.msra.mxu0 0.0
        %6912 = vmatprep.subr.mxu0 0.0
        %6913 = vmatpush1.msra.mxu0 0.0
        %6914 = vmatprep.subr.mxu0 0.0
        %6915 = vmatpush1.msra.mxu0 0.0
        %6916 = vmatprep.subr.mxu0 0.0
        %6917 = vmatpush1.msra.mxu0 0.0
        %6918 = vmatprep.subr.mxu0 0.0
        %6919 = vmatpush1.msra.mxu0 0.0
        %6920 = vmatprep.subr.mxu0 0.0
        %6921 = vmatpush1.msra.mxu0 0.0
        %6922 = vmatprep.subr.mxu0 0.0
        %6923 = vmatpush1.msra.mxu0 0.0
        %6924 = vmatprep.subr.mxu0 0.0
        %6925 = vmatpush1.msra.mxu0 0.0
        %6926 = vmatprep.subr.mxu0 0.0
        %6927 = vmatpush1.msra.mxu0 0.0
        %6928 = vmatprep.subr.mxu0 0.0
        %6929 = vmatpush1.msra.mxu0 0.0
        %6930 = vmatprep.subr.mxu0 0.0
        %6931 = vmatpush1.msra.mxu0 0.0
        %6932 = vmatprep.subr.mxu0 0.0
        %6933 = vmatpush1.msra.mxu0 0.0
        %6934 = vmatprep.subr.mxu0 0.0
        %6935 = vmatpush1.msra.mxu0 0.0
        %6936 = vmatprep.subr.mxu0 0.0
        %6937 = vmatpush1.msra.mxu0 0.0
        %6938 = vmatprep.subr.mxu0 0.0
        %6939 = vmatpush1.msra.mxu0 0.0
        %6940 = vmatprep.subr.mxu0 0.0
        %6941 = vmatpush1.msra.mxu0 0.0
        %6942 = vmatprep.subr.mxu0 0.0
        %6943 = vmatpush1.msra.mxu0 0.0
        %6944 = vmatprep.subr.mxu0 0.0
        %6945 = vmatpush1.msra.mxu0 0.0
        %6946 = vmatprep.subr.mxu0 0.0
        %6947 = vmatpush1.msra.mxu0 0.0
        %6948 = vmatprep.mubr.f32.mxu0 0.0
        %v6949 = vand.u32 %v6728, 4294901760
        %v6950 = vsub.f32 %v6728, %v6949
        %6951 = vmatmul.mubr.f32.gmra.mrb[0].mxu0 %v6950
        %v6952 = vpop.f32.mrb[0].mxu0
        %v6953 = vadd.f32 %v6879, %v6952
        %v6954 = vpop.f32.mrb[0].mxu0
        %6955 = vdwg.mxu0
        %6956 = vmatprep.subr.mxu0 0.0
        %v6957 = vand.u32 %v5791, 4294901760
        %6958 = vmatpush1.msra.mxu0 %v6957
        %6959 = vmatprep.subr.mxu0 0.0
        %6960 = vmatpush1.msra.mxu0 0.0
        %6961 = vmatprep.subr.mxu0 0.0
        %6962 = vmatpush1.msra.mxu0 0.0
        %6963 = vmatprep.subr.mxu0 0.0
        %6964 = vmatpush1.msra.mxu0 0.0
        %6965 = vmatprep.subr.mxu0 0.0
        %6966 = vmatpush1.msra.mxu0 0.0
        %6967 = vmatprep.subr.mxu0 0.0
        %6968 = vmatpush1.msra.mxu0 0.0
        %6969 = vmatprep.subr.mxu0 0.0
        %6970 = vmatpush1.msra.mxu0 0.0
        %6971 = vmatprep.subr.mxu0 0.0
        %6972 = vmatpush1.msra.mxu0 0.0
        %6973 = vmatprep.subr.mxu0 0.0
        %6974 = vmatpush1.msra.mxu0 0.0
        %6975 = vmatprep.subr.mxu0 0.0
        %6976 = vmatpush1.msra.mxu0 0.0
        %6977 = vmatprep.subr.mxu0 0.0
        %6978 = vmatpush1.msra.mxu0 0.0
        %6979 = vmatprep.subr.mxu0 0.0
        %6980 = vmatpush1.msra.mxu0 0.0
        %6981 = vmatprep.subr.mxu0 0.0
        %6982 = vmatpush1.msra.mxu0 0.0
        %6983 = vmatprep.subr.mxu0 0.0
        %6984 = vmatpush1.msra.mxu0 0.0
        %6985 = vmatprep.subr.mxu0 0.0
        %6986 = vmatpush1.msra.mxu0 0.0
        %6987 = vmatprep.subr.mxu0 0.0
        %6988 = vmatpush1.msra.mxu0 0.0
        %6989 = vmatprep.subr.mxu0 0.0
        %6990 = vmatpush1.msra.mxu0 0.0
        %6991 = vmatprep.subr.mxu0 0.0
        %6992 = vmatpush1.msra.mxu0 0.0
        %6993 = vmatprep.subr.mxu0 0.0
        %6994 = vmatpush1.msra.mxu0 0.0
        %6995 = vmatprep.subr.mxu0 0.0
        %6996 = vmatpush1.msra.mxu0 0.0
        %6997 = vmatprep.subr.mxu0 0.0
        %6998 = vmatpush1.msra.mxu0 0.0
        %6999 = vmatprep.subr.mxu0 0.0
        %7000 = vmatpush1.msra.mxu0 0.0
        %7001 = vmatprep.subr.mxu0 0.0
        %7002 = vmatpush1.msra.mxu0 0.0
        %7003 = vmatprep.subr.mxu0 0.0
        %7004 = vmatpush1.msra.mxu0 0.0
        %7005 = vmatprep.subr.mxu0 0.0
        %7006 = vmatpush1.msra.mxu0 0.0
        %7007 = vmatprep.subr.mxu0 0.0
        %7008 = vmatpush1.msra.mxu0 0.0
        %7009 = vmatprep.subr.mxu0 0.0
        %7010 = vmatpush1.msra.mxu0 0.0
        %7011 = vmatprep.subr.mxu0 0.0
        %7012 = vmatpush1.msra.mxu0 0.0
        %7013 = vmatprep.subr.mxu0 0.0
        %7014 = vmatpush1.msra.mxu0 0.0
        %7015 = vmatprep.subr.mxu0 0.0
        %7016 = vmatpush1.msra.mxu0 0.0
        %7017 = vmatprep.subr.mxu0 0.0
        %7018 = vmatpush1.msra.mxu0 0.0
        %7019 = vmatprep.subr.mxu0 0.0
        %7020 = vmatpush1.msra.mxu0 0.0
        %7021 = vmatprep.mubr.f32.mxu0 0.0
        %v7022 = vand.u32 %v6728, 4294901760
        %v7023 = vsub.f32 %v6728, %v7022
        %v7024 = vand.u32 %v7023, 4294901760
        %7025 = vmatmul.mubr.f32.gmra.mrb[0].mxu0 %v7024
        %v7026 = vpop.f32.mrb[0].mxu0
        %v7027 = vadd.f32 %v6953, %v7026
        %v7028 = vpop.f32.mrb[0].mxu0
        %7029 = vdwg.mxu0
        %7030 = vmatprep.subr.mxu0 0.0
        %v7031 = vand.u32 %v5791, 4294901760
        %v7032 = vsub.f32 %v5791, %v7031
        %v7033 = vand.u32 %v7032, 4294901760
        %7034 = vmatpush1.msra.mxu0 %v7033
        %7035 = vmatprep.subr.mxu0 0.0
        %7036 = vmatpush1.msra.mxu0 0.0
        %7037 = vmatprep.subr.mxu0 0.0
        %7038 = vmatpush1.msra.mxu0 0.0
        %7039 = vmatprep.subr.mxu0 0.0
        %7040 = vmatpush1.msra.mxu0 0.0
        %7041 = vmatprep.subr.mxu0 0.0
        %7042 = vmatpush1.msra.mxu0 0.0
        %7043 = vmatprep.subr.mxu0 0.0
        %7044 = vmatpush1.msra.mxu0 0.0
        %7045 = vmatprep.subr.mxu0 0.0
        %7046 = vmatpush1.msra.mxu0 0.0
        %7047 = vmatprep.subr.mxu0 0.0
        %7048 = vmatpush1.msra.mxu0 0.0
        %7049 = vmatprep.subr.mxu0 0.0
        %7050 = vmatpush1.msra.mxu0 0.0
        %7051 = vmatprep.subr.mxu0 0.0
        %7052 = vmatpush1.msra.mxu0 0.0
        %7053 = vmatprep.subr.mxu0 0.0
        %7054 = vmatpush1.msra.mxu0 0.0
        %7055 = vmatprep.subr.mxu0 0.0
        %7056 = vmatpush1.msra.mxu0 0.0
        %7057 = vmatprep.subr.mxu0 0.0
        %7058 = vmatpush1.msra.mxu0 0.0
        %7059 = vmatprep.subr.mxu0 0.0
        %7060 = vmatpush1.msra.mxu0 0.0
        %7061 = vmatprep.subr.mxu0 0.0
        %7062 = vmatpush1.msra.mxu0 0.0
        %7063 = vmatprep.subr.mxu0 0.0
        %7064 = vmatpush1.msra.mxu0 0.0
        %7065 = vmatprep.subr.mxu0 0.0
        %7066 = vmatpush1.msra.mxu0 0.0
        %7067 = vmatprep.subr.mxu0 0.0
        %7068 = vmatpush1.msra.mxu0 0.0
        %7069 = vmatprep.subr.mxu0 0.0
        %7070 = vmatpush1.msra.mxu0 0.0
        %7071 = vmatprep.subr.mxu0 0.0
        %7072 = vmatpush1.msra.mxu0 0.0
        %7073 = vmatprep.subr.mxu0 0.0
        %7074 = vmatpush1.msra.mxu0 0.0
        %7075 = vmatprep.subr.mxu0 0.0
        %7076 = vmatpush1.msra.mxu0 0.0
        %7077 = vmatprep.subr.mxu0 0.0
        %7078 = vmatpush1.msra.mxu0 0.0
        %7079 = vmatprep.subr.mxu0 0.0
        %7080 = vmatpush1.msra.mxu0 0.0
        %7081 = vmatprep.subr.mxu0 0.0
        %7082 = vmatpush1.msra.mxu0 0.0
        %7083 = vmatprep.subr.mxu0 0.0
        %7084 = vmatpush1.msra.mxu0 0.0
        %7085 = vmatprep.subr.mxu0 0.0
        %7086 = vmatpush1.msra.mxu0 0.0
        %7087 = vmatprep.subr.mxu0 0.0
        %7088 = vmatpush1.msra.mxu0 0.0
        %7089 = vmatprep.subr.mxu0 0.0
        %7090 = vmatpush1.msra.mxu0 0.0
        %7091 = vmatprep.subr.mxu0 0.0
        %7092 = vmatpush1.msra.mxu0 0.0
        %7093 = vmatprep.subr.mxu0 0.0
        %7094 = vmatpush1.msra.mxu0 0.0
        %7095 = vmatprep.subr.mxu0 0.0
        %7096 = vmatpush1.msra.mxu0 0.0
        %7097 = vmatprep.mubr.f32.mxu0 0.0
        %v7098 = vand.u32 %v6728, 4294901760
        %7099 = vmatmul.mubr.f32.gmra.mrb[0].mxu0 %v7098
        %v7100 = vpop.f32.mrb[0].mxu0
        %v7101 = vadd.f32 %v7027, %v7100
        %v7102 = vpop.f32.mrb[0].mxu0
        %7103 = vdwg.mxu0
        %7104 = vmatprep.subr.mxu0 0.0
        %v7105 = vand.u32 %v5791, 4294901760
        %7106 = vmatpush1.msra.mxu0 %v7105
        %7107 = vmatprep.subr.mxu0 0.0
        %7108 = vmatpush1.msra.mxu0 0.0
        %7109 = vmatprep.subr.mxu0 0.0
        %7110 = vmatpush1.msra.mxu0 0.0
        %7111 = vmatprep.subr.mxu0 0.0
        %7112 = vmatpush1.msra.mxu0 0.0
        %7113 = vmatprep.subr.mxu0 0.0
        %7114 = vmatpush1.msra.mxu0 0.0
        %7115 = vmatprep.subr.mxu0 0.0
        %7116 = vmatpush1.msra.mxu0 0.0
        %7117 = vmatprep.subr.mxu0 0.0
        %7118 = vmatpush1.msra.mxu0 0.0
        %7119 = vmatprep.subr.mxu0 0.0
        %7120 = vmatpush1.msra.mxu0 0.0
        %7121 = vmatprep.subr.mxu0 0.0
        %7122 = vmatpush1.msra.mxu0 0.0
        %7123 = vmatprep.subr.mxu0 0.0
        %7124 = vmatpush1.msra.mxu0 0.0
        %7125 = vmatprep.subr.mxu0 0.0
        %7126 = vmatpush1.msra.mxu0 0.0
        %7127 = vmatprep.subr.mxu0 0.0
        %7128 = vmatpush1.msra.mxu0 0.0
        %7129 = vmatprep.subr.mxu0 0.0
        %7130 = vmatpush1.msra.mxu0 0.0
        %7131 = vmatprep.subr.mxu0 0.0
        %7132 = vmatpush1.msra.mxu0 0.0
        %7133 = vmatprep.subr.mxu0 0.0
        %7134 = vmatpush1.msra.mxu0 0.0
        %7135 = vmatprep.subr.mxu0 0.0
        %7136 = vmatpush1.msra.mxu0 0.0
        %7137 = vmatprep.subr.mxu0 0.0
        %7138 = vmatpush1.msra.mxu0 0.0
        %7139 = vmatprep.subr.mxu0 0.0
        %7140 = vmatpush1.msra.mxu0 0.0
        %7141 = vmatprep.subr.mxu0 0.0
        %7142 = vmatpush1.msra.mxu0 0.0
        %7143 = vmatprep.subr.mxu0 0.0
        %7144 = vmatpush1.msra.mxu0 0.0
        %7145 = vmatprep.subr.mxu0 0.0
        %7146 = vmatpush1.msra.mxu0 0.0
        %7147 = vmatprep.subr.mxu0 0.0
        %7148 = vmatpush1.msra.mxu0 0.0
        %7149 = vmatprep.subr.mxu0 0.0
        %7150 = vmatpush1.msra.mxu0 0.0
        %7151 = vmatprep.subr.mxu0 0.0
        %7152 = vmatpush1.msra.mxu0 0.0
        %7153 = vmatprep.subr.mxu0 0.0
        %7154 = vmatpush1.msra.mxu0 0.0
        %7155 = vmatprep.subr.mxu0 0.0
        %7156 = vmatpush1.msra.mxu0 0.0
        %7157 = vmatprep.subr.mxu0 0.0
        %7158 = vmatpush1.msra.mxu0 0.0
        %7159 = vmatprep.subr.mxu0 0.0
        %7160 = vmatpush1.msra.mxu0 0.0
        %7161 = vmatprep.subr.mxu0 0.0
        %7162 = vmatpush1.msra.mxu0 0.0
        %7163 = vmatprep.subr.mxu0 0.0
        %7164 = vmatpush1.msra.mxu0 0.0
        %7165 = vmatprep.subr.mxu0 0.0
        %7166 = vmatpush1.msra.mxu0 0.0
        %7167 = vmatprep.subr.mxu0 0.0
        %7168 = vmatpush1.msra.mxu0 0.0
        %7169 = vmatprep.mubr.f32.mxu0 0.0
        %v7170 = vand.u32 %v6728, 4294901760
        %7171 = vmatmul.mubr.f32.gmra.mrb[0].mxu0 %v7170
        %v7172 = vpop.f32.mrb[0].mxu0
        %v7173 = vadd.f32 %v7101, %v7172
        %v7174 = vpop.f32.mrb[0].mxu0
        %7175 = vdwg.mxu0
        %v7176 = vadd.f32 %v6712, %v7173
        %v7177 = vld [vmem:[%s4] sm:$0x1]
        %v7179 = vlaneseq
        %v7180 = vshrl.u32 %v7179, 7
        %v7181 = vsub.s32 0, %v7180
        %v7182 = vrot.slane %v7177, %v7181
        %v7184 = vadd.f32 %v7176, %v7182
        %v7185 = vmax.f32 %v7184, 0.0
        %v7186 = vld [vmem:[#allocation7] sm:$0xff]
        %v7187 = vld [vmem:[#allocation7 + $0x8] sm:$0xf]
        %v7188 = vld [vmem:[#allocation7 + $0xc] sm:$0xff]
        %v7189 = vld [vmem:[#allocation7 + $0x14] sm:$0xf]
        %v7190 = vld [vmem:[#allocation7 + $0x18] sm:$0xff]
        %v7191 = vld [vmem:[#allocation7 + $0x20] sm:$0xf]
        %v7192 = vld [vmem:[#allocation7 + $0x24] sm:$0xff]
        %v7193 = vld [vmem:[#allocation7 + $0x2c] sm:$0xf]
        %v7194 = vld [vmem:[#allocation7 + $0x30] sm:$0xff]
        %v7195 = vld [vmem:[#allocation7 + $0x38] sm:$0xf]
        %v7196 = vld [vmem:[#allocation7 + $0x3c] sm:$0xff]
        %v7197 = vld [vmem:[#allocation7 + $0x44] sm:$0xf]
        %v7198 = vld [vmem:[#allocation7 + $0x48] sm:$0xff]
        %v7199 = vld [vmem:[#allocation7 + $0x50] sm:$0xf]
        %v7200 = vld [vmem:[#allocation7 + $0x54] sm:$0xff]
        %v7201 = vld [vmem:[#allocation7 + $0x5c] sm:$0xf]
        %v7202 = vld [vmem:[#allocation7 + $0x60] sm:$0xff]
        %v7203 = vld [vmem:[#allocation7 + $0x68] sm:$0xf]
        %v7204 = vld [vmem:[#allocation7 + $0x6c] sm:$0xff]
        %v7205 = vld [vmem:[#allocation7 + $0x74] sm:$0xf]
        %v7206 = vld [vmem:[#allocation7 + $0x78] sm:$0xff]
        %v7207 = vld [vmem:[#allocation7 + $0x80] sm:$0xf]
        %v7208 = vld [vmem:[#allocation7 + $0x84] sm:$0xff]
        %v7209 = vld [vmem:[#allocation7 + $0x8c] sm:$0xf]
        %v7210 = vld [vmem:[#allocation7 + $0x90] sm:$0xff]
        %v7211 = vld [vmem:[#allocation7 + $0x98] sm:$0xf]
        %v7212 = vld [vmem:[#allocation7 + $0x9c] sm:$0xff]
        %v7213 = vld [vmem:[#allocation7 + $0xa4] sm:$0xf]
        %v7214 = vld [vmem:[#allocation7 + $0xa8] sm:$0xff]
        %v7215 = vld [vmem:[#allocation7 + $0xb0] sm:$0xf]
        %v7216 = vld [vmem:[#allocation7 + $0xb4] sm:$0xff]
        %v7217 = vld [vmem:[#allocation7 + $0xbc] sm:$0xf]
        %7218 = vmatprep.subr.mxu0 0.0
        %v7219 = vand.u32 %v7185, 4294901760
        %7220 = vmatpush1.xpose.msra.mxu0 %v7219
        %7221 = vmatprep.subr.mxu0 0.0
        %7222 = vmatpush1.xpose.msra.mxu0 0.0
        %7223 = vmatprep.subr.mxu0 0.0
        %7224 = vmatpush1.xpose.msra.mxu0 0.0
        %7225 = vmatprep.subr.mxu0 0.0
        %7226 = vmatpush1.xpose.msra.mxu0 0.0
        %7227 = vmatprep.subr.mxu0 0.0
        %7228 = vmatpush1.xpose.msra.mxu0 0.0
        %7229 = vmatprep.subr.mxu0 0.0
        %7230 = vmatpush1.xpose.msra.mxu0 0.0
        %7231 = vmatprep.subr.mxu0 0.0
        %7232 = vmatpush1.xpose.msra.mxu0 0.0
        %7233 = vmatprep.subr.mxu0 0.0
        %7234 = vmatpush1.xpose.msra.mxu0 0.0
        %7235 = vmatprep.subr.mxu0 0.0
        %7236 = vmatpush1.xpose.msra.mxu0 0.0
        %7237 = vmatprep.subr.mxu0 0.0
        %7238 = vmatpush1.xpose.msra.mxu0 0.0
        %7239 = vmatprep.subr.mxu0 0.0
        %7240 = vmatpush1.xpose.msra.mxu0 0.0
        %7241 = vmatprep.subr.mxu0 0.0
        %7242 = vmatpush1.xpose.msra.mxu0 0.0
        %7243 = vmatprep.subr.mxu0 0.0
        %7244 = vmatpush1.xpose.msra.mxu0 0.0
        %7245 = vmatprep.subr.mxu0 0.0
        %7246 = vmatpush1.xpose.msra.mxu0 0.0
        %7247 = vmatprep.subr.mxu0 0.0
        %7248 = vmatpush1.xpose.msra.mxu0 0.0
        %7249 = vmatprep.subr.mxu0 0.0
        %7250 = vmatpush1.xpose.msra.mxu0 0.0
        %7251 = vmatprep.subr.mxu0 0.0
        %7252 = vmatpush1.xpose.msra.mxu0 0.0
        %7253 = vmatprep.subr.mxu0 0.0
        %7254 = vmatpush1.xpose.msra.mxu0 0.0
        %7255 = vmatprep.subr.mxu0 0.0
        %7256 = vmatpush1.xpose.msra.mxu0 0.0
        %7257 = vmatprep.subr.mxu0 0.0
        %7258 = vmatpush1.xpose.msra.mxu0 0.0
        %7259 = vmatprep.subr.mxu0 0.0
        %7260 = vmatpush1.xpose.msra.mxu0 0.0
        %7261 = vmatprep.subr.mxu0 0.0
        %7262 = vmatpush1.xpose.msra.mxu0 0.0
        %7263 = vmatprep.subr.mxu0 0.0
        %7264 = vmatpush1.xpose.msra.mxu0 0.0
        %7265 = vmatprep.subr.mxu0 0.0
        %7266 = vmatpush1.xpose.msra.mxu0 0.0
        %7267 = vmatprep.subr.mxu0 0.0
        %7268 = vmatpush1.xpose.msra.mxu0 0.0
        %7269 = vmatprep.subr.mxu0 0.0
        %7270 = vmatpush1.xpose.msra.mxu0 0.0
        %7271 = vmatprep.subr.mxu0 0.0
        %7272 = vmatpush1.xpose.msra.mxu0 0.0
        %7273 = vmatprep.subr.mxu0 0.0
        %7274 = vmatpush1.xpose.msra.mxu0 0.0
        %7275 = vmatprep.subr.mxu0 0.0
        %7276 = vmatpush1.xpose.msra.mxu0 0.0
        %7277 = vmatprep.subr.mxu0 0.0
        %7278 = vmatpush1.xpose.msra.mxu0 0.0
        %7279 = vmatprep.subr.mxu0 0.0
        %7280 = vmatpush1.xpose.msra.mxu0 0.0
        %7281 = vmatprep.subr.mxu0 0.0
        %7282 = vmatpush1.xpose.msra.mxu0 0.0
        %7283 = vmatprep.mubr.f32.mxu0 0.0
        %v7284 = vand.u32 %v7185, 4294901760
        %v7285 = vsub.f32 %v7185, %v7284
        %v7286 = vand.u32 %v7285, 4294901760
        %v7287 = vsub.f32 %v7285, %v7286
        %v7288 = vand.u32 %v7287, 4294901760
        %7289 = vmatmul.mubr.f32.gmra.mrb[0].mxu0 %v7288
        %v7290 = vpop.f32.mrb[0].mxu0
        %v7291 = vadd.f32 0.0, %v7290
        %v7292 = vpop.f32.mrb[0].mxu0
        %7293 = vdwg.mxu0
        %7294 = vmatprep.subr.mxu0 0.0
        %v7295 = vand.u32 %v7185, 4294901760
        %v7296 = vsub.f32 %v7185, %v7295
        %v7297 = vand.u32 %v7296, 4294901760
        %v7298 = vsub.f32 %v7296, %v7297
        %v7299 = vand.u32 %v7298, 4294901760
        %7300 = vmatpush1.xpose.msra.mxu0 %v7299
        %7301 = vmatprep.subr.mxu0 0.0
        %7302 = vmatpush1.xpose.msra.mxu0 0.0
        %7303 = vmatprep.subr.mxu0 0.0
        %7304 = vmatpush1.xpose.msra.mxu0 0.0
        %7305 = vmatprep.subr.mxu0 0.0
        %7306 = vmatpush1.xpose.msra.mxu0 0.0
        %7307 = vmatprep.subr.mxu0 0.0
        %7308 = vmatpush1.xpose.msra.mxu0 0.0
        %7309 = vmatprep.subr.mxu0 0.0
        %7310 = vmatpush1.xpose.msra.mxu0 0.0
        %7311 = vmatprep.subr.mxu0 0.0
        %7312 = vmatpush1.xpose.msra.mxu0 0.0
        %7313 = vmatprep.subr.mxu0 0.0
        %7314 = vmatpush1.xpose.msra.mxu0 0.0
        %7315 = vmatprep.subr.mxu0 0.0
        %7316 = vmatpush1.xpose.msra.mxu0 0.0
        %7317 = vmatprep.subr.mxu0 0.0
        %7318 = vmatpush1.xpose.msra.mxu0 0.0
        %7319 = vmatprep.subr.mxu0 0.0
        %7320 = vmatpush1.xpose.msra.mxu0 0.0
        %7321 = vmatprep.subr.mxu0 0.0
        %7322 = vmatpush1.xpose.msra.mxu0 0.0
        %7323 = vmatprep.subr.mxu0 0.0
        %7324 = vmatpush1.xpose.msra.mxu0 0.0
        %7325 = vmatprep.subr.mxu0 0.0
        %7326 = vmatpush1.xpose.msra.mxu0 0.0
        %7327 = vmatprep.subr.mxu0 0.0
        %7328 = vmatpush1.xpose.msra.mxu0 0.0
        %7329 = vmatprep.subr.mxu0 0.0
        %7330 = vmatpush1.xpose.msra.mxu0 0.0
        %7331 = vmatprep.subr.mxu0 0.0
        %7332 = vmatpush1.xpose.msra.mxu0 0.0
        %7333 = vmatprep.subr.mxu0 0.0
        %7334 = vmatpush1.xpose.msra.mxu0 0.0
        %7335 = vmatprep.subr.mxu0 0.0
        %7336 = vmatpush1.xpose.msra.mxu0 0.0
        %7337 = vmatprep.subr.mxu0 0.0
        %7338 = vmatpush1.xpose.msra.mxu0 0.0
        %7339 = vmatprep.subr.mxu0 0.0
        %7340 = vmatpush1.xpose.msra.mxu0 0.0
        %7341 = vmatprep.subr.mxu0 0.0
        %7342 = vmatpush1.xpose.msra.mxu0 0.0
        %7343 = vmatprep.subr.mxu0 0.0
        %7344 = vmatpush1.xpose.msra.mxu0 0.0
        %7345 = vmatprep.subr.mxu0 0.0
        %7346 = vmatpush1.xpose.msra.mxu0 0.0
        %7347 = vmatprep.subr.mxu0 0.0
        %7348 = vmatpush1.xpose.msra.mxu0 0.0
        %7349 = vmatprep.subr.mxu0 0.0
        %7350 = vmatpush1.xpose.msra.mxu0 0.0
        %7351 = vmatprep.subr.mxu0 0.0
        %7352 = vmatpush1.xpose.msra.mxu0 0.0
        %7353 = vmatprep.subr.mxu0 0.0
        %7354 = vmatpush1.xpose.msra.mxu0 0.0
        %7355 = vmatprep.subr.mxu0 0.0
        %7356 = vmatpush1.xpose.msra.mxu0 0.0
        %7357 = vmatprep.subr.mxu0 0.0
        %7358 = vmatpush1.xpose.msra.mxu0 0.0
        %7359 = vmatprep.subr.mxu0 0.0
        %7360 = vmatpush1.xpose.msra.mxu0 0.0
        %7361 = vmatprep.subr.mxu0 0.0
        %7362 = vmatpush1.xpose.msra.mxu0 0.0
        %7363 = vmatprep.mubr.f32.mxu0 0.0
        %v7364 = vand.u32 %v7185, 4294901760
        %7365 = vmatmul.mubr.f32.gmra.mrb[0].mxu0 %v7364
        %v7366 = vpop.f32.mrb[0].mxu0
        %v7367 = vadd.f32 %v7291, %v7366
        %v7368 = vpop.f32.mrb[0].mxu0
        %7369 = vdwg.mxu0
        %7370 = vmatprep.subr.mxu0 0.0
        %v7371 = vand.u32 %v7185, 4294901760
        %v7372 = vsub.f32 %v7185, %v7371
        %7373 = vmatpush1.xpose.msra.mxu0 %v7372
        %7374 = vmatprep.subr.mxu0 0.0
        %7375 = vmatpush1.xpose.msra.mxu0 0.0
        %7376 = vmatprep.subr.mxu0 0.0
        %7377 = vmatpush1.xpose.msra.mxu0 0.0
        %7378 = vmatprep.subr.mxu0 0.0
        %7379 = vmatpush1.xpose.msra.mxu0 0.0
        %7380 = vmatprep.subr.mxu0 0.0
        %7381 = vmatpush1.xpose.msra.mxu0 0.0
        %7382 = vmatprep.subr.mxu0 0.0
        %7383 = vmatpush1.xpose.msra.mxu0 0.0
        %7384 = vmatprep.subr.mxu0 0.0
        %7385 = vmatpush1.xpose.msra.mxu0 0.0
        %7386 = vmatprep.subr.mxu0 0.0
        %7387 = vmatpush1.xpose.msra.mxu0 0.0
        %7388 = vmatprep.subr.mxu0 0.0
        %7389 = vmatpush1.xpose.msra.mxu0 0.0
        %7390 = vmatprep.subr.mxu0 0.0
        %7391 = vmatpush1.xpose.msra.mxu0 0.0
        %7392 = vmatprep.subr.mxu0 0.0
        %7393 = vmatpush1.xpose.msra.mxu0 0.0
        %7394 = vmatprep.subr.mxu0 0.0
        %7395 = vmatpush1.xpose.msra.mxu0 0.0
        %7396 = vmatprep.subr.mxu0 0.0
        %7397 = vmatpush1.xpose.msra.mxu0 0.0
        %7398 = vmatprep.subr.mxu0 0.0
        %7399 = vmatpush1.xpose.msra.mxu0 0.0
        %7400 = vmatprep.subr.mxu0 0.0
        %7401 = vmatpush1.xpose.msra.mxu0 0.0
        %7402 = vmatprep.subr.mxu0 0.0
        %7403 = vmatpush1.xpose.msra.mxu0 0.0
        %7404 = vmatprep.subr.mxu0 0.0
        %7405 = vmatpush1.xpose.msra.mxu0 0.0
        %7406 = vmatprep.subr.mxu0 0.0
        %7407 = vmatpush1.xpose.msra.mxu0 0.0
        %7408 = vmatprep.subr.mxu0 0.0
        %7409 = vmatpush1.xpose.msra.mxu0 0.0
        %7410 = vmatprep.subr.mxu0 0.0
        %7411 = vmatpush1.xpose.msra.mxu0 0.0
        %7412 = vmatprep.subr.mxu0 0.0
        %7413 = vmatpush1.xpose.msra.mxu0 0.0
        %7414 = vmatprep.subr.mxu0 0.0
        %7415 = vmatpush1.xpose.msra.mxu0 0.0
        %7416 = vmatprep.subr.mxu0 0.0
        %7417 = vmatpush1.xpose.msra.mxu0 0.0
        %7418 = vmatprep.subr.mxu0 0.0
        %7419 = vmatpush1.xpose.msra.mxu0 0.0
        %7420 = vmatprep.subr.mxu0 0.0
        %7421 = vmatpush1.xpose.msra.mxu0 0.0
        %7422 = vmatprep.subr.mxu0 0.0
        %7423 = vmatpush1.xpose.msra.mxu0 0.0
        %7424 = vmatprep.subr.mxu0 0.0
        %7425 = vmatpush1.xpose.msra.mxu0 0.0
        %7426 = vmatprep.subr.mxu0 0.0
        %7427 = vmatpush1.xpose.msra.mxu0 0.0
        %7428 = vmatprep.subr.mxu0 0.0
        %7429 = vmatpush1.xpose.msra.mxu0 0.0
        %7430 = vmatprep.subr.mxu0 0.0
        %7431 = vmatpush1.xpose.msra.mxu0 0.0
        %7432 = vmatprep.subr.mxu0 0.0
        %7433 = vmatpush1.xpose.msra.mxu0 0.0
        %7434 = vmatprep.subr.mxu0 0.0
        %7435 = vmatpush1.xpose.msra.mxu0 0.0
        %7436 = vmatprep.mubr.f32.mxu0 0.0
        %v7437 = vand.u32 %v7185, 4294901760
        %v7438 = vsub.f32 %v7185, %v7437
        %7439 = vmatmul.mubr.f32.gmra.mrb[0].mxu0 %v7438
        %v7440 = vpop.f32.mrb[0].mxu0
        %v7441 = vadd.f32 %v7367, %v7440
        %v7442 = vpop.f32.mrb[0].mxu0
        %7443 = vdwg.mxu0
        %7444 = vmatprep.subr.mxu0 0.0
        %v7445 = vand.u32 %v7185, 4294901760
        %7446 = vmatpush1.xpose.msra.mxu0 %v7445
        %7447 = vmatprep.subr.mxu0 0.0
        %7448 = vmatpush1.xpose.msra.mxu0 0.0
        %7449 = vmatprep.subr.mxu0 0.0
        %7450 = vmatpush1.xpose.msra.mxu0 0.0
        %7451 = vmatprep.subr.mxu0 0.0
        %7452 = vmatpush1.xpose.msra.mxu0 0.0
        %7453 = vmatprep.subr.mxu0 0.0
        %7454 = vmatpush1.xpose.msra.mxu0 0.0
        %7455 = vmatprep.subr.mxu0 0.0
        %7456 = vmatpush1.xpose.msra.mxu0 0.0
        %7457 = vmatprep.subr.mxu0 0.0
        %7458 = vmatpush1.xpose.msra.mxu0 0.0
        %7459 = vmatprep.subr.mxu0 0.0
        %7460 = vmatpush1.xpose.msra.mxu0 0.0
        %7461 = vmatprep.subr.mxu0 0.0
        %7462 = vmatpush1.xpose.msra.mxu0 0.0
        %7463 = vmatprep.subr.mxu0 0.0
        %7464 = vmatpush1.xpose.msra.mxu0 0.0
        %7465 = vmatprep.subr.mxu0 0.0
        %7466 = vmatpush1.xpose.msra.mxu0 0.0
        %7467 = vmatprep.subr.mxu0 0.0
        %7468 = vmatpush1.xpose.msra.mxu0 0.0
        %7469 = vmatprep.subr.mxu0 0.0
        %7470 = vmatpush1.xpose.msra.mxu0 0.0
        %7471 = vmatprep.subr.mxu0 0.0
        %7472 = vmatpush1.xpose.msra.mxu0 0.0
        %7473 = vmatprep.subr.mxu0 0.0
        %7474 = vmatpush1.xpose.msra.mxu0 0.0
        %7475 = vmatprep.subr.mxu0 0.0
        %7476 = vmatpush1.xpose.msra.mxu0 0.0
        %7477 = vmatprep.subr.mxu0 0.0
        %7478 = vmatpush1.xpose.msra.mxu0 0.0
        %7479 = vmatprep.subr.mxu0 0.0
        %7480 = vmatpush1.xpose.msra.mxu0 0.0
        %7481 = vmatprep.subr.mxu0 0.0
        %7482 = vmatpush1.xpose.msra.mxu0 0.0
        %7483 = vmatprep.subr.mxu0 0.0
        %7484 = vmatpush1.xpose.msra.mxu0 0.0
        %7485 = vmatprep.subr.mxu0 0.0
        %7486 = vmatpush1.xpose.msra.mxu0 0.0
        %7487 = vmatprep.subr.mxu0 0.0
        %7488 = vmatpush1.xpose.msra.mxu0 0.0
        %7489 = vmatprep.subr.mxu0 0.0
        %7490 = vmatpush1.xpose.msra.mxu0 0.0
        %7491 = vmatprep.subr.mxu0 0.0
        %7492 = vmatpush1.xpose.msra.mxu0 0.0
        %7493 = vmatprep.subr.mxu0 0.0
        %7494 = vmatpush1.xpose.msra.mxu0 0.0
        %7495 = vmatprep.subr.mxu0 0.0
        %7496 = vmatpush1.xpose.msra.mxu0 0.0
        %7497 = vmatprep.subr.mxu0 0.0
        %7498 = vmatpush1.xpose.msra.mxu0 0.0
        %7499 = vmatprep.subr.mxu0 0.0
        %7500 = vmatpush1.xpose.msra.mxu0 0.0
        %7501 = vmatprep.subr.mxu0 0.0
        %7502 = vmatpush1.xpose.msra.mxu0 0.0
        %7503 = vmatprep.subr.mxu0 0.0
        %7504 = vmatpush1.xpose.msra.mxu0 0.0
        %7505 = vmatprep.subr.mxu0 0.0
        %7506 = vmatpush1.xpose.msra.mxu0 0.0
        %7507 = vmatprep.subr.mxu0 0.0
        %7508 = vmatpush1.xpose.msra.mxu0 0.0
        %7509 = vmatprep.mubr.f32.mxu0 0.0
        %v7510 = vand.u32 %v7185, 4294901760
        %v7511 = vsub.f32 %v7185, %v7510
        %v7512 = vand.u32 %v7511, 4294901760
        %7513 = vmatmul.mubr.f32.gmra.mrb[0].mxu0 %v7512
        %v7514 = vpop.f32.mrb[0].mxu0
        %v7515 = vadd.f32 %v7441, %v7514
        %v7516 = vpop.f32.mrb[0].mxu0
        %7517 = vdwg.mxu0
        %7518 = vmatprep.subr.mxu0 0.0
        %v7519 = vand.u32 %v7185, 4294901760
        %v7520 = vsub.f32 %v7185, %v7519
        %v7521 = vand.u32 %v7520, 4294901760
        %7522 = vmatpush1.xpose.msra.mxu0 %v7521
        %7523 = vmatprep.subr.mxu0 0.0
        %7524 = vmatpush1.xpose.msra.mxu0 0.0
        %7525 = vmatprep.subr.mxu0 0.0
        %7526 = vmatpush1.xpose.msra.mxu0 0.0
        %7527 = vmatprep.subr.mxu0 0.0
        %7528 = vmatpush1.xpose.msra.mxu0 0.0
        %7529 = vmatprep.subr.mxu0 0.0
        %7530 = vmatpush1.xpose.msra.mxu0 0.0
        %7531 = vmatprep.subr.mxu0 0.0
        %7532 = vmatpush1.xpose.msra.mxu0 0.0
        %7533 = vmatprep.subr.mxu0 0.0
        %7534 = vmatpush1.xpose.msra.mxu0 0.0
        %7535 = vmatprep.subr.mxu0 0.0
        %7536 = vmatpush1.xpose.msra.mxu0 0.0
        %7537 = vmatprep.subr.mxu0 0.0
        %7538 = vmatpush1.xpose.msra.mxu0 0.0
        %7539 = vmatprep.subr.mxu0 0.0
        %7540 = vmatpush1.xpose.msra.mxu0 0.0
        %7541 = vmatprep.subr.mxu0 0.0
        %7542 = vmatpush1.xpose.msra.mxu0 0.0
        %7543 = vmatprep.subr.mxu0 0.0
        %7544 = vmatpush1.xpose.msra.mxu0 0.0
        %7545 = vmatprep.subr.mxu0 0.0
        %7546 = vmatpush1.xpose.msra.mxu0 0.0
        %7547 = vmatprep.subr.mxu0 0.0
        %7548 = vmatpush1.xpose.msra.mxu0 0.0
        %7549 = vmatprep.subr.mxu0 0.0
        %7550 = vmatpush1.xpose.msra.mxu0 0.0
        %7551 = vmatprep.subr.mxu0 0.0
        %7552 = vmatpush1.xpose.msra.mxu0 0.0
        %7553 = vmatprep.subr.mxu0 0.0
        %7554 = vmatpush1.xpose.msra.mxu0 0.0
        %7555 = vmatprep.subr.mxu0 0.0
        %7556 = vmatpush1.xpose.msra.mxu0 0.0
        %7557 = vmatprep.subr.mxu0 0.0
        %7558 = vmatpush1.xpose.msra.mxu0 0.0
        %7559 = vmatprep.subr.mxu0 0.0
        %7560 = vmatpush1.xpose.msra.mxu0 0.0
        %7561 = vmatprep.subr.mxu0 0.0
        %7562 = vmatpush1.xpose.msra.mxu0 0.0
        %7563 = vmatprep.subr.mxu0 0.0
        %7564 = vmatpush1.xpose.msra.mxu0 0.0
        %7565 = vmatprep.subr.mxu0 0.0
        %7566 = vmatpush1.xpose.msra.mxu0 0.0
        %7567 = vmatprep.subr.mxu0 0.0
        %7568 = vmatpush1.xpose.msra.mxu0 0.0
        %7569 = vmatprep.subr.mxu0 0.0
        %7570 = vmatpush1.xpose.msra.mxu0 0.0
        %7571 = vmatprep.subr.mxu0 0.0
        %7572 = vmatpush1.xpose.msra.mxu0 0.0
        %7573 = vmatprep.subr.mxu0 0.0
        %7574 = vmatpush1.xpose.msra.mxu0 0.0
        %7575 = vmatprep.subr.mxu0 0.0
        %7576 = vmatpush1.xpose.msra.mxu0 0.0
        %7577 = vmatprep.subr.mxu0 0.0
        %7578 = vmatpush1.xpose.msra.mxu0 0.0
        %7579 = vmatprep.subr.mxu0 0.0
        %7580 = vmatpush1.xpose.msra.mxu0 0.0
        %7581 = vmatprep.subr.mxu0 0.0
        %7582 = vmatpush1.xpose.msra.mxu0 0.0
        %7583 = vmatprep.subr.mxu0 0.0
        %7584 = vmatpush1.xpose.msra.mxu0 0.0
        %7585 = vmatprep.mubr.f32.mxu0 0.0
        %v7586 = vand.u32 %v7185, 4294901760
        %7587 = vmatmul.mubr.f32.gmra.mrb[0].mxu0 %v7586
        %v7588 = vpop.f32.mrb[0].mxu0
        %v7589 = vadd.f32 %v7515, %v7588
        %v7590 = vpop.f32.mrb[0].mxu0
        %7591 = vdwg.mxu0
        %7592 = vmatprep.subr.mxu0 0.0
        %v7593 = vand.u32 %v7185, 4294901760
        %7594 = vmatpush1.xpose.msra.mxu0 %v7593
        %7595 = vmatprep.subr.mxu0 0.0
        %7596 = vmatpush1.xpose.msra.mxu0 0.0
        %7597 = vmatprep.subr.mxu0 0.0
        %7598 = vmatpush1.xpose.msra.mxu0 0.0
        %7599 = vmatprep.subr.mxu0 0.0
        %7600 = vmatpush1.xpose.msra.mxu0 0.0
        %7601 = vmatprep.subr.mxu0 0.0
        %7602 = vmatpush1.xpose.msra.mxu0 0.0
        %7603 = vmatprep.subr.mxu0 0.0
        %7604 = vmatpush1.xpose.msra.mxu0 0.0
        %7605 = vmatprep.subr.mxu0 0.0
        %7606 = vmatpush1.xpose.msra.mxu0 0.0
        %7607 = vmatprep.subr.mxu0 0.0
        %7608 = vmatpush1.xpose.msra.mxu0 0.0
        %7609 = vmatprep.subr.mxu0 0.0
        %7610 = vmatpush1.xpose.msra.mxu0 0.0
        %7611 = vmatprep.subr.mxu0 0.0
        %7612 = vmatpush1.xpose.msra.mxu0 0.0
        %7613 = vmatprep.subr.mxu0 0.0
        %7614 = vmatpush1.xpose.msra.mxu0 0.0
        %7615 = vmatprep.subr.mxu0 0.0
        %7616 = vmatpush1.xpose.msra.mxu0 0.0
        %7617 = vmatprep.subr.mxu0 0.0
        %7618 = vmatpush1.xpose.msra.mxu0 0.0
        %7619 = vmatprep.subr.mxu0 0.0
        %7620 = vmatpush1.xpose.msra.mxu0 0.0
        %7621 = vmatprep.subr.mxu0 0.0
        %7622 = vmatpush1.xpose.msra.mxu0 0.0
        %7623 = vmatprep.subr.mxu0 0.0
        %7624 = vmatpush1.xpose.msra.mxu0 0.0
        %7625 = vmatprep.subr.mxu0 0.0
        %7626 = vmatpush1.xpose.msra.mxu0 0.0
        %7627 = vmatprep.subr.mxu0 0.0
        %7628 = vmatpush1.xpose.msra.mxu0 0.0
        %7629 = vmatprep.subr.mxu0 0.0
        %7630 = vmatpush1.xpose.msra.mxu0 0.0
        %7631 = vmatprep.subr.mxu0 0.0
        %7632 = vmatpush1.xpose.msra.mxu0 0.0
        %7633 = vmatprep.subr.mxu0 0.0
        %7634 = vmatpush1.xpose.msra.mxu0 0.0
        %7635 = vmatprep.subr.mxu0 0.0
        %7636 = vmatpush1.xpose.msra.mxu0 0.0
        %7637 = vmatprep.subr.mxu0 0.0
        %7638 = vmatpush1.xpose.msra.mxu0 0.0
        %7639 = vmatprep.subr.mxu0 0.0
        %7640 = vmatpush1.xpose.msra.mxu0 0.0
        %7641 = vmatprep.subr.mxu0 0.0
        %7642 = vmatpush1.xpose.msra.mxu0 0.0
        %7643 = vmatprep.subr.mxu0 0.0
        %7644 = vmatpush1.xpose.msra.mxu0 0.0
        %7645 = vmatprep.subr.mxu0 0.0
        %7646 = vmatpush1.xpose.msra.mxu0 0.0
        %7647 = vmatprep.subr.mxu0 0.0
        %7648 = vmatpush1.xpose.msra.mxu0 0.0
        %7649 = vmatprep.subr.mxu0 0.0
        %7650 = vmatpush1.xpose.msra.mxu0 0.0
        %7651 = vmatprep.subr.mxu0 0.0
        %7652 = vmatpush1.xpose.msra.mxu0 0.0
        %7653 = vmatprep.subr.mxu0 0.0
        %7654 = vmatpush1.xpose.msra.mxu0 0.0
        %7655 = vmatprep.subr.mxu0 0.0
        %7656 = vmatpush1.xpose.msra.mxu0 0.0
        %7657 = vmatprep.mubr.f32.mxu0 0.0
        %v7658 = vand.u32 %v7185, 4294901760
        %7659 = vmatmul.mubr.f32.gmra.mrb[0].mxu0 %v7658
        %v7660 = vpop.f32.mrb[0].mxu0
        %v7661 = vadd.f32 %v7589, %v7660
        %v7662 = vpop.f32.mrb[0].mxu0
        %7663 = vdwg.mxu0
        %v7664 = vsel %vm894, %v7661, 0.0
        %v7665 = vsel %vm896, %v7664, 0.0
        %v7666 = vrot.slane %v7665, 4
        %v7667 = vadd.f32 %v7665, %v7666
        %v7668 = vrot.slane %v7667, 2
        %v7669 = vadd.f32 %v7667, %v7668
        %v7670 = vrot.slane %v7669, 1
        %v7671 = vadd.f32 %v7669, %v7670
        %v7672 = vmul.f32 %v7661, 2.0
        %v7673 = vsub.f32 %v7671, %v7672
        %v7674 = vpack.c.bf16 %v7185, %v7185
        %v7707 = vunpack.c.l.b16 %v7186
        %v7708 = vunpack.c.h.b16 %v7186
        %v7709 = vunpack.c.l.b16 %v7187
        %v7710 = vunpack.c.l.b16 %v7188
        %v7711 = vunpack.c.h.b16 %v7188
        %v7712 = vunpack.c.l.b16 %v7189
        %v7713 = vunpack.c.l.b16 %v7190
        %v7714 = vunpack.c.h.b16 %v7190
        %v7715 = vunpack.c.l.b16 %v7191
        %v7716 = vunpack.c.l.b16 %v7192
        %v7717 = vunpack.c.h.b16 %v7192
        %v7718 = vunpack.c.l.b16 %v7193
        %v7719 = vunpack.c.l.b16 %v7194
        %v7720 = vunpack.c.h.b16 %v7194
        %v7721 = vunpack.c.l.b16 %v7195
        %v7722 = vunpack.c.l.b16 %v7196
        %v7723 = vunpack.c.h.b16 %v7196
        %v7724 = vunpack.c.l.b16 %v7197
        %v7725 = vunpack.c.l.b16 %v7198
        %v7726 = vunpack.c.h.b16 %v7198
        %v7727 = vunpack.c.l.b16 %v7199
        %v7728 = vunpack.c.l.b16 %v7200
        %v7729 = vunpack.c.h.b16 %v7200
        %v7730 = vunpack.c.l.b16 %v7201
        %v7731 = vunpack.c.l.b16 %v7202
        %v7732 = vunpack.c.h.b16 %v7202
        %v7733 = vunpack.c.l.b16 %v7203
        %v7734 = vunpack.c.l.b16 %v7204
        %v7735 = vunpack.c.h.b16 %v7204
        %v7736 = vunpack.c.l.b16 %v7205
        %v7737 = vunpack.c.l.b16 %v7206
        %v7738 = vunpack.c.h.b16 %v7206
        %v7739 = vunpack.c.l.b16 %v7207
        %v7740 = vunpack.c.l.b16 %v7208
        %v7741 = vunpack.c.h.b16 %v7208
        %v7742 = vunpack.c.l.b16 %v7209
        %v7743 = vunpack.c.l.b16 %v7210
        %v7744 = vunpack.c.h.b16 %v7210
        %v7745 = vunpack.c.l.b16 %v7211
        %v7746 = vunpack.c.l.b16 %v7212
        %v7747 = vunpack.c.h.b16 %v7212
        %v7748 = vunpack.c.l.b16 %v7213
        %v7749 = vunpack.c.l.b16 %v7214
        %v7750 = vunpack.c.h.b16 %v7214
        %v7751 = vunpack.c.l.b16 %v7215
        %v7752 = vunpack.c.l.b16 %v7216
        %v7753 = vunpack.c.h.b16 %v7216
        %v7754 = vunpack.c.l.b16 %v7217
        %v7755 = vpack.c.b16 %v7710, %v7707
        %v7756 = vpack.c.b16 %v7711, %v7708
        %v7757 = vpack.c.b16 %v7712, %v7709
        %v7758 = vpack.c.b16 %v7716, %v7713
        %v7759 = vpack.c.b16 %v7717, %v7714
        %v7760 = vpack.c.b16 %v7718, %v7715
        %v7761 = vpack.c.b16 %v7722, %v7719
        %v7762 = vpack.c.b16 %v7723, %v7720
        %v7763 = vpack.c.b16 %v7724, %v7721
        %v7764 = vpack.c.b16 %v7728, %v7725
        %v7765 = vpack.c.b16 %v7729, %v7726
        %v7766 = vpack.c.b16 %v7730, %v7727
        %v7767 = vpack.c.b16 %v7734, %v7731
        %v7768 = vpack.c.b16 %v7735, %v7732
        %v7769 = vpack.c.b16 %v7736, %v7733
        %v7770 = vpack.c.b16 %v7740, %v7737
        %v7771 = vpack.c.b16 %v7741, %v7738
        %v7772 = vpack.c.b16 %v7742, %v7739
        %v7773 = vpack.c.b16 %v7746, %v7743
        %v7774 = vpack.c.b16 %v7747, %v7744
        %v7775 = vpack.c.b16 %v7748, %v7745
        %v7776 = vpack.c.b16 %v7752, %v7749
        %v7777 = vpack.c.b16 %v7753, %v7750
        %v7778 = vpack.c.b16 %v7754, %v7751
        %7803 = vmatprep.subr.bf16.mxu0 %v7756
        %7804 = vmatpush1.bf16.msra.mxu0 %v7755
        %7805 = vmatprep.subr.bf16.mxu0 %v7759
        %7806 = vmatpush1.bf16.msra.mxu0 %v7758
        %7807 = vmatprep.subr.bf16.mxu0 %v7762
        %7808 = vmatpush1.bf16.msra.mxu0 %v7761
        %7809 = vmatprep.subr.bf16.mxu0 %v7765
        %7810 = vmatpush1.bf16.msra.mxu0 %v7764
        %7811 = vmatprep.subr.bf16.mxu0 %v7768
        %7812 = vmatpush1.bf16.msra.mxu0 %v7767
        %7813 = vmatprep.subr.bf16.mxu0 %v7771
        %7814 = vmatpush1.bf16.msra.mxu0 %v7770
        %7815 = vmatprep.subr.bf16.mxu0 %v7774
        %7816 = vmatpush1.bf16.msra.mxu0 %v7773
        %7817 = vmatprep.subr.bf16.mxu0 %v7777
        %7818 = vmatpush1.bf16.msra.mxu0 %v7776
        %7819 = vmatprep.subr.bf16.mxu0 0
        %7820 = vmatpush1.bf16.msra.mxu0 0
        %7821 = vmatprep.subr.bf16.mxu0 0
        %7822 = vmatpush1.bf16.msra.mxu0 0
        %7823 = vmatprep.subr.bf16.mxu0 0
        %7824 = vmatpush1.bf16.msra.mxu0 0
        %7825 = vmatprep.subr.bf16.mxu0 0
        %7826 = vmatpush1.bf16.msra.mxu0 0
        %7827 = vmatprep.subr.bf16.mxu0 0
        %7828 = vmatpush1.bf16.msra.mxu0 0
        %7829 = vmatprep.subr.bf16.mxu0 0
        %7830 = vmatpush1.bf16.msra.mxu0 0
        %7831 = vmatprep.subr.bf16.mxu0 0
        %7832 = vmatpush1.bf16.msra.mxu0 0
        %7833 = vmatprep.subr.bf16.mxu0 0
        %7834 = vmatpush1.bf16.msra.mxu0 0
        %7835 = vmatprep.mubr.bf16.mxu0 0
        %7836 = vmatmul.mubr.bf16.gmra.mrb[0].mxu0 %v7674
        %v7837 = vpop.f32.mrb[0].mxu0
        %v7838 = vadd.f32 0.0, %v7837
        %v7839 = vpop.f32.mrb[0].mxu0
        %v7840 = vadd.f32 0.0, %v7839
        %v7841 = vpop.f32.mrb[0].mxu0
        %v7842 = vpop.f32.mrb[0].mxu0
        %7843 = vdwg.mxu0
        %7844 = vmatprep.subr.bf16.mxu0 0
        %7845 = vmatpush1.bf16.msra.mxu0 %v7757
        %7846 = vmatprep.subr.bf16.mxu0 0
        %7847 = vmatpush1.bf16.msra.mxu0 %v7760
        %7848 = vmatprep.subr.bf16.mxu0 0
        %7849 = vmatpush1.bf16.msra.mxu0 %v7763
        %7850 = vmatprep.subr.bf16.mxu0 0
        %7851 = vmatpush1.bf16.msra.mxu0 %v7766
        %7852 = vmatprep.subr.bf16.mxu0 0
        %7853 = vmatpush1.bf16.msra.mxu0 %v7769
        %7854 = vmatprep.subr.bf16.mxu0 0
        %7855 = vmatpush1.bf16.msra.mxu0 %v7772
        %7856 = vmatprep.subr.bf16.mxu0 0
        %7857 = vmatpush1.bf16.msra.mxu0 %v7775
        %7858 = vmatprep.subr.bf16.mxu0 0
        %7859 = vmatpush1.bf16.msra.mxu0 %v7778
        %7860 = vmatprep.subr.bf16.mxu0 0
        %7861 = vmatpush1.bf16.msra.mxu0 0
        %7862 = vmatprep.subr.bf16.mxu0 0
        %7863 = vmatpush1.bf16.msra.mxu0 0
        %7864 = vmatprep.subr.bf16.mxu0 0
        %7865 = vmatpush1.bf16.msra.mxu0 0
        %7866 = vmatprep.subr.bf16.mxu0 0
        %7867 = vmatpush1.bf16.msra.mxu0 0
        %7868 = vmatprep.subr.bf16.mxu0 0
        %7869 = vmatpush1.bf16.msra.mxu0 0
        %7870 = vmatprep.subr.bf16.mxu0 0
        %7871 = vmatpush1.bf16.msra.mxu0 0
        %7872 = vmatprep.subr.bf16.mxu0 0
        %7873 = vmatpush1.bf16.msra.mxu0 0
        %7874 = vmatprep.subr.bf16.mxu0 0
        %7875 = vmatpush1.bf16.msra.mxu0 0
        %7876 = vmatprep.mubr.bf16.mxu0 0
        %7877 = vmatmul.mubr.bf16.gmra.mrb[0].mxu0 %v7674
        %v7878 = vpop.f32.mrb[0].mxu0
        %v7879 = vadd.f32 0.0, %v7878
        %v7880 = vpop.f32.mrb[0].mxu0
        %v7881 = vpop.f32.mrb[0].mxu0
        %v7882 = vpop.f32.mrb[0].mxu0
        %7883 = vdwg.mxu0
        %v7884 = vsel %vm896, %v7673, inf
        %7885 = vmin.xlane.f32.xlu0 %v7884
        %v7886 = vpop.xlane.xlu0 %7885
        %vm7887 = vcmp.le.f32.partialorder %v7673, %v7886
        %v7888 = vsel %vm7887, %v399, 1e+30
        %v7889 = vsel %vm896, %v7888, inf
        %7890 = vmin.xlane.f32.xlu0 %v7889
        %v7891 = vpop.xlane.xlu0 %7890
        %vm7892 = vcmp.eq.f32.partialorder %v399, %v7891
        %v7893 = vsel %vm7892, 1, 0
        %v7894 = vcvt.s32.f32 %v7893
        %v7895 = vsel %vm7892, 1e+30, %v7673
        %v7896 = vsel %vm896, %v7895, inf
        %7897 = vmin.xlane.f32.xlu0 %v7896
        %v7898 = vpop.xlane.xlu0 %7897
        %vm7899 = vcmp.le.f32.partialorder %v7895, %v7898
        %v7900 = vsel %vm7899, %v399, 1e+30
        %v7901 = vsel %vm896, %v7900, inf
        %7902 = vmin.xlane.f32.xlu0 %v7901
        %v7903 = vpop.xlane.xlu0 %7902
        %vm7904 = vcmp.eq.f32.partialorder %v399, %v7903
        %v7905 = vsel %vm7904, 1, 0
        %v7906 = vcvt.s32.f32 %v7905
        %v7908 = vsel %vm896, %v7906, 0
        %7910 = vmatprep.subr.mxu0 0.0
        %v7911 = vand.u32 %v7840, 4294901760
        %7912 = vmatpush1.msra.mxu0 %v7911
        %7913 = vmatprep.subr.mxu0 0.0
        %7914 = vmatpush1.msra.mxu0 0.0
        %7915 = vmatprep.subr.mxu0 0.0
        %7916 = vmatpush1.msra.mxu0 0.0
        %7917 = vmatprep.subr.mxu0 0.0
        %7918 = vmatpush1.msra.mxu0 0.0
        %7919 = vmatprep.subr.mxu0 0.0
        %7920 = vmatpush1.msra.mxu0 0.0
        %7921 = vmatprep.subr.mxu0 0.0
        %7922 = vmatpush1.msra.mxu0 0.0
        %7923 = vmatprep.subr.mxu0 0.0
        %7924 = vmatpush1.msra.mxu0 0.0
        %7925 = vmatprep.subr.mxu0 0.0
        %7926 = vmatpush1.msra.mxu0 0.0
        %7927 = vmatprep.subr.mxu0 0.0
        %7928 = vmatpush1.msra.mxu0 0.0
        %7929 = vmatprep.subr.mxu0 0.0
        %7930 = vmatpush1.msra.mxu0 0.0
        %7931 = vmatprep.subr.mxu0 0.0
        %7932 = vmatpush1.msra.mxu0 0.0
        %7933 = vmatprep.subr.mxu0 0.0
        %7934 = vmatpush1.msra.mxu0 0.0
        %7935 = vmatprep.subr.mxu0 0.0
        %7936 = vmatpush1.msra.mxu0 0.0
        %7937 = vmatprep.subr.mxu0 0.0
        %7938 = vmatpush1.msra.mxu0 0.0
        %7939 = vmatprep.subr.mxu0 0.0
        %7940 = vmatpush1.msra.mxu0 0.0
        %7941 = vmatprep.subr.mxu0 0.0
        %7942 = vmatpush1.msra.mxu0 0.0
        %7943 = vmatprep.subr.mxu0 0.0
        %7944 = vmatpush1.msra.mxu0 0.0
        %7945 = vmatprep.subr.mxu0 0.0
        %7946 = vmatpush1.msra.mxu0 0.0
        %7947 = vmatprep.subr.mxu0 0.0
        %7948 = vmatpush1.msra.mxu0 0.0
        %7949 = vmatprep.subr.mxu0 0.0
        %7950 = vmatpush1.msra.mxu0 0.0
        %7951 = vmatprep.subr.mxu0 0.0
        %7952 = vmatpush1.msra.mxu0 0.0
        %7953 = vmatprep.subr.mxu0 0.0
        %7954 = vmatpush1.msra.mxu0 0.0
        %7955 = vmatprep.subr.mxu0 0.0
        %7956 = vmatpush1.msra.mxu0 0.0
        %7957 = vmatprep.subr.mxu0 0.0
        %7958 = vmatpush1.msra.mxu0 0.0
        %7959 = vmatprep.subr.mxu0 0.0
        %7960 = vmatpush1.msra.mxu0 0.0
        %7961 = vmatprep.subr.mxu0 0.0
        %7962 = vmatpush1.msra.mxu0 0.0
        %7963 = vmatprep.subr.mxu0 0.0
        %7964 = vmatpush1.msra.mxu0 0.0
        %7965 = vmatprep.subr.mxu0 0.0
        %7966 = vmatpush1.msra.mxu0 0.0
        %7967 = vmatprep.subr.mxu0 0.0
        %7968 = vmatpush1.msra.mxu0 0.0
        %7969 = vmatprep.subr.mxu0 0.0
        %7970 = vmatpush1.msra.mxu0 0.0
        %7971 = vmatprep.subr.mxu0 0.0
        %7972 = vmatpush1.msra.mxu0 0.0
        %7973 = vmatprep.subr.mxu0 0.0
        %7974 = vmatpush1.msra.mxu0 0.0
        %7975 = vmatprep.mubr.f32.mxu0 0.0
        %v7976 = vand.u32 %v7908, 4294901760
        %v7977 = vsub.f32 %v7908, %v7976
        %v7978 = vand.u32 %v7977, 4294901760
        %v7979 = vsub.f32 %v7977, %v7978
        %v7980 = vand.u32 %v7979, 4294901760
        %7981 = vmatmul.mubr.f32.gmra.mrb[0].mxu0 %v7980
        %v7982 = vpop.f32.mrb[0].mxu0
        %v7983 = vadd.f32 0.0, %v7982
        %v7984 = vpop.f32.mrb[0].mxu0
        %7985 = vdwg.mxu0
        %7986 = vmatprep.subr.mxu0 0.0
        %v7987 = vand.u32 %v7840, 4294901760
        %v7988 = vsub.f32 %v7840, %v7987
        %v7989 = vand.u32 %v7988, 4294901760
        %v7990 = vsub.f32 %v7988, %v7989
        %v7991 = vand.u32 %v7990, 4294901760
        %7992 = vmatpush1.msra.mxu0 %v7991
        %7993 = vmatprep.subr.mxu0 0.0
        %7994 = vmatpush1.msra.mxu0 0.0
        %7995 = vmatprep.subr.mxu0 0.0
        %7996 = vmatpush1.msra.mxu0 0.0
        %7997 = vmatprep.subr.mxu0 0.0
        %7998 = vmatpush1.msra.mxu0 0.0
        %7999 = vmatprep.subr.mxu0 0.0
        %8000 = vmatpush1.msra.mxu0 0.0
        %8001 = vmatprep.subr.mxu0 0.0
        %8002 = vmatpush1.msra.mxu0 0.0
        %8003 = vmatprep.subr.mxu0 0.0
        %8004 = vmatpush1.msra.mxu0 0.0
        %8005 = vmatprep.subr.mxu0 0.0
        %8006 = vmatpush1.msra.mxu0 0.0
        %8007 = vmatprep.subr.mxu0 0.0
        %8008 = vmatpush1.msra.mxu0 0.0
        %8009 = vmatprep.subr.mxu0 0.0
        %8010 = vmatpush1.msra.mxu0 0.0
        %8011 = vmatprep.subr.mxu0 0.0
        %8012 = vmatpush1.msra.mxu0 0.0
        %8013 = vmatprep.subr.mxu0 0.0
        %8014 = vmatpush1.msra.mxu0 0.0
        %8015 = vmatprep.subr.mxu0 0.0
        %8016 = vmatpush1.msra.mxu0 0.0
        %8017 = vmatprep.subr.mxu0 0.0
        %8018 = vmatpush1.msra.mxu0 0.0
        %8019 = vmatprep.subr.mxu0 0.0
        %8020 = vmatpush1.msra.mxu0 0.0
        %8021 = vmatprep.subr.mxu0 0.0
        %8022 = vmatpush1.msra.mxu0 0.0
        %8023 = vmatprep.subr.mxu0 0.0
        %8024 = vmatpush1.msra.mxu0 0.0
        %8025 = vmatprep.subr.mxu0 0.0
        %8026 = vmatpush1.msra.mxu0 0.0
        %8027 = vmatprep.subr.mxu0 0.0
        %8028 = vmatpush1.msra.mxu0 0.0
        %8029 = vmatprep.subr.mxu0 0.0
        %8030 = vmatpush1.msra.mxu0 0.0
        %8031 = vmatprep.subr.mxu0 0.0
        %8032 = vmatpush1.msra.mxu0 0.0
        %8033 = vmatprep.subr.mxu0 0.0
        %8034 = vmatpush1.msra.mxu0 0.0
        %8035 = vmatprep.subr.mxu0 0.0
        %8036 = vmatpush1.msra.mxu0 0.0
        %8037 = vmatprep.subr.mxu0 0.0
        %8038 = vmatpush1.msra.mxu0 0.0
        %8039 = vmatprep.subr.mxu0 0.0
        %8040 = vmatpush1.msra.mxu0 0.0
        %8041 = vmatprep.subr.mxu0 0.0
        %8042 = vmatpush1.msra.mxu0 0.0
        %8043 = vmatprep.subr.mxu0 0.0
        %8044 = vmatpush1.msra.mxu0 0.0
        %8045 = vmatprep.subr.mxu0 0.0
        %8046 = vmatpush1.msra.mxu0 0.0
        %8047 = vmatprep.subr.mxu0 0.0
        %8048 = vmatpush1.msra.mxu0 0.0
        %8049 = vmatprep.subr.mxu0 0.0
        %8050 = vmatpush1.msra.mxu0 0.0
        %8051 = vmatprep.subr.mxu0 0.0
        %8052 = vmatpush1.msra.mxu0 0.0
        %8053 = vmatprep.subr.mxu0 0.0
        %8054 = vmatpush1.msra.mxu0 0.0
        %8055 = vmatprep.mubr.f32.mxu0 0.0
        %v8056 = vand.u32 %v7908, 4294901760
        %8057 = vmatmul.mubr.f32.gmra.mrb[0].mxu0 %v8056
        %v8058 = vpop.f32.mrb[0].mxu0
        %v8059 = vadd.f32 %v7983, %v8058
        %v8060 = vpop.f32.mrb[0].mxu0
        %8061 = vdwg.mxu0
        %8062 = vmatprep.subr.mxu0 0.0
        %v8063 = vand.u32 %v7840, 4294901760
        %v8064 = vsub.f32 %v7840, %v8063
        %8065 = vmatpush1.msra.mxu0 %v8064
        %8066 = vmatprep.subr.mxu0 0.0
        %8067 = vmatpush1.msra.mxu0 0.0
        %8068 = vmatprep.subr.mxu0 0.0
        %8069 = vmatpush1.msra.mxu0 0.0
        %8070 = vmatprep.subr.mxu0 0.0
        %8071 = vmatpush1.msra.mxu0 0.0
        %8072 = vmatprep.subr.mxu0 0.0
        %8073 = vmatpush1.msra.mxu0 0.0
        %8074 = vmatprep.subr.mxu0 0.0
        %8075 = vmatpush1.msra.mxu0 0.0
        %8076 = vmatprep.subr.mxu0 0.0
        %8077 = vmatpush1.msra.mxu0 0.0
        %8078 = vmatprep.subr.mxu0 0.0
        %8079 = vmatpush1.msra.mxu0 0.0
        %8080 = vmatprep.subr.mxu0 0.0
        %8081 = vmatpush1.msra.mxu0 0.0
        %8082 = vmatprep.subr.mxu0 0.0
        %8083 = vmatpush1.msra.mxu0 0.0
        %8084 = vmatprep.subr.mxu0 0.0
        %8085 = vmatpush1.msra.mxu0 0.0
        %8086 = vmatprep.subr.mxu0 0.0
        %8087 = vmatpush1.msra.mxu0 0.0
        %8088 = vmatprep.subr.mxu0 0.0
        %8089 = vmatpush1.msra.mxu0 0.0
        %8090 = vmatprep.subr.mxu0 0.0
        %8091 = vmatpush1.msra.mxu0 0.0
        %8092 = vmatprep.subr.mxu0 0.0
        %8093 = vmatpush1.msra.mxu0 0.0
        %8094 = vmatprep.subr.mxu0 0.0
        %8095 = vmatpush1.msra.mxu0 0.0
        %8096 = vmatprep.subr.mxu0 0.0
        %8097 = vmatpush1.msra.mxu0 0.0
        %8098 = vmatprep.subr.mxu0 0.0
        %8099 = vmatpush1.msra.mxu0 0.0
        %8100 = vmatprep.subr.mxu0 0.0
        %8101 = vmatpush1.msra.mxu0 0.0
        %8102 = vmatprep.subr.mxu0 0.0
        %8103 = vmatpush1.msra.mxu0 0.0
        %8104 = vmatprep.subr.mxu0 0.0
        %8105 = vmatpush1.msra.mxu0 0.0
        %8106 = vmatprep.subr.mxu0 0.0
        %8107 = vmatpush1.msra.mxu0 0.0
        %8108 = vmatprep.subr.mxu0 0.0
        %8109 = vmatpush1.msra.mxu0 0.0
        %8110 = vmatprep.subr.mxu0 0.0
        %8111 = vmatpush1.msra.mxu0 0.0
        %8112 = vmatprep.subr.mxu0 0.0
        %8113 = vmatpush1.msra.mxu0 0.0
        %8114 = vmatprep.subr.mxu0 0.0
        %8115 = vmatpush1.msra.mxu0 0.0
        %8116 = vmatprep.subr.mxu0 0.0
        %8117 = vmatpush1.msra.mxu0 0.0
        %8118 = vmatprep.subr.mxu0 0.0
        %8119 = vmatpush1.msra.mxu0 0.0
        %8120 = vmatprep.subr.mxu0 0.0
        %8121 = vmatpush1.msra.mxu0 0.0
        %8122 = vmatprep.subr.mxu0 0.0
        %8123 = vmatpush1.msra.mxu0 0.0
        %8124 = vmatprep.subr.mxu0 0.0
        %8125 = vmatpush1.msra.mxu0 0.0
        %8126 = vmatprep.subr.mxu0 0.0
        %8127 = vmatpush1.msra.mxu0 0.0
        %8128 = vmatprep.mubr.f32.mxu0 0.0
        %v8129 = vand.u32 %v7908, 4294901760
        %v8130 = vsub.f32 %v7908, %v8129
        %8131 = vmatmul.mubr.f32.gmra.mrb[0].mxu0 %v8130
        %v8132 = vpop.f32.mrb[0].mxu0
        %v8133 = vadd.f32 %v8059, %v8132
        %v8134 = vpop.f32.mrb[0].mxu0
        %8135 = vdwg.mxu0
        %8136 = vmatprep.subr.mxu0 0.0
        %v8137 = vand.u32 %v7840, 4294901760
        %8138 = vmatpush1.msra.mxu0 %v8137
        %8139 = vmatprep.subr.mxu0 0.0
        %8140 = vmatpush1.msra.mxu0 0.0
        %8141 = vmatprep.subr.mxu0 0.0
        %8142 = vmatpush1.msra.mxu0 0.0
        %8143 = vmatprep.subr.mxu0 0.0
        %8144 = vmatpush1.msra.mxu0 0.0
        %8145 = vmatprep.subr.mxu0 0.0
        %8146 = vmatpush1.msra.mxu0 0.0
        %8147 = vmatprep.subr.mxu0 0.0
        %8148 = vmatpush1.msra.mxu0 0.0
        %8149 = vmatprep.subr.mxu0 0.0
        %8150 = vmatpush1.msra.mxu0 0.0
        %8151 = vmatprep.subr.mxu0 0.0
        %8152 = vmatpush1.msra.mxu0 0.0
        %8153 = vmatprep.subr.mxu0 0.0
        %8154 = vmatpush1.msra.mxu0 0.0
        %8155 = vmatprep.subr.mxu0 0.0
        %8156 = vmatpush1.msra.mxu0 0.0
        %8157 = vmatprep.subr.mxu0 0.0
        %8158 = vmatpush1.msra.mxu0 0.0
        %8159 = vmatprep.subr.mxu0 0.0
        %8160 = vmatpush1.msra.mxu0 0.0
        %8161 = vmatprep.subr.mxu0 0.0
        %8162 = vmatpush1.msra.mxu0 0.0
        %8163 = vmatprep.subr.mxu0 0.0
        %8164 = vmatpush1.msra.mxu0 0.0
        %8165 = vmatprep.subr.mxu0 0.0
        %8166 = vmatpush1.msra.mxu0 0.0
        %8167 = vmatprep.subr.mxu0 0.0
        %8168 = vmatpush1.msra.mxu0 0.0
        %8169 = vmatprep.subr.mxu0 0.0
        %8170 = vmatpush1.msra.mxu0 0.0
        %8171 = vmatprep.subr.mxu0 0.0
        %8172 = vmatpush1.msra.mxu0 0.0
        %8173 = vmatprep.subr.mxu0 0.0
        %8174 = vmatpush1.msra.mxu0 0.0
        %8175 = vmatprep.subr.mxu0 0.0
        %8176 = vmatpush1.msra.mxu0 0.0
        %8177 = vmatprep.subr.mxu0 0.0
        %8178 = vmatpush1.msra.mxu0 0.0
        %8179 = vmatprep.subr.mxu0 0.0
        %8180 = vmatpush1.msra.mxu0 0.0
        %8181 = vmatprep.subr.mxu0 0.0
        %8182 = vmatpush1.msra.mxu0 0.0
        %8183 = vmatprep.subr.mxu0 0.0
        %8184 = vmatpush1.msra.mxu0 0.0
        %8185 = vmatprep.subr.mxu0 0.0
        %8186 = vmatpush1.msra.mxu0 0.0
        %8187 = vmatprep.subr.mxu0 0.0
        %8188 = vmatpush1.msra.mxu0 0.0
        %8189 = vmatprep.subr.mxu0 0.0
        %8190 = vmatpush1.msra.mxu0 0.0
        %8191 = vmatprep.subr.mxu0 0.0
        %8192 = vmatpush1.msra.mxu0 0.0
        %8193 = vmatprep.subr.mxu0 0.0
        %8194 = vmatpush1.msra.mxu0 0.0
        %8195 = vmatprep.subr.mxu0 0.0
        %8196 = vmatpush1.msra.mxu0 0.0
        %8197 = vmatprep.subr.mxu0 0.0
        %8198 = vmatpush1.msra.mxu0 0.0
        %8199 = vmatprep.subr.mxu0 0.0
        %8200 = vmatpush1.msra.mxu0 0.0
        %8201 = vmatprep.mubr.f32.mxu0 0.0
        %v8202 = vand.u32 %v7908, 4294901760
        %v8203 = vsub.f32 %v7908, %v8202
        %v8204 = vand.u32 %v8203, 4294901760
        %8205 = vmatmul.mubr.f32.gmra.mrb[0].mxu0 %v8204
        %v8206 = vpop.f32.mrb[0].mxu0
        %v8207 = vadd.f32 %v8133, %v8206
        %v8208 = vpop.f32.mrb[0].mxu0
        %8209 = vdwg.mxu0
        %8210 = vmatprep.subr.mxu0 0.0
        %v8211 = vand.u32 %v7840, 4294901760
        %v8212 = vsub.f32 %v7840, %v8211
        %v8213 = vand.u32 %v8212, 4294901760
        %8214 = vmatpush1.msra.mxu0 %v8213
        %8215 = vmatprep.subr.mxu0 0.0
        %8216 = vmatpush1.msra.mxu0 0.0
        %8217 = vmatprep.subr.mxu0 0.0
        %8218 = vmatpush1.msra.mxu0 0.0
        %8219 = vmatprep.subr.mxu0 0.0
        %8220 = vmatpush1.msra.mxu0 0.0
        %8221 = vmatprep.subr.mxu0 0.0
        %8222 = vmatpush1.msra.mxu0 0.0
        %8223 = vmatprep.subr.mxu0 0.0
        %8224 = vmatpush1.msra.mxu0 0.0
        %8225 = vmatprep.subr.mxu0 0.0
        %8226 = vmatpush1.msra.mxu0 0.0
        %8227 = vmatprep.subr.mxu0 0.0
        %8228 = vmatpush1.msra.mxu0 0.0
        %8229 = vmatprep.subr.mxu0 0.0
        %8230 = vmatpush1.msra.mxu0 0.0
        %8231 = vmatprep.subr.mxu0 0.0
        %8232 = vmatpush1.msra.mxu0 0.0
        %8233 = vmatprep.subr.mxu0 0.0
        %8234 = vmatpush1.msra.mxu0 0.0
        %8235 = vmatprep.subr.mxu0 0.0
        %8236 = vmatpush1.msra.mxu0 0.0
        %8237 = vmatprep.subr.mxu0 0.0
        %8238 = vmatpush1.msra.mxu0 0.0
        %8239 = vmatprep.subr.mxu0 0.0
        %8240 = vmatpush1.msra.mxu0 0.0
        %8241 = vmatprep.subr.mxu0 0.0
        %8242 = vmatpush1.msra.mxu0 0.0
        %8243 = vmatprep.subr.mxu0 0.0
        %8244 = vmatpush1.msra.mxu0 0.0
        %8245 = vmatprep.subr.mxu0 0.0
        %8246 = vmatpush1.msra.mxu0 0.0
        %8247 = vmatprep.subr.mxu0 0.0
        %8248 = vmatpush1.msra.mxu0 0.0
        %8249 = vmatprep.subr.mxu0 0.0
        %8250 = vmatpush1.msra.mxu0 0.0
        %8251 = vmatprep.subr.mxu0 0.0
        %8252 = vmatpush1.msra.mxu0 0.0
        %8253 = vmatprep.subr.mxu0 0.0
        %8254 = vmatpush1.msra.mxu0 0.0
        %8255 = vmatprep.subr.mxu0 0.0
        %8256 = vmatpush1.msra.mxu0 0.0
        %8257 = vmatprep.subr.mxu0 0.0
        %8258 = vmatpush1.msra.mxu0 0.0
        %8259 = vmatprep.subr.mxu0 0.0
        %8260 = vmatpush1.msra.mxu0 0.0
        %8261 = vmatprep.subr.mxu0 0.0
        %8262 = vmatpush1.msra.mxu0 0.0
        %8263 = vmatprep.subr.mxu0 0.0
        %8264 = vmatpush1.msra.mxu0 0.0
        %8265 = vmatprep.subr.mxu0 0.0
        %8266 = vmatpush1.msra.mxu0 0.0
        %8267 = vmatprep.subr.mxu0 0.0
        %8268 = vmatpush1.msra.mxu0 0.0
        %8269 = vmatprep.subr.mxu0 0.0
        %8270 = vmatpush1.msra.mxu0 0.0
        %8271 = vmatprep.subr.mxu0 0.0
        %8272 = vmatpush1.msra.mxu0 0.0
        %8273 = vmatprep.subr.mxu0 0.0
        %8274 = vmatpush1.msra.mxu0 0.0
        %8275 = vmatprep.subr.mxu0 0.0
        %8276 = vmatpush1.msra.mxu0 0.0
        %8277 = vmatprep.mubr.f32.mxu0 0.0
        %v8278 = vand.u32 %v7908, 4294901760
        %8279 = vmatmul.mubr.f32.gmra.mrb[0].mxu0 %v8278
        %v8280 = vpop.f32.mrb[0].mxu0
        %v8281 = vadd.f32 %v8207, %v8280
        %v8282 = vpop.f32.mrb[0].mxu0
        %8283 = vdwg.mxu0
        %8284 = vmatprep.subr.mxu0 0.0
        %v8285 = vand.u32 %v7840, 4294901760
        %8286 = vmatpush1.msra.mxu0 %v8285
        %8287 = vmatprep.subr.mxu0 0.0
        %8288 = vmatpush1.msra.mxu0 0.0
        %8289 = vmatprep.subr.mxu0 0.0
        %8290 = vmatpush1.msra.mxu0 0.0
        %8291 = vmatprep.subr.mxu0 0.0
        %8292 = vmatpush1.msra.mxu0 0.0
        %8293 = vmatprep.subr.mxu0 0.0
        %8294 = vmatpush1.msra.mxu0 0.0
        %8295 = vmatprep.subr.mxu0 0.0
        %8296 = vmatpush1.msra.mxu0 0.0
        %8297 = vmatprep.subr.mxu0 0.0
        %8298 = vmatpush1.msra.mxu0 0.0
        %8299 = vmatprep.subr.mxu0 0.0
        %8300 = vmatpush1.msra.mxu0 0.0
        %8301 = vmatprep.subr.mxu0 0.0
        %8302 = vmatpush1.msra.mxu0 0.0
        %8303 = vmatprep.subr.mxu0 0.0
        %8304 = vmatpush1.msra.mxu0 0.0
        %8305 = vmatprep.subr.mxu0 0.0
        %8306 = vmatpush1.msra.mxu0 0.0
        %8307 = vmatprep.subr.mxu0 0.0
        %8308 = vmatpush1.msra.mxu0 0.0
        %8309 = vmatprep.subr.mxu0 0.0
        %8310 = vmatpush1.msra.mxu0 0.0
        %8311 = vmatprep.subr.mxu0 0.0
        %8312 = vmatpush1.msra.mxu0 0.0
        %8313 = vmatprep.subr.mxu0 0.0
        %8314 = vmatpush1.msra.mxu0 0.0
        %8315 = vmatprep.subr.mxu0 0.0
        %8316 = vmatpush1.msra.mxu0 0.0
        %8317 = vmatprep.subr.mxu0 0.0
        %8318 = vmatpush1.msra.mxu0 0.0
        %8319 = vmatprep.subr.mxu0 0.0
        %8320 = vmatpush1.msra.mxu0 0.0
        %8321 = vmatprep.subr.mxu0 0.0
        %8322 = vmatpush1.msra.mxu0 0.0
        %8323 = vmatprep.subr.mxu0 0.0
        %8324 = vmatpush1.msra.mxu0 0.0
        %8325 = vmatprep.subr.mxu0 0.0
        %8326 = vmatpush1.msra.mxu0 0.0
        %8327 = vmatprep.subr.mxu0 0.0
        %8328 = vmatpush1.msra.mxu0 0.0
        %8329 = vmatprep.subr.mxu0 0.0
        %8330 = vmatpush1.msra.mxu0 0.0
        %8331 = vmatprep.subr.mxu0 0.0
        %8332 = vmatpush1.msra.mxu0 0.0
        %8333 = vmatprep.subr.mxu0 0.0
        %8334 = vmatpush1.msra.mxu0 0.0
        %8335 = vmatprep.subr.mxu0 0.0
        %8336 = vmatpush1.msra.mxu0 0.0
        %8337 = vmatprep.subr.mxu0 0.0
        %8338 = vmatpush1.msra.mxu0 0.0
        %8339 = vmatprep.subr.mxu0 0.0
        %8340 = vmatpush1.msra.mxu0 0.0
        %8341 = vmatprep.subr.mxu0 0.0
        %8342 = vmatpush1.msra.mxu0 0.0
        %8343 = vmatprep.subr.mxu0 0.0
        %8344 = vmatpush1.msra.mxu0 0.0
        %8345 = vmatprep.subr.mxu0 0.0
        %8346 = vmatpush1.msra.mxu0 0.0
        %8347 = vmatprep.subr.mxu0 0.0
        %8348 = vmatpush1.msra.mxu0 0.0
        %8349 = vmatprep.mubr.f32.mxu0 0.0
        %v8350 = vand.u32 %v7908, 4294901760
        %8351 = vmatmul.mubr.f32.gmra.mrb[0].mxu0 %v8350
        %v8352 = vpop.f32.mrb[0].mxu0
        %v8353 = vadd.f32 %v8281, %v8352
        %v8354 = vpop.f32.mrb[0].mxu0
        %8355 = vdwg.mxu0
        %v8357 = vsel %vm896, %v7894, 0
        %8359 = vmatprep.subr.mxu0 0.0
        %v8360 = vand.u32 %v7838, 4294901760
        %8361 = vmatpush1.msra.mxu0 %v8360
        %8362 = vmatprep.subr.mxu0 0.0
        %8363 = vmatpush1.msra.mxu0 0.0
        %8364 = vmatprep.subr.mxu0 0.0
        %8365 = vmatpush1.msra.mxu0 0.0
        %8366 = vmatprep.subr.mxu0 0.0
        %8367 = vmatpush1.msra.mxu0 0.0
        %8368 = vmatprep.subr.mxu0 0.0
        %8369 = vmatpush1.msra.mxu0 0.0
        %8370 = vmatprep.subr.mxu0 0.0
        %8371 = vmatpush1.msra.mxu0 0.0
        %8372 = vmatprep.subr.mxu0 0.0
        %8373 = vmatpush1.msra.mxu0 0.0
        %8374 = vmatprep.subr.mxu0 0.0
        %8375 = vmatpush1.msra.mxu0 0.0
        %8376 = vmatprep.subr.mxu0 0.0
        %8377 = vmatpush1.msra.mxu0 0.0
        %8378 = vmatprep.subr.mxu0 0.0
        %8379 = vmatpush1.msra.mxu0 0.0
        %8380 = vmatprep.subr.mxu0 0.0
        %8381 = vmatpush1.msra.mxu0 0.0
        %8382 = vmatprep.subr.mxu0 0.0
        %8383 = vmatpush1.msra.mxu0 0.0
        %8384 = vmatprep.subr.mxu0 0.0
        %8385 = vmatpush1.msra.mxu0 0.0
        %8386 = vmatprep.subr.mxu0 0.0
        %8387 = vmatpush1.msra.mxu0 0.0
        %8388 = vmatprep.subr.mxu0 0.0
        %8389 = vmatpush1.msra.mxu0 0.0
        %8390 = vmatprep.subr.mxu0 0.0
        %8391 = vmatpush1.msra.mxu0 0.0
        %8392 = vmatprep.subr.mxu0 0.0
        %8393 = vmatpush1.msra.mxu0 0.0
        %8394 = vmatprep.subr.mxu0 0.0
        %8395 = vmatpush1.msra.mxu0 0.0
        %8396 = vmatprep.subr.mxu0 0.0
        %8397 = vmatpush1.msra.mxu0 0.0
        %8398 = vmatprep.subr.mxu0 0.0
        %8399 = vmatpush1.msra.mxu0 0.0
        %8400 = vmatprep.subr.mxu0 0.0
        %8401 = vmatpush1.msra.mxu0 0.0
        %8402 = vmatprep.subr.mxu0 0.0
        %8403 = vmatpush1.msra.mxu0 0.0
        %8404 = vmatprep.subr.mxu0 0.0
        %8405 = vmatpush1.msra.mxu0 0.0
        %8406 = vmatprep.subr.mxu0 0.0
        %8407 = vmatpush1.msra.mxu0 0.0
        %8408 = vmatprep.subr.mxu0 0.0
        %8409 = vmatpush1.msra.mxu0 0.0
        %8410 = vmatprep.subr.mxu0 0.0
        %8411 = vmatpush1.msra.mxu0 0.0
        %8412 = vmatprep.subr.mxu0 0.0
        %8413 = vmatpush1.msra.mxu0 0.0
        %8414 = vmatprep.subr.mxu0 0.0
        %8415 = vmatpush1.msra.mxu0 0.0
        %8416 = vmatprep.subr.mxu0 0.0
        %8417 = vmatpush1.msra.mxu0 0.0
        %8418 = vmatprep.subr.mxu0 0.0
        %8419 = vmatpush1.msra.mxu0 0.0
        %8420 = vmatprep.subr.mxu0 0.0
        %8421 = vmatpush1.msra.mxu0 0.0
        %8422 = vmatprep.subr.mxu0 0.0
        %8423 = vmatpush1.msra.mxu0 0.0
        %8424 = vmatprep.mubr.f32.mxu0 0.0
        %v8425 = vand.u32 %v8357, 4294901760
        %v8426 = vsub.f32 %v8357, %v8425
        %v8427 = vand.u32 %v8426, 4294901760
        %v8428 = vsub.f32 %v8426, %v8427
        %v8429 = vand.u32 %v8428, 4294901760
        %8430 = vmatmul.mubr.f32.gmra.mrb[0].mxu0 %v8429
        %v8431 = vpop.f32.mrb[0].mxu0
        %v8432 = vadd.f32 %v8353, %v8431
        %v8433 = vpop.f32.mrb[0].mxu0
        %8434 = vdwg.mxu0
        %8435 = vmatprep.subr.mxu0 0.0
        %v8436 = vand.u32 %v7838, 4294901760
        %v8437 = vsub.f32 %v7838, %v8436
        %v8438 = vand.u32 %v8437, 4294901760
        %v8439 = vsub.f32 %v8437, %v8438
        %v8440 = vand.u32 %v8439, 4294901760
        %8441 = vmatpush1.msra.mxu0 %v8440
        %8442 = vmatprep.subr.mxu0 0.0
        %8443 = vmatpush1.msra.mxu0 0.0
        %8444 = vmatprep.subr.mxu0 0.0
        %8445 = vmatpush1.msra.mxu0 0.0
        %8446 = vmatprep.subr.mxu0 0.0
        %8447 = vmatpush1.msra.mxu0 0.0
        %8448 = vmatprep.subr.mxu0 0.0
        %8449 = vmatpush1.msra.mxu0 0.0
        %8450 = vmatprep.subr.mxu0 0.0
        %8451 = vmatpush1.msra.mxu0 0.0
        %8452 = vmatprep.subr.mxu0 0.0
        %8453 = vmatpush1.msra.mxu0 0.0
        %8454 = vmatprep.subr.mxu0 0.0
        %8455 = vmatpush1.msra.mxu0 0.0
        %8456 = vmatprep.subr.mxu0 0.0
        %8457 = vmatpush1.msra.mxu0 0.0
        %8458 = vmatprep.subr.mxu0 0.0
        %8459 = vmatpush1.msra.mxu0 0.0
        %8460 = vmatprep.subr.mxu0 0.0
        %8461 = vmatpush1.msra.mxu0 0.0
        %8462 = vmatprep.subr.mxu0 0.0
        %8463 = vmatpush1.msra.mxu0 0.0
        %8464 = vmatprep.subr.mxu0 0.0
        %8465 = vmatpush1.msra.mxu0 0.0
        %8466 = vmatprep.subr.mxu0 0.0
        %8467 = vmatpush1.msra.mxu0 0.0
        %8468 = vmatprep.subr.mxu0 0.0
        %8469 = vmatpush1.msra.mxu0 0.0
        %8470 = vmatprep.subr.mxu0 0.0
        %8471 = vmatpush1.msra.mxu0 0.0
        %8472 = vmatprep.subr.mxu0 0.0
        %8473 = vmatpush1.msra.mxu0 0.0
        %8474 = vmatprep.subr.mxu0 0.0
        %8475 = vmatpush1.msra.mxu0 0.0
        %8476 = vmatprep.subr.mxu0 0.0
        %8477 = vmatpush1.msra.mxu0 0.0
        %8478 = vmatprep.subr.mxu0 0.0
        %8479 = vmatpush1.msra.mxu0 0.0
        %8480 = vmatprep.subr.mxu0 0.0
        %8481 = vmatpush1.msra.mxu0 0.0
        %8482 = vmatprep.subr.mxu0 0.0
        %8483 = vmatpush1.msra.mxu0 0.0
        %8484 = vmatprep.subr.mxu0 0.0
        %8485 = vmatpush1.msra.mxu0 0.0
        %8486 = vmatprep.subr.mxu0 0.0
        %8487 = vmatpush1.msra.mxu0 0.0
        %8488 = vmatprep.subr.mxu0 0.0
        %8489 = vmatpush1.msra.mxu0 0.0
        %8490 = vmatprep.subr.mxu0 0.0
        %8491 = vmatpush1.msra.mxu0 0.0
        %8492 = vmatprep.subr.mxu0 0.0
        %8493 = vmatpush1.msra.mxu0 0.0
        %8494 = vmatprep.subr.mxu0 0.0
        %8495 = vmatpush1.msra.mxu0 0.0
        %8496 = vmatprep.subr.mxu0 0.0
        %8497 = vmatpush1.msra.mxu0 0.0
        %8498 = vmatprep.subr.mxu0 0.0
        %8499 = vmatpush1.msra.mxu0 0.0
        %8500 = vmatprep.subr.mxu0 0.0
        %8501 = vmatpush1.msra.mxu0 0.0
        %8502 = vmatprep.subr.mxu0 0.0
        %8503 = vmatpush1.msra.mxu0 0.0
        %8504 = vmatprep.mubr.f32.mxu0 0.0
        %v8505 = vand.u32 %v8357, 4294901760
        %8506 = vmatmul.mubr.f32.gmra.mrb[0].mxu0 %v8505
        %v8507 = vpop.f32.mrb[0].mxu0
        %v8508 = vadd.f32 %v8432, %v8507
        %v8509 = vpop.f32.mrb[0].mxu0
        %8510 = vdwg.mxu0
        %8511 = vmatprep.subr.mxu0 0.0
        %v8512 = vand.u32 %v7838, 4294901760
        %v8513 = vsub.f32 %v7838, %v8512
        %8514 = vmatpush1.msra.mxu0 %v8513
        %8515 = vmatprep.subr.mxu0 0.0
        %8516 = vmatpush1.msra.mxu0 0.0
        %8517 = vmatprep.subr.mxu0 0.0
        %8518 = vmatpush1.msra.mxu0 0.0
        %8519 = vmatprep.subr.mxu0 0.0
        %8520 = vmatpush1.msra.mxu0 0.0
        %8521 = vmatprep.subr.mxu0 0.0
        %8522 = vmatpush1.msra.mxu0 0.0
        %8523 = vmatprep.subr.mxu0 0.0
        %8524 = vmatpush1.msra.mxu0 0.0
        %8525 = vmatprep.subr.mxu0 0.0
        %8526 = vmatpush1.msra.mxu0 0.0
        %8527 = vmatprep.subr.mxu0 0.0
        %8528 = vmatpush1.msra.mxu0 0.0
        %8529 = vmatprep.subr.mxu0 0.0
        %8530 = vmatpush1.msra.mxu0 0.0
        %8531 = vmatprep.subr.mxu0 0.0
        %8532 = vmatpush1.msra.mxu0 0.0
        %8533 = vmatprep.subr.mxu0 0.0
        %8534 = vmatpush1.msra.mxu0 0.0
        %8535 = vmatprep.subr.mxu0 0.0
        %8536 = vmatpush1.msra.mxu0 0.0
        %8537 = vmatprep.subr.mxu0 0.0
        %8538 = vmatpush1.msra.mxu0 0.0
        %8539 = vmatprep.subr.mxu0 0.0
        %8540 = vmatpush1.msra.mxu0 0.0
        %8541 = vmatprep.subr.mxu0 0.0
        %8542 = vmatpush1.msra.mxu0 0.0
        %8543 = vmatprep.subr.mxu0 0.0
        %8544 = vmatpush1.msra.mxu0 0.0
        %8545 = vmatprep.subr.mxu0 0.0
        %8546 = vmatpush1.msra.mxu0 0.0
        %8547 = vmatprep.subr.mxu0 0.0
        %8548 = vmatpush1.msra.mxu0 0.0
        %8549 = vmatprep.subr.mxu0 0.0
        %8550 = vmatpush1.msra.mxu0 0.0
        %8551 = vmatprep.subr.mxu0 0.0
        %8552 = vmatpush1.msra.mxu0 0.0
        %8553 = vmatprep.subr.mxu0 0.0
        %8554 = vmatpush1.msra.mxu0 0.0
        %8555 = vmatprep.subr.mxu0 0.0
        %8556 = vmatpush1.msra.mxu0 0.0
        %8557 = vmatprep.subr.mxu0 0.0
        %8558 = vmatpush1.msra.mxu0 0.0
        %8559 = vmatprep.subr.mxu0 0.0
        %8560 = vmatpush1.msra.mxu0 0.0
        %8561 = vmatprep.subr.mxu0 0.0
        %8562 = vmatpush1.msra.mxu0 0.0
        %8563 = vmatprep.subr.mxu0 0.0
        %8564 = vmatpush1.msra.mxu0 0.0
        %8565 = vmatprep.subr.mxu0 0.0
        %8566 = vmatpush1.msra.mxu0 0.0
        %8567 = vmatprep.subr.mxu0 0.0
        %8568 = vmatpush1.msra.mxu0 0.0
        %8569 = vmatprep.subr.mxu0 0.0
        %8570 = vmatpush1.msra.mxu0 0.0
        %8571 = vmatprep.subr.mxu0 0.0
        %8572 = vmatpush1.msra.mxu0 0.0
        %8573 = vmatprep.subr.mxu0 0.0
        %8574 = vmatpush1.msra.mxu0 0.0
        %8575 = vmatprep.subr.mxu0 0.0
        %8576 = vmatpush1.msra.mxu0 0.0
        %8577 = vmatprep.mubr.f32.mxu0 0.0
        %v8578 = vand.u32 %v8357, 4294901760
        %v8579 = vsub.f32 %v8357, %v8578
        %8580 = vmatmul.mubr.f32.gmra.mrb[0].mxu0 %v8579
        %v8581 = vpop.f32.mrb[0].mxu0
        %v8582 = vadd.f32 %v8508, %v8581
        %v8583 = vpop.f32.mrb[0].mxu0
        %8584 = vdwg.mxu0
        %8585 = vmatprep.subr.mxu0 0.0
        %v8586 = vand.u32 %v7838, 4294901760
        %8587 = vmatpush1.msra.mxu0 %v8586
        %8588 = vmatprep.subr.mxu0 0.0
        %8589 = vmatpush1.msra.mxu0 0.0
        %8590 = vmatprep.subr.mxu0 0.0
        %8591 = vmatpush1.msra.mxu0 0.0
        %8592 = vmatprep.subr.mxu0 0.0
        %8593 = vmatpush1.msra.mxu0 0.0
        %8594 = vmatprep.subr.mxu0 0.0
        %8595 = vmatpush1.msra.mxu0 0.0
        %8596 = vmatprep.subr.mxu0 0.0
        %8597 = vmatpush1.msra.mxu0 0.0
        %8598 = vmatprep.subr.mxu0 0.0
        %8599 = vmatpush1.msra.mxu0 0.0
        %8600 = vmatprep.subr.mxu0 0.0
        %8601 = vmatpush1.msra.mxu0 0.0
        %8602 = vmatprep.subr.mxu0 0.0
        %8603 = vmatpush1.msra.mxu0 0.0
        %8604 = vmatprep.subr.mxu0 0.0
        %8605 = vmatpush1.msra.mxu0 0.0
        %8606 = vmatprep.subr.mxu0 0.0
        %8607 = vmatpush1.msra.mxu0 0.0
        %8608 = vmatprep.subr.mxu0 0.0
        %8609 = vmatpush1.msra.mxu0 0.0
        %8610 = vmatprep.subr.mxu0 0.0
        %8611 = vmatpush1.msra.mxu0 0.0
        %8612 = vmatprep.subr.mxu0 0.0
        %8613 = vmatpush1.msra.mxu0 0.0
        %8614 = vmatprep.subr.mxu0 0.0
        %8615 = vmatpush1.msra.mxu0 0.0
        %8616 = vmatprep.subr.mxu0 0.0
        %8617 = vmatpush1.msra.mxu0 0.0
        %8618 = vmatprep.subr.mxu0 0.0
        %8619 = vmatpush1.msra.mxu0 0.0
        %8620 = vmatprep.subr.mxu0 0.0
        %8621 = vmatpush1.msra.mxu0 0.0
        %8622 = vmatprep.subr.mxu0 0.0
        %8623 = vmatpush1.msra.mxu0 0.0
        %8624 = vmatprep.subr.mxu0 0.0
        %8625 = vmatpush1.msra.mxu0 0.0
        %8626 = vmatprep.subr.mxu0 0.0
        %8627 = vmatpush1.msra.mxu0 0.0
        %8628 = vmatprep.subr.mxu0 0.0
        %8629 = vmatpush1.msra.mxu0 0.0
        %8630 = vmatprep.subr.mxu0 0.0
        %8631 = vmatpush1.msra.mxu0 0.0
        %8632 = vmatprep.subr.mxu0 0.0
        %8633 = vmatpush1.msra.mxu0 0.0
        %8634 = vmatprep.subr.mxu0 0.0
        %8635 = vmatpush1.msra.mxu0 0.0
        %8636 = vmatprep.subr.mxu0 0.0
        %8637 = vmatpush1.msra.mxu0 0.0
        %8638 = vmatprep.subr.mxu0 0.0
        %8639 = vmatpush1.msra.mxu0 0.0
        %8640 = vmatprep.subr.mxu0 0.0
        %8641 = vmatpush1.msra.mxu0 0.0
        %8642 = vmatprep.subr.mxu0 0.0
        %8643 = vmatpush1.msra.mxu0 0.0
        %8644 = vmatprep.subr.mxu0 0.0
        %8645 = vmatpush1.msra.mxu0 0.0
        %8646 = vmatprep.subr.mxu0 0.0
        %8647 = vmatpush1.msra.mxu0 0.0
        %8648 = vmatprep.subr.mxu0 0.0
        %8649 = vmatpush1.msra.mxu0 0.0
        %8650 = vmatprep.mubr.f32.mxu0 0.0
        %v8651 = vand.u32 %v8357, 4294901760
        %v8652 = vsub.f32 %v8357, %v8651
        %v8653 = vand.u32 %v8652, 4294901760
        %8654 = vmatmul.mubr.f32.gmra.mrb[0].mxu0 %v8653
        %v8655 = vpop.f32.mrb[0].mxu0
        %v8656 = vadd.f32 %v8582, %v8655
        %v8657 = vpop.f32.mrb[0].mxu0
        %8658 = vdwg.mxu0
        %8659 = vmatprep.subr.mxu0 0.0
        %v8660 = vand.u32 %v7838, 4294901760
        %v8661 = vsub.f32 %v7838, %v8660
        %v8662 = vand.u32 %v8661, 4294901760
        %8663 = vmatpush1.msra.mxu0 %v8662
        %8664 = vmatprep.subr.mxu0 0.0
        %8665 = vmatpush1.msra.mxu0 0.0
        %8666 = vmatprep.subr.mxu0 0.0
        %8667 = vmatpush1.msra.mxu0 0.0
        %8668 = vmatprep.subr.mxu0 0.0
        %8669 = vmatpush1.msra.mxu0 0.0
        %8670 = vmatprep.subr.mxu0 0.0
        %8671 = vmatpush1.msra.mxu0 0.0
        %8672 = vmatprep.subr.mxu0 0.0
        %8673 = vmatpush1.msra.mxu0 0.0
        %8674 = vmatprep.subr.mxu0 0.0
        %8675 = vmatpush1.msra.mxu0 0.0
        %8676 = vmatprep.subr.mxu0 0.0
        %8677 = vmatpush1.msra.mxu0 0.0
        %8678 = vmatprep.subr.mxu0 0.0
        %8679 = vmatpush1.msra.mxu0 0.0
        %8680 = vmatprep.subr.mxu0 0.0
        %8681 = vmatpush1.msra.mxu0 0.0
        %8682 = vmatprep.subr.mxu0 0.0
        %8683 = vmatpush1.msra.mxu0 0.0
        %8684 = vmatprep.subr.mxu0 0.0
        %8685 = vmatpush1.msra.mxu0 0.0
        %8686 = vmatprep.subr.mxu0 0.0
        %8687 = vmatpush1.msra.mxu0 0.0
        %8688 = vmatprep.subr.mxu0 0.0
        %8689 = vmatpush1.msra.mxu0 0.0
        %8690 = vmatprep.subr.mxu0 0.0
        %8691 = vmatpush1.msra.mxu0 0.0
        %8692 = vmatprep.subr.mxu0 0.0
        %8693 = vmatpush1.msra.mxu0 0.0
        %8694 = vmatprep.subr.mxu0 0.0
        %8695 = vmatpush1.msra.mxu0 0.0
        %8696 = vmatprep.subr.mxu0 0.0
        %8697 = vmatpush1.msra.mxu0 0.0
        %8698 = vmatprep.subr.mxu0 0.0
        %8699 = vmatpush1.msra.mxu0 0.0
        %8700 = vmatprep.subr.mxu0 0.0
        %8701 = vmatpush1.msra.mxu0 0.0
        %8702 = vmatprep.subr.mxu0 0.0
        %8703 = vmatpush1.msra.mxu0 0.0
        %8704 = vmatprep.subr.mxu0 0.0
        %8705 = vmatpush1.msra.mxu0 0.0
        %8706 = vmatprep.subr.mxu0 0.0
        %8707 = vmatpush1.msra.mxu0 0.0
        %8708 = vmatprep.subr.mxu0 0.0
        %8709 = vmatpush1.msra.mxu0 0.0
        %8710 = vmatprep.subr.mxu0 0.0
        %8711 = vmatpush1.msra.mxu0 0.0
        %8712 = vmatprep.subr.mxu0 0.0
        %8713 = vmatpush1.msra.mxu0 0.0
        %8714 = vmatprep.subr.mxu0 0.0
        %8715 = vmatpush1.msra.mxu0 0.0
        %8716 = vmatprep.subr.mxu0 0.0
        %8717 = vmatpush1.msra.mxu0 0.0
        %8718 = vmatprep.subr.mxu0 0.0
        %8719 = vmatpush1.msra.mxu0 0.0
        %8720 = vmatprep.subr.mxu0 0.0
        %8721 = vmatpush1.msra.mxu0 0.0
        %8722 = vmatprep.subr.mxu0 0.0
        %8723 = vmatpush1.msra.mxu0 0.0
        %8724 = vmatprep.subr.mxu0 0.0
        %8725 = vmatpush1.msra.mxu0 0.0
        %8726 = vmatprep.mubr.f32.mxu0 0.0
        %v8727 = vand.u32 %v8357, 4294901760
        %8728 = vmatmul.mubr.f32.gmra.mrb[0].mxu0 %v8727
        %v8729 = vpop.f32.mrb[0].mxu0
        %v8730 = vadd.f32 %v8656, %v8729
        %v8731 = vpop.f32.mrb[0].mxu0
        %8732 = vdwg.mxu0
        %8733 = vmatprep.subr.mxu0 0.0
        %v8734 = vand.u32 %v7838, 4294901760
        %8735 = vmatpush1.msra.mxu0 %v8734
        %8736 = vmatprep.subr.mxu0 0.0
        %8737 = vmatpush1.msra.mxu0 0.0
        %8738 = vmatprep.subr.mxu0 0.0
        %8739 = vmatpush1.msra.mxu0 0.0
        %8740 = vmatprep.subr.mxu0 0.0
        %8741 = vmatpush1.msra.mxu0 0.0
        %8742 = vmatprep.subr.mxu0 0.0
        %8743 = vmatpush1.msra.mxu0 0.0
        %8744 = vmatprep.subr.mxu0 0.0
        %8745 = vmatpush1.msra.mxu0 0.0
        %8746 = vmatprep.subr.mxu0 0.0
        %8747 = vmatpush1.msra.mxu0 0.0
        %8748 = vmatprep.subr.mxu0 0.0
        %8749 = vmatpush1.msra.mxu0 0.0
        %8750 = vmatprep.subr.mxu0 0.0
        %8751 = vmatpush1.msra.mxu0 0.0
        %8752 = vmatprep.subr.mxu0 0.0
        %8753 = vmatpush1.msra.mxu0 0.0
        %8754 = vmatprep.subr.mxu0 0.0
        %8755 = vmatpush1.msra.mxu0 0.0
        %8756 = vmatprep.subr.mxu0 0.0
        %8757 = vmatpush1.msra.mxu0 0.0
        %8758 = vmatprep.subr.mxu0 0.0
        %8759 = vmatpush1.msra.mxu0 0.0
        %8760 = vmatprep.subr.mxu0 0.0
        %8761 = vmatpush1.msra.mxu0 0.0
        %8762 = vmatprep.subr.mxu0 0.0
        %8763 = vmatpush1.msra.mxu0 0.0
        %8764 = vmatprep.subr.mxu0 0.0
        %8765 = vmatpush1.msra.mxu0 0.0
        %8766 = vmatprep.subr.mxu0 0.0
        %8767 = vmatpush1.msra.mxu0 0.0
        %8768 = vmatprep.subr.mxu0 0.0
        %8769 = vmatpush1.msra.mxu0 0.0
        %8770 = vmatprep.subr.mxu0 0.0
        %8771 = vmatpush1.msra.mxu0 0.0
        %8772 = vmatprep.subr.mxu0 0.0
        %8773 = vmatpush1.msra.mxu0 0.0
        %8774 = vmatprep.subr.mxu0 0.0
        %8775 = vmatpush1.msra.mxu0 0.0
        %8776 = vmatprep.subr.mxu0 0.0
        %8777 = vmatpush1.msra.mxu0 0.0
        %8778 = vmatprep.subr.mxu0 0.0
        %8779 = vmatpush1.msra.mxu0 0.0
        %8780 = vmatprep.subr.mxu0 0.0
        %8781 = vmatpush1.msra.mxu0 0.0
        %8782 = vmatprep.subr.mxu0 0.0
        %8783 = vmatpush1.msra.mxu0 0.0
        %8784 = vmatprep.subr.mxu0 0.0
        %8785 = vmatpush1.msra.mxu0 0.0
        %8786 = vmatprep.subr.mxu0 0.0
        %8787 = vmatpush1.msra.mxu0 0.0
        %8788 = vmatprep.subr.mxu0 0.0
        %8789 = vmatpush1.msra.mxu0 0.0
        %8790 = vmatprep.subr.mxu0 0.0
        %8791 = vmatpush1.msra.mxu0 0.0
        %8792 = vmatprep.subr.mxu0 0.0
        %8793 = vmatpush1.msra.mxu0 0.0
        %8794 = vmatprep.subr.mxu0 0.0
        %8795 = vmatpush1.msra.mxu0 0.0
        %8796 = vmatprep.subr.mxu0 0.0
        %8797 = vmatpush1.msra.mxu0 0.0
        %8798 = vmatprep.mubr.f32.mxu0 0.0
        %v8799 = vand.u32 %v8357, 4294901760
        %8800 = vmatmul.mubr.f32.gmra.mrb[0].mxu0 %v8799
        %v8801 = vpop.f32.mrb[0].mxu0
        %v8802 = vadd.f32 %v8730, %v8801
        %v8803 = vpop.f32.mrb[0].mxu0
        %8804 = vdwg.mxu0
        %v8805 = vsel %vm7904, 1e+30, %v7895
        %v8806 = vsel %vm896, %v8805, inf
        %8807 = vmin.xlane.f32.xlu0 %v8806
        %v8808 = vpop.xlane.xlu0 %8807
        %vm8809 = vcmp.le.f32.partialorder %v8805, %v8808
        %v8810 = vsel %vm8809, %v399, 1e+30
        %v8811 = vsel %vm896, %v8810, inf
        %8812 = vmin.xlane.f32.xlu0 %v8811
        %v8813 = vpop.xlane.xlu0 %8812
        %vm8814 = vcmp.eq.f32.partialorder %v399, %v8813
        %v8815 = vsel %vm8814, 1, 0
        %v8816 = vcvt.s32.f32 %v8815
        %v8818 = vsel %vm896, %v8816, 0
        %8820 = vmatprep.subr.mxu0 0.0
        %v8821 = vand.u32 %v7879, 4294901760
        %8822 = vmatpush1.msra.mxu0 %v8821
        %8823 = vmatprep.subr.mxu0 0.0
        %8824 = vmatpush1.msra.mxu0 0.0
        %8825 = vmatprep.subr.mxu0 0.0
        %8826 = vmatpush1.msra.mxu0 0.0
        %8827 = vmatprep.subr.mxu0 0.0
        %8828 = vmatpush1.msra.mxu0 0.0
        %8829 = vmatprep.subr.mxu0 0.0
        %8830 = vmatpush1.msra.mxu0 0.0
        %8831 = vmatprep.subr.mxu0 0.0
        %8832 = vmatpush1.msra.mxu0 0.0
        %8833 = vmatprep.subr.mxu0 0.0
        %8834 = vmatpush1.msra.mxu0 0.0
        %8835 = vmatprep.subr.mxu0 0.0
        %8836 = vmatpush1.msra.mxu0 0.0
        %8837 = vmatprep.subr.mxu0 0.0
        %8838 = vmatpush1.msra.mxu0 0.0
        %8839 = vmatprep.subr.mxu0 0.0
        %8840 = vmatpush1.msra.mxu0 0.0
        %8841 = vmatprep.subr.mxu0 0.0
        %8842 = vmatpush1.msra.mxu0 0.0
        %8843 = vmatprep.subr.mxu0 0.0
        %8844 = vmatpush1.msra.mxu0 0.0
        %8845 = vmatprep.subr.mxu0 0.0
        %8846 = vmatpush1.msra.mxu0 0.0
        %8847 = vmatprep.subr.mxu0 0.0
        %8848 = vmatpush1.msra.mxu0 0.0
        %8849 = vmatprep.subr.mxu0 0.0
        %8850 = vmatpush1.msra.mxu0 0.0
        %8851 = vmatprep.subr.mxu0 0.0
        %8852 = vmatpush1.msra.mxu0 0.0
        %8853 = vmatprep.subr.mxu0 0.0
        %8854 = vmatpush1.msra.mxu0 0.0
        %8855 = vmatprep.subr.mxu0 0.0
        %8856 = vmatpush1.msra.mxu0 0.0
        %8857 = vmatprep.subr.mxu0 0.0
        %8858 = vmatpush1.msra.mxu0 0.0
        %8859 = vmatprep.subr.mxu0 0.0
        %8860 = vmatpush1.msra.mxu0 0.0
        %8861 = vmatprep.subr.mxu0 0.0
        %8862 = vmatpush1.msra.mxu0 0.0
        %8863 = vmatprep.subr.mxu0 0.0
        %8864 = vmatpush1.msra.mxu0 0.0
        %8865 = vmatprep.subr.mxu0 0.0
        %8866 = vmatpush1.msra.mxu0 0.0
        %8867 = vmatprep.subr.mxu0 0.0
        %8868 = vmatpush1.msra.mxu0 0.0
        %8869 = vmatprep.subr.mxu0 0.0
        %8870 = vmatpush1.msra.mxu0 0.0
        %8871 = vmatprep.subr.mxu0 0.0
        %8872 = vmatpush1.msra.mxu0 0.0
        %8873 = vmatprep.subr.mxu0 0.0
        %8874 = vmatpush1.msra.mxu0 0.0
        %8875 = vmatprep.subr.mxu0 0.0
        %8876 = vmatpush1.msra.mxu0 0.0
        %8877 = vmatprep.subr.mxu0 0.0
        %8878 = vmatpush1.msra.mxu0 0.0
        %8879 = vmatprep.subr.mxu0 0.0
        %8880 = vmatpush1.msra.mxu0 0.0
        %8881 = vmatprep.subr.mxu0 0.0
        %8882 = vmatpush1.msra.mxu0 0.0
        %8883 = vmatprep.subr.mxu0 0.0
        %8884 = vmatpush1.msra.mxu0 0.0
        %8885 = vmatprep.mubr.f32.mxu0 0.0
        %v8886 = vand.u32 %v8818, 4294901760
        %v8887 = vsub.f32 %v8818, %v8886
        %v8888 = vand.u32 %v8887, 4294901760
        %v8889 = vsub.f32 %v8887, %v8888
        %v8890 = vand.u32 %v8889, 4294901760
        %8891 = vmatmul.mubr.f32.gmra.mrb[0].mxu0 %v8890
        %v8892 = vpop.f32.mrb[0].mxu0
        %v8893 = vadd.f32 0.0, %v8892
        %v8894 = vpop.f32.mrb[0].mxu0
        %8895 = vdwg.mxu0
        %8896 = vmatprep.subr.mxu0 0.0
        %v8897 = vand.u32 %v7879, 4294901760
        %v8898 = vsub.f32 %v7879, %v8897
        %v8899 = vand.u32 %v8898, 4294901760
        %v8900 = vsub.f32 %v8898, %v8899
        %v8901 = vand.u32 %v8900, 4294901760
        %8902 = vmatpush1.msra.mxu0 %v8901
        %8903 = vmatprep.subr.mxu0 0.0
        %8904 = vmatpush1.msra.mxu0 0.0
        %8905 = vmatprep.subr.mxu0 0.0
        %8906 = vmatpush1.msra.mxu0 0.0
        %8907 = vmatprep.subr.mxu0 0.0
        %8908 = vmatpush1.msra.mxu0 0.0
        %8909 = vmatprep.subr.mxu0 0.0
        %8910 = vmatpush1.msra.mxu0 0.0
        %8911 = vmatprep.subr.mxu0 0.0
        %8912 = vmatpush1.msra.mxu0 0.0
        %8913 = vmatprep.subr.mxu0 0.0
        %8914 = vmatpush1.msra.mxu0 0.0
        %8915 = vmatprep.subr.mxu0 0.0
        %8916 = vmatpush1.msra.mxu0 0.0
        %8917 = vmatprep.subr.mxu0 0.0
        %8918 = vmatpush1.msra.mxu0 0.0
        %8919 = vmatprep.subr.mxu0 0.0
        %8920 = vmatpush1.msra.mxu0 0.0
        %8921 = vmatprep.subr.mxu0 0.0
        %8922 = vmatpush1.msra.mxu0 0.0
        %8923 = vmatprep.subr.mxu0 0.0
        %8924 = vmatpush1.msra.mxu0 0.0
        %8925 = vmatprep.subr.mxu0 0.0
        %8926 = vmatpush1.msra.mxu0 0.0
        %8927 = vmatprep.subr.mxu0 0.0
        %8928 = vmatpush1.msra.mxu0 0.0
        %8929 = vmatprep.subr.mxu0 0.0
        %8930 = vmatpush1.msra.mxu0 0.0
        %8931 = vmatprep.subr.mxu0 0.0
        %8932 = vmatpush1.msra.mxu0 0.0
        %8933 = vmatprep.subr.mxu0 0.0
        %8934 = vmatpush1.msra.mxu0 0.0
        %8935 = vmatprep.subr.mxu0 0.0
        %8936 = vmatpush1.msra.mxu0 0.0
        %8937 = vmatprep.subr.mxu0 0.0
        %8938 = vmatpush1.msra.mxu0 0.0
        %8939 = vmatprep.subr.mxu0 0.0
        %8940 = vmatpush1.msra.mxu0 0.0
        %8941 = vmatprep.subr.mxu0 0.0
        %8942 = vmatpush1.msra.mxu0 0.0
        %8943 = vmatprep.subr.mxu0 0.0
        %8944 = vmatpush1.msra.mxu0 0.0
        %8945 = vmatprep.subr.mxu0 0.0
        %8946 = vmatpush1.msra.mxu0 0.0
        %8947 = vmatprep.subr.mxu0 0.0
        %8948 = vmatpush1.msra.mxu0 0.0
        %8949 = vmatprep.subr.mxu0 0.0
        %8950 = vmatpush1.msra.mxu0 0.0
        %8951 = vmatprep.subr.mxu0 0.0
        %8952 = vmatpush1.msra.mxu0 0.0
        %8953 = vmatprep.subr.mxu0 0.0
        %8954 = vmatpush1.msra.mxu0 0.0
        %8955 = vmatprep.subr.mxu0 0.0
        %8956 = vmatpush1.msra.mxu0 0.0
        %8957 = vmatprep.subr.mxu0 0.0
        %8958 = vmatpush1.msra.mxu0 0.0
        %8959 = vmatprep.subr.mxu0 0.0
        %8960 = vmatpush1.msra.mxu0 0.0
        %8961 = vmatprep.subr.mxu0 0.0
        %8962 = vmatpush1.msra.mxu0 0.0
        %8963 = vmatprep.subr.mxu0 0.0
        %8964 = vmatpush1.msra.mxu0 0.0
        %8965 = vmatprep.mubr.f32.mxu0 0.0
        %v8966 = vand.u32 %v8818, 4294901760
        %8967 = vmatmul.mubr.f32.gmra.mrb[0].mxu0 %v8966
        %v8968 = vpop.f32.mrb[0].mxu0
        %v8969 = vadd.f32 %v8893, %v8968
        %v8970 = vpop.f32.mrb[0].mxu0
        %8971 = vdwg.mxu0
        %8972 = vmatprep.subr.mxu0 0.0
        %v8973 = vand.u32 %v7879, 4294901760
        %v8974 = vsub.f32 %v7879, %v8973
        %8975 = vmatpush1.msra.mxu0 %v8974
        %8976 = vmatprep.subr.mxu0 0.0
        %8977 = vmatpush1.msra.mxu0 0.0
        %8978 = vmatprep.subr.mxu0 0.0
        %8979 = vmatpush1.msra.mxu0 0.0
        %8980 = vmatprep.subr.mxu0 0.0
        %8981 = vmatpush1.msra.mxu0 0.0
        %8982 = vmatprep.subr.mxu0 0.0
        %8983 = vmatpush1.msra.mxu0 0.0
        %8984 = vmatprep.subr.mxu0 0.0
        %8985 = vmatpush1.msra.mxu0 0.0
        %8986 = vmatprep.subr.mxu0 0.0
        %8987 = vmatpush1.msra.mxu0 0.0
        %8988 = vmatprep.subr.mxu0 0.0
        %8989 = vmatpush1.msra.mxu0 0.0
        %8990 = vmatprep.subr.mxu0 0.0
        %8991 = vmatpush1.msra.mxu0 0.0
        %8992 = vmatprep.subr.mxu0 0.0
        %8993 = vmatpush1.msra.mxu0 0.0
        %8994 = vmatprep.subr.mxu0 0.0
        %8995 = vmatpush1.msra.mxu0 0.0
        %8996 = vmatprep.subr.mxu0 0.0
        %8997 = vmatpush1.msra.mxu0 0.0
        %8998 = vmatprep.subr.mxu0 0.0
        %8999 = vmatpush1.msra.mxu0 0.0
        %9000 = vmatprep.subr.mxu0 0.0
        %9001 = vmatpush1.msra.mxu0 0.0
        %9002 = vmatprep.subr.mxu0 0.0
        %9003 = vmatpush1.msra.mxu0 0.0
        %9004 = vmatprep.subr.mxu0 0.0
        %9005 = vmatpush1.msra.mxu0 0.0
        %9006 = vmatprep.subr.mxu0 0.0
        %9007 = vmatpush1.msra.mxu0 0.0
        %9008 = vmatprep.subr.mxu0 0.0
        %9009 = vmatpush1.msra.mxu0 0.0
        %9010 = vmatprep.subr.mxu0 0.0
        %9011 = vmatpush1.msra.mxu0 0.0
        %9012 = vmatprep.subr.mxu0 0.0
        %9013 = vmatpush1.msra.mxu0 0.0
        %9014 = vmatprep.subr.mxu0 0.0
        %9015 = vmatpush1.msra.mxu0 0.0
        %9016 = vmatprep.subr.mxu0 0.0
        %9017 = vmatpush1.msra.mxu0 0.0
        %9018 = vmatprep.subr.mxu0 0.0
        %9019 = vmatpush1.msra.mxu0 0.0
        %9020 = vmatprep.subr.mxu0 0.0
        %9021 = vmatpush1.msra.mxu0 0.0
        %9022 = vmatprep.subr.mxu0 0.0
        %9023 = vmatpush1.msra.mxu0 0.0
        %9024 = vmatprep.subr.mxu0 0.0
        %9025 = vmatpush1.msra.mxu0 0.0
        %9026 = vmatprep.subr.mxu0 0.0
        %9027 = vmatpush1.msra.mxu0 0.0
        %9028 = vmatprep.subr.mxu0 0.0
        %9029 = vmatpush1.msra.mxu0 0.0
        %9030 = vmatprep.subr.mxu0 0.0
        %9031 = vmatpush1.msra.mxu0 0.0
        %9032 = vmatprep.subr.mxu0 0.0
        %9033 = vmatpush1.msra.mxu0 0.0
        %9034 = vmatprep.subr.mxu0 0.0
        %9035 = vmatpush1.msra.mxu0 0.0
        %9036 = vmatprep.subr.mxu0 0.0
        %9037 = vmatpush1.msra.mxu0 0.0
        %9038 = vmatprep.mubr.f32.mxu0 0.0
        %v9039 = vand.u32 %v8818, 4294901760
        %v9040 = vsub.f32 %v8818, %v9039
        %9041 = vmatmul.mubr.f32.gmra.mrb[0].mxu0 %v9040
        %v9042 = vpop.f32.mrb[0].mxu0
        %v9043 = vadd.f32 %v8969, %v9042
        %v9044 = vpop.f32.mrb[0].mxu0
        %9045 = vdwg.mxu0
        %9046 = vmatprep.subr.mxu0 0.0
        %v9047 = vand.u32 %v7879, 4294901760
        %9048 = vmatpush1.msra.mxu0 %v9047
        %9049 = vmatprep.subr.mxu0 0.0
        %9050 = vmatpush1.msra.mxu0 0.0
        %9051 = vmatprep.subr.mxu0 0.0
        %9052 = vmatpush1.msra.mxu0 0.0
        %9053 = vmatprep.subr.mxu0 0.0
        %9054 = vmatpush1.msra.mxu0 0.0
        %9055 = vmatprep.subr.mxu0 0.0
        %9056 = vmatpush1.msra.mxu0 0.0
        %9057 = vmatprep.subr.mxu0 0.0
        %9058 = vmatpush1.msra.mxu0 0.0
        %9059 = vmatprep.subr.mxu0 0.0
        %9060 = vmatpush1.msra.mxu0 0.0
        %9061 = vmatprep.subr.mxu0 0.0
        %9062 = vmatpush1.msra.mxu0 0.0
        %9063 = vmatprep.subr.mxu0 0.0
        %9064 = vmatpush1.msra.mxu0 0.0
        %9065 = vmatprep.subr.mxu0 0.0
        %9066 = vmatpush1.msra.mxu0 0.0
        %9067 = vmatprep.subr.mxu0 0.0
        %9068 = vmatpush1.msra.mxu0 0.0
        %9069 = vmatprep.subr.mxu0 0.0
        %9070 = vmatpush1.msra.mxu0 0.0
        %9071 = vmatprep.subr.mxu0 0.0
        %9072 = vmatpush1.msra.mxu0 0.0
        %9073 = vmatprep.subr.mxu0 0.0
        %9074 = vmatpush1.msra.mxu0 0.0
        %9075 = vmatprep.subr.mxu0 0.0
        %9076 = vmatpush1.msra.mxu0 0.0
        %9077 = vmatprep.subr.mxu0 0.0
        %9078 = vmatpush1.msra.mxu0 0.0
        %9079 = vmatprep.subr.mxu0 0.0
        %9080 = vmatpush1.msra.mxu0 0.0
        %9081 = vmatprep.subr.mxu0 0.0
        %9082 = vmatpush1.msra.mxu0 0.0
        %9083 = vmatprep.subr.mxu0 0.0
        %9084 = vmatpush1.msra.mxu0 0.0
        %9085 = vmatprep.subr.mxu0 0.0
        %9086 = vmatpush1.msra.mxu0 0.0
        %9087 = vmatprep.subr.mxu0 0.0
        %9088 = vmatpush1.msra.mxu0 0.0
        %9089 = vmatprep.subr.mxu0 0.0
        %9090 = vmatpush1.msra.mxu0 0.0
        %9091 = vmatprep.subr.mxu0 0.0
        %9092 = vmatpush1.msra.mxu0 0.0
        %9093 = vmatprep.subr.mxu0 0.0
        %9094 = vmatpush1.msra.mxu0 0.0
        %9095 = vmatprep.subr.mxu0 0.0
        %9096 = vmatpush1.msra.mxu0 0.0
        %9097 = vmatprep.subr.mxu0 0.0
        %9098 = vmatpush1.msra.mxu0 0.0
        %9099 = vmatprep.subr.mxu0 0.0
        %9100 = vmatpush1.msra.mxu0 0.0
        %9101 = vmatprep.subr.mxu0 0.0
        %9102 = vmatpush1.msra.mxu0 0.0
        %9103 = vmatprep.subr.mxu0 0.0
        %9104 = vmatpush1.msra.mxu0 0.0
        %9105 = vmatprep.subr.mxu0 0.0
        %9106 = vmatpush1.msra.mxu0 0.0
        %9107 = vmatprep.subr.mxu0 0.0
        %9108 = vmatpush1.msra.mxu0 0.0
        %9109 = vmatprep.subr.mxu0 0.0
        %9110 = vmatpush1.msra.mxu0 0.0
        %9111 = vmatprep.mubr.f32.mxu0 0.0
        %v9112 = vand.u32 %v8818, 4294901760
        %v9113 = vsub.f32 %v8818, %v9112
        %v9114 = vand.u32 %v9113, 4294901760
        %9115 = vmatmul.mubr.f32.gmra.mrb[0].mxu0 %v9114
        %v9116 = vpop.f32.mrb[0].mxu0
        %v9117 = vadd.f32 %v9043, %v9116
        %v9118 = vpop.f32.mrb[0].mxu0
        %9119 = vdwg.mxu0
        %9120 = vmatprep.subr.mxu0 0.0
        %v9121 = vand.u32 %v7879, 4294901760
        %v9122 = vsub.f32 %v7879, %v9121
        %v9123 = vand.u32 %v9122, 4294901760
        %9124 = vmatpush1.msra.mxu0 %v9123
        %9125 = vmatprep.subr.mxu0 0.0
        %9126 = vmatpush1.msra.mxu0 0.0
        %9127 = vmatprep.subr.mxu0 0.0
        %9128 = vmatpush1.msra.mxu0 0.0
        %9129 = vmatprep.subr.mxu0 0.0
        %9130 = vmatpush1.msra.mxu0 0.0
        %9131 = vmatprep.subr.mxu0 0.0
        %9132 = vmatpush1.msra.mxu0 0.0
        %9133 = vmatprep.subr.mxu0 0.0
        %9134 = vmatpush1.msra.mxu0 0.0
        %9135 = vmatprep.subr.mxu0 0.0
        %9136 = vmatpush1.msra.mxu0 0.0
        %9137 = vmatprep.subr.mxu0 0.0
        %9138 = vmatpush1.msra.mxu0 0.0
        %9139 = vmatprep.subr.mxu0 0.0
        %9140 = vmatpush1.msra.mxu0 0.0
        %9141 = vmatprep.subr.mxu0 0.0
        %9142 = vmatpush1.msra.mxu0 0.0
        %9143 = vmatprep.subr.mxu0 0.0
        %9144 = vmatpush1.msra.mxu0 0.0
        %9145 = vmatprep.subr.mxu0 0.0
        %9146 = vmatpush1.msra.mxu0 0.0
        %9147 = vmatprep.subr.mxu0 0.0
        %9148 = vmatpush1.msra.mxu0 0.0
        %9149 = vmatprep.subr.mxu0 0.0
        %9150 = vmatpush1.msra.mxu0 0.0
        %9151 = vmatprep.subr.mxu0 0.0
        %9152 = vmatpush1.msra.mxu0 0.0
        %9153 = vmatprep.subr.mxu0 0.0
        %9154 = vmatpush1.msra.mxu0 0.0
        %9155 = vmatprep.subr.mxu0 0.0
        %9156 = vmatpush1.msra.mxu0 0.0
        %9157 = vmatprep.subr.mxu0 0.0
        %9158 = vmatpush1.msra.mxu0 0.0
        %9159 = vmatprep.subr.mxu0 0.0
        %9160 = vmatpush1.msra.mxu0 0.0
        %9161 = vmatprep.subr.mxu0 0.0
        %9162 = vmatpush1.msra.mxu0 0.0
        %9163 = vmatprep.subr.mxu0 0.0
        %9164 = vmatpush1.msra.mxu0 0.0
        %9165 = vmatprep.subr.mxu0 0.0
        %9166 = vmatpush1.msra.mxu0 0.0
        %9167 = vmatprep.subr.mxu0 0.0
        %9168 = vmatpush1.msra.mxu0 0.0
        %9169 = vmatprep.subr.mxu0 0.0
        %9170 = vmatpush1.msra.mxu0 0.0
        %9171 = vmatprep.subr.mxu0 0.0
        %9172 = vmatpush1.msra.mxu0 0.0
        %9173 = vmatprep.subr.mxu0 0.0
        %9174 = vmatpush1.msra.mxu0 0.0
        %9175 = vmatprep.subr.mxu0 0.0
        %9176 = vmatpush1.msra.mxu0 0.0
        %9177 = vmatprep.subr.mxu0 0.0
        %9178 = vmatpush1.msra.mxu0 0.0
        %9179 = vmatprep.subr.mxu0 0.0
        %9180 = vmatpush1.msra.mxu0 0.0
        %9181 = vmatprep.subr.mxu0 0.0
        %9182 = vmatpush1.msra.mxu0 0.0
        %9183 = vmatprep.subr.mxu0 0.0
        %9184 = vmatpush1.msra.mxu0 0.0
        %9185 = vmatprep.subr.mxu0 0.0
        %9186 = vmatpush1.msra.mxu0 0.0
        %9187 = vmatprep.mubr.f32.mxu0 0.0
        %v9188 = vand.u32 %v8818, 4294901760
        %9189 = vmatmul.mubr.f32.gmra.mrb[0].mxu0 %v9188
        %v9190 = vpop.f32.mrb[0].mxu0
        %v9191 = vadd.f32 %v9117, %v9190
        %v9192 = vpop.f32.mrb[0].mxu0
        %9193 = vdwg.mxu0
        %9194 = vmatprep.subr.mxu0 0.0
        %v9195 = vand.u32 %v7879, 4294901760
        %9196 = vmatpush1.msra.mxu0 %v9195
        %9197 = vmatprep.subr.mxu0 0.0
        %9198 = vmatpush1.msra.mxu0 0.0
        %9199 = vmatprep.subr.mxu0 0.0
        %9200 = vmatpush1.msra.mxu0 0.0
        %9201 = vmatprep.subr.mxu0 0.0
        %9202 = vmatpush1.msra.mxu0 0.0
        %9203 = vmatprep.subr.mxu0 0.0
        %9204 = vmatpush1.msra.mxu0 0.0
        %9205 = vmatprep.subr.mxu0 0.0
        %9206 = vmatpush1.msra.mxu0 0.0
        %9207 = vmatprep.subr.mxu0 0.0
        %9208 = vmatpush1.msra.mxu0 0.0
        %9209 = vmatprep.subr.mxu0 0.0
        %9210 = vmatpush1.msra.mxu0 0.0
        %9211 = vmatprep.subr.mxu0 0.0
        %9212 = vmatpush1.msra.mxu0 0.0
        %9213 = vmatprep.subr.mxu0 0.0
        %9214 = vmatpush1.msra.mxu0 0.0
        %9215 = vmatprep.subr.mxu0 0.0
        %9216 = vmatpush1.msra.mxu0 0.0
        %9217 = vmatprep.subr.mxu0 0.0
        %9218 = vmatpush1.msra.mxu0 0.0
        %9219 = vmatprep.subr.mxu0 0.0
        %9220 = vmatpush1.msra.mxu0 0.0
        %9221 = vmatprep.subr.mxu0 0.0
        %9222 = vmatpush1.msra.mxu0 0.0
        %9223 = vmatprep.subr.mxu0 0.0
        %9224 = vmatpush1.msra.mxu0 0.0
        %9225 = vmatprep.subr.mxu0 0.0
        %9226 = vmatpush1.msra.mxu0 0.0
        %9227 = vmatprep.subr.mxu0 0.0
        %9228 = vmatpush1.msra.mxu0 0.0
        %9229 = vmatprep.subr.mxu0 0.0
        %9230 = vmatpush1.msra.mxu0 0.0
        %9231 = vmatprep.subr.mxu0 0.0
        %9232 = vmatpush1.msra.mxu0 0.0
        %9233 = vmatprep.subr.mxu0 0.0
        %9234 = vmatpush1.msra.mxu0 0.0
        %9235 = vmatprep.subr.mxu0 0.0
        %9236 = vmatpush1.msra.mxu0 0.0
        %9237 = vmatprep.subr.mxu0 0.0
        %9238 = vmatpush1.msra.mxu0 0.0
        %9239 = vmatprep.subr.mxu0 0.0
        %9240 = vmatpush1.msra.mxu0 0.0
        %9241 = vmatprep.subr.mxu0 0.0
        %9242 = vmatpush1.msra.mxu0 0.0
        %9243 = vmatprep.subr.mxu0 0.0
        %9244 = vmatpush1.msra.mxu0 0.0
        %9245 = vmatprep.subr.mxu0 0.0
        %9246 = vmatpush1.msra.mxu0 0.0
        %9247 = vmatprep.subr.mxu0 0.0
        %9248 = vmatpush1.msra.mxu0 0.0
        %9249 = vmatprep.subr.mxu0 0.0
        %9250 = vmatpush1.msra.mxu0 0.0
        %9251 = vmatprep.subr.mxu0 0.0
        %9252 = vmatpush1.msra.mxu0 0.0
        %9253 = vmatprep.subr.mxu0 0.0
        %9254 = vmatpush1.msra.mxu0 0.0
        %9255 = vmatprep.subr.mxu0 0.0
        %9256 = vmatpush1.msra.mxu0 0.0
        %9257 = vmatprep.subr.mxu0 0.0
        %9258 = vmatpush1.msra.mxu0 0.0
        %9259 = vmatprep.mubr.f32.mxu0 0.0
        %v9260 = vand.u32 %v8818, 4294901760
        %9261 = vmatmul.mubr.f32.gmra.mrb[0].mxu0 %v9260
        %v9262 = vpop.f32.mrb[0].mxu0
        %v9263 = vadd.f32 %v9191, %v9262
        %v9264 = vpop.f32.mrb[0].mxu0
        %9265 = vdwg.mxu0
        %v9266 = vadd.f32 %v8802, %v9263
        %v9267 = vld [vmem:[%s6] sm:$0x1]
        %v9269 = vlaneseq
        %v9270 = vshrl.u32 %v9269, 7
        %v9271 = vsub.s32 0, %v9270
        %v9272 = vrot.slane %v9267, %v9271
        %v9274 = vadd.f32 %v9266, %v9272
        %v9275 = vmax.f32 %v9274, 0.0
        %v9276 = vld [vmem:[%s8] sm:$0x1]
        %v9277 = vpack.c.bf16 %v9275, %v9275
        %v9278 = vld [vmem:[#allocation8] sm:$0xf]
        %v9279 = vld [vmem:[#allocation8 + $0x4] sm:$0xf]
        %v9280 = vld [vmem:[#allocation8 + $0x8] sm:$0xf]
        %v9281 = vld [vmem:[#allocation8 + $0xc] sm:$0xf]
        %v9282 = vld [vmem:[#allocation8 + $0x10] sm:$0xf]
        %v9283 = vld [vmem:[#allocation8 + $0x14] sm:$0xf]
        %v9284 = vld [vmem:[#allocation8 + $0x18] sm:$0xf]
        %v9285 = vld [vmem:[#allocation8 + $0x1c] sm:$0xf]
        %v9286 = vld [vmem:[#allocation8 + $0x20] sm:$0xf]
        %v9287 = vld [vmem:[#allocation8 + $0x24] sm:$0xf]
        %v9288 = vld [vmem:[#allocation8 + $0x28] sm:$0xf]
        %v9289 = vld [vmem:[#allocation8 + $0x2c] sm:$0xf]
        %v9290 = vld [vmem:[#allocation8 + $0x30] sm:$0xf]
        %v9291 = vld [vmem:[#allocation8 + $0x34] sm:$0xf]
        %v9292 = vld [vmem:[#allocation8 + $0x38] sm:$0xf]
        %v9293 = vld [vmem:[#allocation8 + $0x3c] sm:$0xf]
        %v9310 = vunpack.c.l.b16 %v9278
        %v9311 = vunpack.c.l.b16 %v9279
        %v9312 = vunpack.c.l.b16 %v9280
        %v9313 = vunpack.c.l.b16 %v9281
        %v9314 = vunpack.c.l.b16 %v9282
        %v9315 = vunpack.c.l.b16 %v9283
        %v9316 = vunpack.c.l.b16 %v9284
        %v9317 = vunpack.c.l.b16 %v9285
        %v9318 = vunpack.c.l.b16 %v9286
        %v9319 = vunpack.c.l.b16 %v9287
        %v9320 = vunpack.c.l.b16 %v9288
        %v9321 = vunpack.c.l.b16 %v9289
        %v9322 = vunpack.c.l.b16 %v9290
        %v9323 = vunpack.c.l.b16 %v9291
        %v9324 = vunpack.c.l.b16 %v9292
        %v9325 = vunpack.c.l.b16 %v9293
        %v9326 = vpack.c.b16 %v9311, %v9310
        %v9327 = vpack.c.b16 %v9313, %v9312
        %v9328 = vpack.c.b16 %v9315, %v9314
        %v9329 = vpack.c.b16 %v9317, %v9316
        %v9330 = vpack.c.b16 %v9319, %v9318
        %v9331 = vpack.c.b16 %v9321, %v9320
        %v9332 = vpack.c.b16 %v9323, %v9322
        %v9333 = vpack.c.b16 %v9325, %v9324
        %9342 = vmatprep.subr.bf16.mxu0 0
        %9343 = vmatpush1.bf16.msra.mxu0 %v9326
        %9344 = vmatprep.subr.bf16.mxu0 0
        %9345 = vmatpush1.bf16.msra.mxu0 %v9327
        %9346 = vmatprep.subr.bf16.mxu0 0
        %9347 = vmatpush1.bf16.msra.mxu0 %v9328
        %9348 = vmatprep.subr.bf16.mxu0 0
        %9349 = vmatpush1.bf16.msra.mxu0 %v9329
        %9350 = vmatprep.subr.bf16.mxu0 0
        %9351 = vmatpush1.bf16.msra.mxu0 %v9330
        %9352 = vmatprep.subr.bf16.mxu0 0
        %9353 = vmatpush1.bf16.msra.mxu0 %v9331
        %9354 = vmatprep.subr.bf16.mxu0 0
        %9355 = vmatpush1.bf16.msra.mxu0 %v9332
        %9356 = vmatprep.subr.bf16.mxu0 0
        %9357 = vmatpush1.bf16.msra.mxu0 %v9333
        %9358 = vmatprep.subr.bf16.mxu0 0
        %9359 = vmatpush1.bf16.msra.mxu0 0
        %9360 = vmatprep.subr.bf16.mxu0 0
        %9361 = vmatpush1.bf16.msra.mxu0 0
        %9362 = vmatprep.subr.bf16.mxu0 0
        %9363 = vmatpush1.bf16.msra.mxu0 0
        %9364 = vmatprep.subr.bf16.mxu0 0
        %9365 = vmatpush1.bf16.msra.mxu0 0
        %9366 = vmatprep.subr.bf16.mxu0 0
        %9367 = vmatpush1.bf16.msra.mxu0 0
        %9368 = vmatprep.subr.bf16.mxu0 0
        %9369 = vmatpush1.bf16.msra.mxu0 0
        %9370 = vmatprep.subr.bf16.mxu0 0
        %9371 = vmatpush1.bf16.msra.mxu0 0
        %9372 = vmatprep.subr.bf16.mxu0 0
        %9373 = vmatpush1.bf16.msra.mxu0 0
        %9374 = vmatprep.mubr.bf16.mxu0 0
        %9375 = vmatmul.mubr.bf16.gmra.mrb[0].mxu0 %v9277
        %v9376 = vpop.f32.mrb[0].mxu0
        %v9377 = vadd.f32 0.0, %v9376
        %v9378 = vpop.f32.mrb[0].mxu0
        %v9379 = vpop.f32.mrb[0].mxu0
        %v9380 = vpop.f32.mrb[0].mxu0
        %9381 = vdwg.mxu0
        %v9382 = vadd.f32 %v9276, %v9377
        %s9383 = scalar_lea.vmem [#allocation8], 64
        %v9384 = vld [vmem:[%s9383] sm:$0xf]
        %v9385 = vld [vmem:[%s9383 + $0x4] sm:$0xf]
        %v9386 = vld [vmem:[%s9383 + $0x8] sm:$0xf]
        %v9387 = vld [vmem:[%s9383 + $0xc] sm:$0xf]
        %v9388 = vld [vmem:[%s9383 + $0x10] sm:$0xf]
        %v9389 = vld [vmem:[%s9383 + $0x14] sm:$0xf]
        %v9390 = vld [vmem:[%s9383 + $0x18] sm:$0xf]
        %v9391 = vld [vmem:[%s9383 + $0x1c] sm:$0xf]
        %v9392 = vld [vmem:[%s9383 + $0x20] sm:$0xf]
        %v9393 = vld [vmem:[%s9383 + $0x24] sm:$0xf]
        %v9394 = vld [vmem:[%s9383 + $0x28] sm:$0xf]
        %v9395 = vld [vmem:[%s9383 + $0x2c] sm:$0xf]
        %v9396 = vld [vmem:[%s9383 + $0x30] sm:$0xf]
        %v9397 = vld [vmem:[%s9383 + $0x34] sm:$0xf]
        %v9398 = vld [vmem:[%s9383 + $0x38] sm:$0xf]
        %v9399 = vld [vmem:[%s9383 + $0x3c] sm:$0xf]
        %v9401 = vshrl.u32 %v9277, 16
        %v9420 = vunpack.c.l.b16 %v9384
        %v9421 = vunpack.c.l.b16 %v9385
        %v9422 = vunpack.c.l.b16 %v9386
        %v9423 = vunpack.c.l.b16 %v9387
        %v9424 = vunpack.c.l.b16 %v9388
        %v9425 = vunpack.c.l.b16 %v9389
        %v9426 = vunpack.c.l.b16 %v9390
        %v9427 = vunpack.c.l.b16 %v9391
        %v9428 = vunpack.c.l.b16 %v9392
        %v9429 = vunpack.c.l.b16 %v9393
        %v9430 = vunpack.c.l.b16 %v9394
        %v9431 = vunpack.c.l.b16 %v9395
        %v9432 = vunpack.c.l.b16 %v9396
        %v9433 = vunpack.c.l.b16 %v9397
        %v9434 = vunpack.c.l.b16 %v9398
        %v9435 = vunpack.c.l.b16 %v9399
        %v9436 = vpack.c.b16 %v9421, %v9420
        %v9437 = vpack.c.b16 %v9423, %v9422
        %v9438 = vpack.c.b16 %v9425, %v9424
        %v9439 = vpack.c.b16 %v9427, %v9426
        %v9440 = vpack.c.b16 %v9429, %v9428
        %v9441 = vpack.c.b16 %v9431, %v9430
        %v9442 = vpack.c.b16 %v9433, %v9432
        %v9443 = vpack.c.b16 %v9435, %v9434
        %9452 = vmatprep.subr.bf16.mxu0 0
        %9453 = vmatpush1.bf16.msra.mxu0 %v9436
        %9454 = vmatprep.subr.bf16.mxu0 0
        %9455 = vmatpush1.bf16.msra.mxu0 %v9437
        %9456 = vmatprep.subr.bf16.mxu0 0
        %9457 = vmatpush1.bf16.msra.mxu0 %v9438
        %9458 = vmatprep.subr.bf16.mxu0 0
        %9459 = vmatpush1.bf16.msra.mxu0 %v9439
        %9460 = vmatprep.subr.bf16.mxu0 0
        %9461 = vmatpush1.bf16.msra.mxu0 %v9440
        %9462 = vmatprep.subr.bf16.mxu0 0
        %9463 = vmatpush1.bf16.msra.mxu0 %v9441
        %9464 = vmatprep.subr.bf16.mxu0 0
        %9465 = vmatpush1.bf16.msra.mxu0 %v9442
        %9466 = vmatprep.subr.bf16.mxu0 0
        %9467 = vmatpush1.bf16.msra.mxu0 %v9443
        %9468 = vmatprep.subr.bf16.mxu0 0
        %9469 = vmatpush1.bf16.msra.mxu0 0
        %9470 = vmatprep.subr.bf16.mxu0 0
        %9471 = vmatpush1.bf16.msra.mxu0 0
        %9472 = vmatprep.subr.bf16.mxu0 0
        %9473 = vmatpush1.bf16.msra.mxu0 0
        %9474 = vmatprep.subr.bf16.mxu0 0
        %9475 = vmatpush1.bf16.msra.mxu0 0
        %9476 = vmatprep.subr.bf16.mxu0 0
        %9477 = vmatpush1.bf16.msra.mxu0 0
        %9478 = vmatprep.subr.bf16.mxu0 0
        %9479 = vmatpush1.bf16.msra.mxu0 0
        %9480 = vmatprep.subr.bf16.mxu0 0
        %9481 = vmatpush1.bf16.msra.mxu0 0
        %9482 = vmatprep.subr.bf16.mxu0 0
        %9483 = vmatpush1.bf16.msra.mxu0 0
        %9484 = vmatprep.mubr.bf16.mxu0 0
        %9485 = vmatmul.mubr.bf16.gmra.mrb[0].mxu0 %v9401
        %v9486 = vpop.f32.mrb[0].mxu0
        %v9487 = vadd.f32 0.0, %v9486
        %v9488 = vpop.f32.mrb[0].mxu0
        %v9489 = vpop.f32.mrb[0].mxu0
        %v9490 = vpop.f32.mrb[0].mxu0
        %9491 = vdwg.mxu0
        %v9492 = vadd.f32 %v9382, %v9487
        %s9493 = scalar_lea.vmem [#allocation8], 128
        %v9494 = vld [vmem:[%s9493] sm:$0xf]
        %v9495 = vld [vmem:[%s9493 + $0x4] sm:$0xf]
        %v9496 = vld [vmem:[%s9493 + $0x8] sm:$0xf]
        %v9497 = vld [vmem:[%s9493 + $0xc] sm:$0xf]
        %v9498 = vld [vmem:[%s9493 + $0x10] sm:$0xf]
        %v9499 = vld [vmem:[%s9493 + $0x14] sm:$0xf]
        %v9500 = vld [vmem:[%s9493 + $0x18] sm:$0xf]
        %v9501 = vld [vmem:[%s9493 + $0x1c] sm:$0xf]
        %v9502 = vld [vmem:[%s9493 + $0x20] sm:$0xf]
        %v9503 = vld [vmem:[%s9493 + $0x24] sm:$0xf]
        %v9504 = vld [vmem:[%s9493 + $0x28] sm:$0xf]
        %v9505 = vld [vmem:[%s9493 + $0x2c] sm:$0xf]
        %v9506 = vld [vmem:[%s9493 + $0x30] sm:$0xf]
        %v9507 = vld [vmem:[%s9493 + $0x34] sm:$0xf]
        %v9508 = vld [vmem:[%s9493 + $0x38] sm:$0xf]
        %v9509 = vld [vmem:[%s9493 + $0x3c] sm:$0xf]
        %v9511 = vrot.slane %v9277, 1
        %v9529 = vunpack.c.l.b16 %v9494
        %v9530 = vunpack.c.l.b16 %v9495
        %v9531 = vunpack.c.l.b16 %v9496
        %v9532 = vunpack.c.l.b16 %v9497
        %v9533 = vunpack.c.l.b16 %v9498
        %v9534 = vunpack.c.l.b16 %v9499
        %v9535 = vunpack.c.l.b16 %v9500
        %v9536 = vunpack.c.l.b16 %v9501
        %v9537 = vunpack.c.l.b16 %v9502
        %v9538 = vunpack.c.l.b16 %v9503
        %v9539 = vunpack.c.l.b16 %v9504
        %v9540 = vunpack.c.l.b16 %v9505
        %v9541 = vunpack.c.l.b16 %v9506
        %v9542 = vunpack.c.l.b16 %v9507
        %v9543 = vunpack.c.l.b16 %v9508
        %v9544 = vunpack.c.l.b16 %v9509
        %v9545 = vpack.c.b16 %v9530, %v9529
        %v9546 = vpack.c.b16 %v9532, %v9531
        %v9547 = vpack.c.b16 %v9534, %v9533
        %v9548 = vpack.c.b16 %v9536, %v9535
        %v9549 = vpack.c.b16 %v9538, %v9537
        %v9550 = vpack.c.b16 %v9540, %v9539
        %v9551 = vpack.c.b16 %v9542, %v9541
        %v9552 = vpack.c.b16 %v9544, %v9543
        %9561 = vmatprep.subr.bf16.mxu0 0
        %9562 = vmatpush1.bf16.msra.mxu0 %v9545
        %9563 = vmatprep.subr.bf16.mxu0 0
        %9564 = vmatpush1.bf16.msra.mxu0 %v9546
        %9565 = vmatprep.subr.bf16.mxu0 0
        %9566 = vmatpush1.bf16.msra.mxu0 %v9547
        %9567 = vmatprep.subr.bf16.mxu0 0
        %9568 = vmatpush1.bf16.msra.mxu0 %v9548
        %9569 = vmatprep.subr.bf16.mxu0 0
        %9570 = vmatpush1.bf16.msra.mxu0 %v9549
        %9571 = vmatprep.subr.bf16.mxu0 0
        %9572 = vmatpush1.bf16.msra.mxu0 %v9550
        %9573 = vmatprep.subr.bf16.mxu0 0
        %9574 = vmatpush1.bf16.msra.mxu0 %v9551
        %9575 = vmatprep.subr.bf16.mxu0 0
        %9576 = vmatpush1.bf16.msra.mxu0 %v9552
        %9577 = vmatprep.subr.bf16.mxu0 0
        %9578 = vmatpush1.bf16.msra.mxu0 0
        %9579 = vmatprep.subr.bf16.mxu0 0
        %9580 = vmatpush1.bf16.msra.mxu0 0
        %9581 = vmatprep.subr.bf16.mxu0 0
        %9582 = vmatpush1.bf16.msra.mxu0 0
        %9583 = vmatprep.subr.bf16.mxu0 0
        %9584 = vmatpush1.bf16.msra.mxu0 0
        %9585 = vmatprep.subr.bf16.mxu0 0
        %9586 = vmatpush1.bf16.msra.mxu0 0
        %9587 = vmatprep.subr.bf16.mxu0 0
        %9588 = vmatpush1.bf16.msra.mxu0 0
        %9589 = vmatprep.subr.bf16.mxu0 0
        %9590 = vmatpush1.bf16.msra.mxu0 0
        %9591 = vmatprep.subr.bf16.mxu0 0
        %9592 = vmatpush1.bf16.msra.mxu0 0
        %9593 = vmatprep.mubr.bf16.mxu0 0
        %9594 = vmatmul.mubr.bf16.gmra.mrb[0].mxu0 %v9511
        %v9595 = vpop.f32.mrb[0].mxu0
        %v9596 = vadd.f32 0.0, %v9595
        %v9597 = vpop.f32.mrb[0].mxu0
        %v9598 = vpop.f32.mrb[0].mxu0
        %v9599 = vpop.f32.mrb[0].mxu0
        %9600 = vdwg.mxu0
        %v9601 = vadd.f32 %v9492, %v9596
        %s9602 = scalar_lea.vmem [#allocation8], 192
        %v9603 = vld [vmem:[%s9602] sm:$0xf]
        %v9604 = vld [vmem:[%s9602 + $0x4] sm:$0xf]
        %v9605 = vld [vmem:[%s9602 + $0x8] sm:$0xf]
        %v9606 = vld [vmem:[%s9602 + $0xc] sm:$0xf]
        %v9607 = vld [vmem:[%s9602 + $0x10] sm:$0xf]
        %v9608 = vld [vmem:[%s9602 + $0x14] sm:$0xf]
        %v9609 = vld [vmem:[%s9602 + $0x18] sm:$0xf]
        %v9610 = vld [vmem:[%s9602 + $0x1c] sm:$0xf]
        %v9611 = vld [vmem:[%s9602 + $0x20] sm:$0xf]
        %v9612 = vld [vmem:[%s9602 + $0x24] sm:$0xf]
        %v9613 = vld [vmem:[%s9602 + $0x28] sm:$0xf]
        %v9614 = vld [vmem:[%s9602 + $0x2c] sm:$0xf]
        %v9615 = vld [vmem:[%s9602 + $0x30] sm:$0xf]
        %v9616 = vld [vmem:[%s9602 + $0x34] sm:$0xf]
        %v9617 = vld [vmem:[%s9602 + $0x38] sm:$0xf]
        %v9618 = vld [vmem:[%s9602 + $0x3c] sm:$0xf]
        %v9619 = vrot.slane %v9401, 1
        %v9637 = vunpack.c.l.b16 %v9603
        %v9638 = vunpack.c.l.b16 %v9604
        %v9639 = vunpack.c.l.b16 %v9605
        %v9640 = vunpack.c.l.b16 %v9606
        %v9641 = vunpack.c.l.b16 %v9607
        %v9642 = vunpack.c.l.b16 %v9608
        %v9643 = vunpack.c.l.b16 %v9609
        %v9644 = vunpack.c.l.b16 %v9610
        %v9645 = vunpack.c.l.b16 %v9611
        %v9646 = vunpack.c.l.b16 %v9612
        %v9647 = vunpack.c.l.b16 %v9613
        %v9648 = vunpack.c.l.b16 %v9614
        %v9649 = vunpack.c.l.b16 %v9615
        %v9650 = vunpack.c.l.b16 %v9616
        %v9651 = vunpack.c.l.b16 %v9617
        %v9652 = vunpack.c.l.b16 %v9618
        %v9653 = vpack.c.b16 %v9638, %v9637
        %v9654 = vpack.c.b16 %v9640, %v9639
        %v9655 = vpack.c.b16 %v9642, %v9641
        %v9656 = vpack.c.b16 %v9644, %v9643
        %v9657 = vpack.c.b16 %v9646, %v9645
        %v9658 = vpack.c.b16 %v9648, %v9647
        %v9659 = vpack.c.b16 %v9650, %v9649
        %v9660 = vpack.c.b16 %v9652, %v9651
        %9669 = vmatprep.subr.bf16.mxu0 0
        %9670 = vmatpush1.bf16.msra.mxu0 %v9653
        %9671 = vmatprep.subr.bf16.mxu0 0
        %9672 = vmatpush1.bf16.msra.mxu0 %v9654
        %9673 = vmatprep.subr.bf16.mxu0 0
        %9674 = vmatpush1.bf16.msra.mxu0 %v9655
        %9675 = vmatprep.subr.bf16.mxu0 0
        %9676 = vmatpush1.bf16.msra.mxu0 %v9656
        %9677 = vmatprep.subr.bf16.mxu0 0
        %9678 = vmatpush1.bf16.msra.mxu0 %v9657
        %9679 = vmatprep.subr.bf16.mxu0 0
        %9680 = vmatpush1.bf16.msra.mxu0 %v9658
        %9681 = vmatprep.subr.bf16.mxu0 0
        %9682 = vmatpush1.bf16.msra.mxu0 %v9659
        %9683 = vmatprep.subr.bf16.mxu0 0
        %9684 = vmatpush1.bf16.msra.mxu0 %v9660
        %9685 = vmatprep.subr.bf16.mxu0 0
        %9686 = vmatpush1.bf16.msra.mxu0 0
        %9687 = vmatprep.subr.bf16.mxu0 0
        %9688 = vmatpush1.bf16.msra.mxu0 0
        %9689 = vmatprep.subr.bf16.mxu0 0
        %9690 = vmatpush1.bf16.msra.mxu0 0
        %9691 = vmatprep.subr.bf16.mxu0 0
        %9692 = vmatpush1.bf16.msra.mxu0 0
        %9693 = vmatprep.subr.bf16.mxu0 0
        %9694 = vmatpush1.bf16.msra.mxu0 0
        %9695 = vmatprep.subr.bf16.mxu0 0
        %9696 = vmatpush1.bf16.msra.mxu0 0
        %9697 = vmatprep.subr.bf16.mxu0 0
        %9698 = vmatpush1.bf16.msra.mxu0 0
        %9699 = vmatprep.subr.bf16.mxu0 0
        %9700 = vmatpush1.bf16.msra.mxu0 0
        %9701 = vmatprep.mubr.bf16.mxu0 0
        %9702 = vmatmul.mubr.bf16.gmra.mrb[0].mxu0 %v9619
        %v9703 = vpop.f32.mrb[0].mxu0
        %v9704 = vadd.f32 0.0, %v9703
        %v9705 = vpop.f32.mrb[0].mxu0
        %v9706 = vpop.f32.mrb[0].mxu0
        %v9707 = vpop.f32.mrb[0].mxu0
        %9708 = vdwg.mxu0
        %v9709 = vadd.f32 %v9601, %v9704
        %s9710 = scalar_lea.vmem [#allocation8], 256
        %v9711 = vld [vmem:[%s9710] sm:$0xf]
        %v9712 = vld [vmem:[%s9710 + $0x4] sm:$0xf]
        %v9713 = vld [vmem:[%s9710 + $0x8] sm:$0xf]
        %v9714 = vld [vmem:[%s9710 + $0xc] sm:$0xf]
        %v9715 = vld [vmem:[%s9710 + $0x10] sm:$0xf]
        %v9716 = vld [vmem:[%s9710 + $0x14] sm:$0xf]
        %v9717 = vld [vmem:[%s9710 + $0x18] sm:$0xf]
        %v9718 = vld [vmem:[%s9710 + $0x1c] sm:$0xf]
        %v9719 = vld [vmem:[%s9710 + $0x20] sm:$0xf]
        %v9720 = vld [vmem:[%s9710 + $0x24] sm:$0xf]
        %v9721 = vld [vmem:[%s9710 + $0x28] sm:$0xf]
        %v9722 = vld [vmem:[%s9710 + $0x2c] sm:$0xf]
        %v9723 = vld [vmem:[%s9710 + $0x30] sm:$0xf]
        %v9724 = vld [vmem:[%s9710 + $0x34] sm:$0xf]
        %v9725 = vld [vmem:[%s9710 + $0x38] sm:$0xf]
        %v9726 = vld [vmem:[%s9710 + $0x3c] sm:$0xf]
        %v9727 = vrot.slane %v9277, 2
        %v9745 = vunpack.c.l.b16 %v9711
        %v9746 = vunpack.c.l.b16 %v9712
        %v9747 = vunpack.c.l.b16 %v9713
        %v9748 = vunpack.c.l.b16 %v9714
        %v9749 = vunpack.c.l.b16 %v9715
        %v9750 = vunpack.c.l.b16 %v9716
        %v9751 = vunpack.c.l.b16 %v9717
        %v9752 = vunpack.c.l.b16 %v9718
        %v9753 = vunpack.c.l.b16 %v9719
        %v9754 = vunpack.c.l.b16 %v9720
        %v9755 = vunpack.c.l.b16 %v9721
        %v9756 = vunpack.c.l.b16 %v9722
        %v9757 = vunpack.c.l.b16 %v9723
        %v9758 = vunpack.c.l.b16 %v9724
        %v9759 = vunpack.c.l.b16 %v9725
        %v9760 = vunpack.c.l.b16 %v9726
        %v9761 = vpack.c.b16 %v9746, %v9745
        %v9762 = vpack.c.b16 %v9748, %v9747
        %v9763 = vpack.c.b16 %v9750, %v9749
        %v9764 = vpack.c.b16 %v9752, %v9751
        %v9765 = vpack.c.b16 %v9754, %v9753
        %v9766 = vpack.c.b16 %v9756, %v9755
        %v9767 = vpack.c.b16 %v9758, %v9757
        %v9768 = vpack.c.b16 %v9760, %v9759
        %9777 = vmatprep.subr.bf16.mxu0 0
        %9778 = vmatpush1.bf16.msra.mxu0 %v9761
        %9779 = vmatprep.subr.bf16.mxu0 0
        %9780 = vmatpush1.bf16.msra.mxu0 %v9762
        %9781 = vmatprep.subr.bf16.mxu0 0
        %9782 = vmatpush1.bf16.msra.mxu0 %v9763
        %9783 = vmatprep.subr.bf16.mxu0 0
        %9784 = vmatpush1.bf16.msra.mxu0 %v9764
        %9785 = vmatprep.subr.bf16.mxu0 0
        %9786 = vmatpush1.bf16.msra.mxu0 %v9765
        %9787 = vmatprep.subr.bf16.mxu0 0
        %9788 = vmatpush1.bf16.msra.mxu0 %v9766
        %9789 = vmatprep.subr.bf16.mxu0 0
        %9790 = vmatpush1.bf16.msra.mxu0 %v9767
        %9791 = vmatprep.subr.bf16.mxu0 0
        %9792 = vmatpush1.bf16.msra.mxu0 %v9768
        %9793 = vmatprep.subr.bf16.mxu0 0
        %9794 = vmatpush1.bf16.msra.mxu0 0
        %9795 = vmatprep.subr.bf16.mxu0 0
        %9796 = vmatpush1.bf16.msra.mxu0 0
        %9797 = vmatprep.subr.bf16.mxu0 0
        %9798 = vmatpush1.bf16.msra.mxu0 0
        %9799 = vmatprep.subr.bf16.mxu0 0
        %9800 = vmatpush1.bf16.msra.mxu0 0
        %9801 = vmatprep.subr.bf16.mxu0 0
        %9802 = vmatpush1.bf16.msra.mxu0 0
        %9803 = vmatprep.subr.bf16.mxu0 0
        %9804 = vmatpush1.bf16.msra.mxu0 0
        %9805 = vmatprep.subr.bf16.mxu0 0
        %9806 = vmatpush1.bf16.msra.mxu0 0
        %9807 = vmatprep.subr.bf16.mxu0 0
        %9808 = vmatpush1.bf16.msra.mxu0 0
        %9809 = vmatprep.mubr.bf16.mxu0 0
        %9810 = vmatmul.mubr.bf16.gmra.mrb[0].mxu0 %v9727
        %v9811 = vpop.f32.mrb[0].mxu0
        %v9812 = vadd.f32 0.0, %v9811
        %v9813 = vpop.f32.mrb[0].mxu0
        %v9814 = vpop.f32.mrb[0].mxu0
        %v9815 = vpop.f32.mrb[0].mxu0
        %9816 = vdwg.mxu0
        %v9817 = vadd.f32 %v9709, %v9812
        %s9818 = scalar_lea.vmem [#allocation8], 320
        %v9819 = vld [vmem:[%s9818] sm:$0xf]
        %v9820 = vld [vmem:[%s9818 + $0x4] sm:$0xf]
        %v9821 = vld [vmem:[%s9818 + $0x8] sm:$0xf]
        %v9822 = vld [vmem:[%s9818 + $0xc] sm:$0xf]
        %v9823 = vld [vmem:[%s9818 + $0x10] sm:$0xf]
        %v9824 = vld [vmem:[%s9818 + $0x14] sm:$0xf]
        %v9825 = vld [vmem:[%s9818 + $0x18] sm:$0xf]
        %v9826 = vld [vmem:[%s9818 + $0x1c] sm:$0xf]
        %v9827 = vld [vmem:[%s9818 + $0x20] sm:$0xf]
        %v9828 = vld [vmem:[%s9818 + $0x24] sm:$0xf]
        %v9829 = vld [vmem:[%s9818 + $0x28] sm:$0xf]
        %v9830 = vld [vmem:[%s9818 + $0x2c] sm:$0xf]
        %v9831 = vld [vmem:[%s9818 + $0x30] sm:$0xf]
        %v9832 = vld [vmem:[%s9818 + $0x34] sm:$0xf]
        %v9833 = vld [vmem:[%s9818 + $0x38] sm:$0xf]
        %v9834 = vld [vmem:[%s9818 + $0x3c] sm:$0xf]
        %v9835 = vrot.slane %v9401, 2
        %v9853 = vunpack.c.l.b16 %v9819
        %v9854 = vunpack.c.l.b16 %v9820
        %v9855 = vunpack.c.l.b16 %v9821
        %v9856 = vunpack.c.l.b16 %v9822
        %v9857 = vunpack.c.l.b16 %v9823
        %v9858 = vunpack.c.l.b16 %v9824
        %v9859 = vunpack.c.l.b16 %v9825
        %v9860 = vunpack.c.l.b16 %v9826
        %v9861 = vunpack.c.l.b16 %v9827
        %v9862 = vunpack.c.l.b16 %v9828
        %v9863 = vunpack.c.l.b16 %v9829
        %v9864 = vunpack.c.l.b16 %v9830
        %v9865 = vunpack.c.l.b16 %v9831
        %v9866 = vunpack.c.l.b16 %v9832
        %v9867 = vunpack.c.l.b16 %v9833
        %v9868 = vunpack.c.l.b16 %v9834
        %v9869 = vpack.c.b16 %v9854, %v9853
        %v9870 = vpack.c.b16 %v9856, %v9855
        %v9871 = vpack.c.b16 %v9858, %v9857
        %v9872 = vpack.c.b16 %v9860, %v9859
        %v9873 = vpack.c.b16 %v9862, %v9861
        %v9874 = vpack.c.b16 %v9864, %v9863
        %v9875 = vpack.c.b16 %v9866, %v9865
        %v9876 = vpack.c.b16 %v9868, %v9867
        %9885 = vmatprep.subr.bf16.mxu0 0
        %9886 = vmatpush1.bf16.msra.mxu0 %v9869
        %9887 = vmatprep.subr.bf16.mxu0 0
        %9888 = vmatpush1.bf16.msra.mxu0 %v9870
        %9889 = vmatprep.subr.bf16.mxu0 0
        %9890 = vmatpush1.bf16.msra.mxu0 %v9871
        %9891 = vmatprep.subr.bf16.mxu0 0
        %9892 = vmatpush1.bf16.msra.mxu0 %v9872
        %9893 = vmatprep.subr.bf16.mxu0 0
        %9894 = vmatpush1.bf16.msra.mxu0 %v9873
        %9895 = vmatprep.subr.bf16.mxu0 0
        %9896 = vmatpush1.bf16.msra.mxu0 %v9874
        %9897 = vmatprep.subr.bf16.mxu0 0
        %9898 = vmatpush1.bf16.msra.mxu0 %v9875
        %9899 = vmatprep.subr.bf16.mxu0 0
        %9900 = vmatpush1.bf16.msra.mxu0 %v9876
        %9901 = vmatprep.subr.bf16.mxu0 0
        %9902 = vmatpush1.bf16.msra.mxu0 0
        %9903 = vmatprep.subr.bf16.mxu0 0
        %9904 = vmatpush1.bf16.msra.mxu0 0
        %9905 = vmatprep.subr.bf16.mxu0 0
        %9906 = vmatpush1.bf16.msra.mxu0 0
        %9907 = vmatprep.subr.bf16.mxu0 0
        %9908 = vmatpush1.bf16.msra.mxu0 0
        %9909 = vmatprep.subr.bf16.mxu0 0
        %9910 = vmatpush1.bf16.msra.mxu0 0
        %9911 = vmatprep.subr.bf16.mxu0 0
        %9912 = vmatpush1.bf16.msra.mxu0 0
        %9913 = vmatprep.subr.bf16.mxu0 0
        %9914 = vmatpush1.bf16.msra.mxu0 0
        %9915 = vmatprep.subr.bf16.mxu0 0
        %9916 = vmatpush1.bf16.msra.mxu0 0
        %9917 = vmatprep.mubr.bf16.mxu0 0
        %9918 = vmatmul.mubr.bf16.gmra.mrb[0].mxu0 %v9835
        %v9919 = vpop.f32.mrb[0].mxu0
        %v9920 = vadd.f32 0.0, %v9919
        %v9921 = vpop.f32.mrb[0].mxu0
        %v9922 = vpop.f32.mrb[0].mxu0
        %v9923 = vpop.f32.mrb[0].mxu0
        %9924 = vdwg.mxu0
        %v9925 = vadd.f32 %v9817, %v9920
        %s9926 = scalar_lea.vmem [#allocation8], 384
        %v9927 = vld [vmem:[%s9926] sm:$0xf]
        %v9928 = vld [vmem:[%s9926 + $0x4] sm:$0xf]
        %v9929 = vld [vmem:[%s9926 + $0x8] sm:$0xf]
        %v9930 = vld [vmem:[%s9926 + $0xc] sm:$0xf]
        %v9931 = vld [vmem:[%s9926 + $0x10] sm:$0xf]
        %v9932 = vld [vmem:[%s9926 + $0x14] sm:$0xf]
        %v9933 = vld [vmem:[%s9926 + $0x18] sm:$0xf]
        %v9934 = vld [vmem:[%s9926 + $0x1c] sm:$0xf]
        %v9935 = vld [vmem:[%s9926 + $0x20] sm:$0xf]
        %v9936 = vld [vmem:[%s9926 + $0x24] sm:$0xf]
        %v9937 = vld [vmem:[%s9926 + $0x28] sm:$0xf]
        %v9938 = vld [vmem:[%s9926 + $0x2c] sm:$0xf]
        %v9939 = vld [vmem:[%s9926 + $0x30] sm:$0xf]
        %v9940 = vld [vmem:[%s9926 + $0x34] sm:$0xf]
        %v9941 = vld [vmem:[%s9926 + $0x38] sm:$0xf]
        %v9942 = vld [vmem:[%s9926 + $0x3c] sm:$0xf]
        %v9943 = vrot.slane %v9277, 3
        %v9961 = vunpack.c.l.b16 %v9927
        %v9962 = vunpack.c.l.b16 %v9928
        %v9963 = vunpack.c.l.b16 %v9929
        %v9964 = vunpack.c.l.b16 %v9930
        %v9965 = vunpack.c.l.b16 %v9931
        %v9966 = vunpack.c.l.b16 %v9932
        %v9967 = vunpack.c.l.b16 %v9933
        %v9968 = vunpack.c.l.b16 %v9934
        %v9969 = vunpack.c.l.b16 %v9935
        %v9970 = vunpack.c.l.b16 %v9936
        %v9971 = vunpack.c.l.b16 %v9937
        %v9972 = vunpack.c.l.b16 %v9938
        %v9973 = vunpack.c.l.b16 %v9939
        %v9974 = vunpack.c.l.b16 %v9940
        %v9975 = vunpack.c.l.b16 %v9941
        %v9976 = vunpack.c.l.b16 %v9942
        %v9977 = vpack.c.b16 %v9962, %v9961
        %v9978 = vpack.c.b16 %v9964, %v9963
        %v9979 = vpack.c.b16 %v9966, %v9965
        %v9980 = vpack.c.b16 %v9968, %v9967
        %v9981 = vpack.c.b16 %v9970, %v9969
        %v9982 = vpack.c.b16 %v9972, %v9971
        %v9983 = vpack.c.b16 %v9974, %v9973
        %v9984 = vpack.c.b16 %v9976, %v9975
        %9993 = vmatprep.subr.bf16.mxu0 0
        %9994 = vmatpush1.bf16.msra.mxu0 %v9977
        %9995 = vmatprep.subr.bf16.mxu0 0
        %9996 = vmatpush1.bf16.msra.mxu0 %v9978
        %9997 = vmatprep.subr.bf16.mxu0 0
        %9998 = vmatpush1.bf16.msra.mxu0 %v9979
        %9999 = vmatprep.subr.bf16.mxu0 0
        %10000 = vmatpush1.bf16.msra.mxu0 %v9980
        %10001 = vmatprep.subr.bf16.mxu0 0
        %10002 = vmatpush1.bf16.msra.mxu0 %v9981
        %10003 = vmatprep.subr.bf16.mxu0 0
        %10004 = vmatpush1.bf16.msra.mxu0 %v9982
        %10005 = vmatprep.subr.bf16.mxu0 0
        %10006 = vmatpush1.bf16.msra.mxu0 %v9983
        %10007 = vmatprep.subr.bf16.mxu0 0
        %10008 = vmatpush1.bf16.msra.mxu0 %v9984
        %10009 = vmatprep.subr.bf16.mxu0 0
        %10010 = vmatpush1.bf16.msra.mxu0 0
        %10011 = vmatprep.subr.bf16.mxu0 0
        %10012 = vmatpush1.bf16.msra.mxu0 0
        %10013 = vmatprep.subr.bf16.mxu0 0
        %10014 = vmatpush1.bf16.msra.mxu0 0
        %10015 = vmatprep.subr.bf16.mxu0 0
        %10016 = vmatpush1.bf16.msra.mxu0 0
        %10017 = vmatprep.subr.bf16.mxu0 0
        %10018 = vmatpush1.bf16.msra.mxu0 0
        %10019 = vmatprep.subr.bf16.mxu0 0
        %10020 = vmatpush1.bf16.msra.mxu0 0
        %10021 = vmatprep.subr.bf16.mxu0 0
        %10022 = vmatpush1.bf16.msra.mxu0 0
        %10023 = vmatprep.subr.bf16.mxu0 0
        %10024 = vmatpush1.bf16.msra.mxu0 0
        %10025 = vmatprep.mubr.bf16.mxu0 0
        %10026 = vmatmul.mubr.bf16.gmra.mrb[0].mxu0 %v9943
        %v10027 = vpop.f32.mrb[0].mxu0
        %v10028 = vadd.f32 0.0, %v10027
        %v10029 = vpop.f32.mrb[0].mxu0
        %v10030 = vpop.f32.mrb[0].mxu0
        %v10031 = vpop.f32.mrb[0].mxu0
        %10032 = vdwg.mxu0
        %v10033 = vadd.f32 %v9925, %v10028
        %s10034 = scalar_lea.vmem [#allocation8], 448
        %v10035 = vld [vmem:[%s10034] sm:$0xf]
        %v10036 = vld [vmem:[%s10034 + $0x4] sm:$0xf]
        %v10037 = vld [vmem:[%s10034 + $0x8] sm:$0xf]
        %v10038 = vld [vmem:[%s10034 + $0xc] sm:$0xf]
        %v10039 = vld [vmem:[%s10034 + $0x10] sm:$0xf]
        %v10040 = vld [vmem:[%s10034 + $0x14] sm:$0xf]
        %v10041 = vld [vmem:[%s10034 + $0x18] sm:$0xf]
        %v10042 = vld [vmem:[%s10034 + $0x1c] sm:$0xf]
        %v10043 = vld [vmem:[%s10034 + $0x20] sm:$0xf]
        %v10044 = vld [vmem:[%s10034 + $0x24] sm:$0xf]
        %v10045 = vld [vmem:[%s10034 + $0x28] sm:$0xf]
        %v10046 = vld [vmem:[%s10034 + $0x2c] sm:$0xf]
        %v10047 = vld [vmem:[%s10034 + $0x30] sm:$0xf]
        %v10048 = vld [vmem:[%s10034 + $0x34] sm:$0xf]
        %v10049 = vld [vmem:[%s10034 + $0x38] sm:$0xf]
        %v10050 = vld [vmem:[%s10034 + $0x3c] sm:$0xf]
        %v10051 = vrot.slane %v9401, 3
        %v10069 = vunpack.c.l.b16 %v10035
        %v10070 = vunpack.c.l.b16 %v10036
        %v10071 = vunpack.c.l.b16 %v10037
        %v10072 = vunpack.c.l.b16 %v10038
        %v10073 = vunpack.c.l.b16 %v10039
        %v10074 = vunpack.c.l.b16 %v10040
        %v10075 = vunpack.c.l.b16 %v10041
        %v10076 = vunpack.c.l.b16 %v10042
        %v10077 = vunpack.c.l.b16 %v10043
        %v10078 = vunpack.c.l.b16 %v10044
        %v10079 = vunpack.c.l.b16 %v10045
        %v10080 = vunpack.c.l.b16 %v10046
        %v10081 = vunpack.c.l.b16 %v10047
        %v10082 = vunpack.c.l.b16 %v10048
        %v10083 = vunpack.c.l.b16 %v10049
        %v10084 = vunpack.c.l.b16 %v10050
        %v10085 = vpack.c.b16 %v10070, %v10069
        %v10086 = vpack.c.b16 %v10072, %v10071
        %v10087 = vpack.c.b16 %v10074, %v10073
        %v10088 = vpack.c.b16 %v10076, %v10075
        %v10089 = vpack.c.b16 %v10078, %v10077
        %v10090 = vpack.c.b16 %v10080, %v10079
        %v10091 = vpack.c.b16 %v10082, %v10081
        %v10092 = vpack.c.b16 %v10084, %v10083
        %10101 = vmatprep.subr.bf16.mxu0 0
        %10102 = vmatpush1.bf16.msra.mxu0 %v10085
        %10103 = vmatprep.subr.bf16.mxu0 0
        %10104 = vmatpush1.bf16.msra.mxu0 %v10086
        %10105 = vmatprep.subr.bf16.mxu0 0
        %10106 = vmatpush1.bf16.msra.mxu0 %v10087
        %10107 = vmatprep.subr.bf16.mxu0 0
        %10108 = vmatpush1.bf16.msra.mxu0 %v10088
        %10109 = vmatprep.subr.bf16.mxu0 0
        %10110 = vmatpush1.bf16.msra.mxu0 %v10089
        %10111 = vmatprep.subr.bf16.mxu0 0
        %10112 = vmatpush1.bf16.msra.mxu0 %v10090
        %10113 = vmatprep.subr.bf16.mxu0 0
        %10114 = vmatpush1.bf16.msra.mxu0 %v10091
        %10115 = vmatprep.subr.bf16.mxu0 0
        %10116 = vmatpush1.bf16.msra.mxu0 %v10092
        %10117 = vmatprep.subr.bf16.mxu0 0
        %10118 = vmatpush1.bf16.msra.mxu0 0
        %10119 = vmatprep.subr.bf16.mxu0 0
        %10120 = vmatpush1.bf16.msra.mxu0 0
        %10121 = vmatprep.subr.bf16.mxu0 0
        %10122 = vmatpush1.bf16.msra.mxu0 0
        %10123 = vmatprep.subr.bf16.mxu0 0
        %10124 = vmatpush1.bf16.msra.mxu0 0
        %10125 = vmatprep.subr.bf16.mxu0 0
        %10126 = vmatpush1.bf16.msra.mxu0 0
        %10127 = vmatprep.subr.bf16.mxu0 0
        %10128 = vmatpush1.bf16.msra.mxu0 0
        %10129 = vmatprep.subr.bf16.mxu0 0
        %10130 = vmatpush1.bf16.msra.mxu0 0
        %10131 = vmatprep.subr.bf16.mxu0 0
        %10132 = vmatpush1.bf16.msra.mxu0 0
        %10133 = vmatprep.mubr.bf16.mxu0 0
        %10134 = vmatmul.mubr.bf16.gmra.mrb[0].mxu0 %v10051
        %v10135 = vpop.f32.mrb[0].mxu0
        %v10136 = vadd.f32 0.0, %v10135
        %v10137 = vpop.f32.mrb[0].mxu0
        %v10138 = vpop.f32.mrb[0].mxu0
        %v10139 = vpop.f32.mrb[0].mxu0
        %10140 = vdwg.mxu0
        %v10141 = vadd.f32 %v10033, %v10136
        %10142 = vst [vmem:[%s381] sm:$0x1] %v10141
        %s10143 = sand.u32 %s228, 1
        %s10144 = scalar_lea.sflag [#allocation4], %s10143
        %s10145 = sand.u32 %s228, 1
        %s10146 = scalar_lea.vmem [#allocation10], %s10145
        // Predicated region
        $region73: #{convbase_nn_forward.1} parent=55 // pred_check
          %p10147 = pneg %p238
        $region74: #{convbase_nn_forward.1} parent=55 // pred_check_branch
          %10149 = sbr.rel (%p10147) target = $region76
        $region75: #{convbase_nn_forward.1} parent=55 // pred_region
          %s10151 = ssub.s32 16, 16
          %10152 = vsyncadd %s10144, %s10151
          %s10153 = smul.addr %s26, 16
          %s10154 = scalar_lea.hbm %s9, %s10153
          %s10156 = sshll.u32 %s10146, 4
          %s10157 = int_to_ptr.vmem [resolvable:$true] %s10156
          %10159 = dma.vmem_to_hbm [thread:$0]  %s10157, 16, %s10154, %s10144
        $region76: #{convbase_nn_forward.1} parent=55 // pred_fallthru
          _
      $region56: #{convbase_nn_forward.1} parent=5 // pred_fallthru
        _
      %p10160 = scmp.le.s32.totalorder 2, %s21
      // Predicated region
      $region77: #{convbase_nn_forward.1} parent=5 // pred_check
        %p10161 = pneg %p10160
      $region78: #{convbase_nn_forward.1} parent=5 // pred_check_branch
        %10163 = sbr.rel (%p10161) target = $region80
      $region79: #{convbase_nn_forward.1} parent=5 // pred_region
        %s10164 = ssub.s32 %s21, 2
        // Predicated region
        $region81: #{convbase_nn_forward.1} parent=79 // pred_check
          %p10165 = pneg %p244
        $region82: #{convbase_nn_forward.1} parent=79 // pred_check_branch
          %10167 = sbr.rel (%p10165) target = $region84
        $region83: #{convbase_nn_forward.1} parent=79 // pred_region
          %s10168 = sand.u32 %s229, 1
          %s10169 = scalar_lea.sflag [#allocation4], %s10168
          %s10170 = sand.u32 %s229, 1
          %s10171 = scalar_lea.vmem [#allocation10], %s10170
          %10172 = dma.done %s10169, 16
        $region84: #{convbase_nn_forward.1} parent=79 // pred_fallthru
          _
      $region80: #{convbase_nn_forward.1} parent=5 // pred_fallthru
        _
    $region6: #{convbase_nn_forward.1} parent=1 // loop_footer
      %s25 = sadd.s32 1, %s21
    $region7: #{convbase_nn_forward.1} parent=1 // loop_footer_branch
      %20 = sbr.rel target = $region3
    $region8: #{convbase_nn_forward.1} parent=1 // loop_exit
      _
    %10173 = vsyncpa [#allocation3], 1
    %s10174 = scalar_lea.sflag [#allocation3], 1
    %10175 = vsyncpa %s10174, 1
    %10176 = vsyncpa [#allocation6], 1
    %10177 = vsyncpa [#allocation9], 1
    %10178 = vsyncpa [#allocation4], 1
    %s10179 = scalar_lea.sflag [#allocation4], 1
    %10180 = vsyncpa %s10179, 1

</llo_original>
